<compile_context>
chip_gen: v7x
topology: tpu7x:2x2x1
jax: 0.10.0
libtpu: 0.0.40
codegen_flags: <defaults>
</compile_context>

<pallas_src>
import functools

import numpy as np
import jax
import jax.numpy as jnp
from jax.experimental import pallas as pl
from jax.experimental.pallas import tpu as pltpu

_NEG_SLOPE = 0.2
_BN_EPS = 1e-5

_CompilerParams = getattr(pltpu, "CompilerParams", None) or getattr(
    pltpu, "TPUCompilerParams"
)

# Layer configs of the PyTorch Decoder: (Cin, Cout, output_padding, has_bn_act)
_CFGS = [
    (240, 240, 1, True),
    (240, 16, 1, True),
    (16, 32, 0, True),
    (32, 32, 1, True),
    (32, 3, 1, False),
]


# ----------------------------------------------------------------------------
# Pallas kernel: one decoder layer for one batch element (fused polyphase GEMM)
# ----------------------------------------------------------------------------
def _decoder_layer_kernel(x_ref, w_ref, b_ref, o_ref, *, apply_act):
    """x_ref: (4*Cin, HWpad)   4 shifted input taps stacked on the K axis
    w_ref: (4*Cout, 4*Cin)  phase-stacked, BN-scaled conv weights
    b_ref: (4*Cout, 1)      folded conv-bias + BN shift (f32)
    o_ref: (4*Cout, HWpad)  phase-stacked layer output
    """
    y = jnp.dot(w_ref[...], x_ref[...], preferred_element_type=jnp.float32)
    y = y + b_ref[...]
    if apply_act:
        y = jnp.maximum(y, _NEG_SLOPE * y)  # LeakyReLU(0.2): single VPU op
    o_ref[...] = y.astype(o_ref.dtype)


def conv_transpose_layer(x, w_fused, b_fused, output_padding, apply_act,
                         compute_dtype):
    """ConvTranspose2d(k=3, s=2, p=1, op) [+ folded BN(eval) + LeakyReLU]."""
    N, Cin, H, W = x.shape
    C4o, C4i = w_fused.shape
    assert C4i == 4 * Cin
    Cout = C4o // 4

    x = x.astype(compute_dtype)
    # One zero row/col at bottom/right supplies the "+1" taps (incl. op=1 edge).
    xp = jnp.pad(x, ((0, 0), (0, 0), (0, 1), (0, 1)))
    # 4 taps (dy, dx) in {0,1}^2, stacked on the channel (K) axis.
    taps = jnp.stack(
        [xp[:, :, dy:dy + H, dx:dx + W] for dy in (0, 1) for dx in (0, 1)],
        axis=1,
    )                                                   # (N, 4, Cin, H, W)
    HW = H * W
    HWpad = ((HW + 127) // 128) * 128                   # lane-dense spatial axis
    taps = taps.reshape(N, C4i, HW)
    if HWpad != HW:
        taps = jnp.pad(taps, ((0, 0), (0, 0), (0, HWpad - HW)))

    out_dtype = compute_dtype if apply_act else jnp.float32

    out = pl.pallas_call(
        functools.partial(_decoder_layer_kernel, apply_act=apply_act),
        out_shape=jax.ShapeDtypeStruct((N, C4o, HWpad), out_dtype),
        grid_spec=pltpu.PrefetchScalarGridSpec(
            num_scalar_prefetch=0,
            grid=(N,),
            in_specs=[
                pl.BlockSpec((None, C4i, HWpad), lambda n: (n, 0, 0)),
                pl.BlockSpec((C4o, C4i), lambda n: (0, 0)),
                pl.BlockSpec((C4o, 1), lambda n: (0, 0)),
            ],
            out_specs=pl.BlockSpec((None, C4o, HWpad), lambda n: (n, 0, 0)),
        ),
        compiler_params=_CompilerParams(dimension_semantics=("parallel",)),
    )(taps, w_fused, b_fused)

    # Un-interleave phases: out[n, p*Cout+co, a*W+b] -> y[n, co, 2a+py, 2b+px]
    out = out[:, :, :HW].reshape(N, 2, 2, Cout, H, W)       # (n, py, px, co, a, b)
    out = out.transpose(0, 3, 4, 1, 5, 2).reshape(N, Cout, 2 * H, 2 * W)
    Ho = 2 * H - 1 + output_padding
    Wo = 2 * W - 1 + output_padding
    return out[:, :, :Ho, :Wo]


# ----------------------------------------------------------------------------
# Parameter preparation (done once, outside the hot path)
# ----------------------------------------------------------------------------
def prepare_layer_params(w_t, b, bn, apply_act, compute_dtype):
    """Build the fused polyphase weight matrix and bias for one layer.

    w_t: (Cin, Cout, 3, 3) PyTorch ConvTranspose2d weight layout.
    """
    Cin, Cout = w_t.shape[0], w_t.shape[1]
    # Conv-equivalent weight of the transposed conv: flip taps, swap channels.
    w_conv = jnp.flip(w_t, axis=(2, 3)).transpose(1, 0, 2, 3)  # (Cout, Cin, 3, 3)
    if apply_act:
        gamma, beta, mean, var = bn
        scale = gamma / jnp.sqrt(var + _BN_EPS)
        bias = (b - mean) * scale + beta
        w_conv = w_conv * scale[:, None, None, None]           # fold BN scale
    else:
        bias = b

    wf = lambda ky, kx: w_conv[:, :, ky, kx]                   # (Cout, Cin)
    z = jnp.zeros((Cout, Cin), w_conv.dtype)
    # rows: output phase (oh%2, ow%2); cols: input tap (dy, dx) in {0,1}^2
    w_fused = jnp.block([
        [wf(1, 1), z,        z,        z       ],   # phase (0, 0)
        [wf(1, 0), wf(1, 2), z,        z       ],   # phase (0, 1)
        [wf(0, 1), z,        wf(2, 1), z       ],   # phase (1, 0)
        [wf(0, 0), wf(0, 2), wf(2, 0), wf(2, 2)],   # phase (1, 1)
    ]).astype(compute_dtype)                                   # (4Cout, 4Cin)
    b_fused = jnp.tile(bias, 4).reshape(4 * Cout, 1).astype(jnp.float32)
    return dict(w=w_fused, b=b_fused)


def prepare_params(raw_layers, compute_dtype):
    return [
        prepare_layer_params(r["w"], r["b"], r["bn"], act, compute_dtype)
        for r, (_, _, _, act) in zip(raw_layers, _CFGS)
    ]


def init_raw_params(key):
    layers = []
    for cin, cout, op, act in _CFGS:
        key, k1, k2, k3, k4 = jax.random.split(key, 5)
        w = 0.05 * jax.random.normal(k1, (cin, cout, 3, 3), jnp.float32)
        b = 0.05 * jax.random.normal(k2, (cout,), jnp.float32)
        if act:
            gamma = 1.0 + 0.1 * jax.random.normal(k3, (cout,), jnp.float32)
            beta = 0.1 * jax.random.normal(k4, (cout,), jnp.float32)
            mean = jnp.zeros((cout,), jnp.float32)
            var = jnp.ones((cout,), jnp.float32)
            bn = (gamma, beta, mean, var)
        else:
            bn = None
        layers.append(dict(w=w, b=b, bn=bn))
    return layers


# ----------------------------------------------------------------------------
# Forward pass
# ----------------------------------------------------------------------------
@functools.partial(jax.jit, static_argnames=("compute_dtype",))
def decoder_forward(x, params, compute_dtype=jnp.bfloat16):
    f = x
    for p, (_, _, op, act) in zip(params, _CFGS):
        f = conv_transpose_layer(f, p["w"], p["b"], op, act, compute_dtype)
    return f


# ---- pure-JAX (XLA) reference for a sanity check ----------------------------
def decoder_reference(x, raw_layers):
    f = x
    for r, (_, _, op, act) in zip(raw_layers, _CFGS):
        w_t, b, bn = r["w"], r["b"], r["bn"]
        w_conv = jnp.flip(w_t, axis=(2, 3)).transpose(1, 0, 2, 3)
        y = jax.lax.conv_general_dilated(
            f, w_conv,
            window_strides=(1, 1),
            padding=((1, 1 + op), (1, 1 + op)),
            lhs_dilation=(2, 2),
            rhs_dilation=(1, 1),
            dimension_numbers=("NCHW", "OIHW", "NCHW"),
        )
        y = y + b.reshape(1, -1, 1, 1)
        if act:
            gamma, beta, mean, var = bn
            y = (y - mean.reshape(1, -1, 1, 1)) / jnp.sqrt(
                var.reshape(1, -1, 1, 1) + _BN_EPS
            ) * gamma.reshape(1, -1, 1, 1) + beta.reshape(1, -1, 1, 1)
            y = jnp.where(y >= 0, y, _NEG_SLOPE * y)
        f = y
    return f


if __name__ == "__main__":
    key = jax.random.PRNGKey(0)
    kx, kp = jax.random.split(key)

    # Shapes consistent with the module: N=2, C=240, 4x4 spatial input.
    x = jax.random.normal(kx, (2, 240, 4, 4), jnp.float32)
    raw = init_raw_params(kp)

    y_ref = np.asarray(decoder_reference(x, raw))

    # f32 path: tight check that the polyphase/phase-interleave structure is exact.
    params_f32 = prepare_params(raw, jnp.float32)
    y32 = jax.block_until_ready(
        decoder_forward(x, params_f32, compute_dtype=jnp.float32))
    assert y32.shape == (2, 3, 124, 124), y32.shape
    np.testing.assert_allclose(np.asarray(y32), y_ref, rtol=2e-3, atol=2e-3)

    # bf16 path (production config): bf16 taps/weights, f32 accumulation.
    params_bf16 = prepare_params(raw, jnp.bfloat16)
    y = jax.block_until_ready(
        decoder_forward(x, params_bf16, compute_dtype=jnp.bfloat16))
    assert y.shape == (2, 3, 124, 124), y.shape
    atol = 5e-2 * float(np.max(np.abs(y_ref)))
    np.testing.assert_allclose(np.asarray(y), y_ref, rtol=1e-1, atol=atol)

    print("KERNEL_OK")
</pallas_src>

<mosaic_0001>
module attributes {stable_mosaic.version = 11 : i64} {
  func.func @_decoder_layer_kernel(%arg0: i32, %arg1: memref<1x960x128xf32, #tpu.memory_space<vmem>>, %arg2: memref<960x960xf32, #tpu.memory_space<vmem>>, %arg3: memref<960x1xf32, #tpu.memory_space<vmem>>, %arg4: memref<1x960x128xf32, #tpu.memory_space<vmem>>) attributes {dimension_semantics = [#tpu.dimension_semantics<parallel>], iteration_bounds = array<i64: 2>, scalar_prefetch = 0 : i64, scratch_operands = 0 : i64, tpu.core_type = #tpu.core_type<tc>, window_params = [{transform_indices = @transform_0, window_bounds = array<i64: 1, 960, 128>}, {pipeline_mode = #tpu.pipeline_mode<synchronous>, transform_indices = @transform_1, window_bounds = array<i64: 960, 960>}, {pipeline_mode = #tpu.pipeline_mode<synchronous>, transform_indices = @transform_2, window_bounds = array<i64: 960, 1>}, {transform_indices = @transform_3, window_bounds = array<i64: 1, 960, 128>}]} {
    %c0 = arith.constant 0 : index
    %c0_0 = arith.constant 0 : index
    %0 = vector.load %arg2[%c0, %c0_0] : memref<960x960xf32, #tpu.memory_space<vmem>>, vector<960x960xf32>
    %c0_1 = arith.constant 0 : index
    %c0_2 = arith.constant 0 : index
    %c0_3 = arith.constant 0 : index
    %1 = vector.load %arg1[%c0_1, %c0_2, %c0_3] : memref<1x960x128xf32, #tpu.memory_space<vmem>>, vector<1x960x128xf32>
    %2 = vector.shape_cast %1 : vector<1x960x128xf32> to vector<960x128xf32>
    %cst = arith.constant dense<0.000000e+00> : vector<960x128xf32>
    %3 = tpu.matmul %0, %2, %cst {dimension_numbers = #tpu.dot_dimension_numbers<[1], [0], [0], [1], [0, 0, 1, 1], [], []>} : vector<960x960xf32>, vector<960x128xf32>, vector<960x128xf32> -> vector<960x128xf32>
    %c0_4 = arith.constant 0 : index
    %c0_5 = arith.constant 0 : index
    %4 = vector.load %arg3[%c0_4, %c0_5] : memref<960x1xf32, #tpu.memory_space<vmem>>, vector<960x1xf32>
    %5 = vector.broadcast %4 : vector<960x1xf32> to vector<960x128xf32>
    %6 = arith.addf %3, %5 : vector<960x128xf32>
    %cst_6 = arith.constant 2.000000e-01 : f32
    %7 = vector.broadcast %cst_6 : f32 to vector<960x128xf32>
    %8 = arith.mulf %7, %6 : vector<960x128xf32>
    %9 = arith.maximumf %6, %8 : vector<960x128xf32>
    %c0_7 = arith.constant 0 : index
    %c0_8 = arith.constant 0 : index
    %c0_9 = arith.constant 0 : index
    %10 = vector.load %arg4[%c0_7, %c0_8, %c0_9] : memref<1x960x128xf32, #tpu.memory_space<vmem>>, vector<1x960x128xf32>
    %11 = vector.shape_cast %10 : vector<1x960x128xf32> to vector<960x128xf32>
    %12 = vector.shape_cast %9 : vector<960x128xf32> to vector<1x960x128xf32>
    tpu.vector_store %arg4[%c0_7, %c0_8, %c0_9], %12 {strides = array<i32>} : memref<1x960x128xf32, #tpu.memory_space<vmem>>, vector<1x960x128xf32>,
    return
  }
  func.func @transform_0(%arg0: i32) -> (i32, i32, i32) {
    %c0_i32 = arith.constant 0 : i32
    %c0_i32_0 = arith.constant 0 : i32
    %c0_i32_1 = arith.constant 0 : i32
    return %arg0, %c0_i32, %c0_i32_0 : i32, i32, i32
  }
  func.func @transform_1(%arg0: i32) -> (i32, i32) {
    %c0_i32 = arith.constant 0 : i32
    %c0_i32_0 = arith.constant 0 : i32
    %c0_i32_1 = arith.constant 0 : i32
    return %c0_i32, %c0_i32_0 : i32, i32
  }
  func.func @transform_2(%arg0: i32) -> (i32, i32) {
    %c0_i32 = arith.constant 0 : i32
    %c0_i32_0 = arith.constant 0 : i32
    %c0_i32_1 = arith.constant 0 : i32
    return %c0_i32, %c0_i32_0 : i32, i32
  }
  func.func @transform_3(%arg0: i32) -> (i32, i32, i32) {
    %c0_i32 = arith.constant 0 : i32
    %c0_i32_0 = arith.constant 0 : i32
    %c0_i32_1 = arith.constant 0 : i32
    return %arg0, %c0_i32, %c0_i32_0 : i32, i32, i32
  }
}

module attributes {stable_mosaic.version = 11 : i64} {
  func.func @_decoder_layer_kernel(%arg0: i32, %arg1: memref<1x960x128xf32, #tpu.memory_space<vmem>>, %arg2: memref<64x960xf32, #tpu.memory_space<vmem>>, %arg3: memref<64x1xf32, #tpu.memory_space<vmem>>, %arg4: memref<1x64x128xf32, #tpu.memory_space<vmem>>) attributes {dimension_semantics = [#tpu.dimension_semantics<parallel>], iteration_bounds = array<i64: 2>, scalar_prefetch = 0 : i64, scratch_operands = 0 : i64, tpu.core_type = #tpu.core_type<tc>, window_params = [{transform_indices = @transform_0, window_bounds = array<i64: 1, 960, 128>}, {pipeline_mode = #tpu.pipeline_mode<synchronous>, transform_indices = @transform_1, window_bounds = array<i64: 64, 960>}, {pipeline_mode = #tpu.pipeline_mode<synchronous>, transform_indices = @transform_2, window_bounds = array<i64: 64, 1>}, {transform_indices = @transform_3, window_bounds = array<i64: 1, 64, 128>}]} {
    %c0 = arith.constant 0 : index
    %c0_0 = arith.constant 0 : index
    %0 = vector.load %arg2[%c0, %c0_0] : memref<64x960xf32, #tpu.memory_space<vmem>>, vector<64x960xf32>
    %c0_1 = arith.constant 0 : index
    %c0_2 = arith.constant 0 : index
    %c0_3 = arith.constant 0 : index
    %1 = vector.load %arg1[%c0_1, %c0_2, %c0_3] : memref<1x960x128xf32, #tpu.memory_space<vmem>>, vector<1x960x128xf32>
    %2 = vector.shape_cast %1 : vector<1x960x128xf32> to vector<960x128xf32>
    %cst = arith.constant dense<0.000000e+00> : vector<64x128xf32>
    %3 = tpu.matmul %0, %2, %cst {dimension_numbers = #tpu.dot_dimension_numbers<[1], [0], [0], [1], [0, 0, 1, 1], [], []>} : vector<64x960xf32>, vector<960x128xf32>, vector<64x128xf32> -> vector<64x128xf32>
    %c0_4 = arith.constant 0 : index
    %c0_5 = arith.constant 0 : index
    %4 = vector.load %arg3[%c0_4, %c0_5] : memref<64x1xf32, #tpu.memory_space<vmem>>, vector<64x1xf32>
    %5 = vector.broadcast %4 : vector<64x1xf32> to vector<64x128xf32>
    %6 = arith.addf %3, %5 : vector<64x128xf32>
    %cst_6 = arith.constant 2.000000e-01 : f32
    %7 = vector.broadcast %cst_6 : f32 to vector<64x128xf32>
    %8 = arith.mulf %7, %6 : vector<64x128xf32>
    %9 = arith.maximumf %6, %8 : vector<64x128xf32>
    %c0_7 = arith.constant 0 : index
    %c0_8 = arith.constant 0 : index
    %c0_9 = arith.constant 0 : index
    %10 = vector.load %arg4[%c0_7, %c0_8, %c0_9] : memref<1x64x128xf32, #tpu.memory_space<vmem>>, vector<1x64x128xf32>
    %11 = vector.shape_cast %10 : vector<1x64x128xf32> to vector<64x128xf32>
    %12 = vector.shape_cast %9 : vector<64x128xf32> to vector<1x64x128xf32>
    tpu.vector_store %arg4[%c0_7, %c0_8, %c0_9], %12 {strides = array<i32>} : memref<1x64x128xf32, #tpu.memory_space<vmem>>, vector<1x64x128xf32>,
    return
  }
  func.func @transform_0(%arg0: i32) -> (i32, i32, i32) {
    %c0_i32 = arith.constant 0 : i32
    %c0_i32_0 = arith.constant 0 : i32
    %c0_i32_1 = arith.constant 0 : i32
    return %arg0, %c0_i32, %c0_i32_0 : i32, i32, i32
  }
  func.func @transform_1(%arg0: i32) -> (i32, i32) {
    %c0_i32 = arith.constant 0 : i32
    %c0_i32_0 = arith.constant 0 : i32
    %c0_i32_1 = arith.constant 0 : i32
    return %c0_i32, %c0_i32_0 : i32, i32
  }
  func.func @transform_2(%arg0: i32) -> (i32, i32) {
    %c0_i32 = arith.constant 0 : i32
    %c0_i32_0 = arith.constant 0 : i32
    %c0_i32_1 = arith.constant 0 : i32
    return %c0_i32, %c0_i32_0 : i32, i32
  }
  func.func @transform_3(%arg0: i32) -> (i32, i32, i32) {
    %c0_i32 = arith.constant 0 : i32
    %c0_i32_0 = arith.constant 0 : i32
    %c0_i32_1 = arith.constant 0 : i32
    return %arg0, %c0_i32, %c0_i32_0 : i32, i32, i32
  }
}

module attributes {stable_mosaic.version = 11 : i64} {
  func.func @_decoder_layer_kernel(%arg0: i32, %arg1: memref<1x64x256xf32, #tpu.memory_space<vmem>>, %arg2: memref<128x64xf32, #tpu.memory_space<vmem>>, %arg3: memref<128x1xf32, #tpu.memory_space<vmem>>, %arg4: memref<1x128x256xf32, #tpu.memory_space<vmem>>) attributes {dimension_semantics = [#tpu.dimension_semantics<parallel>], iteration_bounds = array<i64: 2>, scalar_prefetch = 0 : i64, scratch_operands = 0 : i64, tpu.core_type = #tpu.core_type<tc>, window_params = [{transform_indices = @transform_0, window_bounds = array<i64: 1, 64, 256>}, {pipeline_mode = #tpu.pipeline_mode<synchronous>, transform_indices = @transform_1, window_bounds = array<i64: 128, 64>}, {pipeline_mode = #tpu.pipeline_mode<synchronous>, transform_indices = @transform_2, window_bounds = array<i64: 128, 1>}, {transform_indices = @transform_3, window_bounds = array<i64: 1, 128, 256>}]} {
    %c0 = arith.constant 0 : index
    %c0_0 = arith.constant 0 : index
    %0 = vector.load %arg2[%c0, %c0_0] : memref<128x64xf32, #tpu.memory_space<vmem>>, vector<128x64xf32>
    %c0_1 = arith.constant 0 : index
    %c0_2 = arith.constant 0 : index
    %c0_3 = arith.constant 0 : index
    %1 = vector.load %arg1[%c0_1, %c0_2, %c0_3] : memref<1x64x256xf32, #tpu.memory_space<vmem>>, vector<1x64x256xf32>
    %2 = vector.shape_cast %1 : vector<1x64x256xf32> to vector<64x256xf32>
    %cst = arith.constant dense<0.000000e+00> : vector<128x256xf32>
    %3 = tpu.matmul %0, %2, %cst {dimension_numbers = #tpu.dot_dimension_numbers<[1], [0], [0], [1], [0, 0, 1, 1], [], []>} : vector<128x64xf32>, vector<64x256xf32>, vector<128x256xf32> -> vector<128x256xf32>
    %c0_4 = arith.constant 0 : index
    %c0_5 = arith.constant 0 : index
    %4 = vector.load %arg3[%c0_4, %c0_5] : memref<128x1xf32, #tpu.memory_space<vmem>>, vector<128x1xf32>
    %5 = vector.broadcast %4 : vector<128x1xf32> to vector<128x256xf32>
    %6 = arith.addf %3, %5 : vector<128x256xf32>
    %cst_6 = arith.constant 2.000000e-01 : f32
    %7 = vector.broadcast %cst_6 : f32 to vector<128x256xf32>
    %8 = arith.mulf %7, %6 : vector<128x256xf32>
    %9 = arith.maximumf %6, %8 : vector<128x256xf32>
    %c0_7 = arith.constant 0 : index
    %c0_8 = arith.constant 0 : index
    %c0_9 = arith.constant 0 : index
    %10 = vector.load %arg4[%c0_7, %c0_8, %c0_9] : memref<1x128x256xf32, #tpu.memory_space<vmem>>, vector<1x128x256xf32>
    %11 = vector.shape_cast %10 : vector<1x128x256xf32> to vector<128x256xf32>
    %12 = vector.shape_cast %9 : vector<128x256xf32> to vector<1x128x256xf32>
    tpu.vector_store %arg4[%c0_7, %c0_8, %c0_9], %12 {strides = array<i32>} : memref<1x128x256xf32, #tpu.memory_space<vmem>>, vector<1x128x256xf32>,
    return
  }
  func.func @transform_0(%arg0: i32) -> (i32, i32, i32) {
    %c0_i32 = arith.constant 0 : i32
    %c0_i32_0 = arith.constant 0 : i32
    %c0_i32_1 = arith.constant 0 : i32
    return %arg0, %c0_i32, %c0_i32_0 : i32, i32, i32
  }
  func.func @transform_1(%arg0: i32) -> (i32, i32) {
    %c0_i32 = arith.constant 0 : i32
    %c0_i32_0 = arith.constant 0 : i32
    %c0_i32_1 = arith.constant 0 : i32
    return %c0_i32, %c0_i32_0 : i32, i32
  }
  func.func @transform_2(%arg0: i32) -> (i32, i32) {
    %c0_i32 = arith.constant 0 : i32
    %c0_i32_0 = arith.constant 0 : i32
    %c0_i32_1 = arith.constant 0 : i32
    return %c0_i32, %c0_i32_0 : i32, i32
  }
  func.func @transform_3(%arg0: i32) -> (i32, i32, i32) {
    %c0_i32 = arith.constant 0 : i32
    %c0_i32_0 = arith.constant 0 : i32
    %c0_i32_1 = arith.constant 0 : i32
    return %arg0, %c0_i32, %c0_i32_0 : i32, i32, i32
  }
}

module attributes {stable_mosaic.version = 11 : i64} {
  func.func @_decoder_layer_kernel(%arg0: i32, %arg1: memref<1x128x1024xf32, #tpu.memory_space<vmem>>, %arg2: memref<128x128xf32, #tpu.memory_space<vmem>>, %arg3: memref<128x1xf32, #tpu.memory_space<vmem>>, %arg4: memref<1x128x1024xf32, #tpu.memory_space<vmem>>) attributes {dimension_semantics = [#tpu.dimension_semantics<parallel>], iteration_bounds = array<i64: 2>, scalar_prefetch = 0 : i64, scratch_operands = 0 : i64, tpu.core_type = #tpu.core_type<tc>, window_params = [{transform_indices = @transform_0, window_bounds = array<i64: 1, 128, 1024>}, {pipeline_mode = #tpu.pipeline_mode<synchronous>, transform_indices = @transform_1, window_bounds = array<i64: 128, 128>}, {pipeline_mode = #tpu.pipeline_mode<synchronous>, transform_indices = @transform_2, window_bounds = array<i64: 128, 1>}, {transform_indices = @transform_3, window_bounds = array<i64: 1, 128, 1024>}]} {
    %c0 = arith.constant 0 : index
    %c0_0 = arith.constant 0 : index
    %0 = vector.load %arg2[%c0, %c0_0] : memref<128x128xf32, #tpu.memory_space<vmem>>, vector<128x128xf32>
    %c0_1 = arith.constant 0 : index
    %c0_2 = arith.constant 0 : index
    %c0_3 = arith.constant 0 : index
    %1 = vector.load %arg1[%c0_1, %c0_2, %c0_3] : memref<1x128x1024xf32, #tpu.memory_space<vmem>>, vector<1x128x1024xf32>
    %2 = vector.shape_cast %1 : vector<1x128x1024xf32> to vector<128x1024xf32>
    %cst = arith.constant dense<0.000000e+00> : vector<128x1024xf32>
    %3 = tpu.matmul %0, %2, %cst {dimension_numbers = #tpu.dot_dimension_numbers<[1], [0], [0], [1], [0, 0, 1, 1], [], []>} : vector<128x128xf32>, vector<128x1024xf32>, vector<128x1024xf32> -> vector<128x1024xf32>
    %c0_4 = arith.constant 0 : index
    %c0_5 = arith.constant 0 : index
    %4 = vector.load %arg3[%c0_4, %c0_5] : memref<128x1xf32, #tpu.memory_space<vmem>>, vector<128x1xf32>
    %5 = vector.broadcast %4 : vector<128x1xf32> to vector<128x1024xf32>
    %6 = arith.addf %3, %5 : vector<128x1024xf32>
    %cst_6 = arith.constant 2.000000e-01 : f32
    %7 = vector.broadcast %cst_6 : f32 to vector<128x1024xf32>
    %8 = arith.mulf %7, %6 : vector<128x1024xf32>
    %9 = arith.maximumf %6, %8 : vector<128x1024xf32>
    %c0_7 = arith.constant 0 : index
    %c0_8 = arith.constant 0 : index
    %c0_9 = arith.constant 0 : index
    %10 = vector.load %arg4[%c0_7, %c0_8, %c0_9] : memref<1x128x1024xf32, #tpu.memory_space<vmem>>, vector<1x128x1024xf32>
    %11 = vector.shape_cast %10 : vector<1x128x1024xf32> to vector<128x1024xf32>
    %12 = vector.shape_cast %9 : vector<128x1024xf32> to vector<1x128x1024xf32>
    tpu.vector_store %arg4[%c0_7, %c0_8, %c0_9], %12 {strides = array<i32>} : memref<1x128x1024xf32, #tpu.memory_space<vmem>>, vector<1x128x1024xf32>,
    return
  }
  func.func @transform_0(%arg0: i32) -> (i32, i32, i32) {
    %c0_i32 = arith.constant 0 : i32
    %c0_i32_0 = arith.constant 0 : i32
    %c0_i32_1 = arith.constant 0 : i32
    return %arg0, %c0_i32, %c0_i32_0 : i32, i32, i32
  }
  func.func @transform_1(%arg0: i32) -> (i32, i32) {
    %c0_i32 = arith.constant 0 : i32
    %c0_i32_0 = arith.constant 0 : i32
    %c0_i32_1 = arith.constant 0 : i32
    return %c0_i32, %c0_i32_0 : i32, i32
  }
  func.func @transform_2(%arg0: i32) -> (i32, i32) {
    %c0_i32 = arith.constant 0 : i32
    %c0_i32_0 = arith.constant 0 : i32
    %c0_i32_1 = arith.constant 0 : i32
    return %c0_i32, %c0_i32_0 : i32, i32
  }
  func.func @transform_3(%arg0: i32) -> (i32, i32, i32) {
    %c0_i32 = arith.constant 0 : i32
    %c0_i32_0 = arith.constant 0 : i32
    %c0_i32_1 = arith.constant 0 : i32
    return %arg0, %c0_i32, %c0_i32_0 : i32, i32, i32
  }
}

module attributes {stable_mosaic.version = 11 : i64} {
  func.func @_decoder_layer_kernel(%arg0: i32, %arg1: memref<1x128x3968xf32, #tpu.memory_space<vmem>>, %arg2: memref<12x128xf32, #tpu.memory_space<vmem>>, %arg3: memref<12x1xf32, #tpu.memory_space<vmem>>, %arg4: memref<1x12x3968xf32, #tpu.memory_space<vmem>>) attributes {dimension_semantics = [#tpu.dimension_semantics<parallel>], iteration_bounds = array<i64: 2>, scalar_prefetch = 0 : i64, scratch_operands = 0 : i64, tpu.core_type = #tpu.core_type<tc>, window_params = [{transform_indices = @transform_0, window_bounds = array<i64: 1, 128, 3968>}, {pipeline_mode = #tpu.pipeline_mode<synchronous>, transform_indices = @transform_1, window_bounds = array<i64: 12, 128>}, {pipeline_mode = #tpu.pipeline_mode<synchronous>, transform_indices = @transform_2, window_bounds = array<i64: 12, 1>}, {transform_indices = @transform_3, window_bounds = array<i64: 1, 12, 3968>}]} {
    %c0 = arith.constant 0 : index
    %c0_0 = arith.constant 0 : index
    %0 = vector.load %arg2[%c0, %c0_0] : memref<12x128xf32, #tpu.memory_space<vmem>>, vector<12x128xf32>
    %c0_1 = arith.constant 0 : index
    %c0_2 = arith.constant 0 : index
    %c0_3 = arith.constant 0 : index
    %1 = vector.load %arg1[%c0_1, %c0_2, %c0_3] : memref<1x128x3968xf32, #tpu.memory_space<vmem>>, vector<1x128x3968xf32>
    %2 = vector.shape_cast %1 : vector<1x128x3968xf32> to vector<128x3968xf32>
    %cst = arith.constant dense<0.000000e+00> : vector<12x3968xf32>
    %3 = tpu.matmul %0, %2, %cst {dimension_numbers = #tpu.dot_dimension_numbers<[1], [0], [0], [1], [0, 0, 1, 1], [], []>} : vector<12x128xf32>, vector<128x3968xf32>, vector<12x3968xf32> -> vector<12x3968xf32>
    %c0_4 = arith.constant 0 : index
    %c0_5 = arith.constant 0 : index
    %4 = vector.load %arg3[%c0_4, %c0_5] : memref<12x1xf32, #tpu.memory_space<vmem>>, vector<12x1xf32>
    %5 = vector.broadcast %4 : vector<12x1xf32> to vector<12x3968xf32>
    %6 = arith.addf %3, %5 : vector<12x3968xf32>
    %c0_6 = arith.constant 0 : index
    %c0_7 = arith.constant 0 : index
    %c0_8 = arith.constant 0 : index
    %7 = vector.load %arg4[%c0_6, %c0_7, %c0_8] : memref<1x12x3968xf32, #tpu.memory_space<vmem>>, vector<1x12x3968xf32>
    %8 = vector.shape_cast %7 : vector<1x12x3968xf32> to vector<12x3968xf32>
    %9 = vector.shape_cast %6 : vector<12x3968xf32> to vector<1x12x3968xf32>
    tpu.vector_store %arg4[%c0_6, %c0_7, %c0_8], %9 {strides = array<i32>} : memref<1x12x3968xf32, #tpu.memory_space<vmem>>, vector<1x12x3968xf32>,
    return
  }
  func.func @transform_0(%arg0: i32) -> (i32, i32, i32) {
    %c0_i32 = arith.constant 0 : i32
    %c0_i32_0 = arith.constant 0 : i32
    %c0_i32_1 = arith.constant 0 : i32
    return %arg0, %c0_i32, %c0_i32_0 : i32, i32, i32
  }
  func.func @transform_1(%arg0: i32) -> (i32, i32) {
    %c0_i32 = arith.constant 0 : i32
    %c0_i32_0 = arith.constant 0 : i32
    %c0_i32_1 = arith.constant 0 : i32
    return %c0_i32, %c0_i32_0 : i32, i32
  }
  func.func @transform_2(%arg0: i32) -> (i32, i32) {
    %c0_i32 = arith.constant 0 : i32
    %c0_i32_0 = arith.constant 0 : i32
    %c0_i32_1 = arith.constant 0 : i32
    return %c0_i32, %c0_i32_0 : i32, i32
  }
  func.func @transform_3(%arg0: i32) -> (i32, i32, i32) {
    %c0_i32 = arith.constant 0 : i32
    %c0_i32_0 = arith.constant 0 : i32
    %c0_i32_1 = arith.constant 0 : i32
    return %arg0, %c0_i32, %c0_i32_0 : i32, i32, i32
  }
}

</mosaic_0001>

<llo_original>
// kernel: decoder_forward.5
$region0: #{decoder_forward.5}
  #allocation0 [shape = 'u32[]', space=smem, size = 0x4, offset = 0x4, fixed_abs, tag = 'smem constant byte address 0x4 - core index']
  #allocation1 [shape = 'u32[144,128]{1,0:T(1,128)}', space=vmem, size = 0x12000, scoped, tag = 'internal scratch']
  %s0 = inlined_call_operand.vmem [shape: f32[2,960,128], index: 0, kind: input, shape index: {}]
  %s1 = inlined_call_operand.vmem [shape: f32[960,960], index: 1, kind: input, shape index: {}]
  %s2 = inlined_call_operand.vmem [shape: f32[960,1], index: 2, kind: input, shape index: {}]
  %s3 = inlined_call_operand.vmem [shape: f32[2,960,128], index: 3, kind: output, shape index: {}]
  %s4 = sld [smem:[#allocation0]]
  $region45: #{decoder_forward.5} parent=0
    _
  %s6 = ssub.s32 1, %s4
  %s7 = scalar_select 0, %s6, %s4
  loop: start=0, step=1, limit=4
  $region2: #{decoder_forward.5} parent=0 // loop_pre_header
    _
  $region3: #{decoder_forward.5} parent=0 // loop_header
    %s9 = sphi 0, %s13
    %p10 = scmp.ge.s32.totalorder %s9, 4
    %s19 = sphi 0, %s21
    %s22 = sphi 0, %s19
    %s23 = sphi 0, %s22
    %s39 = sphi 0, %s23
    %s43 = sphi 0, %s43
    %s45 = sphi 0, %s43
    %s46 = sphi 0, %s45
    %s60 = sphi 0, %s46
    %s64 = sphi 0, %s64
    %s66 = sphi 0, %s64
    %s67 = sphi 0, %s66
    %s81 = sphi 0, %s67
    %s87 = sphi 0, %s89
    %s90 = sphi 0, %s87
    %s91 = sphi 0, %s90
    %s107 = sphi 0, %s91
  $region4: #{decoder_forward.5} parent=0 // loop_header_branch
    %12 = sbr.rel (%p10) target = $region8
  $region5: #{decoder_forward.5} parent=0 // loop_body
    %s14 = ssub.s32 %s9, 1
    %s15 = ssub.s32 %s9, 2
    %s16 = sadd.s32 %s9, 1
    %s17 = ssub.s32 %s9, %s16
    %p18 = scmp.eq.s32.totalorder %s17, 0
    %s20 = sadd.s32 %s19, 1
    %s21 = scalar_select %p18, %s19, %s20
    %p24 = pneg %p18
    %p25 = scmp.eq.s32.totalorder %s9, 1
    %p26 = por %p24, %p25
    %p27 = scmp.ne.s32.totalorder %s19, %s22
    %p28 = scmp.eq.s32.totalorder %s9, 0
    %p29 = por %p27, %p28
    %p30 = scmp.ne.s32.totalorder %s19, %s22
    %p31 = scmp.eq.s32.totalorder %s14, 1
    %p32 = por %p30, %p31
    %p33 = scmp.ne.s32.totalorder %s22, %s23
    %p34 = scmp.eq.s32.totalorder %s14, 0
    %p35 = por %p33, %p34
    %p36 = scmp.ne.s32.totalorder %s22, %s23
    %p37 = scmp.eq.s32.totalorder %s15, 1
    %p38 = por %p36, %p37
    %p40 = scmp.ne.s32.totalorder %s23, %s39
    %p41 = scmp.eq.s32.totalorder %s15, 0
    %p42 = por %p40, %p41
    %s44 = sadd.s32 %s43, 1
    %p47 = scmp.eq.s32.totalorder %s9, 1
    %p48 = scmp.ne.s32.totalorder %s43, %s45
    %p49 = scmp.eq.s32.totalorder %s9, 0
    %p50 = por %p48, %p49
    %p51 = scmp.ne.s32.totalorder %s43, %s45
    %p52 = scmp.eq.s32.totalorder %s14, 1
    %p53 = por %p51, %p52
    %p54 = scmp.ne.s32.totalorder %s45, %s46
    %p55 = scmp.eq.s32.totalorder %s14, 0
    %p56 = por %p54, %p55
    %p57 = scmp.ne.s32.totalorder %s45, %s46
    %p58 = scmp.eq.s32.totalorder %s15, 1
    %p59 = por %p57, %p58
    %p61 = scmp.ne.s32.totalorder %s46, %s60
    %p62 = scmp.eq.s32.totalorder %s15, 0
    %p63 = por %p61, %p62
    %s65 = sadd.s32 %s64, 1
    %p68 = scmp.eq.s32.totalorder %s9, 1
    %p69 = scmp.ne.s32.totalorder %s64, %s66
    %p70 = scmp.eq.s32.totalorder %s9, 0
    %p71 = por %p69, %p70
    %p72 = scmp.ne.s32.totalorder %s64, %s66
    %p73 = scmp.eq.s32.totalorder %s14, 1
    %p74 = por %p72, %p73
    %p75 = scmp.ne.s32.totalorder %s66, %s67
    %p76 = scmp.eq.s32.totalorder %s14, 0
    %p77 = por %p75, %p76
    %p78 = scmp.ne.s32.totalorder %s66, %s67
    %p79 = scmp.eq.s32.totalorder %s15, 1
    %p80 = por %p78, %p79
    %p82 = scmp.ne.s32.totalorder %s67, %s81
    %p83 = scmp.eq.s32.totalorder %s15, 0
    %p84 = por %p82, %p83
    %s85 = ssub.s32 %s9, %s16
    %p86 = scmp.eq.s32.totalorder %s85, 0
    %s88 = sadd.s32 %s87, 1
    %s89 = scalar_select %p86, %s87, %s88
    %p92 = pneg %p86
    %p93 = scmp.eq.s32.totalorder %s9, 1
    %p94 = por %p92, %p93
    %p95 = scmp.ne.s32.totalorder %s87, %s90
    %p96 = scmp.eq.s32.totalorder %s9, 0
    %p97 = por %p95, %p96
    %p98 = scmp.ne.s32.totalorder %s87, %s90
    %p99 = scmp.eq.s32.totalorder %s14, 1
    %p100 = por %p98, %p99
    %p101 = scmp.ne.s32.totalorder %s90, %s91
    %p102 = scmp.eq.s32.totalorder %s14, 0
    %p103 = por %p101, %p102
    %p104 = scmp.ne.s32.totalorder %s90, %s91
    %p105 = scmp.eq.s32.totalorder %s15, 1
    %p106 = por %p104, %p105
    %p108 = scmp.ne.s32.totalorder %s91, %s107
    %p109 = scmp.eq.s32.totalorder %s15, 0
    %p110 = por %p108, %p109
    %p111 = scmp.le.s32.totalorder 1, %s9
    %p112 = scmp.lt.s32.totalorder %s9, 3
    %p113 = pnand %p111, %p112
    %p114 = pneg %p113
    // Predicated region
    $region9: #{decoder_forward.5} parent=5 // pred_check
      _
    $region10: #{decoder_forward.5} parent=5 // pred_check_branch
      %116 = sbr.rel (%p113) target = $region12
    $region11: #{decoder_forward.5} parent=5 // pred_region
      %s117 = ssub.s32 %s9, 1
      // Predicated region
      $region13: #{decoder_forward.5} parent=11 // pred_check
        %p118 = pneg %p56
      $region14: #{decoder_forward.5} parent=11 // pred_check_branch
        %120 = sbr.rel (%p118) target = $region16
      $region15: #{decoder_forward.5} parent=11 // pred_region
        _
      $region16: #{decoder_forward.5} parent=11 // pred_fallthru
        _
      // Predicated region
      $region17: #{decoder_forward.5} parent=11 // pred_check
        %p121 = pneg %p77
      $region18: #{decoder_forward.5} parent=11 // pred_check_branch
        %123 = sbr.rel (%p121) target = $region20
      $region19: #{decoder_forward.5} parent=11 // pred_region
        _
      $region20: #{decoder_forward.5} parent=11 // pred_fallthru
        _
    $region12: #{decoder_forward.5} parent=5 // pred_fallthru
      _
    %p124 = scmp.lt.s32.totalorder %s9, 2
    // Predicated region
    $region21: #{decoder_forward.5} parent=5 // pred_check
      %p125 = pneg %p124
    $region22: #{decoder_forward.5} parent=5 // pred_check_branch
      %127 = sbr.rel (%p125) target = $region24
    $region23: #{decoder_forward.5} parent=5 // pred_region
      // Predicated region
      $region25: #{decoder_forward.5} parent=23 // pred_check
        %p128 = pneg %p29
      $region26: #{decoder_forward.5} parent=23 // pred_check_branch
        %130 = sbr.rel (%p128) target = $region28
      $region27: #{decoder_forward.5} parent=23 // pred_region
        %p131 = scmp.lt.s32.totalorder %s9, 1
        %s132 = scalar_select %p131, %s9, 1
        %s133 = smul.addr %s132, 120
        %s134 = smul.addr %s133, 8
        %s135 = scalar_lea.vmem %s0, %s134
      $region28: #{decoder_forward.5} parent=23 // pred_fallthru
        _
    $region24: #{decoder_forward.5} parent=5 // pred_fallthru
      _
    %p136 = scmp.le.s32.totalorder 1, %s9
    %p137 = scmp.lt.s32.totalorder %s9, 3
    %p138 = pnand %p136, %p137
    %p139 = pneg %p138
    // Predicated region
    $region29: #{decoder_forward.5} parent=5 // pred_check
      _
    $region30: #{decoder_forward.5} parent=5 // pred_check_branch
      %141 = sbr.rel (%p138) target = $region32
    $region31: #{decoder_forward.5} parent=5 // pred_region
      %s142 = ssub.s32 %s9, 1
      %p143 = scmp.lt.s32.totalorder %s14, 1
      %s144 = scalar_select %p143, %s14, 1
      %s145 = smul.addr %s144, 120
      %s146 = smul.addr %s145, 8
      %s147 = scalar_lea.vmem %s0, %s146
      %p148 = pneg %p35
      %p149 = pneg %p32
      %p150 = pneg %p56
      %p151 = pneg %p53
      %p152 = pneg %p77
      %p153 = pneg %p74
      %p154 = pneg %p103
      %p155 = pneg %p100
      %p156 = scmp.lt.s32.totalorder %s14, 1
      %s157 = scalar_select %p156, %s14, 1
      %s158 = smul.addr %s157, 120
      %s159 = smul.addr %s158, 8
      %s160 = scalar_lea.vmem %s3, %s159
      %p161 = scmp.lt.s32.totalorder %s14, 1
      %s162 = scalar_select %p161, %s14, 1
      %s163 = smul.addr %s162, 120
      %s164 = smul.addr %s163, 8
      %s165 = scalar_lea.vmem %s0, %s164
      %p166 = scmp.lt.s32.totalorder %s14, 1
      %s167 = scalar_select %p166, %s14, 1
      %s168 = smul.addr %s167, 120
      %s169 = smul.addr %s168, 8
      %s170 = scalar_lea.vmem %s3, %s169
      %v171 = vld [vmem:[%s1] sm:$0xff]
      %v172 = vld [vmem:[%s1 + $0x8] sm:$0xff]
      %v173 = vld [vmem:[%s1 + $0x10] sm:$0xff]
      %v174 = vld [vmem:[%s1 + $0x18] sm:$0xff]
      %v175 = vld [vmem:[%s1 + $0x20] sm:$0xff]
      %v176 = vld [vmem:[%s1 + $0x28] sm:$0xff]
      %v177 = vld [vmem:[%s1 + $0x30] sm:$0xff]
      %v178 = vld [vmem:[%s1 + $0x38] sm:$0xff]
      %v179 = vld [vmem:[%s1 + $0x40] sm:$0xff]
      %v180 = vld [vmem:[%s1 + $0x48] sm:$0xff]
      %v181 = vld [vmem:[%s1 + $0x50] sm:$0xff]
      %v182 = vld [vmem:[%s1 + $0x58] sm:$0xff]
      %v183 = vld [vmem:[%s1 + $0x60] sm:$0xff]
      %v184 = vld [vmem:[%s1 + $0x68] sm:$0xff]
      %v185 = vld [vmem:[%s1 + $0x70] sm:$0xff]
      %v186 = vld [vmem:[%s1 + $0x78] sm:$0xff]
      %v187 = vld [vmem:[%s1 + $0x80] sm:$0xff]
      %v188 = vld [vmem:[%s1 + $0x88] sm:$0xff]
      %v189 = vld [vmem:[%s1 + $0x90] sm:$0xff]
      %v190 = vld [vmem:[%s1 + $0x98] sm:$0xff]
      %v191 = vld [vmem:[%s1 + $0xa0] sm:$0xff]
      %v192 = vld [vmem:[%s1 + $0xa8] sm:$0xff]
      %v193 = vld [vmem:[%s1 + $0xb0] sm:$0xff]
      %v194 = vld [vmem:[%s1 + $0xb8] sm:$0xff]
      %v195 = vld [vmem:[%s1 + $0xc0] sm:$0xff]
      %v196 = vld [vmem:[%s1 + $0xc8] sm:$0xff]
      %v197 = vld [vmem:[%s1 + $0xd0] sm:$0xff]
      %v198 = vld [vmem:[%s1 + $0xd8] sm:$0xff]
      %v199 = vld [vmem:[%s1 + $0xe0] sm:$0xff]
      %v200 = vld [vmem:[%s1 + $0xe8] sm:$0xff]
      %v201 = vld [vmem:[%s1 + $0xf0] sm:$0xff]
      %v202 = vld [vmem:[%s1 + $0xf8] sm:$0xff]
      %v203 = vld [vmem:[%s1 + $0x100] sm:$0xff]
      %v204 = vld [vmem:[%s1 + $0x108] sm:$0xff]
      %v205 = vld [vmem:[%s1 + $0x110] sm:$0xff]
      %v206 = vld [vmem:[%s1 + $0x118] sm:$0xff]
      %v207 = vld [vmem:[%s1 + $0x120] sm:$0xff]
      %v208 = vld [vmem:[%s1 + $0x128] sm:$0xff]
      %v209 = vld [vmem:[%s1 + $0x130] sm:$0xff]
      %v210 = vld [vmem:[%s1 + $0x138] sm:$0xff]
      %v211 = vld [vmem:[%s1 + $0x140] sm:$0xff]
      %v212 = vld [vmem:[%s1 + $0x148] sm:$0xff]
      %v213 = vld [vmem:[%s1 + $0x150] sm:$0xff]
      %v214 = vld [vmem:[%s1 + $0x158] sm:$0xff]
      %v215 = vld [vmem:[%s1 + $0x160] sm:$0xff]
      %v216 = vld [vmem:[%s1 + $0x168] sm:$0xff]
      %v217 = vld [vmem:[%s1 + $0x170] sm:$0xff]
      %v218 = vld [vmem:[%s1 + $0x178] sm:$0xff]
      %v219 = vld [vmem:[%s1 + $0x180] sm:$0xff]
      %v220 = vld [vmem:[%s1 + $0x188] sm:$0xff]
      %v221 = vld [vmem:[%s1 + $0x190] sm:$0xff]
      %v222 = vld [vmem:[%s1 + $0x198] sm:$0xff]
      %v223 = vld [vmem:[%s1 + $0x1a0] sm:$0xff]
      %v224 = vld [vmem:[%s1 + $0x1a8] sm:$0xff]
      %v225 = vld [vmem:[%s1 + $0x1b0] sm:$0xff]
      %v226 = vld [vmem:[%s1 + $0x1b8] sm:$0xff]
      %v227 = vld [vmem:[%s1 + $0x1c0] sm:$0xff]
      %v228 = vld [vmem:[%s1 + $0x1c8] sm:$0xff]
      %v229 = vld [vmem:[%s1 + $0x1d0] sm:$0xff]
      %v230 = vld [vmem:[%s1 + $0x1d8] sm:$0xff]
      %v231 = vld [vmem:[%s1 + $0x1e0] sm:$0xff]
      %v232 = vld [vmem:[%s1 + $0x1e8] sm:$0xff]
      %v233 = vld [vmem:[%s1 + $0x1f0] sm:$0xff]
      %v234 = vld [vmem:[%s1 + $0x1f8] sm:$0xff]
      %v235 = vld [vmem:[%s1 + $0x200] sm:$0xff]
      %v236 = vld [vmem:[%s1 + $0x208] sm:$0xff]
      %v237 = vld [vmem:[%s1 + $0x210] sm:$0xff]
      %v238 = vld [vmem:[%s1 + $0x218] sm:$0xff]
      %v239 = vld [vmem:[%s1 + $0x220] sm:$0xff]
      %v240 = vld [vmem:[%s1 + $0x228] sm:$0xff]
      %v241 = vld [vmem:[%s1 + $0x230] sm:$0xff]
      %v242 = vld [vmem:[%s1 + $0x238] sm:$0xff]
      %v243 = vld [vmem:[%s1 + $0x240] sm:$0xff]
      %v244 = vld [vmem:[%s1 + $0x248] sm:$0xff]
      %v245 = vld [vmem:[%s1 + $0x250] sm:$0xff]
      %v246 = vld [vmem:[%s1 + $0x258] sm:$0xff]
      %v247 = vld [vmem:[%s1 + $0x260] sm:$0xff]
      %v248 = vld [vmem:[%s1 + $0x268] sm:$0xff]
      %v249 = vld [vmem:[%s1 + $0x270] sm:$0xff]
      %v250 = vld [vmem:[%s1 + $0x278] sm:$0xff]
      %v251 = vld [vmem:[%s1 + $0x280] sm:$0xff]
      %v252 = vld [vmem:[%s1 + $0x288] sm:$0xff]
      %v253 = vld [vmem:[%s1 + $0x290] sm:$0xff]
      %v254 = vld [vmem:[%s1 + $0x298] sm:$0xff]
      %v255 = vld [vmem:[%s1 + $0x2a0] sm:$0xff]
      %v256 = vld [vmem:[%s1 + $0x2a8] sm:$0xff]
      %v257 = vld [vmem:[%s1 + $0x2b0] sm:$0xff]
      %v258 = vld [vmem:[%s1 + $0x2b8] sm:$0xff]
      %v259 = vld [vmem:[%s1 + $0x2c0] sm:$0xff]
      %v260 = vld [vmem:[%s1 + $0x2c8] sm:$0xff]
      %v261 = vld [vmem:[%s1 + $0x2d0] sm:$0xff]
      %v262 = vld [vmem:[%s1 + $0x2d8] sm:$0xff]
      %v263 = vld [vmem:[%s1 + $0x2e0] sm:$0xff]
      %v264 = vld [vmem:[%s1 + $0x2e8] sm:$0xff]
      %v265 = vld [vmem:[%s1 + $0x2f0] sm:$0xff]
      %v266 = vld [vmem:[%s1 + $0x2f8] sm:$0xff]
      %v267 = vld [vmem:[%s1 + $0x300] sm:$0xff]
      %v268 = vld [vmem:[%s1 + $0x308] sm:$0xff]
      %v269 = vld [vmem:[%s1 + $0x310] sm:$0xff]
      %v270 = vld [vmem:[%s1 + $0x318] sm:$0xff]
      %v271 = vld [vmem:[%s1 + $0x320] sm:$0xff]
      %v272 = vld [vmem:[%s1 + $0x328] sm:$0xff]
      %v273 = vld [vmem:[%s1 + $0x330] sm:$0xff]
      %v274 = vld [vmem:[%s1 + $0x338] sm:$0xff]
      %v275 = vld [vmem:[%s1 + $0x340] sm:$0xff]
      %v276 = vld [vmem:[%s1 + $0x348] sm:$0xff]
      %v277 = vld [vmem:[%s1 + $0x350] sm:$0xff]
      %v278 = vld [vmem:[%s1 + $0x358] sm:$0xff]
      %v279 = vld [vmem:[%s1 + $0x360] sm:$0xff]
      %v280 = vld [vmem:[%s1 + $0x368] sm:$0xff]
      %v281 = vld [vmem:[%s1 + $0x370] sm:$0xff]
      %v282 = vld [vmem:[%s1 + $0x378] sm:$0xff]
      %v283 = vld [vmem:[%s1 + $0x380] sm:$0xff]
      %v284 = vld [vmem:[%s1 + $0x388] sm:$0xff]
      %v285 = vld [vmem:[%s1 + $0x390] sm:$0xff]
      %v286 = vld [vmem:[%s1 + $0x398] sm:$0xff]
      %v287 = vld [vmem:[%s1 + $0x3a0] sm:$0xff]
      %v288 = vld [vmem:[%s1 + $0x3a8] sm:$0xff]
      %v289 = vld [vmem:[%s1 + $0x3b0] sm:$0xff]
      %v290 = vld [vmem:[%s1 + $0x3b8] sm:$0xff]
      %v291 = vld [vmem:[%s1 + $0x3c0] sm:$0xff]
      %v292 = vld [vmem:[%s1 + $0x3c8] sm:$0xff]
      %v293 = vld [vmem:[%s1 + $0x3d0] sm:$0xff]
      %v294 = vld [vmem:[%s1 + $0x3d8] sm:$0xff]
      %v295 = vld [vmem:[%s1 + $0x3e0] sm:$0xff]
      %v296 = vld [vmem:[%s1 + $0x3e8] sm:$0xff]
      %v297 = vld [vmem:[%s1 + $0x3f0] sm:$0xff]
      %v298 = vld [vmem:[%s1 + $0x3f8] sm:$0xff]
      %v299 = vld [vmem:[%s1 + $0x400] sm:$0xff]
      %v300 = vld [vmem:[%s1 + $0x408] sm:$0xff]
      %v301 = vld [vmem:[%s1 + $0x410] sm:$0xff]
      %v302 = vld [vmem:[%s1 + $0x418] sm:$0xff]
      %v303 = vld [vmem:[%s1 + $0x420] sm:$0xff]
      %v304 = vld [vmem:[%s1 + $0x428] sm:$0xff]
      %v305 = vld [vmem:[%s1 + $0x430] sm:$0xff]
      %v306 = vld [vmem:[%s1 + $0x438] sm:$0xff]
      %v307 = vld [vmem:[%s1 + $0x440] sm:$0xff]
      %v308 = vld [vmem:[%s1 + $0x448] sm:$0xff]
      %v309 = vld [vmem:[%s1 + $0x450] sm:$0xff]
      %v310 = vld [vmem:[%s1 + $0x458] sm:$0xff]
      %v311 = vld [vmem:[%s1 + $0x460] sm:$0xff]
      %v312 = vld [vmem:[%s1 + $0x468] sm:$0xff]
      %v313 = vld [vmem:[%s1 + $0x470] sm:$0xff]
      %v314 = vld [vmem:[%s1 + $0x478] sm:$0xff]
      %v315 = vld [vmem:[%s1 + $0x480] sm:$0xff]
      %v316 = vld [vmem:[%s1 + $0x488] sm:$0xff]
      %v317 = vld [vmem:[%s1 + $0x490] sm:$0xff]
      %v318 = vld [vmem:[%s1 + $0x498] sm:$0xff]
      %v319 = vld [vmem:[%s1 + $0x4a0] sm:$0xff]
      %v320 = vld [vmem:[%s1 + $0x4a8] sm:$0xff]
      %v321 = vld [vmem:[%s1 + $0x4b0] sm:$0xff]
      %v322 = vld [vmem:[%s1 + $0x4b8] sm:$0xff]
      %v323 = vld [vmem:[%s1 + $0x4c0] sm:$0xff]
      %v324 = vld [vmem:[%s1 + $0x4c8] sm:$0xff]
      %v325 = vld [vmem:[%s1 + $0x4d0] sm:$0xff]
      %v326 = vld [vmem:[%s1 + $0x4d8] sm:$0xff]
      %v327 = vld [vmem:[%s1 + $0x4e0] sm:$0xff]
      %v328 = vld [vmem:[%s1 + $0x4e8] sm:$0xff]
      %v329 = vld [vmem:[%s1 + $0x4f0] sm:$0xff]
      %v330 = vld [vmem:[%s1 + $0x4f8] sm:$0xff]
      %v331 = vld [vmem:[%s1 + $0x500] sm:$0xff]
      %v332 = vld [vmem:[%s1 + $0x508] sm:$0xff]
      %v333 = vld [vmem:[%s1 + $0x510] sm:$0xff]
      %v334 = vld [vmem:[%s1 + $0x518] sm:$0xff]
      %v335 = vld [vmem:[%s1 + $0x520] sm:$0xff]
      %v336 = vld [vmem:[%s1 + $0x528] sm:$0xff]
      %v337 = vld [vmem:[%s1 + $0x530] sm:$0xff]
      %v338 = vld [vmem:[%s1 + $0x538] sm:$0xff]
      %v339 = vld [vmem:[%s1 + $0x540] sm:$0xff]
      %v340 = vld [vmem:[%s1 + $0x548] sm:$0xff]
      %v341 = vld [vmem:[%s1 + $0x550] sm:$0xff]
      %v342 = vld [vmem:[%s1 + $0x558] sm:$0xff]
      %v343 = vld [vmem:[%s1 + $0x560] sm:$0xff]
      %v344 = vld [vmem:[%s1 + $0x568] sm:$0xff]
      %v345 = vld [vmem:[%s1 + $0x570] sm:$0xff]
      %v346 = vld [vmem:[%s1 + $0x578] sm:$0xff]
      %v347 = vld [vmem:[%s1 + $0x580] sm:$0xff]
      %v348 = vld [vmem:[%s1 + $0x588] sm:$0xff]
      %v349 = vld [vmem:[%s1 + $0x590] sm:$0xff]
      %v350 = vld [vmem:[%s1 + $0x598] sm:$0xff]
      %v351 = vld [vmem:[%s1 + $0x5a0] sm:$0xff]
      %v352 = vld [vmem:[%s1 + $0x5a8] sm:$0xff]
      %v353 = vld [vmem:[%s1 + $0x5b0] sm:$0xff]
      %v354 = vld [vmem:[%s1 + $0x5b8] sm:$0xff]
      %v355 = vld [vmem:[%s1 + $0x5c0] sm:$0xff]
      %v356 = vld [vmem:[%s1 + $0x5c8] sm:$0xff]
      %v357 = vld [vmem:[%s1 + $0x5d0] sm:$0xff]
      %v358 = vld [vmem:[%s1 + $0x5d8] sm:$0xff]
      %v359 = vld [vmem:[%s1 + $0x5e0] sm:$0xff]
      %v360 = vld [vmem:[%s1 + $0x5e8] sm:$0xff]
      %v361 = vld [vmem:[%s1 + $0x5f0] sm:$0xff]
      %v362 = vld [vmem:[%s1 + $0x5f8] sm:$0xff]
      %v363 = vld [vmem:[%s1 + $0x600] sm:$0xff]
      %v364 = vld [vmem:[%s1 + $0x608] sm:$0xff]
      %v365 = vld [vmem:[%s1 + $0x610] sm:$0xff]
      %v366 = vld [vmem:[%s1 + $0x618] sm:$0xff]
      %v367 = vld [vmem:[%s1 + $0x620] sm:$0xff]
      %v368 = vld [vmem:[%s1 + $0x628] sm:$0xff]
      %v369 = vld [vmem:[%s1 + $0x630] sm:$0xff]
      %v370 = vld [vmem:[%s1 + $0x638] sm:$0xff]
      %v371 = vld [vmem:[%s1 + $0x640] sm:$0xff]
      %v372 = vld [vmem:[%s1 + $0x648] sm:$0xff]
      %v373 = vld [vmem:[%s1 + $0x650] sm:$0xff]
      %v374 = vld [vmem:[%s1 + $0x658] sm:$0xff]
      %v375 = vld [vmem:[%s1 + $0x660] sm:$0xff]
      %v376 = vld [vmem:[%s1 + $0x668] sm:$0xff]
      %v377 = vld [vmem:[%s1 + $0x670] sm:$0xff]
      %v378 = vld [vmem:[%s1 + $0x678] sm:$0xff]
      %v379 = vld [vmem:[%s1 + $0x680] sm:$0xff]
      %v380 = vld [vmem:[%s1 + $0x688] sm:$0xff]
      %v381 = vld [vmem:[%s1 + $0x690] sm:$0xff]
      %v382 = vld [vmem:[%s1 + $0x698] sm:$0xff]
      %v383 = vld [vmem:[%s1 + $0x6a0] sm:$0xff]
      %v384 = vld [vmem:[%s1 + $0x6a8] sm:$0xff]
      %v385 = vld [vmem:[%s1 + $0x6b0] sm:$0xff]
      %v386 = vld [vmem:[%s1 + $0x6b8] sm:$0xff]
      %v387 = vld [vmem:[%s1 + $0x6c0] sm:$0xff]
      %v388 = vld [vmem:[%s1 + $0x6c8] sm:$0xff]
      %v389 = vld [vmem:[%s1 + $0x6d0] sm:$0xff]
      %v390 = vld [vmem:[%s1 + $0x6d8] sm:$0xff]
      %v391 = vld [vmem:[%s1 + $0x6e0] sm:$0xff]
      %v392 = vld [vmem:[%s1 + $0x6e8] sm:$0xff]
      %v393 = vld [vmem:[%s1 + $0x6f0] sm:$0xff]
      %v394 = vld [vmem:[%s1 + $0x6f8] sm:$0xff]
      %v395 = vld [vmem:[%s1 + $0x700] sm:$0xff]
      %v396 = vld [vmem:[%s1 + $0x708] sm:$0xff]
      %v397 = vld [vmem:[%s1 + $0x710] sm:$0xff]
      %v398 = vld [vmem:[%s1 + $0x718] sm:$0xff]
      %v399 = vld [vmem:[%s1 + $0x720] sm:$0xff]
      %v400 = vld [vmem:[%s1 + $0x728] sm:$0xff]
      %v401 = vld [vmem:[%s1 + $0x730] sm:$0xff]
      %v402 = vld [vmem:[%s1 + $0x738] sm:$0xff]
      %v403 = vld [vmem:[%s1 + $0x740] sm:$0xff]
      %v404 = vld [vmem:[%s1 + $0x748] sm:$0xff]
      %v405 = vld [vmem:[%s1 + $0x750] sm:$0xff]
      %v406 = vld [vmem:[%s1 + $0x758] sm:$0xff]
      %v407 = vld [vmem:[%s1 + $0x760] sm:$0xff]
      %v408 = vld [vmem:[%s1 + $0x768] sm:$0xff]
      %v409 = vld [vmem:[%s1 + $0x770] sm:$0xff]
      %v410 = vld [vmem:[%s1 + $0x778] sm:$0xff]
      %v411 = vld [vmem:[%s1 + $0x780] sm:$0xff]
      %v412 = vld [vmem:[%s1 + $0x788] sm:$0xff]
      %v413 = vld [vmem:[%s1 + $0x790] sm:$0xff]
      %v414 = vld [vmem:[%s1 + $0x798] sm:$0xff]
      %v415 = vld [vmem:[%s1 + $0x7a0] sm:$0xff]
      %v416 = vld [vmem:[%s1 + $0x7a8] sm:$0xff]
      %v417 = vld [vmem:[%s1 + $0x7b0] sm:$0xff]
      %v418 = vld [vmem:[%s1 + $0x7b8] sm:$0xff]
      %v419 = vld [vmem:[%s1 + $0x7c0] sm:$0xff]
      %v420 = vld [vmem:[%s1 + $0x7c8] sm:$0xff]
      %v421 = vld [vmem:[%s1 + $0x7d0] sm:$0xff]
      %v422 = vld [vmem:[%s1 + $0x7d8] sm:$0xff]
      %v423 = vld [vmem:[%s1 + $0x7e0] sm:$0xff]
      %v424 = vld [vmem:[%s1 + $0x7e8] sm:$0xff]
      %v425 = vld [vmem:[%s1 + $0x7f0] sm:$0xff]
      %v426 = vld [vmem:[%s1 + $0x7f8] sm:$0xff]
      %v427 = vld [vmem:[%s1 + $0x800] sm:$0xff]
      %v428 = vld [vmem:[%s1 + $0x808] sm:$0xff]
      %v429 = vld [vmem:[%s1 + $0x810] sm:$0xff]
      %v430 = vld [vmem:[%s1 + $0x818] sm:$0xff]
      %v431 = vld [vmem:[%s1 + $0x820] sm:$0xff]
      %v432 = vld [vmem:[%s1 + $0x828] sm:$0xff]
      %v433 = vld [vmem:[%s1 + $0x830] sm:$0xff]
      %v434 = vld [vmem:[%s1 + $0x838] sm:$0xff]
      %v435 = vld [vmem:[%s1 + $0x840] sm:$0xff]
      %v436 = vld [vmem:[%s1 + $0x848] sm:$0xff]
      %v437 = vld [vmem:[%s1 + $0x850] sm:$0xff]
      %v438 = vld [vmem:[%s1 + $0x858] sm:$0xff]
      %v439 = vld [vmem:[%s1 + $0x860] sm:$0xff]
      %v440 = vld [vmem:[%s1 + $0x868] sm:$0xff]
      %v441 = vld [vmem:[%s1 + $0x870] sm:$0xff]
      %v442 = vld [vmem:[%s1 + $0x878] sm:$0xff]
      %v443 = vld [vmem:[%s1 + $0x880] sm:$0xff]
      %v444 = vld [vmem:[%s1 + $0x888] sm:$0xff]
      %v445 = vld [vmem:[%s1 + $0x890] sm:$0xff]
      %v446 = vld [vmem:[%s1 + $0x898] sm:$0xff]
      %v447 = vld [vmem:[%s1 + $0x8a0] sm:$0xff]
      %v448 = vld [vmem:[%s1 + $0x8a8] sm:$0xff]
      %v449 = vld [vmem:[%s1 + $0x8b0] sm:$0xff]
      %v450 = vld [vmem:[%s1 + $0x8b8] sm:$0xff]
      %v451 = vld [vmem:[%s1 + $0x8c0] sm:$0xff]
      %v452 = vld [vmem:[%s1 + $0x8c8] sm:$0xff]
      %v453 = vld [vmem:[%s1 + $0x8d0] sm:$0xff]
      %v454 = vld [vmem:[%s1 + $0x8d8] sm:$0xff]
      %v455 = vld [vmem:[%s1 + $0x8e0] sm:$0xff]
      %v456 = vld [vmem:[%s1 + $0x8e8] sm:$0xff]
      %v457 = vld [vmem:[%s1 + $0x8f0] sm:$0xff]
      %v458 = vld [vmem:[%s1 + $0x8f8] sm:$0xff]
      %v459 = vld [vmem:[%s1 + $0x900] sm:$0xff]
      %v460 = vld [vmem:[%s1 + $0x908] sm:$0xff]
      %v461 = vld [vmem:[%s1 + $0x910] sm:$0xff]
      %v462 = vld [vmem:[%s1 + $0x918] sm:$0xff]
      %v463 = vld [vmem:[%s1 + $0x920] sm:$0xff]
      %v464 = vld [vmem:[%s1 + $0x928] sm:$0xff]
      %v465 = vld [vmem:[%s1 + $0x930] sm:$0xff]
      %v466 = vld [vmem:[%s1 + $0x938] sm:$0xff]
      %v467 = vld [vmem:[%s1 + $0x940] sm:$0xff]
      %v468 = vld [vmem:[%s1 + $0x948] sm:$0xff]
      %v469 = vld [vmem:[%s1 + $0x950] sm:$0xff]
      %v470 = vld [vmem:[%s1 + $0x958] sm:$0xff]
      %v471 = vld [vmem:[%s1 + $0x960] sm:$0xff]
      %v472 = vld [vmem:[%s1 + $0x968] sm:$0xff]
      %v473 = vld [vmem:[%s1 + $0x970] sm:$0xff]
      %v474 = vld [vmem:[%s1 + $0x978] sm:$0xff]
      %v475 = vld [vmem:[%s1 + $0x980] sm:$0xff]
      %v476 = vld [vmem:[%s1 + $0x988] sm:$0xff]
      %v477 = vld [vmem:[%s1 + $0x990] sm:$0xff]
      %v478 = vld [vmem:[%s1 + $0x998] sm:$0xff]
      %v479 = vld [vmem:[%s1 + $0x9a0] sm:$0xff]
      %v480 = vld [vmem:[%s1 + $0x9a8] sm:$0xff]
      %v481 = vld [vmem:[%s1 + $0x9b0] sm:$0xff]
      %v482 = vld [vmem:[%s1 + $0x9b8] sm:$0xff]
      %v483 = vld [vmem:[%s1 + $0x9c0] sm:$0xff]
      %v484 = vld [vmem:[%s1 + $0x9c8] sm:$0xff]
      %v485 = vld [vmem:[%s1 + $0x9d0] sm:$0xff]
      %v486 = vld [vmem:[%s1 + $0x9d8] sm:$0xff]
      %v487 = vld [vmem:[%s1 + $0x9e0] sm:$0xff]
      %v488 = vld [vmem:[%s1 + $0x9e8] sm:$0xff]
      %v489 = vld [vmem:[%s1 + $0x9f0] sm:$0xff]
      %v490 = vld [vmem:[%s1 + $0x9f8] sm:$0xff]
      %v491 = vld [vmem:[%s1 + $0xa00] sm:$0xff]
      %v492 = vld [vmem:[%s1 + $0xa08] sm:$0xff]
      %v493 = vld [vmem:[%s1 + $0xa10] sm:$0xff]
      %v494 = vld [vmem:[%s1 + $0xa18] sm:$0xff]
      %v495 = vld [vmem:[%s1 + $0xa20] sm:$0xff]
      %v496 = vld [vmem:[%s1 + $0xa28] sm:$0xff]
      %v497 = vld [vmem:[%s1 + $0xa30] sm:$0xff]
      %v498 = vld [vmem:[%s1 + $0xa38] sm:$0xff]
      %v499 = vld [vmem:[%s1 + $0xa40] sm:$0xff]
      %v500 = vld [vmem:[%s1 + $0xa48] sm:$0xff]
      %v501 = vld [vmem:[%s1 + $0xa50] sm:$0xff]
      %v502 = vld [vmem:[%s1 + $0xa58] sm:$0xff]
      %v503 = vld [vmem:[%s1 + $0xa60] sm:$0xff]
      %v504 = vld [vmem:[%s1 + $0xa68] sm:$0xff]
      %v505 = vld [vmem:[%s1 + $0xa70] sm:$0xff]
      %v506 = vld [vmem:[%s1 + $0xa78] sm:$0xff]
      %v507 = vld [vmem:[%s1 + $0xa80] sm:$0xff]
      %v508 = vld [vmem:[%s1 + $0xa88] sm:$0xff]
      %v509 = vld [vmem:[%s1 + $0xa90] sm:$0xff]
      %v510 = vld [vmem:[%s1 + $0xa98] sm:$0xff]
      %v511 = vld [vmem:[%s1 + $0xaa0] sm:$0xff]
      %v512 = vld [vmem:[%s1 + $0xaa8] sm:$0xff]
      %v513 = vld [vmem:[%s1 + $0xab0] sm:$0xff]
      %v514 = vld [vmem:[%s1 + $0xab8] sm:$0xff]
      %v515 = vld [vmem:[%s1 + $0xac0] sm:$0xff]
      %v516 = vld [vmem:[%s1 + $0xac8] sm:$0xff]
      %v517 = vld [vmem:[%s1 + $0xad0] sm:$0xff]
      %v518 = vld [vmem:[%s1 + $0xad8] sm:$0xff]
      %v519 = vld [vmem:[%s1 + $0xae0] sm:$0xff]
      %v520 = vld [vmem:[%s1 + $0xae8] sm:$0xff]
      %v521 = vld [vmem:[%s1 + $0xaf0] sm:$0xff]
      %v522 = vld [vmem:[%s1 + $0xaf8] sm:$0xff]
      %v523 = vld [vmem:[%s1 + $0xb00] sm:$0xff]
      %v524 = vld [vmem:[%s1 + $0xb08] sm:$0xff]
      %v525 = vld [vmem:[%s1 + $0xb10] sm:$0xff]
      %v526 = vld [vmem:[%s1 + $0xb18] sm:$0xff]
      %v527 = vld [vmem:[%s1 + $0xb20] sm:$0xff]
      %v528 = vld [vmem:[%s1 + $0xb28] sm:$0xff]
      %v529 = vld [vmem:[%s1 + $0xb30] sm:$0xff]
      %v530 = vld [vmem:[%s1 + $0xb38] sm:$0xff]
      %v531 = vld [vmem:[%s1 + $0xb40] sm:$0xff]
      %v532 = vld [vmem:[%s1 + $0xb48] sm:$0xff]
      %v533 = vld [vmem:[%s1 + $0xb50] sm:$0xff]
      %v534 = vld [vmem:[%s1 + $0xb58] sm:$0xff]
      %v535 = vld [vmem:[%s1 + $0xb60] sm:$0xff]
      %v536 = vld [vmem:[%s1 + $0xb68] sm:$0xff]
      %v537 = vld [vmem:[%s1 + $0xb70] sm:$0xff]
      %v538 = vld [vmem:[%s1 + $0xb78] sm:$0xff]
      %v539 = vld [vmem:[%s1 + $0xb80] sm:$0xff]
      %v540 = vld [vmem:[%s1 + $0xb88] sm:$0xff]
      %v541 = vld [vmem:[%s1 + $0xb90] sm:$0xff]
      %v542 = vld [vmem:[%s1 + $0xb98] sm:$0xff]
      %v543 = vld [vmem:[%s1 + $0xba0] sm:$0xff]
      %v544 = vld [vmem:[%s1 + $0xba8] sm:$0xff]
      %v545 = vld [vmem:[%s1 + $0xbb0] sm:$0xff]
      %v546 = vld [vmem:[%s1 + $0xbb8] sm:$0xff]
      %v547 = vld [vmem:[%s1 + $0xbc0] sm:$0xff]
      %v548 = vld [vmem:[%s1 + $0xbc8] sm:$0xff]
      %v549 = vld [vmem:[%s1 + $0xbd0] sm:$0xff]
      %v550 = vld [vmem:[%s1 + $0xbd8] sm:$0xff]
      %v551 = vld [vmem:[%s1 + $0xbe0] sm:$0xff]
      %v552 = vld [vmem:[%s1 + $0xbe8] sm:$0xff]
      %v553 = vld [vmem:[%s1 + $0xbf0] sm:$0xff]
      %v554 = vld [vmem:[%s1 + $0xbf8] sm:$0xff]
      %v555 = vld [vmem:[%s1 + $0xc00] sm:$0xff]
      %v556 = vld [vmem:[%s1 + $0xc08] sm:$0xff]
      %v557 = vld [vmem:[%s1 + $0xc10] sm:$0xff]
      %v558 = vld [vmem:[%s1 + $0xc18] sm:$0xff]
      %v559 = vld [vmem:[%s1 + $0xc20] sm:$0xff]
      %v560 = vld [vmem:[%s1 + $0xc28] sm:$0xff]
      %v561 = vld [vmem:[%s1 + $0xc30] sm:$0xff]
      %v562 = vld [vmem:[%s1 + $0xc38] sm:$0xff]
      %v563 = vld [vmem:[%s1 + $0xc40] sm:$0xff]
      %v564 = vld [vmem:[%s1 + $0xc48] sm:$0xff]
      %v565 = vld [vmem:[%s1 + $0xc50] sm:$0xff]
      %v566 = vld [vmem:[%s1 + $0xc58] sm:$0xff]
      %v567 = vld [vmem:[%s1 + $0xc60] sm:$0xff]
      %v568 = vld [vmem:[%s1 + $0xc68] sm:$0xff]
      %v569 = vld [vmem:[%s1 + $0xc70] sm:$0xff]
      %v570 = vld [vmem:[%s1 + $0xc78] sm:$0xff]
      %v571 = vld [vmem:[%s1 + $0xc80] sm:$0xff]
      %v572 = vld [vmem:[%s1 + $0xc88] sm:$0xff]
      %v573 = vld [vmem:[%s1 + $0xc90] sm:$0xff]
      %v574 = vld [vmem:[%s1 + $0xc98] sm:$0xff]
      %v575 = vld [vmem:[%s1 + $0xca0] sm:$0xff]
      %v576 = vld [vmem:[%s1 + $0xca8] sm:$0xff]
      %v577 = vld [vmem:[%s1 + $0xcb0] sm:$0xff]
      %v578 = vld [vmem:[%s1 + $0xcb8] sm:$0xff]
      %v579 = vld [vmem:[%s1 + $0xcc0] sm:$0xff]
      %v580 = vld [vmem:[%s1 + $0xcc8] sm:$0xff]
      %v581 = vld [vmem:[%s1 + $0xcd0] sm:$0xff]
      %v582 = vld [vmem:[%s1 + $0xcd8] sm:$0xff]
      %v583 = vld [vmem:[%s1 + $0xce0] sm:$0xff]
      %v584 = vld [vmem:[%s1 + $0xce8] sm:$0xff]
      %v585 = vld [vmem:[%s1 + $0xcf0] sm:$0xff]
      %v586 = vld [vmem:[%s1 + $0xcf8] sm:$0xff]
      %v587 = vld [vmem:[%s1 + $0xd00] sm:$0xff]
      %v588 = vld [vmem:[%s1 + $0xd08] sm:$0xff]
      %v589 = vld [vmem:[%s1 + $0xd10] sm:$0xff]
      %v590 = vld [vmem:[%s1 + $0xd18] sm:$0xff]
      %v591 = vld [vmem:[%s1 + $0xd20] sm:$0xff]
      %v592 = vld [vmem:[%s1 + $0xd28] sm:$0xff]
      %v593 = vld [vmem:[%s1 + $0xd30] sm:$0xff]
      %v594 = vld [vmem:[%s1 + $0xd38] sm:$0xff]
      %v595 = vld [vmem:[%s1 + $0xd40] sm:$0xff]
      %v596 = vld [vmem:[%s1 + $0xd48] sm:$0xff]
      %v597 = vld [vmem:[%s1 + $0xd50] sm:$0xff]
      %v598 = vld [vmem:[%s1 + $0xd58] sm:$0xff]
      %v599 = vld [vmem:[%s1 + $0xd60] sm:$0xff]
      %v600 = vld [vmem:[%s1 + $0xd68] sm:$0xff]
      %v601 = vld [vmem:[%s1 + $0xd70] sm:$0xff]
      %v602 = vld [vmem:[%s1 + $0xd78] sm:$0xff]
      %v603 = vld [vmem:[%s1 + $0xd80] sm:$0xff]
      %v604 = vld [vmem:[%s1 + $0xd88] sm:$0xff]
      %v605 = vld [vmem:[%s1 + $0xd90] sm:$0xff]
      %v606 = vld [vmem:[%s1 + $0xd98] sm:$0xff]
      %v607 = vld [vmem:[%s1 + $0xda0] sm:$0xff]
      %v608 = vld [vmem:[%s1 + $0xda8] sm:$0xff]
      %v609 = vld [vmem:[%s1 + $0xdb0] sm:$0xff]
      %v610 = vld [vmem:[%s1 + $0xdb8] sm:$0xff]
      %v611 = vld [vmem:[%s1 + $0xdc0] sm:$0xff]
      %v612 = vld [vmem:[%s1 + $0xdc8] sm:$0xff]
      %v613 = vld [vmem:[%s1 + $0xdd0] sm:$0xff]
      %v614 = vld [vmem:[%s1 + $0xdd8] sm:$0xff]
      %v615 = vld [vmem:[%s1 + $0xde0] sm:$0xff]
      %v616 = vld [vmem:[%s1 + $0xde8] sm:$0xff]
      %v617 = vld [vmem:[%s1 + $0xdf0] sm:$0xff]
      %v618 = vld [vmem:[%s1 + $0xdf8] sm:$0xff]
      %v619 = vld [vmem:[%s1 + $0xe00] sm:$0xff]
      %v620 = vld [vmem:[%s1 + $0xe08] sm:$0xff]
      %v621 = vld [vmem:[%s1 + $0xe10] sm:$0xff]
      %v622 = vld [vmem:[%s1 + $0xe18] sm:$0xff]
      %v623 = vld [vmem:[%s1 + $0xe20] sm:$0xff]
      %v624 = vld [vmem:[%s1 + $0xe28] sm:$0xff]
      %v625 = vld [vmem:[%s1 + $0xe30] sm:$0xff]
      %v626 = vld [vmem:[%s1 + $0xe38] sm:$0xff]
      %v627 = vld [vmem:[%s1 + $0xe40] sm:$0xff]
      %v628 = vld [vmem:[%s1 + $0xe48] sm:$0xff]
      %v629 = vld [vmem:[%s1 + $0xe50] sm:$0xff]
      %v630 = vld [vmem:[%s1 + $0xe58] sm:$0xff]
      %v631 = vld [vmem:[%s1 + $0xe60] sm:$0xff]
      %v632 = vld [vmem:[%s1 + $0xe68] sm:$0xff]
      %v633 = vld [vmem:[%s1 + $0xe70] sm:$0xff]
      %v634 = vld [vmem:[%s1 + $0xe78] sm:$0xff]
      %v635 = vld [vmem:[%s1 + $0xe80] sm:$0xff]
      %v636 = vld [vmem:[%s1 + $0xe88] sm:$0xff]
      %v637 = vld [vmem:[%s1 + $0xe90] sm:$0xff]
      %v638 = vld [vmem:[%s1 + $0xe98] sm:$0xff]
      %v639 = vld [vmem:[%s1 + $0xea0] sm:$0xff]
      %v640 = vld [vmem:[%s1 + $0xea8] sm:$0xff]
      %v641 = vld [vmem:[%s1 + $0xeb0] sm:$0xff]
      %v642 = vld [vmem:[%s1 + $0xeb8] sm:$0xff]
      %v643 = vld [vmem:[%s1 + $0xec0] sm:$0xff]
      %v644 = vld [vmem:[%s1 + $0xec8] sm:$0xff]
      %v645 = vld [vmem:[%s1 + $0xed0] sm:$0xff]
      %v646 = vld [vmem:[%s1 + $0xed8] sm:$0xff]
      %v647 = vld [vmem:[%s1 + $0xee0] sm:$0xff]
      %v648 = vld [vmem:[%s1 + $0xee8] sm:$0xff]
      %v649 = vld [vmem:[%s1 + $0xef0] sm:$0xff]
      %v650 = vld [vmem:[%s1 + $0xef8] sm:$0xff]
      %v651 = vld [vmem:[%s1 + $0xf00] sm:$0xff]
      %v652 = vld [vmem:[%s1 + $0xf08] sm:$0xff]
      %v653 = vld [vmem:[%s1 + $0xf10] sm:$0xff]
      %v654 = vld [vmem:[%s1 + $0xf18] sm:$0xff]
      %v655 = vld [vmem:[%s1 + $0xf20] sm:$0xff]
      %v656 = vld [vmem:[%s1 + $0xf28] sm:$0xff]
      %v657 = vld [vmem:[%s1 + $0xf30] sm:$0xff]
      %v658 = vld [vmem:[%s1 + $0xf38] sm:$0xff]
      %v659 = vld [vmem:[%s1 + $0xf40] sm:$0xff]
      %v660 = vld [vmem:[%s1 + $0xf48] sm:$0xff]
      %v661 = vld [vmem:[%s1 + $0xf50] sm:$0xff]
      %v662 = vld [vmem:[%s1 + $0xf58] sm:$0xff]
      %v663 = vld [vmem:[%s1 + $0xf60] sm:$0xff]
      %v664 = vld [vmem:[%s1 + $0xf68] sm:$0xff]
      %v665 = vld [vmem:[%s1 + $0xf70] sm:$0xff]
      %v666 = vld [vmem:[%s1 + $0xf78] sm:$0xff]
      %v667 = vld [vmem:[%s1 + $0xf80] sm:$0xff]
      %v668 = vld [vmem:[%s1 + $0xf88] sm:$0xff]
      %v669 = vld [vmem:[%s1 + $0xf90] sm:$0xff]
      %v670 = vld [vmem:[%s1 + $0xf98] sm:$0xff]
      %v671 = vld [vmem:[%s1 + $0xfa0] sm:$0xff]
      %v672 = vld [vmem:[%s1 + $0xfa8] sm:$0xff]
      %v673 = vld [vmem:[%s1 + $0xfb0] sm:$0xff]
      %v674 = vld [vmem:[%s1 + $0xfb8] sm:$0xff]
      %v675 = vld [vmem:[%s1 + $0xfc0] sm:$0xff]
      %v676 = vld [vmem:[%s1 + $0xfc8] sm:$0xff]
      %v677 = vld [vmem:[%s1 + $0xfd0] sm:$0xff]
      %v678 = vld [vmem:[%s1 + $0xfd8] sm:$0xff]
      %v679 = vld [vmem:[%s1 + $0xfe0] sm:$0xff]
      %v680 = vld [vmem:[%s1 + $0xfe8] sm:$0xff]
      %v681 = vld [vmem:[%s1 + $0xff0] sm:$0xff]
      %v682 = vld [vmem:[%s1 + $0xff8] sm:$0xff]
      %v683 = vld [vmem:[%s1 + $0x1000] sm:$0xff]
      %v684 = vld [vmem:[%s1 + $0x1008] sm:$0xff]
      %v685 = vld [vmem:[%s1 + $0x1010] sm:$0xff]
      %v686 = vld [vmem:[%s1 + $0x1018] sm:$0xff]
      %v687 = vld [vmem:[%s1 + $0x1020] sm:$0xff]
      %v688 = vld [vmem:[%s1 + $0x1028] sm:$0xff]
      %v689 = vld [vmem:[%s1 + $0x1030] sm:$0xff]
      %v690 = vld [vmem:[%s1 + $0x1038] sm:$0xff]
      %v691 = vld [vmem:[%s1 + $0x1040] sm:$0xff]
      %v692 = vld [vmem:[%s1 + $0x1048] sm:$0xff]
      %v693 = vld [vmem:[%s1 + $0x1050] sm:$0xff]
      %v694 = vld [vmem:[%s1 + $0x1058] sm:$0xff]
      %v695 = vld [vmem:[%s1 + $0x1060] sm:$0xff]
      %v696 = vld [vmem:[%s1 + $0x1068] sm:$0xff]
      %v697 = vld [vmem:[%s1 + $0x1070] sm:$0xff]
      %v698 = vld [vmem:[%s1 + $0x1078] sm:$0xff]
      %v699 = vld [vmem:[%s1 + $0x1080] sm:$0xff]
      %v700 = vld [vmem:[%s1 + $0x1088] sm:$0xff]
      %v701 = vld [vmem:[%s1 + $0x1090] sm:$0xff]
      %v702 = vld [vmem:[%s1 + $0x1098] sm:$0xff]
      %v703 = vld [vmem:[%s1 + $0x10a0] sm:$0xff]
      %v704 = vld [vmem:[%s1 + $0x10a8] sm:$0xff]
      %v705 = vld [vmem:[%s1 + $0x10b0] sm:$0xff]
      %v706 = vld [vmem:[%s1 + $0x10b8] sm:$0xff]
      %v707 = vld [vmem:[%s1 + $0x10c0] sm:$0xff]
      %v708 = vld [vmem:[%s1 + $0x10c8] sm:$0xff]
      %v709 = vld [vmem:[%s1 + $0x10d0] sm:$0xff]
      %v710 = vld [vmem:[%s1 + $0x10d8] sm:$0xff]
      %v711 = vld [vmem:[%s1 + $0x10e0] sm:$0xff]
      %v712 = vld [vmem:[%s1 + $0x10e8] sm:$0xff]
      %v713 = vld [vmem:[%s1 + $0x10f0] sm:$0xff]
      %v714 = vld [vmem:[%s1 + $0x10f8] sm:$0xff]
      %v715 = vld [vmem:[%s1 + $0x1100] sm:$0xff]
      %v716 = vld [vmem:[%s1 + $0x1108] sm:$0xff]
      %v717 = vld [vmem:[%s1 + $0x1110] sm:$0xff]
      %v718 = vld [vmem:[%s1 + $0x1118] sm:$0xff]
      %v719 = vld [vmem:[%s1 + $0x1120] sm:$0xff]
      %v720 = vld [vmem:[%s1 + $0x1128] sm:$0xff]
      %v721 = vld [vmem:[%s1 + $0x1130] sm:$0xff]
      %v722 = vld [vmem:[%s1 + $0x1138] sm:$0xff]
      %v723 = vld [vmem:[%s1 + $0x1140] sm:$0xff]
      %v724 = vld [vmem:[%s1 + $0x1148] sm:$0xff]
      %v725 = vld [vmem:[%s1 + $0x1150] sm:$0xff]
      %v726 = vld [vmem:[%s1 + $0x1158] sm:$0xff]
      %v727 = vld [vmem:[%s1 + $0x1160] sm:$0xff]
      %v728 = vld [vmem:[%s1 + $0x1168] sm:$0xff]
      %v729 = vld [vmem:[%s1 + $0x1170] sm:$0xff]
      %v730 = vld [vmem:[%s1 + $0x1178] sm:$0xff]
      %v731 = vld [vmem:[%s1 + $0x1180] sm:$0xff]
      %v732 = vld [vmem:[%s1 + $0x1188] sm:$0xff]
      %v733 = vld [vmem:[%s1 + $0x1190] sm:$0xff]
      %v734 = vld [vmem:[%s1 + $0x1198] sm:$0xff]
      %v735 = vld [vmem:[%s1 + $0x11a0] sm:$0xff]
      %v736 = vld [vmem:[%s1 + $0x11a8] sm:$0xff]
      %v737 = vld [vmem:[%s1 + $0x11b0] sm:$0xff]
      %v738 = vld [vmem:[%s1 + $0x11b8] sm:$0xff]
      %v739 = vld [vmem:[%s1 + $0x11c0] sm:$0xff]
      %v740 = vld [vmem:[%s1 + $0x11c8] sm:$0xff]
      %v741 = vld [vmem:[%s1 + $0x11d0] sm:$0xff]
      %v742 = vld [vmem:[%s1 + $0x11d8] sm:$0xff]
      %v743 = vld [vmem:[%s1 + $0x11e0] sm:$0xff]
      %v744 = vld [vmem:[%s1 + $0x11e8] sm:$0xff]
      %v745 = vld [vmem:[%s1 + $0x11f0] sm:$0xff]
      %v746 = vld [vmem:[%s1 + $0x11f8] sm:$0xff]
      %v747 = vld [vmem:[%s1 + $0x1200] sm:$0xff]
      %v748 = vld [vmem:[%s1 + $0x1208] sm:$0xff]
      %v749 = vld [vmem:[%s1 + $0x1210] sm:$0xff]
      %v750 = vld [vmem:[%s1 + $0x1218] sm:$0xff]
      %v751 = vld [vmem:[%s1 + $0x1220] sm:$0xff]
      %v752 = vld [vmem:[%s1 + $0x1228] sm:$0xff]
      %v753 = vld [vmem:[%s1 + $0x1230] sm:$0xff]
      %v754 = vld [vmem:[%s1 + $0x1238] sm:$0xff]
      %v755 = vld [vmem:[%s1 + $0x1240] sm:$0xff]
      %v756 = vld [vmem:[%s1 + $0x1248] sm:$0xff]
      %v757 = vld [vmem:[%s1 + $0x1250] sm:$0xff]
      %v758 = vld [vmem:[%s1 + $0x1258] sm:$0xff]
      %v759 = vld [vmem:[%s1 + $0x1260] sm:$0xff]
      %v760 = vld [vmem:[%s1 + $0x1268] sm:$0xff]
      %v761 = vld [vmem:[%s1 + $0x1270] sm:$0xff]
      %v762 = vld [vmem:[%s1 + $0x1278] sm:$0xff]
      %v763 = vld [vmem:[%s1 + $0x1280] sm:$0xff]
      %v764 = vld [vmem:[%s1 + $0x1288] sm:$0xff]
      %v765 = vld [vmem:[%s1 + $0x1290] sm:$0xff]
      %v766 = vld [vmem:[%s1 + $0x1298] sm:$0xff]
      %v767 = vld [vmem:[%s1 + $0x12a0] sm:$0xff]
      %v768 = vld [vmem:[%s1 + $0x12a8] sm:$0xff]
      %v769 = vld [vmem:[%s1 + $0x12b0] sm:$0xff]
      %v770 = vld [vmem:[%s1 + $0x12b8] sm:$0xff]
      %v771 = vld [vmem:[%s1 + $0x12c0] sm:$0xff]
      %v772 = vld [vmem:[%s1 + $0x12c8] sm:$0xff]
      %v773 = vld [vmem:[%s1 + $0x12d0] sm:$0xff]
      %v774 = vld [vmem:[%s1 + $0x12d8] sm:$0xff]
      %v775 = vld [vmem:[%s1 + $0x12e0] sm:$0xff]
      %v776 = vld [vmem:[%s1 + $0x12e8] sm:$0xff]
      %v777 = vld [vmem:[%s1 + $0x12f0] sm:$0xff]
      %v778 = vld [vmem:[%s1 + $0x12f8] sm:$0xff]
      %v779 = vld [vmem:[%s1 + $0x1300] sm:$0xff]
      %v780 = vld [vmem:[%s1 + $0x1308] sm:$0xff]
      %v781 = vld [vmem:[%s1 + $0x1310] sm:$0xff]
      %v782 = vld [vmem:[%s1 + $0x1318] sm:$0xff]
      %v783 = vld [vmem:[%s1 + $0x1320] sm:$0xff]
      %v784 = vld [vmem:[%s1 + $0x1328] sm:$0xff]
      %v785 = vld [vmem:[%s1 + $0x1330] sm:$0xff]
      %v786 = vld [vmem:[%s1 + $0x1338] sm:$0xff]
      %v787 = vld [vmem:[%s1 + $0x1340] sm:$0xff]
      %v788 = vld [vmem:[%s1 + $0x1348] sm:$0xff]
      %v789 = vld [vmem:[%s1 + $0x1350] sm:$0xff]
      %v790 = vld [vmem:[%s1 + $0x1358] sm:$0xff]
      %v791 = vld [vmem:[%s1 + $0x1360] sm:$0xff]
      %v792 = vld [vmem:[%s1 + $0x1368] sm:$0xff]
      %v793 = vld [vmem:[%s1 + $0x1370] sm:$0xff]
      %v794 = vld [vmem:[%s1 + $0x1378] sm:$0xff]
      %v795 = vld [vmem:[%s1 + $0x1380] sm:$0xff]
      %v796 = vld [vmem:[%s1 + $0x1388] sm:$0xff]
      %v797 = vld [vmem:[%s1 + $0x1390] sm:$0xff]
      %v798 = vld [vmem:[%s1 + $0x1398] sm:$0xff]
      %v799 = vld [vmem:[%s1 + $0x13a0] sm:$0xff]
      %v800 = vld [vmem:[%s1 + $0x13a8] sm:$0xff]
      %v801 = vld [vmem:[%s1 + $0x13b0] sm:$0xff]
      %v802 = vld [vmem:[%s1 + $0x13b8] sm:$0xff]
      %v803 = vld [vmem:[%s1 + $0x13c0] sm:$0xff]
      %v804 = vld [vmem:[%s1 + $0x13c8] sm:$0xff]
      %v805 = vld [vmem:[%s1 + $0x13d0] sm:$0xff]
      %v806 = vld [vmem:[%s1 + $0x13d8] sm:$0xff]
      %v807 = vld [vmem:[%s1 + $0x13e0] sm:$0xff]
      %v808 = vld [vmem:[%s1 + $0x13e8] sm:$0xff]
      %v809 = vld [vmem:[%s1 + $0x13f0] sm:$0xff]
      %v810 = vld [vmem:[%s1 + $0x13f8] sm:$0xff]
      %v811 = vld [vmem:[%s1 + $0x1400] sm:$0xff]
      %v812 = vld [vmem:[%s1 + $0x1408] sm:$0xff]
      %v813 = vld [vmem:[%s1 + $0x1410] sm:$0xff]
      %v814 = vld [vmem:[%s1 + $0x1418] sm:$0xff]
      %v815 = vld [vmem:[%s1 + $0x1420] sm:$0xff]
      %v816 = vld [vmem:[%s1 + $0x1428] sm:$0xff]
      %v817 = vld [vmem:[%s1 + $0x1430] sm:$0xff]
      %v818 = vld [vmem:[%s1 + $0x1438] sm:$0xff]
      %v819 = vld [vmem:[%s1 + $0x1440] sm:$0xff]
      %v820 = vld [vmem:[%s1 + $0x1448] sm:$0xff]
      %v821 = vld [vmem:[%s1 + $0x1450] sm:$0xff]
      %v822 = vld [vmem:[%s1 + $0x1458] sm:$0xff]
      %v823 = vld [vmem:[%s1 + $0x1460] sm:$0xff]
      %v824 = vld [vmem:[%s1 + $0x1468] sm:$0xff]
      %v825 = vld [vmem:[%s1 + $0x1470] sm:$0xff]
      %v826 = vld [vmem:[%s1 + $0x1478] sm:$0xff]
      %v827 = vld [vmem:[%s1 + $0x1480] sm:$0xff]
      %v828 = vld [vmem:[%s1 + $0x1488] sm:$0xff]
      %v829 = vld [vmem:[%s1 + $0x1490] sm:$0xff]
      %v830 = vld [vmem:[%s1 + $0x1498] sm:$0xff]
      %v831 = vld [vmem:[%s1 + $0x14a0] sm:$0xff]
      %v832 = vld [vmem:[%s1 + $0x14a8] sm:$0xff]
      %v833 = vld [vmem:[%s1 + $0x14b0] sm:$0xff]
      %v834 = vld [vmem:[%s1 + $0x14b8] sm:$0xff]
      %v835 = vld [vmem:[%s1 + $0x14c0] sm:$0xff]
      %v836 = vld [vmem:[%s1 + $0x14c8] sm:$0xff]
      %v837 = vld [vmem:[%s1 + $0x14d0] sm:$0xff]
      %v838 = vld [vmem:[%s1 + $0x14d8] sm:$0xff]
      %v839 = vld [vmem:[%s1 + $0x14e0] sm:$0xff]
      %v840 = vld [vmem:[%s1 + $0x14e8] sm:$0xff]
      %v841 = vld [vmem:[%s1 + $0x14f0] sm:$0xff]
      %v842 = vld [vmem:[%s1 + $0x14f8] sm:$0xff]
      %v843 = vld [vmem:[%s1 + $0x1500] sm:$0xff]
      %v844 = vld [vmem:[%s1 + $0x1508] sm:$0xff]
      %v845 = vld [vmem:[%s1 + $0x1510] sm:$0xff]
      %v846 = vld [vmem:[%s1 + $0x1518] sm:$0xff]
      %v847 = vld [vmem:[%s1 + $0x1520] sm:$0xff]
      %v848 = vld [vmem:[%s1 + $0x1528] sm:$0xff]
      %v849 = vld [vmem:[%s1 + $0x1530] sm:$0xff]
      %v850 = vld [vmem:[%s1 + $0x1538] sm:$0xff]
      %v851 = vld [vmem:[%s1 + $0x1540] sm:$0xff]
      %v852 = vld [vmem:[%s1 + $0x1548] sm:$0xff]
      %v853 = vld [vmem:[%s1 + $0x1550] sm:$0xff]
      %v854 = vld [vmem:[%s1 + $0x1558] sm:$0xff]
      %v855 = vld [vmem:[%s1 + $0x1560] sm:$0xff]
      %v856 = vld [vmem:[%s1 + $0x1568] sm:$0xff]
      %v857 = vld [vmem:[%s1 + $0x1570] sm:$0xff]
      %v858 = vld [vmem:[%s1 + $0x1578] sm:$0xff]
      %v859 = vld [vmem:[%s1 + $0x1580] sm:$0xff]
      %v860 = vld [vmem:[%s1 + $0x1588] sm:$0xff]
      %v861 = vld [vmem:[%s1 + $0x1590] sm:$0xff]
      %v862 = vld [vmem:[%s1 + $0x1598] sm:$0xff]
      %v863 = vld [vmem:[%s1 + $0x15a0] sm:$0xff]
      %v864 = vld [vmem:[%s1 + $0x15a8] sm:$0xff]
      %v865 = vld [vmem:[%s1 + $0x15b0] sm:$0xff]
      %v866 = vld [vmem:[%s1 + $0x15b8] sm:$0xff]
      %v867 = vld [vmem:[%s1 + $0x15c0] sm:$0xff]
      %v868 = vld [vmem:[%s1 + $0x15c8] sm:$0xff]
      %v869 = vld [vmem:[%s1 + $0x15d0] sm:$0xff]
      %v870 = vld [vmem:[%s1 + $0x15d8] sm:$0xff]
      %v871 = vld [vmem:[%s1 + $0x15e0] sm:$0xff]
      %v872 = vld [vmem:[%s1 + $0x15e8] sm:$0xff]
      %v873 = vld [vmem:[%s1 + $0x15f0] sm:$0xff]
      %v874 = vld [vmem:[%s1 + $0x15f8] sm:$0xff]
      %v875 = vld [vmem:[%s1 + $0x1600] sm:$0xff]
      %v876 = vld [vmem:[%s1 + $0x1608] sm:$0xff]
      %v877 = vld [vmem:[%s1 + $0x1610] sm:$0xff]
      %v878 = vld [vmem:[%s1 + $0x1618] sm:$0xff]
      %v879 = vld [vmem:[%s1 + $0x1620] sm:$0xff]
      %v880 = vld [vmem:[%s1 + $0x1628] sm:$0xff]
      %v881 = vld [vmem:[%s1 + $0x1630] sm:$0xff]
      %v882 = vld [vmem:[%s1 + $0x1638] sm:$0xff]
      %v883 = vld [vmem:[%s1 + $0x1640] sm:$0xff]
      %v884 = vld [vmem:[%s1 + $0x1648] sm:$0xff]
      %v885 = vld [vmem:[%s1 + $0x1650] sm:$0xff]
      %v886 = vld [vmem:[%s1 + $0x1658] sm:$0xff]
      %v887 = vld [vmem:[%s1 + $0x1660] sm:$0xff]
      %v888 = vld [vmem:[%s1 + $0x1668] sm:$0xff]
      %v889 = vld [vmem:[%s1 + $0x1670] sm:$0xff]
      %v890 = vld [vmem:[%s1 + $0x1678] sm:$0xff]
      %v891 = vld [vmem:[%s1 + $0x1680] sm:$0xff]
      %v892 = vld [vmem:[%s1 + $0x1688] sm:$0xff]
      %v893 = vld [vmem:[%s1 + $0x1690] sm:$0xff]
      %v894 = vld [vmem:[%s1 + $0x1698] sm:$0xff]
      %v895 = vld [vmem:[%s1 + $0x16a0] sm:$0xff]
      %v896 = vld [vmem:[%s1 + $0x16a8] sm:$0xff]
      %v897 = vld [vmem:[%s1 + $0x16b0] sm:$0xff]
      %v898 = vld [vmem:[%s1 + $0x16b8] sm:$0xff]
      %v899 = vld [vmem:[%s1 + $0x16c0] sm:$0xff]
      %v900 = vld [vmem:[%s1 + $0x16c8] sm:$0xff]
      %v901 = vld [vmem:[%s1 + $0x16d0] sm:$0xff]
      %v902 = vld [vmem:[%s1 + $0x16d8] sm:$0xff]
      %v903 = vld [vmem:[%s1 + $0x16e0] sm:$0xff]
      %v904 = vld [vmem:[%s1 + $0x16e8] sm:$0xff]
      %v905 = vld [vmem:[%s1 + $0x16f0] sm:$0xff]
      %v906 = vld [vmem:[%s1 + $0x16f8] sm:$0xff]
      %v907 = vld [vmem:[%s1 + $0x1700] sm:$0xff]
      %v908 = vld [vmem:[%s1 + $0x1708] sm:$0xff]
      %v909 = vld [vmem:[%s1 + $0x1710] sm:$0xff]
      %v910 = vld [vmem:[%s1 + $0x1718] sm:$0xff]
      %v911 = vld [vmem:[%s1 + $0x1720] sm:$0xff]
      %v912 = vld [vmem:[%s1 + $0x1728] sm:$0xff]
      %v913 = vld [vmem:[%s1 + $0x1730] sm:$0xff]
      %v914 = vld [vmem:[%s1 + $0x1738] sm:$0xff]
      %v915 = vld [vmem:[%s1 + $0x1740] sm:$0xff]
      %v916 = vld [vmem:[%s1 + $0x1748] sm:$0xff]
      %v917 = vld [vmem:[%s1 + $0x1750] sm:$0xff]
      %v918 = vld [vmem:[%s1 + $0x1758] sm:$0xff]
      %v919 = vld [vmem:[%s1 + $0x1760] sm:$0xff]
      %v920 = vld [vmem:[%s1 + $0x1768] sm:$0xff]
      %v921 = vld [vmem:[%s1 + $0x1770] sm:$0xff]
      %v922 = vld [vmem:[%s1 + $0x1778] sm:$0xff]
      %v923 = vld [vmem:[%s1 + $0x1780] sm:$0xff]
      %v924 = vld [vmem:[%s1 + $0x1788] sm:$0xff]
      %v925 = vld [vmem:[%s1 + $0x1790] sm:$0xff]
      %v926 = vld [vmem:[%s1 + $0x1798] sm:$0xff]
      %v927 = vld [vmem:[%s1 + $0x17a0] sm:$0xff]
      %v928 = vld [vmem:[%s1 + $0x17a8] sm:$0xff]
      %v929 = vld [vmem:[%s1 + $0x17b0] sm:$0xff]
      %v930 = vld [vmem:[%s1 + $0x17b8] sm:$0xff]
      %v931 = vld [vmem:[%s1 + $0x17c0] sm:$0xff]
      %v932 = vld [vmem:[%s1 + $0x17c8] sm:$0xff]
      %v933 = vld [vmem:[%s1 + $0x17d0] sm:$0xff]
      %v934 = vld [vmem:[%s1 + $0x17d8] sm:$0xff]
      %v935 = vld [vmem:[%s1 + $0x17e0] sm:$0xff]
      %v936 = vld [vmem:[%s1 + $0x17e8] sm:$0xff]
      %v937 = vld [vmem:[%s1 + $0x17f0] sm:$0xff]
      %v938 = vld [vmem:[%s1 + $0x17f8] sm:$0xff]
      %v939 = vld [vmem:[%s1 + $0x1800] sm:$0xff]
      %v940 = vld [vmem:[%s1 + $0x1808] sm:$0xff]
      %v941 = vld [vmem:[%s1 + $0x1810] sm:$0xff]
      %v942 = vld [vmem:[%s1 + $0x1818] sm:$0xff]
      %v943 = vld [vmem:[%s1 + $0x1820] sm:$0xff]
      %v944 = vld [vmem:[%s1 + $0x1828] sm:$0xff]
      %v945 = vld [vmem:[%s1 + $0x1830] sm:$0xff]
      %v946 = vld [vmem:[%s1 + $0x1838] sm:$0xff]
      %v947 = vld [vmem:[%s1 + $0x1840] sm:$0xff]
      %v948 = vld [vmem:[%s1 + $0x1848] sm:$0xff]
      %v949 = vld [vmem:[%s1 + $0x1850] sm:$0xff]
      %v950 = vld [vmem:[%s1 + $0x1858] sm:$0xff]
      %v951 = vld [vmem:[%s1 + $0x1860] sm:$0xff]
      %v952 = vld [vmem:[%s1 + $0x1868] sm:$0xff]
      %v953 = vld [vmem:[%s1 + $0x1870] sm:$0xff]
      %v954 = vld [vmem:[%s1 + $0x1878] sm:$0xff]
      %v955 = vld [vmem:[%s1 + $0x1880] sm:$0xff]
      %v956 = vld [vmem:[%s1 + $0x1888] sm:$0xff]
      %v957 = vld [vmem:[%s1 + $0x1890] sm:$0xff]
      %v958 = vld [vmem:[%s1 + $0x1898] sm:$0xff]
      %v959 = vld [vmem:[%s1 + $0x18a0] sm:$0xff]
      %v960 = vld [vmem:[%s1 + $0x18a8] sm:$0xff]
      %v961 = vld [vmem:[%s1 + $0x18b0] sm:$0xff]
      %v962 = vld [vmem:[%s1 + $0x18b8] sm:$0xff]
      %v963 = vld [vmem:[%s1 + $0x18c0] sm:$0xff]
      %v964 = vld [vmem:[%s1 + $0x18c8] sm:$0xff]
      %v965 = vld [vmem:[%s1 + $0x18d0] sm:$0xff]
      %v966 = vld [vmem:[%s1 + $0x18d8] sm:$0xff]
      %v967 = vld [vmem:[%s1 + $0x18e0] sm:$0xff]
      %v968 = vld [vmem:[%s1 + $0x18e8] sm:$0xff]
      %v969 = vld [vmem:[%s1 + $0x18f0] sm:$0xff]
      %v970 = vld [vmem:[%s1 + $0x18f8] sm:$0xff]
      %v971 = vld [vmem:[%s1 + $0x1900] sm:$0xff]
      %v972 = vld [vmem:[%s1 + $0x1908] sm:$0xff]
      %v973 = vld [vmem:[%s1 + $0x1910] sm:$0xff]
      %v974 = vld [vmem:[%s1 + $0x1918] sm:$0xff]
      %v975 = vld [vmem:[%s1 + $0x1920] sm:$0xff]
      %v976 = vld [vmem:[%s1 + $0x1928] sm:$0xff]
      %v977 = vld [vmem:[%s1 + $0x1930] sm:$0xff]
      %v978 = vld [vmem:[%s1 + $0x1938] sm:$0xff]
      %v979 = vld [vmem:[%s1 + $0x1940] sm:$0xff]
      %v980 = vld [vmem:[%s1 + $0x1948] sm:$0xff]
      %v981 = vld [vmem:[%s1 + $0x1950] sm:$0xff]
      %v982 = vld [vmem:[%s1 + $0x1958] sm:$0xff]
      %v983 = vld [vmem:[%s1 + $0x1960] sm:$0xff]
      %v984 = vld [vmem:[%s1 + $0x1968] sm:$0xff]
      %v985 = vld [vmem:[%s1 + $0x1970] sm:$0xff]
      %v986 = vld [vmem:[%s1 + $0x1978] sm:$0xff]
      %v987 = vld [vmem:[%s1 + $0x1980] sm:$0xff]
      %v988 = vld [vmem:[%s1 + $0x1988] sm:$0xff]
      %v989 = vld [vmem:[%s1 + $0x1990] sm:$0xff]
      %v990 = vld [vmem:[%s1 + $0x1998] sm:$0xff]
      %v991 = vld [vmem:[%s1 + $0x19a0] sm:$0xff]
      %v992 = vld [vmem:[%s1 + $0x19a8] sm:$0xff]
      %v993 = vld [vmem:[%s1 + $0x19b0] sm:$0xff]
      %v994 = vld [vmem:[%s1 + $0x19b8] sm:$0xff]
      %v995 = vld [vmem:[%s1 + $0x19c0] sm:$0xff]
      %v996 = vld [vmem:[%s1 + $0x19c8] sm:$0xff]
      %v997 = vld [vmem:[%s1 + $0x19d0] sm:$0xff]
      %v998 = vld [vmem:[%s1 + $0x19d8] sm:$0xff]
      %v999 = vld [vmem:[%s1 + $0x19e0] sm:$0xff]
      %v1000 = vld [vmem:[%s1 + $0x19e8] sm:$0xff]
      %v1001 = vld [vmem:[%s1 + $0x19f0] sm:$0xff]
      %v1002 = vld [vmem:[%s1 + $0x19f8] sm:$0xff]
      %v1003 = vld [vmem:[%s1 + $0x1a00] sm:$0xff]
      %v1004 = vld [vmem:[%s1 + $0x1a08] sm:$0xff]
      %v1005 = vld [vmem:[%s1 + $0x1a10] sm:$0xff]
      %v1006 = vld [vmem:[%s1 + $0x1a18] sm:$0xff]
      %v1007 = vld [vmem:[%s1 + $0x1a20] sm:$0xff]
      %v1008 = vld [vmem:[%s1 + $0x1a28] sm:$0xff]
      %v1009 = vld [vmem:[%s1 + $0x1a30] sm:$0xff]
      %v1010 = vld [vmem:[%s1 + $0x1a38] sm:$0xff]
      %v1011 = vld [vmem:[%s1 + $0x1a40] sm:$0xff]
      %v1012 = vld [vmem:[%s1 + $0x1a48] sm:$0xff]
      %v1013 = vld [vmem:[%s1 + $0x1a50] sm:$0xff]
      %v1014 = vld [vmem:[%s1 + $0x1a58] sm:$0xff]
      %v1015 = vld [vmem:[%s1 + $0x1a60] sm:$0xff]
      %v1016 = vld [vmem:[%s1 + $0x1a68] sm:$0xff]
      %v1017 = vld [vmem:[%s1 + $0x1a70] sm:$0xff]
      %v1018 = vld [vmem:[%s1 + $0x1a78] sm:$0xff]
      %v1019 = vld [vmem:[%s1 + $0x1a80] sm:$0xff]
      %v1020 = vld [vmem:[%s1 + $0x1a88] sm:$0xff]
      %v1021 = vld [vmem:[%s1 + $0x1a90] sm:$0xff]
      %v1022 = vld [vmem:[%s1 + $0x1a98] sm:$0xff]
      %v1023 = vld [vmem:[%s1 + $0x1aa0] sm:$0xff]
      %v1024 = vld [vmem:[%s1 + $0x1aa8] sm:$0xff]
      %v1025 = vld [vmem:[%s1 + $0x1ab0] sm:$0xff]
      %v1026 = vld [vmem:[%s1 + $0x1ab8] sm:$0xff]
      %v1027 = vld [vmem:[%s1 + $0x1ac0] sm:$0xff]
      %v1028 = vld [vmem:[%s1 + $0x1ac8] sm:$0xff]
      %v1029 = vld [vmem:[%s1 + $0x1ad0] sm:$0xff]
      %v1030 = vld [vmem:[%s1 + $0x1ad8] sm:$0xff]
      %v1031 = vld [vmem:[%s1 + $0x1ae0] sm:$0xff]
      %v1032 = vld [vmem:[%s1 + $0x1ae8] sm:$0xff]
      %v1033 = vld [vmem:[%s1 + $0x1af0] sm:$0xff]
      %v1034 = vld [vmem:[%s1 + $0x1af8] sm:$0xff]
      %v1035 = vld [vmem:[%s1 + $0x1b00] sm:$0xff]
      %v1036 = vld [vmem:[%s1 + $0x1b08] sm:$0xff]
      %v1037 = vld [vmem:[%s1 + $0x1b10] sm:$0xff]
      %v1038 = vld [vmem:[%s1 + $0x1b18] sm:$0xff]
      %v1039 = vld [vmem:[%s1 + $0x1b20] sm:$0xff]
      %v1040 = vld [vmem:[%s1 + $0x1b28] sm:$0xff]
      %v1041 = vld [vmem:[%s1 + $0x1b30] sm:$0xff]
      %v1042 = vld [vmem:[%s1 + $0x1b38] sm:$0xff]
      %v1043 = vld [vmem:[%s1 + $0x1b40] sm:$0xff]
      %v1044 = vld [vmem:[%s1 + $0x1b48] sm:$0xff]
      %v1045 = vld [vmem:[%s1 + $0x1b50] sm:$0xff]
      %v1046 = vld [vmem:[%s1 + $0x1b58] sm:$0xff]
      %v1047 = vld [vmem:[%s1 + $0x1b60] sm:$0xff]
      %v1048 = vld [vmem:[%s1 + $0x1b68] sm:$0xff]
      %v1049 = vld [vmem:[%s1 + $0x1b70] sm:$0xff]
      %v1050 = vld [vmem:[%s1 + $0x1b78] sm:$0xff]
      %v1051 = vld [vmem:[%s1 + $0x1b80] sm:$0xff]
      %v1052 = vld [vmem:[%s1 + $0x1b88] sm:$0xff]
      %v1053 = vld [vmem:[%s1 + $0x1b90] sm:$0xff]
      %v1054 = vld [vmem:[%s1 + $0x1b98] sm:$0xff]
      %v1055 = vld [vmem:[%s1 + $0x1ba0] sm:$0xff]
      %v1056 = vld [vmem:[%s1 + $0x1ba8] sm:$0xff]
      %v1057 = vld [vmem:[%s1 + $0x1bb0] sm:$0xff]
      %v1058 = vld [vmem:[%s1 + $0x1bb8] sm:$0xff]
      %v1059 = vld [vmem:[%s1 + $0x1bc0] sm:$0xff]
      %v1060 = vld [vmem:[%s1 + $0x1bc8] sm:$0xff]
      %v1061 = vld [vmem:[%s1 + $0x1bd0] sm:$0xff]
      %v1062 = vld [vmem:[%s1 + $0x1bd8] sm:$0xff]
      %v1063 = vld [vmem:[%s1 + $0x1be0] sm:$0xff]
      %v1064 = vld [vmem:[%s1 + $0x1be8] sm:$0xff]
      %v1065 = vld [vmem:[%s1 + $0x1bf0] sm:$0xff]
      %v1066 = vld [vmem:[%s1 + $0x1bf8] sm:$0xff]
      %v1067 = vld [vmem:[%s1 + $0x1c00] sm:$0xff]
      %v1068 = vld [vmem:[%s1 + $0x1c08] sm:$0xff]
      %v1069 = vld [vmem:[%s1 + $0x1c10] sm:$0xff]
      %v1070 = vld [vmem:[%s1 + $0x1c18] sm:$0xff]
      %v1071 = vld [vmem:[%s1 + $0x1c20] sm:$0xff]
      %v1072 = vld [vmem:[%s1 + $0x1c28] sm:$0xff]
      %v1073 = vld [vmem:[%s1 + $0x1c30] sm:$0xff]
      %v1074 = vld [vmem:[%s1 + $0x1c38] sm:$0xff]
      %v1075 = vld [vmem:[%s1 + $0x1c40] sm:$0xff]
      %v1076 = vld [vmem:[%s1 + $0x1c48] sm:$0xff]
      %v1077 = vld [vmem:[%s1 + $0x1c50] sm:$0xff]
      %v1078 = vld [vmem:[%s1 + $0x1c58] sm:$0xff]
      %v1079 = vld [vmem:[%s1 + $0x1c60] sm:$0xff]
      %v1080 = vld [vmem:[%s1 + $0x1c68] sm:$0xff]
      %v1081 = vld [vmem:[%s1 + $0x1c70] sm:$0xff]
      %v1082 = vld [vmem:[%s1 + $0x1c78] sm:$0xff]
      %v1083 = vld [vmem:[%s1 + $0x1c80] sm:$0xff]
      %v1084 = vld [vmem:[%s1 + $0x1c88] sm:$0xff]
      %v1085 = vld [vmem:[%s1 + $0x1c90] sm:$0xff]
      %v1086 = vld [vmem:[%s1 + $0x1c98] sm:$0xff]
      %v1087 = vld [vmem:[%s1 + $0x1ca0] sm:$0xff]
      %v1088 = vld [vmem:[%s1 + $0x1ca8] sm:$0xff]
      %v1089 = vld [vmem:[%s1 + $0x1cb0] sm:$0xff]
      %v1090 = vld [vmem:[%s1 + $0x1cb8] sm:$0xff]
      %v1091 = vld [vmem:[%s1 + $0x1cc0] sm:$0xff]
      %v1092 = vld [vmem:[%s1 + $0x1cc8] sm:$0xff]
      %v1093 = vld [vmem:[%s1 + $0x1cd0] sm:$0xff]
      %v1094 = vld [vmem:[%s1 + $0x1cd8] sm:$0xff]
      %v1095 = vld [vmem:[%s1 + $0x1ce0] sm:$0xff]
      %v1096 = vld [vmem:[%s1 + $0x1ce8] sm:$0xff]
      %v1097 = vld [vmem:[%s1 + $0x1cf0] sm:$0xff]
      %v1098 = vld [vmem:[%s1 + $0x1cf8] sm:$0xff]
      %v1099 = vld [vmem:[%s1 + $0x1d00] sm:$0xff]
      %v1100 = vld [vmem:[%s1 + $0x1d08] sm:$0xff]
      %v1101 = vld [vmem:[%s1 + $0x1d10] sm:$0xff]
      %v1102 = vld [vmem:[%s1 + $0x1d18] sm:$0xff]
      %v1103 = vld [vmem:[%s1 + $0x1d20] sm:$0xff]
      %v1104 = vld [vmem:[%s1 + $0x1d28] sm:$0xff]
      %v1105 = vld [vmem:[%s1 + $0x1d30] sm:$0xff]
      %v1106 = vld [vmem:[%s1 + $0x1d38] sm:$0xff]
      %v1107 = vld [vmem:[%s1 + $0x1d40] sm:$0xff]
      %v1108 = vld [vmem:[%s1 + $0x1d48] sm:$0xff]
      %v1109 = vld [vmem:[%s1 + $0x1d50] sm:$0xff]
      %v1110 = vld [vmem:[%s1 + $0x1d58] sm:$0xff]
      %v1111 = vld [vmem:[%s1 + $0x1d60] sm:$0xff]
      %v1112 = vld [vmem:[%s1 + $0x1d68] sm:$0xff]
      %v1113 = vld [vmem:[%s1 + $0x1d70] sm:$0xff]
      %v1114 = vld [vmem:[%s1 + $0x1d78] sm:$0xff]
      %v1115 = vld [vmem:[%s1 + $0x1d80] sm:$0xff]
      %v1116 = vld [vmem:[%s1 + $0x1d88] sm:$0xff]
      %v1117 = vld [vmem:[%s1 + $0x1d90] sm:$0xff]
      %v1118 = vld [vmem:[%s1 + $0x1d98] sm:$0xff]
      %v1119 = vld [vmem:[%s1 + $0x1da0] sm:$0xff]
      %v1120 = vld [vmem:[%s1 + $0x1da8] sm:$0xff]
      %v1121 = vld [vmem:[%s1 + $0x1db0] sm:$0xff]
      %v1122 = vld [vmem:[%s1 + $0x1db8] sm:$0xff]
      %v1123 = vld [vmem:[%s1 + $0x1dc0] sm:$0xff]
      %v1124 = vld [vmem:[%s1 + $0x1dc8] sm:$0xff]
      %v1125 = vld [vmem:[%s1 + $0x1dd0] sm:$0xff]
      %v1126 = vld [vmem:[%s1 + $0x1dd8] sm:$0xff]
      %v1127 = vld [vmem:[%s1 + $0x1de0] sm:$0xff]
      %v1128 = vld [vmem:[%s1 + $0x1de8] sm:$0xff]
      %v1129 = vld [vmem:[%s1 + $0x1df0] sm:$0xff]
      %v1130 = vld [vmem:[%s1 + $0x1df8] sm:$0xff]
      %v1131 = vld [vmem:[%s165] sm:$0xff]
      %v1132 = vld [vmem:[%s165 + $0x8] sm:$0xff]
      %v1133 = vld [vmem:[%s165 + $0x10] sm:$0xff]
      %v1134 = vld [vmem:[%s165 + $0x18] sm:$0xff]
      %v1135 = vld [vmem:[%s165 + $0x20] sm:$0xff]
      %v1136 = vld [vmem:[%s165 + $0x28] sm:$0xff]
      %v1137 = vld [vmem:[%s165 + $0x30] sm:$0xff]
      %v1138 = vld [vmem:[%s165 + $0x38] sm:$0xff]
      %v1139 = vld [vmem:[%s165 + $0x40] sm:$0xff]
      %v1140 = vld [vmem:[%s165 + $0x48] sm:$0xff]
      %v1141 = vld [vmem:[%s165 + $0x50] sm:$0xff]
      %v1142 = vld [vmem:[%s165 + $0x58] sm:$0xff]
      %v1143 = vld [vmem:[%s165 + $0x60] sm:$0xff]
      %v1144 = vld [vmem:[%s165 + $0x68] sm:$0xff]
      %v1145 = vld [vmem:[%s165 + $0x70] sm:$0xff]
      %v1146 = vld [vmem:[%s165 + $0x78] sm:$0xff]
      %v1147 = vld [vmem:[%s165 + $0x80] sm:$0xff]
      %v1148 = vld [vmem:[%s165 + $0x88] sm:$0xff]
      %v1149 = vld [vmem:[%s165 + $0x90] sm:$0xff]
      %v1150 = vld [vmem:[%s165 + $0x98] sm:$0xff]
      %v1151 = vld [vmem:[%s165 + $0xa0] sm:$0xff]
      %v1152 = vld [vmem:[%s165 + $0xa8] sm:$0xff]
      %v1153 = vld [vmem:[%s165 + $0xb0] sm:$0xff]
      %v1154 = vld [vmem:[%s165 + $0xb8] sm:$0xff]
      %v1155 = vld [vmem:[%s165 + $0xc0] sm:$0xff]
      %v1156 = vld [vmem:[%s165 + $0xc8] sm:$0xff]
      %v1157 = vld [vmem:[%s165 + $0xd0] sm:$0xff]
      %v1158 = vld [vmem:[%s165 + $0xd8] sm:$0xff]
      %v1159 = vld [vmem:[%s165 + $0xe0] sm:$0xff]
      %v1160 = vld [vmem:[%s165 + $0xe8] sm:$0xff]
      %v1161 = vld [vmem:[%s165 + $0xf0] sm:$0xff]
      %v1162 = vld [vmem:[%s165 + $0xf8] sm:$0xff]
      %v1163 = vld [vmem:[%s165 + $0x100] sm:$0xff]
      %v1164 = vld [vmem:[%s165 + $0x108] sm:$0xff]
      %v1165 = vld [vmem:[%s165 + $0x110] sm:$0xff]
      %v1166 = vld [vmem:[%s165 + $0x118] sm:$0xff]
      %v1167 = vld [vmem:[%s165 + $0x120] sm:$0xff]
      %v1168 = vld [vmem:[%s165 + $0x128] sm:$0xff]
      %v1169 = vld [vmem:[%s165 + $0x130] sm:$0xff]
      %v1170 = vld [vmem:[%s165 + $0x138] sm:$0xff]
      %v1171 = vld [vmem:[%s165 + $0x140] sm:$0xff]
      %v1172 = vld [vmem:[%s165 + $0x148] sm:$0xff]
      %v1173 = vld [vmem:[%s165 + $0x150] sm:$0xff]
      %v1174 = vld [vmem:[%s165 + $0x158] sm:$0xff]
      %v1175 = vld [vmem:[%s165 + $0x160] sm:$0xff]
      %v1176 = vld [vmem:[%s165 + $0x168] sm:$0xff]
      %v1177 = vld [vmem:[%s165 + $0x170] sm:$0xff]
      %v1178 = vld [vmem:[%s165 + $0x178] sm:$0xff]
      %v1179 = vld [vmem:[%s165 + $0x180] sm:$0xff]
      %v1180 = vld [vmem:[%s165 + $0x188] sm:$0xff]
      %v1181 = vld [vmem:[%s165 + $0x190] sm:$0xff]
      %v1182 = vld [vmem:[%s165 + $0x198] sm:$0xff]
      %v1183 = vld [vmem:[%s165 + $0x1a0] sm:$0xff]
      %v1184 = vld [vmem:[%s165 + $0x1a8] sm:$0xff]
      %v1185 = vld [vmem:[%s165 + $0x1b0] sm:$0xff]
      %v1186 = vld [vmem:[%s165 + $0x1b8] sm:$0xff]
      %v1187 = vld [vmem:[%s165 + $0x1c0] sm:$0xff]
      %v1188 = vld [vmem:[%s165 + $0x1c8] sm:$0xff]
      %v1189 = vld [vmem:[%s165 + $0x1d0] sm:$0xff]
      %v1190 = vld [vmem:[%s165 + $0x1d8] sm:$0xff]
      %v1191 = vld [vmem:[%s165 + $0x1e0] sm:$0xff]
      %v1192 = vld [vmem:[%s165 + $0x1e8] sm:$0xff]
      %v1193 = vld [vmem:[%s165 + $0x1f0] sm:$0xff]
      %v1194 = vld [vmem:[%s165 + $0x1f8] sm:$0xff]
      %v1195 = vld [vmem:[%s165 + $0x200] sm:$0xff]
      %v1196 = vld [vmem:[%s165 + $0x208] sm:$0xff]
      %v1197 = vld [vmem:[%s165 + $0x210] sm:$0xff]
      %v1198 = vld [vmem:[%s165 + $0x218] sm:$0xff]
      %v1199 = vld [vmem:[%s165 + $0x220] sm:$0xff]
      %v1200 = vld [vmem:[%s165 + $0x228] sm:$0xff]
      %v1201 = vld [vmem:[%s165 + $0x230] sm:$0xff]
      %v1202 = vld [vmem:[%s165 + $0x238] sm:$0xff]
      %v1203 = vld [vmem:[%s165 + $0x240] sm:$0xff]
      %v1204 = vld [vmem:[%s165 + $0x248] sm:$0xff]
      %v1205 = vld [vmem:[%s165 + $0x250] sm:$0xff]
      %v1206 = vld [vmem:[%s165 + $0x258] sm:$0xff]
      %v1207 = vld [vmem:[%s165 + $0x260] sm:$0xff]
      %v1208 = vld [vmem:[%s165 + $0x268] sm:$0xff]
      %v1209 = vld [vmem:[%s165 + $0x270] sm:$0xff]
      %v1210 = vld [vmem:[%s165 + $0x278] sm:$0xff]
      %v1211 = vld [vmem:[%s165 + $0x280] sm:$0xff]
      %v1212 = vld [vmem:[%s165 + $0x288] sm:$0xff]
      %v1213 = vld [vmem:[%s165 + $0x290] sm:$0xff]
      %v1214 = vld [vmem:[%s165 + $0x298] sm:$0xff]
      %v1215 = vld [vmem:[%s165 + $0x2a0] sm:$0xff]
      %v1216 = vld [vmem:[%s165 + $0x2a8] sm:$0xff]
      %v1217 = vld [vmem:[%s165 + $0x2b0] sm:$0xff]
      %v1218 = vld [vmem:[%s165 + $0x2b8] sm:$0xff]
      %v1219 = vld [vmem:[%s165 + $0x2c0] sm:$0xff]
      %v1220 = vld [vmem:[%s165 + $0x2c8] sm:$0xff]
      %v1221 = vld [vmem:[%s165 + $0x2d0] sm:$0xff]
      %v1222 = vld [vmem:[%s165 + $0x2d8] sm:$0xff]
      %v1223 = vld [vmem:[%s165 + $0x2e0] sm:$0xff]
      %v1224 = vld [vmem:[%s165 + $0x2e8] sm:$0xff]
      %v1225 = vld [vmem:[%s165 + $0x2f0] sm:$0xff]
      %v1226 = vld [vmem:[%s165 + $0x2f8] sm:$0xff]
      %v1227 = vld [vmem:[%s165 + $0x300] sm:$0xff]
      %v1228 = vld [vmem:[%s165 + $0x308] sm:$0xff]
      %v1229 = vld [vmem:[%s165 + $0x310] sm:$0xff]
      %v1230 = vld [vmem:[%s165 + $0x318] sm:$0xff]
      %v1231 = vld [vmem:[%s165 + $0x320] sm:$0xff]
      %v1232 = vld [vmem:[%s165 + $0x328] sm:$0xff]
      %v1233 = vld [vmem:[%s165 + $0x330] sm:$0xff]
      %v1234 = vld [vmem:[%s165 + $0x338] sm:$0xff]
      %v1235 = vld [vmem:[%s165 + $0x340] sm:$0xff]
      %v1236 = vld [vmem:[%s165 + $0x348] sm:$0xff]
      %v1237 = vld [vmem:[%s165 + $0x350] sm:$0xff]
      %v1238 = vld [vmem:[%s165 + $0x358] sm:$0xff]
      %v1239 = vld [vmem:[%s165 + $0x360] sm:$0xff]
      %v1240 = vld [vmem:[%s165 + $0x368] sm:$0xff]
      %v1241 = vld [vmem:[%s165 + $0x370] sm:$0xff]
      %v1242 = vld [vmem:[%s165 + $0x378] sm:$0xff]
      %v1243 = vld [vmem:[%s165 + $0x380] sm:$0xff]
      %v1244 = vld [vmem:[%s165 + $0x388] sm:$0xff]
      %v1245 = vld [vmem:[%s165 + $0x390] sm:$0xff]
      %v1246 = vld [vmem:[%s165 + $0x398] sm:$0xff]
      %v1247 = vld [vmem:[%s165 + $0x3a0] sm:$0xff]
      %v1248 = vld [vmem:[%s165 + $0x3a8] sm:$0xff]
      %v1249 = vld [vmem:[%s165 + $0x3b0] sm:$0xff]
      %v1250 = vld [vmem:[%s165 + $0x3b8] sm:$0xff]
      %v1251 = vld [vmem:[%s2] sm:$0xff]
      %v1252 = vld [vmem:[%s2 + $0x8] sm:$0xff]
      %v1253 = vld [vmem:[%s2 + $0x10] sm:$0xff]
      %v1254 = vld [vmem:[%s2 + $0x18] sm:$0xff]
      %v1255 = vld [vmem:[%s2 + $0x20] sm:$0xff]
      %v1256 = vld [vmem:[%s2 + $0x28] sm:$0xff]
      %v1257 = vld [vmem:[%s2 + $0x30] sm:$0xff]
      %v1258 = vld [vmem:[%s2 + $0x38] sm:$0xff]
      %v1259 = vld [vmem:[%s2 + $0x40] sm:$0xff]
      %v1260 = vld [vmem:[%s2 + $0x48] sm:$0xff]
      %v1261 = vld [vmem:[%s2 + $0x50] sm:$0xff]
      %v1262 = vld [vmem:[%s2 + $0x58] sm:$0xff]
      %v1263 = vld [vmem:[%s2 + $0x60] sm:$0xff]
      %v1264 = vld [vmem:[%s2 + $0x68] sm:$0xff]
      %v1265 = vld [vmem:[%s2 + $0x70] sm:$0xff]
      %v1266 = vld [vmem:[%s2 + $0x78] sm:$0xff]
      %v1267 = vld [vmem:[%s2 + $0x80] sm:$0xff]
      %v1268 = vld [vmem:[%s2 + $0x88] sm:$0xff]
      %v1269 = vld [vmem:[%s2 + $0x90] sm:$0xff]
      %v1270 = vld [vmem:[%s2 + $0x98] sm:$0xff]
      %v1271 = vld [vmem:[%s2 + $0xa0] sm:$0xff]
      %v1272 = vld [vmem:[%s2 + $0xa8] sm:$0xff]
      %v1273 = vld [vmem:[%s2 + $0xb0] sm:$0xff]
      %v1274 = vld [vmem:[%s2 + $0xb8] sm:$0xff]
      %v1275 = vld [vmem:[%s2 + $0xc0] sm:$0xff]
      %v1276 = vld [vmem:[%s2 + $0xc8] sm:$0xff]
      %v1277 = vld [vmem:[%s2 + $0xd0] sm:$0xff]
      %v1278 = vld [vmem:[%s2 + $0xd8] sm:$0xff]
      %v1279 = vld [vmem:[%s2 + $0xe0] sm:$0xff]
      %v1280 = vld [vmem:[%s2 + $0xe8] sm:$0xff]
      %v1281 = vld [vmem:[%s2 + $0xf0] sm:$0xff]
      %v1282 = vld [vmem:[%s2 + $0xf8] sm:$0xff]
      %v1283 = vld [vmem:[%s2 + $0x100] sm:$0xff]
      %v1284 = vld [vmem:[%s2 + $0x108] sm:$0xff]
      %v1285 = vld [vmem:[%s2 + $0x110] sm:$0xff]
      %v1286 = vld [vmem:[%s2 + $0x118] sm:$0xff]
      %v1287 = vld [vmem:[%s2 + $0x120] sm:$0xff]
      %v1288 = vld [vmem:[%s2 + $0x128] sm:$0xff]
      %v1289 = vld [vmem:[%s2 + $0x130] sm:$0xff]
      %v1290 = vld [vmem:[%s2 + $0x138] sm:$0xff]
      %v1291 = vld [vmem:[%s2 + $0x140] sm:$0xff]
      %v1292 = vld [vmem:[%s2 + $0x148] sm:$0xff]
      %v1293 = vld [vmem:[%s2 + $0x150] sm:$0xff]
      %v1294 = vld [vmem:[%s2 + $0x158] sm:$0xff]
      %v1295 = vld [vmem:[%s2 + $0x160] sm:$0xff]
      %v1296 = vld [vmem:[%s2 + $0x168] sm:$0xff]
      %v1297 = vld [vmem:[%s2 + $0x170] sm:$0xff]
      %v1298 = vld [vmem:[%s2 + $0x178] sm:$0xff]
      %v1299 = vld [vmem:[%s2 + $0x180] sm:$0xff]
      %v1300 = vld [vmem:[%s2 + $0x188] sm:$0xff]
      %v1301 = vld [vmem:[%s2 + $0x190] sm:$0xff]
      %v1302 = vld [vmem:[%s2 + $0x198] sm:$0xff]
      %v1303 = vld [vmem:[%s2 + $0x1a0] sm:$0xff]
      %v1304 = vld [vmem:[%s2 + $0x1a8] sm:$0xff]
      %v1305 = vld [vmem:[%s2 + $0x1b0] sm:$0xff]
      %v1306 = vld [vmem:[%s2 + $0x1b8] sm:$0xff]
      %v1307 = vld [vmem:[%s2 + $0x1c0] sm:$0xff]
      %v1308 = vld [vmem:[%s2 + $0x1c8] sm:$0xff]
      %v1309 = vld [vmem:[%s2 + $0x1d0] sm:$0xff]
      %v1310 = vld [vmem:[%s2 + $0x1d8] sm:$0xff]
      %v1311 = vld [vmem:[%s2 + $0x1e0] sm:$0xff]
      %v1312 = vld [vmem:[%s2 + $0x1e8] sm:$0xff]
      %v1313 = vld [vmem:[%s2 + $0x1f0] sm:$0xff]
      %v1314 = vld [vmem:[%s2 + $0x1f8] sm:$0xff]
      %v1315 = vld [vmem:[%s2 + $0x200] sm:$0xff]
      %v1316 = vld [vmem:[%s2 + $0x208] sm:$0xff]
      %v1317 = vld [vmem:[%s2 + $0x210] sm:$0xff]
      %v1318 = vld [vmem:[%s2 + $0x218] sm:$0xff]
      %v1319 = vld [vmem:[%s2 + $0x220] sm:$0xff]
      %v1320 = vld [vmem:[%s2 + $0x228] sm:$0xff]
      %v1321 = vld [vmem:[%s2 + $0x230] sm:$0xff]
      %v1322 = vld [vmem:[%s2 + $0x238] sm:$0xff]
      %v1323 = vld [vmem:[%s2 + $0x240] sm:$0xff]
      %v1324 = vld [vmem:[%s2 + $0x248] sm:$0xff]
      %v1325 = vld [vmem:[%s2 + $0x250] sm:$0xff]
      %v1326 = vld [vmem:[%s2 + $0x258] sm:$0xff]
      %v1327 = vld [vmem:[%s2 + $0x260] sm:$0xff]
      %v1328 = vld [vmem:[%s2 + $0x268] sm:$0xff]
      %v1329 = vld [vmem:[%s2 + $0x270] sm:$0xff]
      %v1330 = vld [vmem:[%s2 + $0x278] sm:$0xff]
      %v1331 = vld [vmem:[%s2 + $0x280] sm:$0xff]
      %v1332 = vld [vmem:[%s2 + $0x288] sm:$0xff]
      %v1333 = vld [vmem:[%s2 + $0x290] sm:$0xff]
      %v1334 = vld [vmem:[%s2 + $0x298] sm:$0xff]
      %v1335 = vld [vmem:[%s2 + $0x2a0] sm:$0xff]
      %v1336 = vld [vmem:[%s2 + $0x2a8] sm:$0xff]
      %v1337 = vld [vmem:[%s2 + $0x2b0] sm:$0xff]
      %v1338 = vld [vmem:[%s2 + $0x2b8] sm:$0xff]
      %v1339 = vld [vmem:[%s2 + $0x2c0] sm:$0xff]
      %v1340 = vld [vmem:[%s2 + $0x2c8] sm:$0xff]
      %v1341 = vld [vmem:[%s2 + $0x2d0] sm:$0xff]
      %v1342 = vld [vmem:[%s2 + $0x2d8] sm:$0xff]
      %v1343 = vld [vmem:[%s2 + $0x2e0] sm:$0xff]
      %v1344 = vld [vmem:[%s2 + $0x2e8] sm:$0xff]
      %v1345 = vld [vmem:[%s2 + $0x2f0] sm:$0xff]
      %v1346 = vld [vmem:[%s2 + $0x2f8] sm:$0xff]
      %v1347 = vld [vmem:[%s2 + $0x300] sm:$0xff]
      %v1348 = vld [vmem:[%s2 + $0x308] sm:$0xff]
      %v1349 = vld [vmem:[%s2 + $0x310] sm:$0xff]
      %v1350 = vld [vmem:[%s2 + $0x318] sm:$0xff]
      %v1351 = vld [vmem:[%s2 + $0x320] sm:$0xff]
      %v1352 = vld [vmem:[%s2 + $0x328] sm:$0xff]
      %v1353 = vld [vmem:[%s2 + $0x330] sm:$0xff]
      %v1354 = vld [vmem:[%s2 + $0x338] sm:$0xff]
      %v1355 = vld [vmem:[%s2 + $0x340] sm:$0xff]
      %v1356 = vld [vmem:[%s2 + $0x348] sm:$0xff]
      %v1357 = vld [vmem:[%s2 + $0x350] sm:$0xff]
      %v1358 = vld [vmem:[%s2 + $0x358] sm:$0xff]
      %v1359 = vld [vmem:[%s2 + $0x360] sm:$0xff]
      %v1360 = vld [vmem:[%s2 + $0x368] sm:$0xff]
      %v1361 = vld [vmem:[%s2 + $0x370] sm:$0xff]
      %v1362 = vld [vmem:[%s2 + $0x378] sm:$0xff]
      %v1363 = vld [vmem:[%s2 + $0x380] sm:$0xff]
      %v1364 = vld [vmem:[%s2 + $0x388] sm:$0xff]
      %v1365 = vld [vmem:[%s2 + $0x390] sm:$0xff]
      %v1366 = vld [vmem:[%s2 + $0x398] sm:$0xff]
      %v1367 = vld [vmem:[%s2 + $0x3a0] sm:$0xff]
      %v1368 = vld [vmem:[%s2 + $0x3a8] sm:$0xff]
      %v1369 = vld [vmem:[%s2 + $0x3b0] sm:$0xff]
      %v1370 = vld [vmem:[%s2 + $0x3b8] sm:$0xff]
      %1372 = vset.pattern.permute.xlu0 0
      %1373 = vperm.xlu0 %1372, %v1251
      %v1374 = vpop.permute.xlu0 %1373
      %1377 = vset.pattern.permute.xlu0 0
      %1378 = vperm.xlu0 %1377, %v1252
      %v1379 = vpop.permute.xlu0 %1378
      %1382 = vset.pattern.permute.xlu0 0
      %1383 = vperm.xlu0 %1382, %v1253
      %v1384 = vpop.permute.xlu0 %1383
      %1387 = vset.pattern.permute.xlu0 0
      %1388 = vperm.xlu0 %1387, %v1254
      %v1389 = vpop.permute.xlu0 %1388
      %1392 = vset.pattern.permute.xlu0 0
      %1393 = vperm.xlu0 %1392, %v1255
      %v1394 = vpop.permute.xlu0 %1393
      %1397 = vset.pattern.permute.xlu0 0
      %1398 = vperm.xlu0 %1397, %v1256
      %v1399 = vpop.permute.xlu0 %1398
      %1402 = vset.pattern.permute.xlu0 0
      %1403 = vperm.xlu0 %1402, %v1257
      %v1404 = vpop.permute.xlu0 %1403
      %1407 = vset.pattern.permute.xlu0 0
      %1408 = vperm.xlu0 %1407, %v1258
      %v1409 = vpop.permute.xlu0 %1408
      %1412 = vset.pattern.permute.xlu0 0
      %1413 = vperm.xlu0 %1412, %v1259
      %v1414 = vpop.permute.xlu0 %1413
      %1417 = vset.pattern.permute.xlu0 0
      %1418 = vperm.xlu0 %1417, %v1260
      %v1419 = vpop.permute.xlu0 %1418
      %1422 = vset.pattern.permute.xlu0 0
      %1423 = vperm.xlu0 %1422, %v1261
      %v1424 = vpop.permute.xlu0 %1423
      %1427 = vset.pattern.permute.xlu0 0
      %1428 = vperm.xlu0 %1427, %v1262
      %v1429 = vpop.permute.xlu0 %1428
      %1432 = vset.pattern.permute.xlu0 0
      %1433 = vperm.xlu0 %1432, %v1263
      %v1434 = vpop.permute.xlu0 %1433
      %1437 = vset.pattern.permute.xlu0 0
      %1438 = vperm.xlu0 %1437, %v1264
      %v1439 = vpop.permute.xlu0 %1438
      %1442 = vset.pattern.permute.xlu0 0
      %1443 = vperm.xlu0 %1442, %v1265
      %v1444 = vpop.permute.xlu0 %1443
      %1447 = vset.pattern.permute.xlu0 0
      %1448 = vperm.xlu0 %1447, %v1266
      %v1449 = vpop.permute.xlu0 %1448
      %1452 = vset.pattern.permute.xlu0 0
      %1453 = vperm.xlu0 %1452, %v1267
      %v1454 = vpop.permute.xlu0 %1453
      %1457 = vset.pattern.permute.xlu0 0
      %1458 = vperm.xlu0 %1457, %v1268
      %v1459 = vpop.permute.xlu0 %1458
      %1462 = vset.pattern.permute.xlu0 0
      %1463 = vperm.xlu0 %1462, %v1269
      %v1464 = vpop.permute.xlu0 %1463
      %1467 = vset.pattern.permute.xlu0 0
      %1468 = vperm.xlu0 %1467, %v1270
      %v1469 = vpop.permute.xlu0 %1468
      %1472 = vset.pattern.permute.xlu0 0
      %1473 = vperm.xlu0 %1472, %v1271
      %v1474 = vpop.permute.xlu0 %1473
      %1477 = vset.pattern.permute.xlu0 0
      %1478 = vperm.xlu0 %1477, %v1272
      %v1479 = vpop.permute.xlu0 %1478
      %1482 = vset.pattern.permute.xlu0 0
      %1483 = vperm.xlu0 %1482, %v1273
      %v1484 = vpop.permute.xlu0 %1483
      %1487 = vset.pattern.permute.xlu0 0
      %1488 = vperm.xlu0 %1487, %v1274
      %v1489 = vpop.permute.xlu0 %1488
      %1492 = vset.pattern.permute.xlu0 0
      %1493 = vperm.xlu0 %1492, %v1275
      %v1494 = vpop.permute.xlu0 %1493
      %1497 = vset.pattern.permute.xlu0 0
      %1498 = vperm.xlu0 %1497, %v1276
      %v1499 = vpop.permute.xlu0 %1498
      %1502 = vset.pattern.permute.xlu0 0
      %1503 = vperm.xlu0 %1502, %v1277
      %v1504 = vpop.permute.xlu0 %1503
      %1507 = vset.pattern.permute.xlu0 0
      %1508 = vperm.xlu0 %1507, %v1278
      %v1509 = vpop.permute.xlu0 %1508
      %1512 = vset.pattern.permute.xlu0 0
      %1513 = vperm.xlu0 %1512, %v1279
      %v1514 = vpop.permute.xlu0 %1513
      %1517 = vset.pattern.permute.xlu0 0
      %1518 = vperm.xlu0 %1517, %v1280
      %v1519 = vpop.permute.xlu0 %1518
      %1522 = vset.pattern.permute.xlu0 0
      %1523 = vperm.xlu0 %1522, %v1281
      %v1524 = vpop.permute.xlu0 %1523
      %1527 = vset.pattern.permute.xlu0 0
      %1528 = vperm.xlu0 %1527, %v1282
      %v1529 = vpop.permute.xlu0 %1528
      %1532 = vset.pattern.permute.xlu0 0
      %1533 = vperm.xlu0 %1532, %v1283
      %v1534 = vpop.permute.xlu0 %1533
      %1537 = vset.pattern.permute.xlu0 0
      %1538 = vperm.xlu0 %1537, %v1284
      %v1539 = vpop.permute.xlu0 %1538
      %1542 = vset.pattern.permute.xlu0 0
      %1543 = vperm.xlu0 %1542, %v1285
      %v1544 = vpop.permute.xlu0 %1543
      %1547 = vset.pattern.permute.xlu0 0
      %1548 = vperm.xlu0 %1547, %v1286
      %v1549 = vpop.permute.xlu0 %1548
      %1552 = vset.pattern.permute.xlu0 0
      %1553 = vperm.xlu0 %1552, %v1287
      %v1554 = vpop.permute.xlu0 %1553
      %1557 = vset.pattern.permute.xlu0 0
      %1558 = vperm.xlu0 %1557, %v1288
      %v1559 = vpop.permute.xlu0 %1558
      %1562 = vset.pattern.permute.xlu0 0
      %1563 = vperm.xlu0 %1562, %v1289
      %v1564 = vpop.permute.xlu0 %1563
      %1567 = vset.pattern.permute.xlu0 0
      %1568 = vperm.xlu0 %1567, %v1290
      %v1569 = vpop.permute.xlu0 %1568
      %1572 = vset.pattern.permute.xlu0 0
      %1573 = vperm.xlu0 %1572, %v1291
      %v1574 = vpop.permute.xlu0 %1573
      %1577 = vset.pattern.permute.xlu0 0
      %1578 = vperm.xlu0 %1577, %v1292
      %v1579 = vpop.permute.xlu0 %1578
      %1582 = vset.pattern.permute.xlu0 0
      %1583 = vperm.xlu0 %1582, %v1293
      %v1584 = vpop.permute.xlu0 %1583
      %1587 = vset.pattern.permute.xlu0 0
      %1588 = vperm.xlu0 %1587, %v1294
      %v1589 = vpop.permute.xlu0 %1588
      %1592 = vset.pattern.permute.xlu0 0
      %1593 = vperm.xlu0 %1592, %v1295
      %v1594 = vpop.permute.xlu0 %1593
      %1597 = vset.pattern.permute.xlu0 0
      %1598 = vperm.xlu0 %1597, %v1296
      %v1599 = vpop.permute.xlu0 %1598
      %1602 = vset.pattern.permute.xlu0 0
      %1603 = vperm.xlu0 %1602, %v1297
      %v1604 = vpop.permute.xlu0 %1603
      %1607 = vset.pattern.permute.xlu0 0
      %1608 = vperm.xlu0 %1607, %v1298
      %v1609 = vpop.permute.xlu0 %1608
      %1612 = vset.pattern.permute.xlu0 0
      %1613 = vperm.xlu0 %1612, %v1299
      %v1614 = vpop.permute.xlu0 %1613
      %1617 = vset.pattern.permute.xlu0 0
      %1618 = vperm.xlu0 %1617, %v1300
      %v1619 = vpop.permute.xlu0 %1618
      %1622 = vset.pattern.permute.xlu0 0
      %1623 = vperm.xlu0 %1622, %v1301
      %v1624 = vpop.permute.xlu0 %1623
      %1627 = vset.pattern.permute.xlu0 0
      %1628 = vperm.xlu0 %1627, %v1302
      %v1629 = vpop.permute.xlu0 %1628
      %1632 = vset.pattern.permute.xlu0 0
      %1633 = vperm.xlu0 %1632, %v1303
      %v1634 = vpop.permute.xlu0 %1633
      %1637 = vset.pattern.permute.xlu0 0
      %1638 = vperm.xlu0 %1637, %v1304
      %v1639 = vpop.permute.xlu0 %1638
      %1642 = vset.pattern.permute.xlu0 0
      %1643 = vperm.xlu0 %1642, %v1305
      %v1644 = vpop.permute.xlu0 %1643
      %1647 = vset.pattern.permute.xlu0 0
      %1648 = vperm.xlu0 %1647, %v1306
      %v1649 = vpop.permute.xlu0 %1648
      %1652 = vset.pattern.permute.xlu0 0
      %1653 = vperm.xlu0 %1652, %v1307
      %v1654 = vpop.permute.xlu0 %1653
      %1657 = vset.pattern.permute.xlu0 0
      %1658 = vperm.xlu0 %1657, %v1308
      %v1659 = vpop.permute.xlu0 %1658
      %1662 = vset.pattern.permute.xlu0 0
      %1663 = vperm.xlu0 %1662, %v1309
      %v1664 = vpop.permute.xlu0 %1663
      %1667 = vset.pattern.permute.xlu0 0
      %1668 = vperm.xlu0 %1667, %v1310
      %v1669 = vpop.permute.xlu0 %1668
      %1672 = vset.pattern.permute.xlu0 0
      %1673 = vperm.xlu0 %1672, %v1311
      %v1674 = vpop.permute.xlu0 %1673
      %1677 = vset.pattern.permute.xlu0 0
      %1678 = vperm.xlu0 %1677, %v1312
      %v1679 = vpop.permute.xlu0 %1678
      %1682 = vset.pattern.permute.xlu0 0
      %1683 = vperm.xlu0 %1682, %v1313
      %v1684 = vpop.permute.xlu0 %1683
      %1687 = vset.pattern.permute.xlu0 0
      %1688 = vperm.xlu0 %1687, %v1314
      %v1689 = vpop.permute.xlu0 %1688
      %1692 = vset.pattern.permute.xlu0 0
      %1693 = vperm.xlu0 %1692, %v1315
      %v1694 = vpop.permute.xlu0 %1693
      %1697 = vset.pattern.permute.xlu0 0
      %1698 = vperm.xlu0 %1697, %v1316
      %v1699 = vpop.permute.xlu0 %1698
      %1702 = vset.pattern.permute.xlu0 0
      %1703 = vperm.xlu0 %1702, %v1317
      %v1704 = vpop.permute.xlu0 %1703
      %1707 = vset.pattern.permute.xlu0 0
      %1708 = vperm.xlu0 %1707, %v1318
      %v1709 = vpop.permute.xlu0 %1708
      %1712 = vset.pattern.permute.xlu0 0
      %1713 = vperm.xlu0 %1712, %v1319
      %v1714 = vpop.permute.xlu0 %1713
      %1717 = vset.pattern.permute.xlu0 0
      %1718 = vperm.xlu0 %1717, %v1320
      %v1719 = vpop.permute.xlu0 %1718
      %1722 = vset.pattern.permute.xlu0 0
      %1723 = vperm.xlu0 %1722, %v1321
      %v1724 = vpop.permute.xlu0 %1723
      %1727 = vset.pattern.permute.xlu0 0
      %1728 = vperm.xlu0 %1727, %v1322
      %v1729 = vpop.permute.xlu0 %1728
      %1732 = vset.pattern.permute.xlu0 0
      %1733 = vperm.xlu0 %1732, %v1323
      %v1734 = vpop.permute.xlu0 %1733
      %1737 = vset.pattern.permute.xlu0 0
      %1738 = vperm.xlu0 %1737, %v1324
      %v1739 = vpop.permute.xlu0 %1738
      %1742 = vset.pattern.permute.xlu0 0
      %1743 = vperm.xlu0 %1742, %v1325
      %v1744 = vpop.permute.xlu0 %1743
      %1747 = vset.pattern.permute.xlu0 0
      %1748 = vperm.xlu0 %1747, %v1326
      %v1749 = vpop.permute.xlu0 %1748
      %1752 = vset.pattern.permute.xlu0 0
      %1753 = vperm.xlu0 %1752, %v1327
      %v1754 = vpop.permute.xlu0 %1753
      %1757 = vset.pattern.permute.xlu0 0
      %1758 = vperm.xlu0 %1757, %v1328
      %v1759 = vpop.permute.xlu0 %1758
      %1762 = vset.pattern.permute.xlu0 0
      %1763 = vperm.xlu0 %1762, %v1329
      %v1764 = vpop.permute.xlu0 %1763
      %1767 = vset.pattern.permute.xlu0 0
      %1768 = vperm.xlu0 %1767, %v1330
      %v1769 = vpop.permute.xlu0 %1768
      %1772 = vset.pattern.permute.xlu0 0
      %1773 = vperm.xlu0 %1772, %v1331
      %v1774 = vpop.permute.xlu0 %1773
      %1777 = vset.pattern.permute.xlu0 0
      %1778 = vperm.xlu0 %1777, %v1332
      %v1779 = vpop.permute.xlu0 %1778
      %1782 = vset.pattern.permute.xlu0 0
      %1783 = vperm.xlu0 %1782, %v1333
      %v1784 = vpop.permute.xlu0 %1783
      %1787 = vset.pattern.permute.xlu0 0
      %1788 = vperm.xlu0 %1787, %v1334
      %v1789 = vpop.permute.xlu0 %1788
      %1792 = vset.pattern.permute.xlu0 0
      %1793 = vperm.xlu0 %1792, %v1335
      %v1794 = vpop.permute.xlu0 %1793
      %1797 = vset.pattern.permute.xlu0 0
      %1798 = vperm.xlu0 %1797, %v1336
      %v1799 = vpop.permute.xlu0 %1798
      %1802 = vset.pattern.permute.xlu0 0
      %1803 = vperm.xlu0 %1802, %v1337
      %v1804 = vpop.permute.xlu0 %1803
      %1807 = vset.pattern.permute.xlu0 0
      %1808 = vperm.xlu0 %1807, %v1338
      %v1809 = vpop.permute.xlu0 %1808
      %1812 = vset.pattern.permute.xlu0 0
      %1813 = vperm.xlu0 %1812, %v1339
      %v1814 = vpop.permute.xlu0 %1813
      %1817 = vset.pattern.permute.xlu0 0
      %1818 = vperm.xlu0 %1817, %v1340
      %v1819 = vpop.permute.xlu0 %1818
      %1822 = vset.pattern.permute.xlu0 0
      %1823 = vperm.xlu0 %1822, %v1341
      %v1824 = vpop.permute.xlu0 %1823
      %1827 = vset.pattern.permute.xlu0 0
      %1828 = vperm.xlu0 %1827, %v1342
      %v1829 = vpop.permute.xlu0 %1828
      %1832 = vset.pattern.permute.xlu0 0
      %1833 = vperm.xlu0 %1832, %v1343
      %v1834 = vpop.permute.xlu0 %1833
      %1837 = vset.pattern.permute.xlu0 0
      %1838 = vperm.xlu0 %1837, %v1344
      %v1839 = vpop.permute.xlu0 %1838
      %1842 = vset.pattern.permute.xlu0 0
      %1843 = vperm.xlu0 %1842, %v1345
      %v1844 = vpop.permute.xlu0 %1843
      %1847 = vset.pattern.permute.xlu0 0
      %1848 = vperm.xlu0 %1847, %v1346
      %v1849 = vpop.permute.xlu0 %1848
      %1852 = vset.pattern.permute.xlu0 0
      %1853 = vperm.xlu0 %1852, %v1347
      %v1854 = vpop.permute.xlu0 %1853
      %1857 = vset.pattern.permute.xlu0 0
      %1858 = vperm.xlu0 %1857, %v1348
      %v1859 = vpop.permute.xlu0 %1858
      %1862 = vset.pattern.permute.xlu0 0
      %1863 = vperm.xlu0 %1862, %v1349
      %v1864 = vpop.permute.xlu0 %1863
      %1867 = vset.pattern.permute.xlu0 0
      %1868 = vperm.xlu0 %1867, %v1350
      %v1869 = vpop.permute.xlu0 %1868
      %1872 = vset.pattern.permute.xlu0 0
      %1873 = vperm.xlu0 %1872, %v1351
      %v1874 = vpop.permute.xlu0 %1873
      %1877 = vset.pattern.permute.xlu0 0
      %1878 = vperm.xlu0 %1877, %v1352
      %v1879 = vpop.permute.xlu0 %1878
      %1882 = vset.pattern.permute.xlu0 0
      %1883 = vperm.xlu0 %1882, %v1353
      %v1884 = vpop.permute.xlu0 %1883
      %1887 = vset.pattern.permute.xlu0 0
      %1888 = vperm.xlu0 %1887, %v1354
      %v1889 = vpop.permute.xlu0 %1888
      %1892 = vset.pattern.permute.xlu0 0
      %1893 = vperm.xlu0 %1892, %v1355
      %v1894 = vpop.permute.xlu0 %1893
      %1897 = vset.pattern.permute.xlu0 0
      %1898 = vperm.xlu0 %1897, %v1356
      %v1899 = vpop.permute.xlu0 %1898
      %1902 = vset.pattern.permute.xlu0 0
      %1903 = vperm.xlu0 %1902, %v1357
      %v1904 = vpop.permute.xlu0 %1903
      %1907 = vset.pattern.permute.xlu0 0
      %1908 = vperm.xlu0 %1907, %v1358
      %v1909 = vpop.permute.xlu0 %1908
      %1912 = vset.pattern.permute.xlu0 0
      %1913 = vperm.xlu0 %1912, %v1359
      %v1914 = vpop.permute.xlu0 %1913
      %1917 = vset.pattern.permute.xlu0 0
      %1918 = vperm.xlu0 %1917, %v1360
      %v1919 = vpop.permute.xlu0 %1918
      %1922 = vset.pattern.permute.xlu0 0
      %1923 = vperm.xlu0 %1922, %v1361
      %v1924 = vpop.permute.xlu0 %1923
      %1927 = vset.pattern.permute.xlu0 0
      %1928 = vperm.xlu0 %1927, %v1362
      %v1929 = vpop.permute.xlu0 %1928
      %1932 = vset.pattern.permute.xlu0 0
      %1933 = vperm.xlu0 %1932, %v1363
      %v1934 = vpop.permute.xlu0 %1933
      %1937 = vset.pattern.permute.xlu0 0
      %1938 = vperm.xlu0 %1937, %v1364
      %v1939 = vpop.permute.xlu0 %1938
      %1942 = vset.pattern.permute.xlu0 0
      %1943 = vperm.xlu0 %1942, %v1365
      %v1944 = vpop.permute.xlu0 %1943
      %1947 = vset.pattern.permute.xlu0 0
      %1948 = vperm.xlu0 %1947, %v1366
      %v1949 = vpop.permute.xlu0 %1948
      %1952 = vset.pattern.permute.xlu0 0
      %1953 = vperm.xlu0 %1952, %v1367
      %v1954 = vpop.permute.xlu0 %1953
      %1957 = vset.pattern.permute.xlu0 0
      %1958 = vperm.xlu0 %1957, %v1368
      %v1959 = vpop.permute.xlu0 %1958
      %1962 = vset.pattern.permute.xlu0 0
      %1963 = vperm.xlu0 %1962, %v1369
      %v1964 = vpop.permute.xlu0 %1963
      %1967 = vset.pattern.permute.xlu0 0
      %1968 = vperm.xlu0 %1967, %v1370
      %v1969 = vpop.permute.xlu0 %1968
      %vm1971 = vcmask 523264
      %v1973 = vsel %vm1971, %v178, 0
      %v1976 = vsel %vm1971, %v186, 0
      %v1979 = vsel %vm1971, %v194, 0
      %v1982 = vsel %vm1971, %v202, 0
      %v1985 = vsel %vm1971, %v210, 0
      %v1988 = vsel %vm1971, %v218, 0
      %v1991 = vsel %vm1971, %v226, 0
      %v1994 = vsel %vm1971, %v234, 0
      %v1997 = vsel %vm1971, %v242, 0
      %v2000 = vsel %vm1971, %v250, 0
      %v2003 = vsel %vm1971, %v258, 0
      %v2006 = vsel %vm1971, %v266, 0
      %v2009 = vsel %vm1971, %v274, 0
      %v2012 = vsel %vm1971, %v282, 0
      %v2015 = vsel %vm1971, %v290, 0
      %v2018 = vsel %vm1971, %v298, 0
      %v2021 = vsel %vm1971, %v306, 0
      %v2024 = vsel %vm1971, %v314, 0
      %v2027 = vsel %vm1971, %v322, 0
      %v2030 = vsel %vm1971, %v330, 0
      %v2033 = vsel %vm1971, %v338, 0
      %v2036 = vsel %vm1971, %v346, 0
      %v2039 = vsel %vm1971, %v354, 0
      %v2042 = vsel %vm1971, %v362, 0
      %v2045 = vsel %vm1971, %v370, 0
      %v2048 = vsel %vm1971, %v378, 0
      %v2051 = vsel %vm1971, %v386, 0
      %v2054 = vsel %vm1971, %v394, 0
      %v2057 = vsel %vm1971, %v402, 0
      %v2060 = vsel %vm1971, %v410, 0
      %v2063 = vsel %vm1971, %v418, 0
      %v2066 = vsel %vm1971, %v426, 0
      %v2069 = vsel %vm1971, %v434, 0
      %v2072 = vsel %vm1971, %v442, 0
      %v2075 = vsel %vm1971, %v450, 0
      %v2078 = vsel %vm1971, %v458, 0
      %v2081 = vsel %vm1971, %v466, 0
      %v2084 = vsel %vm1971, %v474, 0
      %v2087 = vsel %vm1971, %v482, 0
      %v2090 = vsel %vm1971, %v490, 0
      %v2093 = vsel %vm1971, %v498, 0
      %v2096 = vsel %vm1971, %v506, 0
      %v2099 = vsel %vm1971, %v514, 0
      %v2102 = vsel %vm1971, %v522, 0
      %v2105 = vsel %vm1971, %v530, 0
      %v2108 = vsel %vm1971, %v538, 0
      %v2111 = vsel %vm1971, %v546, 0
      %v2114 = vsel %vm1971, %v554, 0
      %v2117 = vsel %vm1971, %v562, 0
      %v2120 = vsel %vm1971, %v570, 0
      %v2123 = vsel %vm1971, %v578, 0
      %v2126 = vsel %vm1971, %v586, 0
      %v2129 = vsel %vm1971, %v594, 0
      %v2132 = vsel %vm1971, %v602, 0
      %v2135 = vsel %vm1971, %v610, 0
      %v2138 = vsel %vm1971, %v618, 0
      %v2141 = vsel %vm1971, %v626, 0
      %v2144 = vsel %vm1971, %v634, 0
      %v2147 = vsel %vm1971, %v642, 0
      %v2150 = vsel %vm1971, %v650, 0
      %v2153 = vsel %vm1971, %v658, 0
      %v2156 = vsel %vm1971, %v666, 0
      %v2159 = vsel %vm1971, %v674, 0
      %v2162 = vsel %vm1971, %v682, 0
      %v2165 = vsel %vm1971, %v690, 0
      %v2168 = vsel %vm1971, %v698, 0
      %v2171 = vsel %vm1971, %v706, 0
      %v2174 = vsel %vm1971, %v714, 0
      %v2177 = vsel %vm1971, %v722, 0
      %v2180 = vsel %vm1971, %v730, 0
      %v2183 = vsel %vm1971, %v738, 0
      %v2186 = vsel %vm1971, %v746, 0
      %v2189 = vsel %vm1971, %v754, 0
      %v2192 = vsel %vm1971, %v762, 0
      %v2195 = vsel %vm1971, %v770, 0
      %v2198 = vsel %vm1971, %v778, 0
      %v2201 = vsel %vm1971, %v786, 0
      %v2204 = vsel %vm1971, %v794, 0
      %v2207 = vsel %vm1971, %v802, 0
      %v2210 = vsel %vm1971, %v810, 0
      %v2213 = vsel %vm1971, %v818, 0
      %v2216 = vsel %vm1971, %v826, 0
      %v2219 = vsel %vm1971, %v834, 0
      %v2222 = vsel %vm1971, %v842, 0
      %v2225 = vsel %vm1971, %v850, 0
      %v2228 = vsel %vm1971, %v858, 0
      %v2231 = vsel %vm1971, %v866, 0
      %v2234 = vsel %vm1971, %v874, 0
      %v2237 = vsel %vm1971, %v882, 0
      %v2240 = vsel %vm1971, %v890, 0
      %v2243 = vsel %vm1971, %v898, 0
      %v2246 = vsel %vm1971, %v906, 0
      %v2249 = vsel %vm1971, %v914, 0
      %v2252 = vsel %vm1971, %v922, 0
      %v2255 = vsel %vm1971, %v930, 0
      %v2258 = vsel %vm1971, %v938, 0
      %v2261 = vsel %vm1971, %v946, 0
      %v2264 = vsel %vm1971, %v954, 0
      %v2267 = vsel %vm1971, %v962, 0
      %v2270 = vsel %vm1971, %v970, 0
      %v2273 = vsel %vm1971, %v978, 0
      %v2276 = vsel %vm1971, %v986, 0
      %v2279 = vsel %vm1971, %v994, 0
      %v2282 = vsel %vm1971, %v1002, 0
      %v2285 = vsel %vm1971, %v1010, 0
      %v2288 = vsel %vm1971, %v1018, 0
      %v2291 = vsel %vm1971, %v1026, 0
      %v2294 = vsel %vm1971, %v1034, 0
      %v2297 = vsel %vm1971, %v1042, 0
      %v2300 = vsel %vm1971, %v1050, 0
      %v2303 = vsel %vm1971, %v1058, 0
      %v2306 = vsel %vm1971, %v1066, 0
      %v2309 = vsel %vm1971, %v1074, 0
      %v2312 = vsel %vm1971, %v1082, 0
      %v2315 = vsel %vm1971, %v1090, 0
      %v2318 = vsel %vm1971, %v1098, 0
      %v2321 = vsel %vm1971, %v1106, 0
      %v2324 = vsel %vm1971, %v1114, 0
      %v2327 = vsel %vm1971, %v1122, 0
      %v2330 = vsel %vm1971, %v1130, 0
      %2332 = vmatprep.subr.mxu0 0.0
      %2333 = vmatpush1.msra.mxu0 %v1131
      %2334 = vmatprep.subr.mxu0 0.0
      %2335 = vmatpush1.msra.mxu0 %v1132
      %2336 = vmatprep.subr.mxu0 0.0
      %2337 = vmatpush1.msra.mxu0 %v1133
      %2338 = vmatprep.subr.mxu0 0.0
      %2339 = vmatpush1.msra.mxu0 %v1134
      %2340 = vmatprep.subr.mxu0 0.0
      %2341 = vmatpush1.msra.mxu0 %v1135
      %2342 = vmatprep.subr.mxu0 0.0
      %2343 = vmatpush1.msra.mxu0 %v1136
      %2344 = vmatprep.subr.mxu0 0.0
      %2345 = vmatpush1.msra.mxu0 %v1137
      %2346 = vmatprep.subr.mxu0 0.0
      %2347 = vmatpush1.msra.mxu0 %v1138
      %2348 = vmatprep.subr.mxu0 0.0
      %2349 = vmatpush1.msra.mxu0 %v1139
      %2350 = vmatprep.subr.mxu0 0.0
      %2351 = vmatpush1.msra.mxu0 %v1140
      %2352 = vmatprep.subr.mxu0 0.0
      %2353 = vmatpush1.msra.mxu0 %v1141
      %2354 = vmatprep.subr.mxu0 0.0
      %2355 = vmatpush1.msra.mxu0 %v1142
      %2356 = vmatprep.subr.mxu0 0.0
      %2357 = vmatpush1.msra.mxu0 %v1143
      %2358 = vmatprep.subr.mxu0 0.0
      %2359 = vmatpush1.msra.mxu0 %v1144
      %2360 = vmatprep.subr.mxu0 0.0
      %2361 = vmatpush1.msra.mxu0 %v1145
      %2362 = vmatprep.subr.mxu0 0.0
      %2363 = vmatpush1.msra.mxu0 %v1146
      %2364 = vmatprep.subr.mxu0 0.0
      %2365 = vmatpush1.msra.mxu0 %v1147
      %2366 = vmatprep.subr.mxu0 0.0
      %2367 = vmatpush1.msra.mxu0 %v1148
      %2368 = vmatprep.subr.mxu0 0.0
      %2369 = vmatpush1.msra.mxu0 %v1149
      %2370 = vmatprep.subr.mxu0 0.0
      %2371 = vmatpush1.msra.mxu0 %v1150
      %2372 = vmatprep.subr.mxu0 0.0
      %2373 = vmatpush1.msra.mxu0 %v1151
      %2374 = vmatprep.subr.mxu0 0.0
      %2375 = vmatpush1.msra.mxu0 %v1152
      %2376 = vmatprep.subr.mxu0 0.0
      %2377 = vmatpush1.msra.mxu0 %v1153
      %2378 = vmatprep.subr.mxu0 0.0
      %2379 = vmatpush1.msra.mxu0 %v1154
      %2380 = vmatprep.subr.mxu0 0.0
      %2381 = vmatpush1.msra.mxu0 %v1155
      %2382 = vmatprep.subr.mxu0 0.0
      %2383 = vmatpush1.msra.mxu0 %v1156
      %2384 = vmatprep.subr.mxu0 0.0
      %2385 = vmatpush1.msra.mxu0 %v1157
      %2386 = vmatprep.subr.mxu0 0.0
      %2387 = vmatpush1.msra.mxu0 %v1158
      %2388 = vmatprep.subr.mxu0 0.0
      %2389 = vmatpush1.msra.mxu0 %v1159
      %2390 = vmatprep.subr.mxu0 0.0
      %2391 = vmatpush1.msra.mxu0 %v1160
      %2392 = vmatprep.subr.mxu0 0.0
      %2393 = vmatpush1.msra.mxu0 %v1161
      %2394 = vmatprep.subr.mxu0 0.0
      %2395 = vmatpush1.msra.mxu0 %v1162
      %2396 = vmatprep.mubr.f32.mxu0 %v172
      %2397 = vmatmul.mubr.f32.gmra.mrb[0].mxu0 %v171
      %v2398 = vpop.f32.mrb[0].mxu0
      %v2399 = vadd.f32 %v1374, %v2398
      %v2400 = vpop.f32.mrb[0].mxu0
      %2401 = vmatprep.mubr.f32.mxu0 %v180
      %2402 = vmatmul.mubr.f32.gmra.mrb[0].mxu0 %v179
      %v2403 = vpop.f32.mrb[0].mxu0
      %v2404 = vadd.f32 %v1379, %v2403
      %v2405 = vpop.f32.mrb[0].mxu0
      %2406 = vmatprep.mubr.f32.mxu0 %v188
      %2407 = vmatmul.mubr.f32.gmra.mrb[0].mxu0 %v187
      %v2408 = vpop.f32.mrb[0].mxu0
      %v2409 = vadd.f32 %v1384, %v2408
      %v2410 = vpop.f32.mrb[0].mxu0
      %2411 = vmatprep.mubr.f32.mxu0 %v196
      %2412 = vmatmul.mubr.f32.gmra.mrb[0].mxu0 %v195
      %v2413 = vpop.f32.mrb[0].mxu0
      %v2414 = vadd.f32 %v1389, %v2413
      %v2415 = vpop.f32.mrb[0].mxu0
      %2416 = vmatprep.mubr.f32.mxu0 %v204
      %2417 = vmatmul.mubr.f32.gmra.mrb[0].mxu0 %v203
      %v2418 = vpop.f32.mrb[0].mxu0
      %v2419 = vadd.f32 %v1394, %v2418
      %v2420 = vpop.f32.mrb[0].mxu0
      %2421 = vmatprep.mubr.f32.mxu0 %v212
      %2422 = vmatmul.mubr.f32.gmra.mrb[0].mxu0 %v211
      %v2423 = vpop.f32.mrb[0].mxu0
      %v2424 = vadd.f32 %v1399, %v2423
      %v2425 = vpop.f32.mrb[0].mxu0
      %2426 = vmatprep.mubr.f32.mxu0 %v220
      %2427 = vmatmul.mubr.f32.gmra.mrb[0].mxu0 %v219
      %v2428 = vpop.f32.mrb[0].mxu0
      %v2429 = vadd.f32 %v1404, %v2428
      %v2430 = vpop.f32.mrb[0].mxu0
      %2431 = vmatprep.mubr.f32.mxu0 %v228
      %2432 = vmatmul.mubr.f32.gmra.mrb[0].mxu0 %v227
      %v2433 = vpop.f32.mrb[0].mxu0
      %v2434 = vadd.f32 %v1409, %v2433
      %v2435 = vpop.f32.mrb[0].mxu0
      %2436 = vmatprep.mubr.f32.mxu0 %v236
      %2437 = vmatmul.mubr.f32.gmra.mrb[0].mxu0 %v235
      %v2438 = vpop.f32.mrb[0].mxu0
      %v2439 = vadd.f32 %v1414, %v2438
      %v2440 = vpop.f32.mrb[0].mxu0
      %2441 = vmatprep.mubr.f32.mxu0 %v244
      %2442 = vmatmul.mubr.f32.gmra.mrb[0].mxu0 %v243
      %v2443 = vpop.f32.mrb[0].mxu0
      %v2444 = vadd.f32 %v1419, %v2443
      %v2445 = vpop.f32.mrb[0].mxu0
      %2446 = vmatprep.mubr.f32.mxu0 %v252
      %2447 = vmatmul.mubr.f32.gmra.mrb[0].mxu0 %v251
      %v2448 = vpop.f32.mrb[0].mxu0
      %v2449 = vadd.f32 %v1424, %v2448
      %v2450 = vpop.f32.mrb[0].mxu0
      %2451 = vmatprep.mubr.f32.mxu0 %v260
      %2452 = vmatmul.mubr.f32.gmra.mrb[0].mxu0 %v259
      %v2453 = vpop.f32.mrb[0].mxu0
      %v2454 = vadd.f32 %v1429, %v2453
      %v2455 = vpop.f32.mrb[0].mxu0
      %2456 = vmatprep.mubr.f32.mxu0 %v268
      %2457 = vmatmul.mubr.f32.gmra.mrb[0].mxu0 %v267
      %v2458 = vpop.f32.mrb[0].mxu0
      %v2459 = vadd.f32 %v1434, %v2458
      %v2460 = vpop.f32.mrb[0].mxu0
      %2461 = vmatprep.mubr.f32.mxu0 %v276
      %2462 = vmatmul.mubr.f32.gmra.mrb[0].mxu0 %v275
      %v2463 = vpop.f32.mrb[0].mxu0
      %v2464 = vadd.f32 %v1439, %v2463
      %v2465 = vpop.f32.mrb[0].mxu0
      %2466 = vmatprep.mubr.f32.mxu0 %v284
      %2467 = vmatmul.mubr.f32.gmra.mrb[0].mxu0 %v283
      %v2468 = vpop.f32.mrb[0].mxu0
      %v2469 = vadd.f32 %v1444, %v2468
      %v2470 = vpop.f32.mrb[0].mxu0
      %2471 = vmatprep.mubr.f32.mxu0 %v292
      %2472 = vmatmul.mubr.f32.gmra.mrb[0].mxu0 %v291
      %v2473 = vpop.f32.mrb[0].mxu0
      %v2474 = vadd.f32 %v1449, %v2473
      %v2475 = vpop.f32.mrb[0].mxu0
      %2476 = vmatprep.mubr.f32.mxu0 %v300
      %2477 = vmatmul.mubr.f32.gmra.mrb[0].mxu0 %v299
      %v2478 = vpop.f32.mrb[0].mxu0
      %v2479 = vadd.f32 %v1454, %v2478
      %v2480 = vpop.f32.mrb[0].mxu0
      %2481 = vmatprep.mubr.f32.mxu0 %v308
      %2482 = vmatmul.mubr.f32.gmra.mrb[0].mxu0 %v307
      %v2483 = vpop.f32.mrb[0].mxu0
      %v2484 = vadd.f32 %v1459, %v2483
      %v2485 = vpop.f32.mrb[0].mxu0
      %2486 = vmatprep.mubr.f32.mxu0 %v316
      %2487 = vmatmul.mubr.f32.gmra.mrb[0].mxu0 %v315
      %v2488 = vpop.f32.mrb[0].mxu0
      %v2489 = vadd.f32 %v1464, %v2488
      %v2490 = vpop.f32.mrb[0].mxu0
      %2491 = vmatprep.mubr.f32.mxu0 %v324
      %2492 = vmatmul.mubr.f32.gmra.mrb[0].mxu0 %v323
      %v2493 = vpop.f32.mrb[0].mxu0
      %v2494 = vadd.f32 %v1469, %v2493
      %v2495 = vpop.f32.mrb[0].mxu0
      %2496 = vmatprep.mubr.f32.mxu0 %v332
      %2497 = vmatmul.mubr.f32.gmra.mrb[0].mxu0 %v331
      %v2498 = vpop.f32.mrb[0].mxu0
      %v2499 = vadd.f32 %v1474, %v2498
      %v2500 = vpop.f32.mrb[0].mxu0
      %2501 = vmatprep.mubr.f32.mxu0 %v340
      %2502 = vmatmul.mubr.f32.gmra.mrb[0].mxu0 %v339
      %v2503 = vpop.f32.mrb[0].mxu0
      %v2504 = vadd.f32 %v1479, %v2503
      %v2505 = vpop.f32.mrb[0].mxu0
      %2506 = vmatprep.mubr.f32.mxu0 %v348
      %2507 = vmatmul.mubr.f32.gmra.mrb[0].mxu0 %v347
      %v2508 = vpop.f32.mrb[0].mxu0
      %v2509 = vadd.f32 %v1484, %v2508
      %v2510 = vpop.f32.mrb[0].mxu0
      %2511 = vmatprep.mubr.f32.mxu0 %v356
      %2512 = vmatmul.mubr.f32.gmra.mrb[0].mxu0 %v355
      %v2513 = vpop.f32.mrb[0].mxu0
      %v2514 = vadd.f32 %v1489, %v2513
      %v2515 = vpop.f32.mrb[0].mxu0
      %2516 = vmatprep.mubr.f32.mxu0 %v364
      %2517 = vmatmul.mubr.f32.gmra.mrb[0].mxu0 %v363
      %v2518 = vpop.f32.mrb[0].mxu0
      %v2519 = vadd.f32 %v1494, %v2518
      %v2520 = vpop.f32.mrb[0].mxu0
      %2521 = vmatprep.mubr.f32.mxu0 %v372
      %2522 = vmatmul.mubr.f32.gmra.mrb[0].mxu0 %v371
      %v2523 = vpop.f32.mrb[0].mxu0
      %v2524 = vadd.f32 %v1499, %v2523
      %v2525 = vpop.f32.mrb[0].mxu0
      %2526 = vmatprep.mubr.f32.mxu0 %v380
      %2527 = vmatmul.mubr.f32.gmra.mrb[0].mxu0 %v379
      %v2528 = vpop.f32.mrb[0].mxu0
      %v2529 = vadd.f32 %v1504, %v2528
      %v2530 = vpop.f32.mrb[0].mxu0
      %2531 = vmatprep.mubr.f32.mxu0 %v388
      %2532 = vmatmul.mubr.f32.gmra.mrb[0].mxu0 %v387
      %v2533 = vpop.f32.mrb[0].mxu0
      %v2534 = vadd.f32 %v1509, %v2533
      %v2535 = vpop.f32.mrb[0].mxu0
      %2536 = vmatprep.mubr.f32.mxu0 %v396
      %2537 = vmatmul.mubr.f32.gmra.mrb[0].mxu0 %v395
      %v2538 = vpop.f32.mrb[0].mxu0
      %v2539 = vadd.f32 %v1514, %v2538
      %v2540 = vpop.f32.mrb[0].mxu0
      %2541 = vmatprep.mubr.f32.mxu0 %v404
      %2542 = vmatmul.mubr.f32.gmra.mrb[0].mxu0 %v403
      %v2543 = vpop.f32.mrb[0].mxu0
      %v2544 = vadd.f32 %v1519, %v2543
      %v2545 = vpop.f32.mrb[0].mxu0
      %2546 = vmatprep.mubr.f32.mxu0 %v412
      %2547 = vmatmul.mubr.f32.gmra.mrb[0].mxu0 %v411
      %v2548 = vpop.f32.mrb[0].mxu0
      %v2549 = vadd.f32 %v1524, %v2548
      %v2550 = vpop.f32.mrb[0].mxu0
      %2551 = vmatprep.mubr.f32.mxu0 %v420
      %2552 = vmatmul.mubr.f32.gmra.mrb[0].mxu0 %v419
      %v2553 = vpop.f32.mrb[0].mxu0
      %v2554 = vadd.f32 %v1529, %v2553
      %v2555 = vpop.f32.mrb[0].mxu0
      %2556 = vmatprep.mubr.f32.mxu0 %v428
      %2557 = vmatmul.mubr.f32.gmra.mrb[0].mxu0 %v427
      %v2558 = vpop.f32.mrb[0].mxu0
      %v2559 = vadd.f32 %v1534, %v2558
      %v2560 = vpop.f32.mrb[0].mxu0
      %2561 = vmatprep.mubr.f32.mxu0 %v436
      %2562 = vmatmul.mubr.f32.gmra.mrb[0].mxu0 %v435
      %v2563 = vpop.f32.mrb[0].mxu0
      %v2564 = vadd.f32 %v1539, %v2563
      %v2565 = vpop.f32.mrb[0].mxu0
      %2566 = vmatprep.mubr.f32.mxu0 %v444
      %2567 = vmatmul.mubr.f32.gmra.mrb[0].mxu0 %v443
      %v2568 = vpop.f32.mrb[0].mxu0
      %v2569 = vadd.f32 %v1544, %v2568
      %v2570 = vpop.f32.mrb[0].mxu0
      %2571 = vmatprep.mubr.f32.mxu0 %v452
      %2572 = vmatmul.mubr.f32.gmra.mrb[0].mxu0 %v451
      %v2573 = vpop.f32.mrb[0].mxu0
      %v2574 = vadd.f32 %v1549, %v2573
      %v2575 = vpop.f32.mrb[0].mxu0
      %2576 = vmatprep.mubr.f32.mxu0 %v460
      %2577 = vmatmul.mubr.f32.gmra.mrb[0].mxu0 %v459
      %v2578 = vpop.f32.mrb[0].mxu0
      %v2579 = vadd.f32 %v1554, %v2578
      %v2580 = vpop.f32.mrb[0].mxu0
      %2581 = vmatprep.mubr.f32.mxu0 %v468
      %2582 = vmatmul.mubr.f32.gmra.mrb[0].mxu0 %v467
      %v2583 = vpop.f32.mrb[0].mxu0
      %v2584 = vadd.f32 %v1559, %v2583
      %v2585 = vpop.f32.mrb[0].mxu0
      %2586 = vmatprep.mubr.f32.mxu0 %v476
      %2587 = vmatmul.mubr.f32.gmra.mrb[0].mxu0 %v475
      %v2588 = vpop.f32.mrb[0].mxu0
      %v2589 = vadd.f32 %v1564, %v2588
      %v2590 = vpop.f32.mrb[0].mxu0
      %2591 = vmatprep.mubr.f32.mxu0 %v484
      %2592 = vmatmul.mubr.f32.gmra.mrb[0].mxu0 %v483
      %v2593 = vpop.f32.mrb[0].mxu0
      %v2594 = vadd.f32 %v1569, %v2593
      %v2595 = vpop.f32.mrb[0].mxu0
      %2596 = vmatprep.mubr.f32.mxu0 %v492
      %2597 = vmatmul.mubr.f32.gmra.mrb[0].mxu0 %v491
      %v2598 = vpop.f32.mrb[0].mxu0
      %v2599 = vadd.f32 %v1574, %v2598
      %v2600 = vpop.f32.mrb[0].mxu0
      %2601 = vmatprep.mubr.f32.mxu0 %v500
      %2602 = vmatmul.mubr.f32.gmra.mrb[0].mxu0 %v499
      %v2603 = vpop.f32.mrb[0].mxu0
      %v2604 = vadd.f32 %v1579, %v2603
      %v2605 = vpop.f32.mrb[0].mxu0
      %2606 = vmatprep.mubr.f32.mxu0 %v508
      %2607 = vmatmul.mubr.f32.gmra.mrb[0].mxu0 %v507
      %v2608 = vpop.f32.mrb[0].mxu0
      %v2609 = vadd.f32 %v1584, %v2608
      %v2610 = vpop.f32.mrb[0].mxu0
      %2611 = vmatprep.mubr.f32.mxu0 %v516
      %2612 = vmatmul.mubr.f32.gmra.mrb[0].mxu0 %v515
      %v2613 = vpop.f32.mrb[0].mxu0
      %v2614 = vadd.f32 %v1589, %v2613
      %v2615 = vpop.f32.mrb[0].mxu0
      %2616 = vmatprep.mubr.f32.mxu0 %v524
      %2617 = vmatmul.mubr.f32.gmra.mrb[0].mxu0 %v523
      %v2618 = vpop.f32.mrb[0].mxu0
      %v2619 = vadd.f32 %v1594, %v2618
      %v2620 = vpop.f32.mrb[0].mxu0
      %2621 = vmatprep.mubr.f32.mxu0 %v532
      %2622 = vmatmul.mubr.f32.gmra.mrb[0].mxu0 %v531
      %v2623 = vpop.f32.mrb[0].mxu0
      %v2624 = vadd.f32 %v1599, %v2623
      %v2625 = vpop.f32.mrb[0].mxu0
      %2626 = vmatprep.mubr.f32.mxu0 %v540
      %2627 = vmatmul.mubr.f32.gmra.mrb[0].mxu0 %v539
      %v2628 = vpop.f32.mrb[0].mxu0
      %v2629 = vadd.f32 %v1604, %v2628
      %v2630 = vpop.f32.mrb[0].mxu0
      %2631 = vmatprep.mubr.f32.mxu0 %v548
      %2632 = vmatmul.mubr.f32.gmra.mrb[0].mxu0 %v547
      %v2633 = vpop.f32.mrb[0].mxu0
      %v2634 = vadd.f32 %v1609, %v2633
      %v2635 = vpop.f32.mrb[0].mxu0
      %2636 = vmatprep.mubr.f32.mxu0 %v556
      %2637 = vmatmul.mubr.f32.gmra.mrb[0].mxu0 %v555
      %v2638 = vpop.f32.mrb[0].mxu0
      %v2639 = vadd.f32 %v1614, %v2638
      %v2640 = vpop.f32.mrb[0].mxu0
      %2641 = vmatprep.mubr.f32.mxu0 %v564
      %2642 = vmatmul.mubr.f32.gmra.mrb[0].mxu0 %v563
      %v2643 = vpop.f32.mrb[0].mxu0
      %v2644 = vadd.f32 %v1619, %v2643
      %v2645 = vpop.f32.mrb[0].mxu0
      %2646 = vmatprep.mubr.f32.mxu0 %v572
      %2647 = vmatmul.mubr.f32.gmra.mrb[0].mxu0 %v571
      %v2648 = vpop.f32.mrb[0].mxu0
      %v2649 = vadd.f32 %v1624, %v2648
      %v2650 = vpop.f32.mrb[0].mxu0
      %2651 = vmatprep.mubr.f32.mxu0 %v580
      %2652 = vmatmul.mubr.f32.gmra.mrb[0].mxu0 %v579
      %v2653 = vpop.f32.mrb[0].mxu0
      %v2654 = vadd.f32 %v1629, %v2653
      %v2655 = vpop.f32.mrb[0].mxu0
      %2656 = vmatprep.mubr.f32.mxu0 %v588
      %2657 = vmatmul.mubr.f32.gmra.mrb[0].mxu0 %v587
      %v2658 = vpop.f32.mrb[0].mxu0
      %v2659 = vadd.f32 %v1634, %v2658
      %v2660 = vpop.f32.mrb[0].mxu0
      %2661 = vmatprep.mubr.f32.mxu0 %v596
      %2662 = vmatmul.mubr.f32.gmra.mrb[0].mxu0 %v595
      %v2663 = vpop.f32.mrb[0].mxu0
      %v2664 = vadd.f32 %v1639, %v2663
      %v2665 = vpop.f32.mrb[0].mxu0
      %2666 = vmatprep.mubr.f32.mxu0 %v604
      %2667 = vmatmul.mubr.f32.gmra.mrb[0].mxu0 %v603
      %v2668 = vpop.f32.mrb[0].mxu0
      %v2669 = vadd.f32 %v1644, %v2668
      %v2670 = vpop.f32.mrb[0].mxu0
      %2671 = vmatprep.mubr.f32.mxu0 %v612
      %2672 = vmatmul.mubr.f32.gmra.mrb[0].mxu0 %v611
      %v2673 = vpop.f32.mrb[0].mxu0
      %v2674 = vadd.f32 %v1649, %v2673
      %v2675 = vpop.f32.mrb[0].mxu0
      %2676 = vmatprep.mubr.f32.mxu0 %v620
      %2677 = vmatmul.mubr.f32.gmra.mrb[0].mxu0 %v619
      %v2678 = vpop.f32.mrb[0].mxu0
      %v2679 = vadd.f32 %v1654, %v2678
      %v2680 = vpop.f32.mrb[0].mxu0
      %2681 = vmatprep.mubr.f32.mxu0 %v628
      %2682 = vmatmul.mubr.f32.gmra.mrb[0].mxu0 %v627
      %v2683 = vpop.f32.mrb[0].mxu0
      %v2684 = vadd.f32 %v1659, %v2683
      %v2685 = vpop.f32.mrb[0].mxu0
      %2686 = vmatprep.mubr.f32.mxu0 %v636
      %2687 = vmatmul.mubr.f32.gmra.mrb[0].mxu0 %v635
      %v2688 = vpop.f32.mrb[0].mxu0
      %v2689 = vadd.f32 %v1664, %v2688
      %v2690 = vpop.f32.mrb[0].mxu0
      %2691 = vmatprep.mubr.f32.mxu0 %v644
      %2692 = vmatmul.mubr.f32.gmra.mrb[0].mxu0 %v643
      %v2693 = vpop.f32.mrb[0].mxu0
      %v2694 = vadd.f32 %v1669, %v2693
      %v2695 = vpop.f32.mrb[0].mxu0
      %2696 = vmatprep.mubr.f32.mxu0 %v652
      %2697 = vmatmul.mubr.f32.gmra.mrb[0].mxu0 %v651
      %v2698 = vpop.f32.mrb[0].mxu0
      %v2699 = vadd.f32 %v1674, %v2698
      %v2700 = vpop.f32.mrb[0].mxu0
      %2701 = vmatprep.mubr.f32.mxu0 %v660
      %2702 = vmatmul.mubr.f32.gmra.mrb[0].mxu0 %v659
      %v2703 = vpop.f32.mrb[0].mxu0
      %v2704 = vadd.f32 %v1679, %v2703
      %v2705 = vpop.f32.mrb[0].mxu0
      %2706 = vmatprep.mubr.f32.mxu0 %v668
      %2707 = vmatmul.mubr.f32.gmra.mrb[0].mxu0 %v667
      %v2708 = vpop.f32.mrb[0].mxu0
      %v2709 = vadd.f32 %v1684, %v2708
      %v2710 = vpop.f32.mrb[0].mxu0
      %2711 = vmatprep.mubr.f32.mxu0 %v676
      %2712 = vmatmul.mubr.f32.gmra.mrb[0].mxu0 %v675
      %v2713 = vpop.f32.mrb[0].mxu0
      %v2714 = vadd.f32 %v1689, %v2713
      %v2715 = vpop.f32.mrb[0].mxu0
      %2716 = vmatprep.mubr.f32.mxu0 %v684
      %2717 = vmatmul.mubr.f32.gmra.mrb[0].mxu0 %v683
      %v2718 = vpop.f32.mrb[0].mxu0
      %v2719 = vadd.f32 %v1694, %v2718
      %v2720 = vpop.f32.mrb[0].mxu0
      %2721 = vmatprep.mubr.f32.mxu0 %v692
      %2722 = vmatmul.mubr.f32.gmra.mrb[0].mxu0 %v691
      %v2723 = vpop.f32.mrb[0].mxu0
      %v2724 = vadd.f32 %v1699, %v2723
      %v2725 = vpop.f32.mrb[0].mxu0
      %2726 = vmatprep.mubr.f32.mxu0 %v700
      %2727 = vmatmul.mubr.f32.gmra.mrb[0].mxu0 %v699
      %v2728 = vpop.f32.mrb[0].mxu0
      %v2729 = vadd.f32 %v1704, %v2728
      %v2730 = vpop.f32.mrb[0].mxu0
      %2731 = vmatprep.mubr.f32.mxu0 %v708
      %2732 = vmatmul.mubr.f32.gmra.mrb[0].mxu0 %v707
      %v2733 = vpop.f32.mrb[0].mxu0
      %v2734 = vadd.f32 %v1709, %v2733
      %v2735 = vpop.f32.mrb[0].mxu0
      %2736 = vmatprep.mubr.f32.mxu0 %v716
      %2737 = vmatmul.mubr.f32.gmra.mrb[0].mxu0 %v715
      %v2738 = vpop.f32.mrb[0].mxu0
      %v2739 = vadd.f32 %v1714, %v2738
      %v2740 = vpop.f32.mrb[0].mxu0
      %2741 = vmatprep.mubr.f32.mxu0 %v724
      %2742 = vmatmul.mubr.f32.gmra.mrb[0].mxu0 %v723
      %v2743 = vpop.f32.mrb[0].mxu0
      %v2744 = vadd.f32 %v1719, %v2743
      %v2745 = vpop.f32.mrb[0].mxu0
      %2746 = vmatprep.mubr.f32.mxu0 %v732
      %2747 = vmatmul.mubr.f32.gmra.mrb[0].mxu0 %v731
      %v2748 = vpop.f32.mrb[0].mxu0
      %v2749 = vadd.f32 %v1724, %v2748
      %v2750 = vpop.f32.mrb[0].mxu0
      %2751 = vmatprep.mubr.f32.mxu0 %v740
      %2752 = vmatmul.mubr.f32.gmra.mrb[0].mxu0 %v739
      %v2753 = vpop.f32.mrb[0].mxu0
      %v2754 = vadd.f32 %v1729, %v2753
      %v2755 = vpop.f32.mrb[0].mxu0
      %2756 = vmatprep.mubr.f32.mxu0 %v748
      %2757 = vmatmul.mubr.f32.gmra.mrb[0].mxu0 %v747
      %v2758 = vpop.f32.mrb[0].mxu0
      %v2759 = vadd.f32 %v1734, %v2758
      %v2760 = vpop.f32.mrb[0].mxu0
      %2761 = vmatprep.mubr.f32.mxu0 %v756
      %2762 = vmatmul.mubr.f32.gmra.mrb[0].mxu0 %v755
      %v2763 = vpop.f32.mrb[0].mxu0
      %v2764 = vadd.f32 %v1739, %v2763
      %v2765 = vpop.f32.mrb[0].mxu0
      %2766 = vmatprep.mubr.f32.mxu0 %v764
      %2767 = vmatmul.mubr.f32.gmra.mrb[0].mxu0 %v763
      %v2768 = vpop.f32.mrb[0].mxu0
      %v2769 = vadd.f32 %v1744, %v2768
      %v2770 = vpop.f32.mrb[0].mxu0
      %2771 = vmatprep.mubr.f32.mxu0 %v772
      %2772 = vmatmul.mubr.f32.gmra.mrb[0].mxu0 %v771
      %v2773 = vpop.f32.mrb[0].mxu0
      %v2774 = vadd.f32 %v1749, %v2773
      %v2775 = vpop.f32.mrb[0].mxu0
      %2776 = vmatprep.mubr.f32.mxu0 %v780
      %2777 = vmatmul.mubr.f32.gmra.mrb[0].mxu0 %v779
      %v2778 = vpop.f32.mrb[0].mxu0
      %v2779 = vadd.f32 %v1754, %v2778
      %v2780 = vpop.f32.mrb[0].mxu0
      %2781 = vmatprep.mubr.f32.mxu0 %v788
      %2782 = vmatmul.mubr.f32.gmra.mrb[0].mxu0 %v787
      %v2783 = vpop.f32.mrb[0].mxu0
      %v2784 = vadd.f32 %v1759, %v2783
      %v2785 = vpop.f32.mrb[0].mxu0
      %2786 = vmatprep.mubr.f32.mxu0 %v796
      %2787 = vmatmul.mubr.f32.gmra.mrb[0].mxu0 %v795
      %v2788 = vpop.f32.mrb[0].mxu0
      %v2789 = vadd.f32 %v1764, %v2788
      %v2790 = vpop.f32.mrb[0].mxu0
      %2791 = vmatprep.mubr.f32.mxu0 %v804
      %2792 = vmatmul.mubr.f32.gmra.mrb[0].mxu0 %v803
      %v2793 = vpop.f32.mrb[0].mxu0
      %v2794 = vadd.f32 %v1769, %v2793
      %v2795 = vpop.f32.mrb[0].mxu0
      %2796 = vmatprep.mubr.f32.mxu0 %v812
      %2797 = vmatmul.mubr.f32.gmra.mrb[0].mxu0 %v811
      %v2798 = vpop.f32.mrb[0].mxu0
      %v2799 = vadd.f32 %v1774, %v2798
      %v2800 = vpop.f32.mrb[0].mxu0
      %2801 = vmatprep.mubr.f32.mxu0 %v820
      %2802 = vmatmul.mubr.f32.gmra.mrb[0].mxu0 %v819
      %v2803 = vpop.f32.mrb[0].mxu0
      %v2804 = vadd.f32 %v1779, %v2803
      %v2805 = vpop.f32.mrb[0].mxu0
      %2806 = vmatprep.mubr.f32.mxu0 %v828
      %2807 = vmatmul.mubr.f32.gmra.mrb[0].mxu0 %v827
      %v2808 = vpop.f32.mrb[0].mxu0
      %v2809 = vadd.f32 %v1784, %v2808
      %v2810 = vpop.f32.mrb[0].mxu0
      %2811 = vmatprep.mubr.f32.mxu0 %v836
      %2812 = vmatmul.mubr.f32.gmra.mrb[0].mxu0 %v835
      %v2813 = vpop.f32.mrb[0].mxu0
      %v2814 = vadd.f32 %v1789, %v2813
      %v2815 = vpop.f32.mrb[0].mxu0
      %2816 = vmatprep.mubr.f32.mxu0 %v844
      %2817 = vmatmul.mubr.f32.gmra.mrb[0].mxu0 %v843
      %v2818 = vpop.f32.mrb[0].mxu0
      %v2819 = vadd.f32 %v1794, %v2818
      %v2820 = vpop.f32.mrb[0].mxu0
      %2821 = vmatprep.mubr.f32.mxu0 %v852
      %2822 = vmatmul.mubr.f32.gmra.mrb[0].mxu0 %v851
      %v2823 = vpop.f32.mrb[0].mxu0
      %v2824 = vadd.f32 %v1799, %v2823
      %v2825 = vpop.f32.mrb[0].mxu0
      %2826 = vmatprep.mubr.f32.mxu0 %v860
      %2827 = vmatmul.mubr.f32.gmra.mrb[0].mxu0 %v859
      %v2828 = vpop.f32.mrb[0].mxu0
      %v2829 = vadd.f32 %v1804, %v2828
      %v2830 = vpop.f32.mrb[0].mxu0
      %2831 = vmatprep.mubr.f32.mxu0 %v868
      %2832 = vmatmul.mubr.f32.gmra.mrb[0].mxu0 %v867
      %v2833 = vpop.f32.mrb[0].mxu0
      %v2834 = vadd.f32 %v1809, %v2833
      %v2835 = vpop.f32.mrb[0].mxu0
      %2836 = vmatprep.mubr.f32.mxu0 %v876
      %2837 = vmatmul.mubr.f32.gmra.mrb[0].mxu0 %v875
      %v2838 = vpop.f32.mrb[0].mxu0
      %v2839 = vadd.f32 %v1814, %v2838
      %v2840 = vpop.f32.mrb[0].mxu0
      %2841 = vmatprep.mubr.f32.mxu0 %v884
      %2842 = vmatmul.mubr.f32.gmra.mrb[0].mxu0 %v883
      %v2843 = vpop.f32.mrb[0].mxu0
      %v2844 = vadd.f32 %v1819, %v2843
      %v2845 = vpop.f32.mrb[0].mxu0
      %2846 = vmatprep.mubr.f32.mxu0 %v892
      %2847 = vmatmul.mubr.f32.gmra.mrb[0].mxu0 %v891
      %v2848 = vpop.f32.mrb[0].mxu0
      %v2849 = vadd.f32 %v1824, %v2848
      %v2850 = vpop.f32.mrb[0].mxu0
      %2851 = vmatprep.mubr.f32.mxu0 %v900
      %2852 = vmatmul.mubr.f32.gmra.mrb[0].mxu0 %v899
      %v2853 = vpop.f32.mrb[0].mxu0
      %v2854 = vadd.f32 %v1829, %v2853
      %v2855 = vpop.f32.mrb[0].mxu0
      %2856 = vmatprep.mubr.f32.mxu0 %v908
      %2857 = vmatmul.mubr.f32.gmra.mrb[0].mxu0 %v907
      %v2858 = vpop.f32.mrb[0].mxu0
      %v2859 = vadd.f32 %v1834, %v2858
      %v2860 = vpop.f32.mrb[0].mxu0
      %2861 = vmatprep.mubr.f32.mxu0 %v916
      %2862 = vmatmul.mubr.f32.gmra.mrb[0].mxu0 %v915
      %v2863 = vpop.f32.mrb[0].mxu0
      %v2864 = vadd.f32 %v1839, %v2863
      %v2865 = vpop.f32.mrb[0].mxu0
      %2866 = vmatprep.mubr.f32.mxu0 %v924
      %2867 = vmatmul.mubr.f32.gmra.mrb[0].mxu0 %v923
      %v2868 = vpop.f32.mrb[0].mxu0
      %v2869 = vadd.f32 %v1844, %v2868
      %v2870 = vpop.f32.mrb[0].mxu0
      %2871 = vmatprep.mubr.f32.mxu0 %v932
      %2872 = vmatmul.mubr.f32.gmra.mrb[0].mxu0 %v931
      %v2873 = vpop.f32.mrb[0].mxu0
      %v2874 = vadd.f32 %v1849, %v2873
      %v2875 = vpop.f32.mrb[0].mxu0
      %2876 = vmatprep.mubr.f32.mxu0 %v940
      %2877 = vmatmul.mubr.f32.gmra.mrb[0].mxu0 %v939
      %v2878 = vpop.f32.mrb[0].mxu0
      %v2879 = vadd.f32 %v1854, %v2878
      %v2880 = vpop.f32.mrb[0].mxu0
      %2881 = vmatprep.mubr.f32.mxu0 %v948
      %2882 = vmatmul.mubr.f32.gmra.mrb[0].mxu0 %v947
      %v2883 = vpop.f32.mrb[0].mxu0
      %v2884 = vadd.f32 %v1859, %v2883
      %v2885 = vpop.f32.mrb[0].mxu0
      %2886 = vmatprep.mubr.f32.mxu0 %v956
      %2887 = vmatmul.mubr.f32.gmra.mrb[0].mxu0 %v955
      %v2888 = vpop.f32.mrb[0].mxu0
      %v2889 = vadd.f32 %v1864, %v2888
      %v2890 = vpop.f32.mrb[0].mxu0
      %2891 = vmatprep.mubr.f32.mxu0 %v964
      %2892 = vmatmul.mubr.f32.gmra.mrb[0].mxu0 %v963
      %v2893 = vpop.f32.mrb[0].mxu0
      %v2894 = vadd.f32 %v1869, %v2893
      %v2895 = vpop.f32.mrb[0].mxu0
      %2896 = vmatprep.mubr.f32.mxu0 %v972
      %2897 = vmatmul.mubr.f32.gmra.mrb[0].mxu0 %v971
      %v2898 = vpop.f32.mrb[0].mxu0
      %v2899 = vadd.f32 %v1874, %v2898
      %v2900 = vpop.f32.mrb[0].mxu0
      %2901 = vmatprep.mubr.f32.mxu0 %v980
      %2902 = vmatmul.mubr.f32.gmra.mrb[0].mxu0 %v979
      %v2903 = vpop.f32.mrb[0].mxu0
      %v2904 = vadd.f32 %v1879, %v2903
      %v2905 = vpop.f32.mrb[0].mxu0
      %2906 = vmatprep.mubr.f32.mxu0 %v988
      %2907 = vmatmul.mubr.f32.gmra.mrb[0].mxu0 %v987
      %v2908 = vpop.f32.mrb[0].mxu0
      %v2909 = vadd.f32 %v1884, %v2908
      %v2910 = vpop.f32.mrb[0].mxu0
      %2911 = vmatprep.mubr.f32.mxu0 %v996
      %2912 = vmatmul.mubr.f32.gmra.mrb[0].mxu0 %v995
      %v2913 = vpop.f32.mrb[0].mxu0
      %v2914 = vadd.f32 %v1889, %v2913
      %v2915 = vpop.f32.mrb[0].mxu0
      %2916 = vmatprep.mubr.f32.mxu0 %v1004
      %2917 = vmatmul.mubr.f32.gmra.mrb[0].mxu0 %v1003
      %v2918 = vpop.f32.mrb[0].mxu0
      %v2919 = vadd.f32 %v1894, %v2918
      %v2920 = vpop.f32.mrb[0].mxu0
      %2921 = vmatprep.mubr.f32.mxu0 %v1012
      %2922 = vmatmul.mubr.f32.gmra.mrb[0].mxu0 %v1011
      %v2923 = vpop.f32.mrb[0].mxu0
      %v2924 = vadd.f32 %v1899, %v2923
      %v2925 = vpop.f32.mrb[0].mxu0
      %2926 = vmatprep.mubr.f32.mxu0 %v1020
      %2927 = vmatmul.mubr.f32.gmra.mrb[0].mxu0 %v1019
      %v2928 = vpop.f32.mrb[0].mxu0
      %v2929 = vadd.f32 %v1904, %v2928
      %v2930 = vpop.f32.mrb[0].mxu0
      %2931 = vmatprep.mubr.f32.mxu0 %v1028
      %2932 = vmatmul.mubr.f32.gmra.mrb[0].mxu0 %v1027
      %v2933 = vpop.f32.mrb[0].mxu0
      %v2934 = vadd.f32 %v1909, %v2933
      %v2935 = vpop.f32.mrb[0].mxu0
      %2936 = vmatprep.mubr.f32.mxu0 %v1036
      %2937 = vmatmul.mubr.f32.gmra.mrb[0].mxu0 %v1035
      %v2938 = vpop.f32.mrb[0].mxu0
      %v2939 = vadd.f32 %v1914, %v2938
      %v2940 = vpop.f32.mrb[0].mxu0
      %2941 = vmatprep.mubr.f32.mxu0 %v1044
      %2942 = vmatmul.mubr.f32.gmra.mrb[0].mxu0 %v1043
      %v2943 = vpop.f32.mrb[0].mxu0
      %v2944 = vadd.f32 %v1919, %v2943
      %v2945 = vpop.f32.mrb[0].mxu0
      %2946 = vmatprep.mubr.f32.mxu0 %v1052
      %2947 = vmatmul.mubr.f32.gmra.mrb[0].mxu0 %v1051
      %v2948 = vpop.f32.mrb[0].mxu0
      %v2949 = vadd.f32 %v1924, %v2948
      %v2950 = vpop.f32.mrb[0].mxu0
      %2951 = vmatprep.mubr.f32.mxu0 %v1060
      %2952 = vmatmul.mubr.f32.gmra.mrb[0].mxu0 %v1059
      %v2953 = vpop.f32.mrb[0].mxu0
      %v2954 = vadd.f32 %v1929, %v2953
      %v2955 = vpop.f32.mrb[0].mxu0
      %2956 = vmatprep.mubr.f32.mxu0 %v1068
      %2957 = vmatmul.mubr.f32.gmra.mrb[0].mxu0 %v1067
      %v2958 = vpop.f32.mrb[0].mxu0
      %v2959 = vadd.f32 %v1934, %v2958
      %v2960 = vpop.f32.mrb[0].mxu0
      %2961 = vmatprep.mubr.f32.mxu0 %v1076
      %2962 = vmatmul.mubr.f32.gmra.mrb[0].mxu0 %v1075
      %v2963 = vpop.f32.mrb[0].mxu0
      %v2964 = vadd.f32 %v1939, %v2963
      %v2965 = vpop.f32.mrb[0].mxu0
      %2966 = vmatprep.mubr.f32.mxu0 %v1084
      %2967 = vmatmul.mubr.f32.gmra.mrb[0].mxu0 %v1083
      %v2968 = vpop.f32.mrb[0].mxu0
      %v2969 = vadd.f32 %v1944, %v2968
      %v2970 = vpop.f32.mrb[0].mxu0
      %2971 = vmatprep.mubr.f32.mxu0 %v1092
      %2972 = vmatmul.mubr.f32.gmra.mrb[0].mxu0 %v1091
      %v2973 = vpop.f32.mrb[0].mxu0
      %v2974 = vadd.f32 %v1949, %v2973
      %v2975 = vpop.f32.mrb[0].mxu0
      %2976 = vmatprep.mubr.f32.mxu0 %v1100
      %2977 = vmatmul.mubr.f32.gmra.mrb[0].mxu0 %v1099
      %v2978 = vpop.f32.mrb[0].mxu0
      %v2979 = vadd.f32 %v1954, %v2978
      %v2980 = vpop.f32.mrb[0].mxu0
      %2981 = vmatprep.mubr.f32.mxu0 %v1108
      %2982 = vmatmul.mubr.f32.gmra.mrb[0].mxu0 %v1107
      %v2983 = vpop.f32.mrb[0].mxu0
      %v2984 = vadd.f32 %v1959, %v2983
      %v2985 = vpop.f32.mrb[0].mxu0
      %2986 = vmatprep.mubr.f32.mxu0 %v1116
      %2987 = vmatmul.mubr.f32.gmra.mrb[0].mxu0 %v1115
      %v2988 = vpop.f32.mrb[0].mxu0
      %v2989 = vadd.f32 %v1964, %v2988
      %v2990 = vpop.f32.mrb[0].mxu0
      %2991 = vmatprep.mubr.f32.mxu0 %v1124
      %2992 = vmatmul.mubr.f32.gmra.mrb[0].mxu0 %v1123
      %v2993 = vpop.f32.mrb[0].mxu0
      %v2994 = vadd.f32 %v1969, %v2993
      %v2995 = vpop.f32.mrb[0].mxu0
      %2996 = vdwg.mxu0
      %2997 = vmatprep.subr.mxu0 0.0
      %2998 = vmatpush1.msra.mxu0 %v1163
      %2999 = vmatprep.subr.mxu0 0.0
      %3000 = vmatpush1.msra.mxu0 %v1164
      %3001 = vmatprep.subr.mxu0 0.0
      %3002 = vmatpush1.msra.mxu0 %v1165
      %3003 = vmatprep.subr.mxu0 0.0
      %3004 = vmatpush1.msra.mxu0 %v1166
      %3005 = vmatprep.subr.mxu0 0.0
      %3006 = vmatpush1.msra.mxu0 %v1167
      %3007 = vmatprep.subr.mxu0 0.0
      %3008 = vmatpush1.msra.mxu0 %v1168
      %3009 = vmatprep.subr.mxu0 0.0
      %3010 = vmatpush1.msra.mxu0 %v1169
      %3011 = vmatprep.subr.mxu0 0.0
      %3012 = vmatpush1.msra.mxu0 %v1170
      %3013 = vmatprep.subr.mxu0 0.0
      %3014 = vmatpush1.msra.mxu0 %v1171
      %3015 = vmatprep.subr.mxu0 0.0
      %3016 = vmatpush1.msra.mxu0 %v1172
      %3017 = vmatprep.subr.mxu0 0.0
      %3018 = vmatpush1.msra.mxu0 %v1173
      %3019 = vmatprep.subr.mxu0 0.0
      %3020 = vmatpush1.msra.mxu0 %v1174
      %3021 = vmatprep.subr.mxu0 0.0
      %3022 = vmatpush1.msra.mxu0 %v1175
      %3023 = vmatprep.subr.mxu0 0.0
      %3024 = vmatpush1.msra.mxu0 %v1176
      %3025 = vmatprep.subr.mxu0 0.0
      %3026 = vmatpush1.msra.mxu0 %v1177
      %3027 = vmatprep.subr.mxu0 0.0
      %3028 = vmatpush1.msra.mxu0 %v1178
      %3029 = vmatprep.subr.mxu0 0.0
      %3030 = vmatpush1.msra.mxu0 %v1179
      %3031 = vmatprep.subr.mxu0 0.0
      %3032 = vmatpush1.msra.mxu0 %v1180
      %3033 = vmatprep.subr.mxu0 0.0
      %3034 = vmatpush1.msra.mxu0 %v1181
      %3035 = vmatprep.subr.mxu0 0.0
      %3036 = vmatpush1.msra.mxu0 %v1182
      %3037 = vmatprep.subr.mxu0 0.0
      %3038 = vmatpush1.msra.mxu0 %v1183
      %3039 = vmatprep.subr.mxu0 0.0
      %3040 = vmatpush1.msra.mxu0 %v1184
      %3041 = vmatprep.subr.mxu0 0.0
      %3042 = vmatpush1.msra.mxu0 %v1185
      %3043 = vmatprep.subr.mxu0 0.0
      %3044 = vmatpush1.msra.mxu0 %v1186
      %3045 = vmatprep.subr.mxu0 0.0
      %3046 = vmatpush1.msra.mxu0 %v1187
      %3047 = vmatprep.subr.mxu0 0.0
      %3048 = vmatpush1.msra.mxu0 %v1188
      %3049 = vmatprep.subr.mxu0 0.0
      %3050 = vmatpush1.msra.mxu0 %v1189
      %3051 = vmatprep.subr.mxu0 0.0
      %3052 = vmatpush1.msra.mxu0 %v1190
      %3053 = vmatprep.subr.mxu0 0.0
      %3054 = vmatpush1.msra.mxu0 %v1191
      %3055 = vmatprep.subr.mxu0 0.0
      %3056 = vmatpush1.msra.mxu0 %v1192
      %3057 = vmatprep.subr.mxu0 0.0
      %3058 = vmatpush1.msra.mxu0 %v1193
      %3059 = vmatprep.subr.mxu0 0.0
      %3060 = vmatpush1.msra.mxu0 %v1194
      %3061 = vmatprep.mubr.f32.mxu0 %v174
      %3062 = vmatmul.mubr.f32.gmra.mrb[0].mxu0 %v173
      %v3063 = vpop.f32.mrb[0].mxu0
      %v3064 = vadd.f32 %v2399, %v3063
      %v3065 = vpop.f32.mrb[0].mxu0
      %3066 = vmatprep.mubr.f32.mxu0 %v182
      %3067 = vmatmul.mubr.f32.gmra.mrb[0].mxu0 %v181
      %v3068 = vpop.f32.mrb[0].mxu0
      %v3069 = vadd.f32 %v2404, %v3068
      %v3070 = vpop.f32.mrb[0].mxu0
      %3071 = vmatprep.mubr.f32.mxu0 %v190
      %3072 = vmatmul.mubr.f32.gmra.mrb[0].mxu0 %v189
      %v3073 = vpop.f32.mrb[0].mxu0
      %v3074 = vadd.f32 %v2409, %v3073
      %v3075 = vpop.f32.mrb[0].mxu0
      %3076 = vmatprep.mubr.f32.mxu0 %v198
      %3077 = vmatmul.mubr.f32.gmra.mrb[0].mxu0 %v197
      %v3078 = vpop.f32.mrb[0].mxu0
      %v3079 = vadd.f32 %v2414, %v3078
      %v3080 = vpop.f32.mrb[0].mxu0
      %3081 = vmatprep.mubr.f32.mxu0 %v206
      %3082 = vmatmul.mubr.f32.gmra.mrb[0].mxu0 %v205
      %v3083 = vpop.f32.mrb[0].mxu0
      %v3084 = vadd.f32 %v2419, %v3083
      %v3085 = vpop.f32.mrb[0].mxu0
      %3086 = vmatprep.mubr.f32.mxu0 %v214
      %3087 = vmatmul.mubr.f32.gmra.mrb[0].mxu0 %v213
      %v3088 = vpop.f32.mrb[0].mxu0
      %v3089 = vadd.f32 %v2424, %v3088
      %v3090 = vpop.f32.mrb[0].mxu0
      %3091 = vmatprep.mubr.f32.mxu0 %v222
      %3092 = vmatmul.mubr.f32.gmra.mrb[0].mxu0 %v221
      %v3093 = vpop.f32.mrb[0].mxu0
      %v3094 = vadd.f32 %v2429, %v3093
      %v3095 = vpop.f32.mrb[0].mxu0
      %3096 = vmatprep.mubr.f32.mxu0 %v230
      %3097 = vmatmul.mubr.f32.gmra.mrb[0].mxu0 %v229
      %v3098 = vpop.f32.mrb[0].mxu0
      %v3099 = vadd.f32 %v2434, %v3098
      %v3100 = vpop.f32.mrb[0].mxu0
      %3101 = vmatprep.mubr.f32.mxu0 %v238
      %3102 = vmatmul.mubr.f32.gmra.mrb[0].mxu0 %v237
      %v3103 = vpop.f32.mrb[0].mxu0
      %v3104 = vadd.f32 %v2439, %v3103
      %v3105 = vpop.f32.mrb[0].mxu0
      %3106 = vmatprep.mubr.f32.mxu0 %v246
      %3107 = vmatmul.mubr.f32.gmra.mrb[0].mxu0 %v245
      %v3108 = vpop.f32.mrb[0].mxu0
      %v3109 = vadd.f32 %v2444, %v3108
      %v3110 = vpop.f32.mrb[0].mxu0
      %3111 = vmatprep.mubr.f32.mxu0 %v254
      %3112 = vmatmul.mubr.f32.gmra.mrb[0].mxu0 %v253
      %v3113 = vpop.f32.mrb[0].mxu0
      %v3114 = vadd.f32 %v2449, %v3113
      %v3115 = vpop.f32.mrb[0].mxu0
      %3116 = vmatprep.mubr.f32.mxu0 %v262
      %3117 = vmatmul.mubr.f32.gmra.mrb[0].mxu0 %v261
      %v3118 = vpop.f32.mrb[0].mxu0
      %v3119 = vadd.f32 %v2454, %v3118
      %v3120 = vpop.f32.mrb[0].mxu0
      %3121 = vmatprep.mubr.f32.mxu0 %v270
      %3122 = vmatmul.mubr.f32.gmra.mrb[0].mxu0 %v269
      %v3123 = vpop.f32.mrb[0].mxu0
      %v3124 = vadd.f32 %v2459, %v3123
      %v3125 = vpop.f32.mrb[0].mxu0
      %3126 = vmatprep.mubr.f32.mxu0 %v278
      %3127 = vmatmul.mubr.f32.gmra.mrb[0].mxu0 %v277
      %v3128 = vpop.f32.mrb[0].mxu0
      %v3129 = vadd.f32 %v2464, %v3128
      %v3130 = vpop.f32.mrb[0].mxu0
      %3131 = vmatprep.mubr.f32.mxu0 %v286
      %3132 = vmatmul.mubr.f32.gmra.mrb[0].mxu0 %v285
      %v3133 = vpop.f32.mrb[0].mxu0
      %v3134 = vadd.f32 %v2469, %v3133
      %v3135 = vpop.f32.mrb[0].mxu0
      %3136 = vmatprep.mubr.f32.mxu0 %v294
      %3137 = vmatmul.mubr.f32.gmra.mrb[0].mxu0 %v293
      %v3138 = vpop.f32.mrb[0].mxu0
      %v3139 = vadd.f32 %v2474, %v3138
      %v3140 = vpop.f32.mrb[0].mxu0
      %3141 = vmatprep.mubr.f32.mxu0 %v302
      %3142 = vmatmul.mubr.f32.gmra.mrb[0].mxu0 %v301
      %v3143 = vpop.f32.mrb[0].mxu0
      %v3144 = vadd.f32 %v2479, %v3143
      %v3145 = vpop.f32.mrb[0].mxu0
      %3146 = vmatprep.mubr.f32.mxu0 %v310
      %3147 = vmatmul.mubr.f32.gmra.mrb[0].mxu0 %v309
      %v3148 = vpop.f32.mrb[0].mxu0
      %v3149 = vadd.f32 %v2484, %v3148
      %v3150 = vpop.f32.mrb[0].mxu0
      %3151 = vmatprep.mubr.f32.mxu0 %v318
      %3152 = vmatmul.mubr.f32.gmra.mrb[0].mxu0 %v317
      %v3153 = vpop.f32.mrb[0].mxu0
      %v3154 = vadd.f32 %v2489, %v3153
      %v3155 = vpop.f32.mrb[0].mxu0
      %3156 = vmatprep.mubr.f32.mxu0 %v326
      %3157 = vmatmul.mubr.f32.gmra.mrb[0].mxu0 %v325
      %v3158 = vpop.f32.mrb[0].mxu0
      %v3159 = vadd.f32 %v2494, %v3158
      %v3160 = vpop.f32.mrb[0].mxu0
      %3161 = vmatprep.mubr.f32.mxu0 %v334
      %3162 = vmatmul.mubr.f32.gmra.mrb[0].mxu0 %v333
      %v3163 = vpop.f32.mrb[0].mxu0
      %v3164 = vadd.f32 %v2499, %v3163
      %v3165 = vpop.f32.mrb[0].mxu0
      %3166 = vmatprep.mubr.f32.mxu0 %v342
      %3167 = vmatmul.mubr.f32.gmra.mrb[0].mxu0 %v341
      %v3168 = vpop.f32.mrb[0].mxu0
      %v3169 = vadd.f32 %v2504, %v3168
      %v3170 = vpop.f32.mrb[0].mxu0
      %3171 = vmatprep.mubr.f32.mxu0 %v350
      %3172 = vmatmul.mubr.f32.gmra.mrb[0].mxu0 %v349
      %v3173 = vpop.f32.mrb[0].mxu0
      %v3174 = vadd.f32 %v2509, %v3173
      %v3175 = vpop.f32.mrb[0].mxu0
      %3176 = vmatprep.mubr.f32.mxu0 %v358
      %3177 = vmatmul.mubr.f32.gmra.mrb[0].mxu0 %v357
      %v3178 = vpop.f32.mrb[0].mxu0
      %v3179 = vadd.f32 %v2514, %v3178
      %v3180 = vpop.f32.mrb[0].mxu0
      %3181 = vmatprep.mubr.f32.mxu0 %v366
      %3182 = vmatmul.mubr.f32.gmra.mrb[0].mxu0 %v365
      %v3183 = vpop.f32.mrb[0].mxu0
      %v3184 = vadd.f32 %v2519, %v3183
      %v3185 = vpop.f32.mrb[0].mxu0
      %3186 = vmatprep.mubr.f32.mxu0 %v374
      %3187 = vmatmul.mubr.f32.gmra.mrb[0].mxu0 %v373
      %v3188 = vpop.f32.mrb[0].mxu0
      %v3189 = vadd.f32 %v2524, %v3188
      %v3190 = vpop.f32.mrb[0].mxu0
      %3191 = vmatprep.mubr.f32.mxu0 %v382
      %3192 = vmatmul.mubr.f32.gmra.mrb[0].mxu0 %v381
      %v3193 = vpop.f32.mrb[0].mxu0
      %v3194 = vadd.f32 %v2529, %v3193
      %v3195 = vpop.f32.mrb[0].mxu0
      %3196 = vmatprep.mubr.f32.mxu0 %v390
      %3197 = vmatmul.mubr.f32.gmra.mrb[0].mxu0 %v389
      %v3198 = vpop.f32.mrb[0].mxu0
      %v3199 = vadd.f32 %v2534, %v3198
      %v3200 = vpop.f32.mrb[0].mxu0
      %3201 = vmatprep.mubr.f32.mxu0 %v398
      %3202 = vmatmul.mubr.f32.gmra.mrb[0].mxu0 %v397
      %v3203 = vpop.f32.mrb[0].mxu0
      %v3204 = vadd.f32 %v2539, %v3203
      %v3205 = vpop.f32.mrb[0].mxu0
      %3206 = vmatprep.mubr.f32.mxu0 %v406
      %3207 = vmatmul.mubr.f32.gmra.mrb[0].mxu0 %v405
      %v3208 = vpop.f32.mrb[0].mxu0
      %v3209 = vadd.f32 %v2544, %v3208
      %v3210 = vpop.f32.mrb[0].mxu0
      %3211 = vmatprep.mubr.f32.mxu0 %v414
      %3212 = vmatmul.mubr.f32.gmra.mrb[0].mxu0 %v413
      %v3213 = vpop.f32.mrb[0].mxu0
      %v3214 = vadd.f32 %v2549, %v3213
      %v3215 = vpop.f32.mrb[0].mxu0
      %3216 = vmatprep.mubr.f32.mxu0 %v422
      %3217 = vmatmul.mubr.f32.gmra.mrb[0].mxu0 %v421
      %v3218 = vpop.f32.mrb[0].mxu0
      %v3219 = vadd.f32 %v2554, %v3218
      %v3220 = vpop.f32.mrb[0].mxu0
      %3221 = vmatprep.mubr.f32.mxu0 %v430
      %3222 = vmatmul.mubr.f32.gmra.mrb[0].mxu0 %v429
      %v3223 = vpop.f32.mrb[0].mxu0
      %v3224 = vadd.f32 %v2559, %v3223
      %v3225 = vpop.f32.mrb[0].mxu0
      %3226 = vmatprep.mubr.f32.mxu0 %v438
      %3227 = vmatmul.mubr.f32.gmra.mrb[0].mxu0 %v437
      %v3228 = vpop.f32.mrb[0].mxu0
      %v3229 = vadd.f32 %v2564, %v3228
      %v3230 = vpop.f32.mrb[0].mxu0
      %3231 = vmatprep.mubr.f32.mxu0 %v446
      %3232 = vmatmul.mubr.f32.gmra.mrb[0].mxu0 %v445
      %v3233 = vpop.f32.mrb[0].mxu0
      %v3234 = vadd.f32 %v2569, %v3233
      %v3235 = vpop.f32.mrb[0].mxu0
      %3236 = vmatprep.mubr.f32.mxu0 %v454
      %3237 = vmatmul.mubr.f32.gmra.mrb[0].mxu0 %v453
      %v3238 = vpop.f32.mrb[0].mxu0
      %v3239 = vadd.f32 %v2574, %v3238
      %v3240 = vpop.f32.mrb[0].mxu0
      %3241 = vmatprep.mubr.f32.mxu0 %v462
      %3242 = vmatmul.mubr.f32.gmra.mrb[0].mxu0 %v461
      %v3243 = vpop.f32.mrb[0].mxu0
      %v3244 = vadd.f32 %v2579, %v3243
      %v3245 = vpop.f32.mrb[0].mxu0
      %3246 = vmatprep.mubr.f32.mxu0 %v470
      %3247 = vmatmul.mubr.f32.gmra.mrb[0].mxu0 %v469
      %v3248 = vpop.f32.mrb[0].mxu0
      %v3249 = vadd.f32 %v2584, %v3248
      %v3250 = vpop.f32.mrb[0].mxu0
      %3251 = vmatprep.mubr.f32.mxu0 %v478
      %3252 = vmatmul.mubr.f32.gmra.mrb[0].mxu0 %v477
      %v3253 = vpop.f32.mrb[0].mxu0
      %v3254 = vadd.f32 %v2589, %v3253
      %v3255 = vpop.f32.mrb[0].mxu0
      %3256 = vmatprep.mubr.f32.mxu0 %v486
      %3257 = vmatmul.mubr.f32.gmra.mrb[0].mxu0 %v485
      %v3258 = vpop.f32.mrb[0].mxu0
      %v3259 = vadd.f32 %v2594, %v3258
      %v3260 = vpop.f32.mrb[0].mxu0
      %3261 = vmatprep.mubr.f32.mxu0 %v494
      %3262 = vmatmul.mubr.f32.gmra.mrb[0].mxu0 %v493
      %v3263 = vpop.f32.mrb[0].mxu0
      %v3264 = vadd.f32 %v2599, %v3263
      %v3265 = vpop.f32.mrb[0].mxu0
      %3266 = vmatprep.mubr.f32.mxu0 %v502
      %3267 = vmatmul.mubr.f32.gmra.mrb[0].mxu0 %v501
      %v3268 = vpop.f32.mrb[0].mxu0
      %v3269 = vadd.f32 %v2604, %v3268
      %v3270 = vpop.f32.mrb[0].mxu0
      %3271 = vmatprep.mubr.f32.mxu0 %v510
      %3272 = vmatmul.mubr.f32.gmra.mrb[0].mxu0 %v509
      %v3273 = vpop.f32.mrb[0].mxu0
      %v3274 = vadd.f32 %v2609, %v3273
      %v3275 = vpop.f32.mrb[0].mxu0
      %3276 = vmatprep.mubr.f32.mxu0 %v518
      %3277 = vmatmul.mubr.f32.gmra.mrb[0].mxu0 %v517
      %v3278 = vpop.f32.mrb[0].mxu0
      %v3279 = vadd.f32 %v2614, %v3278
      %v3280 = vpop.f32.mrb[0].mxu0
      %3281 = vmatprep.mubr.f32.mxu0 %v526
      %3282 = vmatmul.mubr.f32.gmra.mrb[0].mxu0 %v525
      %v3283 = vpop.f32.mrb[0].mxu0
      %v3284 = vadd.f32 %v2619, %v3283
      %v3285 = vpop.f32.mrb[0].mxu0
      %3286 = vmatprep.mubr.f32.mxu0 %v534
      %3287 = vmatmul.mubr.f32.gmra.mrb[0].mxu0 %v533
      %v3288 = vpop.f32.mrb[0].mxu0
      %v3289 = vadd.f32 %v2624, %v3288
      %v3290 = vpop.f32.mrb[0].mxu0
      %3291 = vmatprep.mubr.f32.mxu0 %v542
      %3292 = vmatmul.mubr.f32.gmra.mrb[0].mxu0 %v541
      %v3293 = vpop.f32.mrb[0].mxu0
      %v3294 = vadd.f32 %v2629, %v3293
      %v3295 = vpop.f32.mrb[0].mxu0
      %3296 = vmatprep.mubr.f32.mxu0 %v550
      %3297 = vmatmul.mubr.f32.gmra.mrb[0].mxu0 %v549
      %v3298 = vpop.f32.mrb[0].mxu0
      %v3299 = vadd.f32 %v2634, %v3298
      %v3300 = vpop.f32.mrb[0].mxu0
      %3301 = vmatprep.mubr.f32.mxu0 %v558
      %3302 = vmatmul.mubr.f32.gmra.mrb[0].mxu0 %v557
      %v3303 = vpop.f32.mrb[0].mxu0
      %v3304 = vadd.f32 %v2639, %v3303
      %v3305 = vpop.f32.mrb[0].mxu0
      %3306 = vmatprep.mubr.f32.mxu0 %v566
      %3307 = vmatmul.mubr.f32.gmra.mrb[0].mxu0 %v565
      %v3308 = vpop.f32.mrb[0].mxu0
      %v3309 = vadd.f32 %v2644, %v3308
      %v3310 = vpop.f32.mrb[0].mxu0
      %3311 = vmatprep.mubr.f32.mxu0 %v574
      %3312 = vmatmul.mubr.f32.gmra.mrb[0].mxu0 %v573
      %v3313 = vpop.f32.mrb[0].mxu0
      %v3314 = vadd.f32 %v2649, %v3313
      %v3315 = vpop.f32.mrb[0].mxu0
      %3316 = vmatprep.mubr.f32.mxu0 %v582
      %3317 = vmatmul.mubr.f32.gmra.mrb[0].mxu0 %v581
      %v3318 = vpop.f32.mrb[0].mxu0
      %v3319 = vadd.f32 %v2654, %v3318
      %v3320 = vpop.f32.mrb[0].mxu0
      %3321 = vmatprep.mubr.f32.mxu0 %v590
      %3322 = vmatmul.mubr.f32.gmra.mrb[0].mxu0 %v589
      %v3323 = vpop.f32.mrb[0].mxu0
      %v3324 = vadd.f32 %v2659, %v3323
      %v3325 = vpop.f32.mrb[0].mxu0
      %3326 = vmatprep.mubr.f32.mxu0 %v598
      %3327 = vmatmul.mubr.f32.gmra.mrb[0].mxu0 %v597
      %v3328 = vpop.f32.mrb[0].mxu0
      %v3329 = vadd.f32 %v2664, %v3328
      %v3330 = vpop.f32.mrb[0].mxu0
      %3331 = vmatprep.mubr.f32.mxu0 %v606
      %3332 = vmatmul.mubr.f32.gmra.mrb[0].mxu0 %v605
      %v3333 = vpop.f32.mrb[0].mxu0
      %v3334 = vadd.f32 %v2669, %v3333
      %v3335 = vpop.f32.mrb[0].mxu0
      %3336 = vmatprep.mubr.f32.mxu0 %v614
      %3337 = vmatmul.mubr.f32.gmra.mrb[0].mxu0 %v613
      %v3338 = vpop.f32.mrb[0].mxu0
      %v3339 = vadd.f32 %v2674, %v3338
      %v3340 = vpop.f32.mrb[0].mxu0
      %3341 = vmatprep.mubr.f32.mxu0 %v622
      %3342 = vmatmul.mubr.f32.gmra.mrb[0].mxu0 %v621
      %v3343 = vpop.f32.mrb[0].mxu0
      %v3344 = vadd.f32 %v2679, %v3343
      %v3345 = vpop.f32.mrb[0].mxu0
      %3346 = vmatprep.mubr.f32.mxu0 %v630
      %3347 = vmatmul.mubr.f32.gmra.mrb[0].mxu0 %v629
      %v3348 = vpop.f32.mrb[0].mxu0
      %v3349 = vadd.f32 %v2684, %v3348
      %v3350 = vpop.f32.mrb[0].mxu0
      %3351 = vmatprep.mubr.f32.mxu0 %v638
      %3352 = vmatmul.mubr.f32.gmra.mrb[0].mxu0 %v637
      %v3353 = vpop.f32.mrb[0].mxu0
      %v3354 = vadd.f32 %v2689, %v3353
      %v3355 = vpop.f32.mrb[0].mxu0
      %3356 = vmatprep.mubr.f32.mxu0 %v646
      %3357 = vmatmul.mubr.f32.gmra.mrb[0].mxu0 %v645
      %v3358 = vpop.f32.mrb[0].mxu0
      %v3359 = vadd.f32 %v2694, %v3358
      %v3360 = vpop.f32.mrb[0].mxu0
      %3361 = vmatprep.mubr.f32.mxu0 %v654
      %3362 = vmatmul.mubr.f32.gmra.mrb[0].mxu0 %v653
      %v3363 = vpop.f32.mrb[0].mxu0
      %v3364 = vadd.f32 %v2699, %v3363
      %v3365 = vpop.f32.mrb[0].mxu0
      %3366 = vmatprep.mubr.f32.mxu0 %v662
      %3367 = vmatmul.mubr.f32.gmra.mrb[0].mxu0 %v661
      %v3368 = vpop.f32.mrb[0].mxu0
      %v3369 = vadd.f32 %v2704, %v3368
      %v3370 = vpop.f32.mrb[0].mxu0
      %3371 = vmatprep.mubr.f32.mxu0 %v670
      %3372 = vmatmul.mubr.f32.gmra.mrb[0].mxu0 %v669
      %v3373 = vpop.f32.mrb[0].mxu0
      %v3374 = vadd.f32 %v2709, %v3373
      %v3375 = vpop.f32.mrb[0].mxu0
      %3376 = vmatprep.mubr.f32.mxu0 %v678
      %3377 = vmatmul.mubr.f32.gmra.mrb[0].mxu0 %v677
      %v3378 = vpop.f32.mrb[0].mxu0
      %v3379 = vadd.f32 %v2714, %v3378
      %v3380 = vpop.f32.mrb[0].mxu0
      %3381 = vmatprep.mubr.f32.mxu0 %v686
      %3382 = vmatmul.mubr.f32.gmra.mrb[0].mxu0 %v685
      %v3383 = vpop.f32.mrb[0].mxu0
      %v3384 = vadd.f32 %v2719, %v3383
      %v3385 = vpop.f32.mrb[0].mxu0
      %3386 = vmatprep.mubr.f32.mxu0 %v694
      %3387 = vmatmul.mubr.f32.gmra.mrb[0].mxu0 %v693
      %v3388 = vpop.f32.mrb[0].mxu0
      %v3389 = vadd.f32 %v2724, %v3388
      %v3390 = vpop.f32.mrb[0].mxu0
      %3391 = vmatprep.mubr.f32.mxu0 %v702
      %3392 = vmatmul.mubr.f32.gmra.mrb[0].mxu0 %v701
      %v3393 = vpop.f32.mrb[0].mxu0
      %v3394 = vadd.f32 %v2729, %v3393
      %v3395 = vpop.f32.mrb[0].mxu0
      %3396 = vmatprep.mubr.f32.mxu0 %v710
      %3397 = vmatmul.mubr.f32.gmra.mrb[0].mxu0 %v709
      %v3398 = vpop.f32.mrb[0].mxu0
      %v3399 = vadd.f32 %v2734, %v3398
      %v3400 = vpop.f32.mrb[0].mxu0
      %3401 = vmatprep.mubr.f32.mxu0 %v718
      %3402 = vmatmul.mubr.f32.gmra.mrb[0].mxu0 %v717
      %v3403 = vpop.f32.mrb[0].mxu0
      %v3404 = vadd.f32 %v2739, %v3403
      %v3405 = vpop.f32.mrb[0].mxu0
      %3406 = vmatprep.mubr.f32.mxu0 %v726
      %3407 = vmatmul.mubr.f32.gmra.mrb[0].mxu0 %v725
      %v3408 = vpop.f32.mrb[0].mxu0
      %v3409 = vadd.f32 %v2744, %v3408
      %v3410 = vpop.f32.mrb[0].mxu0
      %3411 = vmatprep.mubr.f32.mxu0 %v734
      %3412 = vmatmul.mubr.f32.gmra.mrb[0].mxu0 %v733
      %v3413 = vpop.f32.mrb[0].mxu0
      %v3414 = vadd.f32 %v2749, %v3413
      %v3415 = vpop.f32.mrb[0].mxu0
      %3416 = vmatprep.mubr.f32.mxu0 %v742
      %3417 = vmatmul.mubr.f32.gmra.mrb[0].mxu0 %v741
      %v3418 = vpop.f32.mrb[0].mxu0
      %v3419 = vadd.f32 %v2754, %v3418
      %v3420 = vpop.f32.mrb[0].mxu0
      %3421 = vmatprep.mubr.f32.mxu0 %v750
      %3422 = vmatmul.mubr.f32.gmra.mrb[0].mxu0 %v749
      %v3423 = vpop.f32.mrb[0].mxu0
      %v3424 = vadd.f32 %v2759, %v3423
      %v3425 = vpop.f32.mrb[0].mxu0
      %3426 = vmatprep.mubr.f32.mxu0 %v758
      %3427 = vmatmul.mubr.f32.gmra.mrb[0].mxu0 %v757
      %v3428 = vpop.f32.mrb[0].mxu0
      %v3429 = vadd.f32 %v2764, %v3428
      %v3430 = vpop.f32.mrb[0].mxu0
      %3431 = vmatprep.mubr.f32.mxu0 %v766
      %3432 = vmatmul.mubr.f32.gmra.mrb[0].mxu0 %v765
      %v3433 = vpop.f32.mrb[0].mxu0
      %v3434 = vadd.f32 %v2769, %v3433
      %v3435 = vpop.f32.mrb[0].mxu0
      %3436 = vmatprep.mubr.f32.mxu0 %v774
      %3437 = vmatmul.mubr.f32.gmra.mrb[0].mxu0 %v773
      %v3438 = vpop.f32.mrb[0].mxu0
      %v3439 = vadd.f32 %v2774, %v3438
      %v3440 = vpop.f32.mrb[0].mxu0
      %3441 = vmatprep.mubr.f32.mxu0 %v782
      %3442 = vmatmul.mubr.f32.gmra.mrb[0].mxu0 %v781
      %v3443 = vpop.f32.mrb[0].mxu0
      %v3444 = vadd.f32 %v2779, %v3443
      %v3445 = vpop.f32.mrb[0].mxu0
      %3446 = vmatprep.mubr.f32.mxu0 %v790
      %3447 = vmatmul.mubr.f32.gmra.mrb[0].mxu0 %v789
      %v3448 = vpop.f32.mrb[0].mxu0
      %v3449 = vadd.f32 %v2784, %v3448
      %v3450 = vpop.f32.mrb[0].mxu0
      %3451 = vmatprep.mubr.f32.mxu0 %v798
      %3452 = vmatmul.mubr.f32.gmra.mrb[0].mxu0 %v797
      %v3453 = vpop.f32.mrb[0].mxu0
      %v3454 = vadd.f32 %v2789, %v3453
      %v3455 = vpop.f32.mrb[0].mxu0
      %3456 = vmatprep.mubr.f32.mxu0 %v806
      %3457 = vmatmul.mubr.f32.gmra.mrb[0].mxu0 %v805
      %v3458 = vpop.f32.mrb[0].mxu0
      %v3459 = vadd.f32 %v2794, %v3458
      %v3460 = vpop.f32.mrb[0].mxu0
      %3461 = vmatprep.mubr.f32.mxu0 %v814
      %3462 = vmatmul.mubr.f32.gmra.mrb[0].mxu0 %v813
      %v3463 = vpop.f32.mrb[0].mxu0
      %v3464 = vadd.f32 %v2799, %v3463
      %v3465 = vpop.f32.mrb[0].mxu0
      %3466 = vmatprep.mubr.f32.mxu0 %v822
      %3467 = vmatmul.mubr.f32.gmra.mrb[0].mxu0 %v821
      %v3468 = vpop.f32.mrb[0].mxu0
      %v3469 = vadd.f32 %v2804, %v3468
      %v3470 = vpop.f32.mrb[0].mxu0
      %3471 = vmatprep.mubr.f32.mxu0 %v830
      %3472 = vmatmul.mubr.f32.gmra.mrb[0].mxu0 %v829
      %v3473 = vpop.f32.mrb[0].mxu0
      %v3474 = vadd.f32 %v2809, %v3473
      %v3475 = vpop.f32.mrb[0].mxu0
      %3476 = vmatprep.mubr.f32.mxu0 %v838
      %3477 = vmatmul.mubr.f32.gmra.mrb[0].mxu0 %v837
      %v3478 = vpop.f32.mrb[0].mxu0
      %v3479 = vadd.f32 %v2814, %v3478
      %v3480 = vpop.f32.mrb[0].mxu0
      %3481 = vmatprep.mubr.f32.mxu0 %v846
      %3482 = vmatmul.mubr.f32.gmra.mrb[0].mxu0 %v845
      %v3483 = vpop.f32.mrb[0].mxu0
      %v3484 = vadd.f32 %v2819, %v3483
      %v3485 = vpop.f32.mrb[0].mxu0
      %3486 = vmatprep.mubr.f32.mxu0 %v854
      %3487 = vmatmul.mubr.f32.gmra.mrb[0].mxu0 %v853
      %v3488 = vpop.f32.mrb[0].mxu0
      %v3489 = vadd.f32 %v2824, %v3488
      %v3490 = vpop.f32.mrb[0].mxu0
      %3491 = vmatprep.mubr.f32.mxu0 %v862
      %3492 = vmatmul.mubr.f32.gmra.mrb[0].mxu0 %v861
      %v3493 = vpop.f32.mrb[0].mxu0
      %v3494 = vadd.f32 %v2829, %v3493
      %v3495 = vpop.f32.mrb[0].mxu0
      %3496 = vmatprep.mubr.f32.mxu0 %v870
      %3497 = vmatmul.mubr.f32.gmra.mrb[0].mxu0 %v869
      %v3498 = vpop.f32.mrb[0].mxu0
      %v3499 = vadd.f32 %v2834, %v3498
      %v3500 = vpop.f32.mrb[0].mxu0
      %3501 = vmatprep.mubr.f32.mxu0 %v878
      %3502 = vmatmul.mubr.f32.gmra.mrb[0].mxu0 %v877
      %v3503 = vpop.f32.mrb[0].mxu0
      %v3504 = vadd.f32 %v2839, %v3503
      %v3505 = vpop.f32.mrb[0].mxu0
      %3506 = vmatprep.mubr.f32.mxu0 %v886
      %3507 = vmatmul.mubr.f32.gmra.mrb[0].mxu0 %v885
      %v3508 = vpop.f32.mrb[0].mxu0
      %v3509 = vadd.f32 %v2844, %v3508
      %v3510 = vpop.f32.mrb[0].mxu0
      %3511 = vmatprep.mubr.f32.mxu0 %v894
      %3512 = vmatmul.mubr.f32.gmra.mrb[0].mxu0 %v893
      %v3513 = vpop.f32.mrb[0].mxu0
      %v3514 = vadd.f32 %v2849, %v3513
      %v3515 = vpop.f32.mrb[0].mxu0
      %3516 = vmatprep.mubr.f32.mxu0 %v902
      %3517 = vmatmul.mubr.f32.gmra.mrb[0].mxu0 %v901
      %v3518 = vpop.f32.mrb[0].mxu0
      %v3519 = vadd.f32 %v2854, %v3518
      %v3520 = vpop.f32.mrb[0].mxu0
      %3521 = vmatprep.mubr.f32.mxu0 %v910
      %3522 = vmatmul.mubr.f32.gmra.mrb[0].mxu0 %v909
      %v3523 = vpop.f32.mrb[0].mxu0
      %v3524 = vadd.f32 %v2859, %v3523
      %v3525 = vpop.f32.mrb[0].mxu0
      %3526 = vmatprep.mubr.f32.mxu0 %v918
      %3527 = vmatmul.mubr.f32.gmra.mrb[0].mxu0 %v917
      %v3528 = vpop.f32.mrb[0].mxu0
      %v3529 = vadd.f32 %v2864, %v3528
      %v3530 = vpop.f32.mrb[0].mxu0
      %3531 = vmatprep.mubr.f32.mxu0 %v926
      %3532 = vmatmul.mubr.f32.gmra.mrb[0].mxu0 %v925
      %v3533 = vpop.f32.mrb[0].mxu0
      %v3534 = vadd.f32 %v2869, %v3533
      %v3535 = vpop.f32.mrb[0].mxu0
      %3536 = vmatprep.mubr.f32.mxu0 %v934
      %3537 = vmatmul.mubr.f32.gmra.mrb[0].mxu0 %v933
      %v3538 = vpop.f32.mrb[0].mxu0
      %v3539 = vadd.f32 %v2874, %v3538
      %v3540 = vpop.f32.mrb[0].mxu0
      %3541 = vmatprep.mubr.f32.mxu0 %v942
      %3542 = vmatmul.mubr.f32.gmra.mrb[0].mxu0 %v941
      %v3543 = vpop.f32.mrb[0].mxu0
      %v3544 = vadd.f32 %v2879, %v3543
      %v3545 = vpop.f32.mrb[0].mxu0
      %3546 = vmatprep.mubr.f32.mxu0 %v950
      %3547 = vmatmul.mubr.f32.gmra.mrb[0].mxu0 %v949
      %v3548 = vpop.f32.mrb[0].mxu0
      %v3549 = vadd.f32 %v2884, %v3548
      %v3550 = vpop.f32.mrb[0].mxu0
      %3551 = vmatprep.mubr.f32.mxu0 %v958
      %3552 = vmatmul.mubr.f32.gmra.mrb[0].mxu0 %v957
      %v3553 = vpop.f32.mrb[0].mxu0
      %v3554 = vadd.f32 %v2889, %v3553
      %v3555 = vpop.f32.mrb[0].mxu0
      %3556 = vmatprep.mubr.f32.mxu0 %v966
      %3557 = vmatmul.mubr.f32.gmra.mrb[0].mxu0 %v965
      %v3558 = vpop.f32.mrb[0].mxu0
      %v3559 = vadd.f32 %v2894, %v3558
      %v3560 = vpop.f32.mrb[0].mxu0
      %3561 = vmatprep.mubr.f32.mxu0 %v974
      %3562 = vmatmul.mubr.f32.gmra.mrb[0].mxu0 %v973
      %v3563 = vpop.f32.mrb[0].mxu0
      %v3564 = vadd.f32 %v2899, %v3563
      %v3565 = vpop.f32.mrb[0].mxu0
      %3566 = vmatprep.mubr.f32.mxu0 %v982
      %3567 = vmatmul.mubr.f32.gmra.mrb[0].mxu0 %v981
      %v3568 = vpop.f32.mrb[0].mxu0
      %v3569 = vadd.f32 %v2904, %v3568
      %v3570 = vpop.f32.mrb[0].mxu0
      %3571 = vmatprep.mubr.f32.mxu0 %v990
      %3572 = vmatmul.mubr.f32.gmra.mrb[0].mxu0 %v989
      %v3573 = vpop.f32.mrb[0].mxu0
      %v3574 = vadd.f32 %v2909, %v3573
      %v3575 = vpop.f32.mrb[0].mxu0
      %3576 = vmatprep.mubr.f32.mxu0 %v998
      %3577 = vmatmul.mubr.f32.gmra.mrb[0].mxu0 %v997
      %v3578 = vpop.f32.mrb[0].mxu0
      %v3579 = vadd.f32 %v2914, %v3578
      %v3580 = vpop.f32.mrb[0].mxu0
      %3581 = vmatprep.mubr.f32.mxu0 %v1006
      %3582 = vmatmul.mubr.f32.gmra.mrb[0].mxu0 %v1005
      %v3583 = vpop.f32.mrb[0].mxu0
      %v3584 = vadd.f32 %v2919, %v3583
      %v3585 = vpop.f32.mrb[0].mxu0
      %3586 = vmatprep.mubr.f32.mxu0 %v1014
      %3587 = vmatmul.mubr.f32.gmra.mrb[0].mxu0 %v1013
      %v3588 = vpop.f32.mrb[0].mxu0
      %v3589 = vadd.f32 %v2924, %v3588
      %v3590 = vpop.f32.mrb[0].mxu0
      %3591 = vmatprep.mubr.f32.mxu0 %v1022
      %3592 = vmatmul.mubr.f32.gmra.mrb[0].mxu0 %v1021
      %v3593 = vpop.f32.mrb[0].mxu0
      %v3594 = vadd.f32 %v2929, %v3593
      %v3595 = vpop.f32.mrb[0].mxu0
      %3596 = vmatprep.mubr.f32.mxu0 %v1030
      %3597 = vmatmul.mubr.f32.gmra.mrb[0].mxu0 %v1029
      %v3598 = vpop.f32.mrb[0].mxu0
      %v3599 = vadd.f32 %v2934, %v3598
      %v3600 = vpop.f32.mrb[0].mxu0
      %3601 = vmatprep.mubr.f32.mxu0 %v1038
      %3602 = vmatmul.mubr.f32.gmra.mrb[0].mxu0 %v1037
      %v3603 = vpop.f32.mrb[0].mxu0
      %v3604 = vadd.f32 %v2939, %v3603
      %v3605 = vpop.f32.mrb[0].mxu0
      %3606 = vmatprep.mubr.f32.mxu0 %v1046
      %3607 = vmatmul.mubr.f32.gmra.mrb[0].mxu0 %v1045
      %v3608 = vpop.f32.mrb[0].mxu0
      %v3609 = vadd.f32 %v2944, %v3608
      %v3610 = vpop.f32.mrb[0].mxu0
      %3611 = vmatprep.mubr.f32.mxu0 %v1054
      %3612 = vmatmul.mubr.f32.gmra.mrb[0].mxu0 %v1053
      %v3613 = vpop.f32.mrb[0].mxu0
      %v3614 = vadd.f32 %v2949, %v3613
      %v3615 = vpop.f32.mrb[0].mxu0
      %3616 = vmatprep.mubr.f32.mxu0 %v1062
      %3617 = vmatmul.mubr.f32.gmra.mrb[0].mxu0 %v1061
      %v3618 = vpop.f32.mrb[0].mxu0
      %v3619 = vadd.f32 %v2954, %v3618
      %v3620 = vpop.f32.mrb[0].mxu0
      %3621 = vmatprep.mubr.f32.mxu0 %v1070
      %3622 = vmatmul.mubr.f32.gmra.mrb[0].mxu0 %v1069
      %v3623 = vpop.f32.mrb[0].mxu0
      %v3624 = vadd.f32 %v2959, %v3623
      %v3625 = vpop.f32.mrb[0].mxu0
      %3626 = vmatprep.mubr.f32.mxu0 %v1078
      %3627 = vmatmul.mubr.f32.gmra.mrb[0].mxu0 %v1077
      %v3628 = vpop.f32.mrb[0].mxu0
      %v3629 = vadd.f32 %v2964, %v3628
      %v3630 = vpop.f32.mrb[0].mxu0
      %3631 = vmatprep.mubr.f32.mxu0 %v1086
      %3632 = vmatmul.mubr.f32.gmra.mrb[0].mxu0 %v1085
      %v3633 = vpop.f32.mrb[0].mxu0
      %v3634 = vadd.f32 %v2969, %v3633
      %v3635 = vpop.f32.mrb[0].mxu0
      %3636 = vmatprep.mubr.f32.mxu0 %v1094
      %3637 = vmatmul.mubr.f32.gmra.mrb[0].mxu0 %v1093
      %v3638 = vpop.f32.mrb[0].mxu0
      %v3639 = vadd.f32 %v2974, %v3638
      %v3640 = vpop.f32.mrb[0].mxu0
      %3641 = vmatprep.mubr.f32.mxu0 %v1102
      %3642 = vmatmul.mubr.f32.gmra.mrb[0].mxu0 %v1101
      %v3643 = vpop.f32.mrb[0].mxu0
      %v3644 = vadd.f32 %v2979, %v3643
      %v3645 = vpop.f32.mrb[0].mxu0
      %3646 = vmatprep.mubr.f32.mxu0 %v1110
      %3647 = vmatmul.mubr.f32.gmra.mrb[0].mxu0 %v1109
      %v3648 = vpop.f32.mrb[0].mxu0
      %v3649 = vadd.f32 %v2984, %v3648
      %v3650 = vpop.f32.mrb[0].mxu0
      %3651 = vmatprep.mubr.f32.mxu0 %v1118
      %3652 = vmatmul.mubr.f32.gmra.mrb[0].mxu0 %v1117
      %v3653 = vpop.f32.mrb[0].mxu0
      %v3654 = vadd.f32 %v2989, %v3653
      %v3655 = vpop.f32.mrb[0].mxu0
      %3656 = vmatprep.mubr.f32.mxu0 %v1126
      %3657 = vmatmul.mubr.f32.gmra.mrb[0].mxu0 %v1125
      %v3658 = vpop.f32.mrb[0].mxu0
      %v3659 = vadd.f32 %v2994, %v3658
      %v3660 = vpop.f32.mrb[0].mxu0
      %3661 = vdwg.mxu0
      %3662 = vmatprep.subr.mxu0 0.0
      %3663 = vmatpush1.msra.mxu0 %v1195
      %3664 = vmatprep.subr.mxu0 0.0
      %3665 = vmatpush1.msra.mxu0 %v1196
      %3666 = vmatprep.subr.mxu0 0.0
      %3667 = vmatpush1.msra.mxu0 %v1197
      %3668 = vmatprep.subr.mxu0 0.0
      %3669 = vmatpush1.msra.mxu0 %v1198
      %3670 = vmatprep.subr.mxu0 0.0
      %3671 = vmatpush1.msra.mxu0 %v1199
      %3672 = vmatprep.subr.mxu0 0.0
      %3673 = vmatpush1.msra.mxu0 %v1200
      %3674 = vmatprep.subr.mxu0 0.0
      %3675 = vmatpush1.msra.mxu0 %v1201
      %3676 = vmatprep.subr.mxu0 0.0
      %3677 = vmatpush1.msra.mxu0 %v1202
      %3678 = vmatprep.subr.mxu0 0.0
      %3679 = vmatpush1.msra.mxu0 %v1203
      %3680 = vmatprep.subr.mxu0 0.0
      %3681 = vmatpush1.msra.mxu0 %v1204
      %3682 = vmatprep.subr.mxu0 0.0
      %3683 = vmatpush1.msra.mxu0 %v1205
      %3684 = vmatprep.subr.mxu0 0.0
      %3685 = vmatpush1.msra.mxu0 %v1206
      %3686 = vmatprep.subr.mxu0 0.0
      %3687 = vmatpush1.msra.mxu0 %v1207
      %3688 = vmatprep.subr.mxu0 0.0
      %3689 = vmatpush1.msra.mxu0 %v1208
      %3690 = vmatprep.subr.mxu0 0.0
      %3691 = vmatpush1.msra.mxu0 %v1209
      %3692 = vmatprep.subr.mxu0 0.0
      %3693 = vmatpush1.msra.mxu0 %v1210
      %3694 = vmatprep.subr.mxu0 0.0
      %3695 = vmatpush1.msra.mxu0 %v1211
      %3696 = vmatprep.subr.mxu0 0.0
      %3697 = vmatpush1.msra.mxu0 %v1212
      %3698 = vmatprep.subr.mxu0 0.0
      %3699 = vmatpush1.msra.mxu0 %v1213
      %3700 = vmatprep.subr.mxu0 0.0
      %3701 = vmatpush1.msra.mxu0 %v1214
      %3702 = vmatprep.subr.mxu0 0.0
      %3703 = vmatpush1.msra.mxu0 %v1215
      %3704 = vmatprep.subr.mxu0 0.0
      %3705 = vmatpush1.msra.mxu0 %v1216
      %3706 = vmatprep.subr.mxu0 0.0
      %3707 = vmatpush1.msra.mxu0 %v1217
      %3708 = vmatprep.subr.mxu0 0.0
      %3709 = vmatpush1.msra.mxu0 %v1218
      %3710 = vmatprep.subr.mxu0 0.0
      %3711 = vmatpush1.msra.mxu0 %v1219
      %3712 = vmatprep.subr.mxu0 0.0
      %3713 = vmatpush1.msra.mxu0 %v1220
      %3714 = vmatprep.subr.mxu0 0.0
      %3715 = vmatpush1.msra.mxu0 %v1221
      %3716 = vmatprep.subr.mxu0 0.0
      %3717 = vmatpush1.msra.mxu0 %v1222
      %3718 = vmatprep.subr.mxu0 0.0
      %3719 = vmatpush1.msra.mxu0 %v1223
      %3720 = vmatprep.subr.mxu0 0.0
      %3721 = vmatpush1.msra.mxu0 %v1224
      %3722 = vmatprep.subr.mxu0 0.0
      %3723 = vmatpush1.msra.mxu0 %v1225
      %3724 = vmatprep.subr.mxu0 0.0
      %3725 = vmatpush1.msra.mxu0 %v1226
      %3726 = vmatprep.mubr.f32.mxu0 %v176
      %3727 = vmatmul.mubr.f32.gmra.mrb[0].mxu0 %v175
      %v3728 = vpop.f32.mrb[0].mxu0
      %v3729 = vadd.f32 %v3064, %v3728
      %v3730 = vpop.f32.mrb[0].mxu0
      %3731 = vmatprep.mubr.f32.mxu0 %v184
      %3732 = vmatmul.mubr.f32.gmra.mrb[0].mxu0 %v183
      %v3733 = vpop.f32.mrb[0].mxu0
      %v3734 = vadd.f32 %v3069, %v3733
      %v3735 = vpop.f32.mrb[0].mxu0
      %3736 = vmatprep.mubr.f32.mxu0 %v192
      %3737 = vmatmul.mubr.f32.gmra.mrb[0].mxu0 %v191
      %v3738 = vpop.f32.mrb[0].mxu0
      %v3739 = vadd.f32 %v3074, %v3738
      %v3740 = vpop.f32.mrb[0].mxu0
      %3741 = vmatprep.mubr.f32.mxu0 %v200
      %3742 = vmatmul.mubr.f32.gmra.mrb[0].mxu0 %v199
      %v3743 = vpop.f32.mrb[0].mxu0
      %v3744 = vadd.f32 %v3079, %v3743
      %v3745 = vpop.f32.mrb[0].mxu0
      %3746 = vmatprep.mubr.f32.mxu0 %v208
      %3747 = vmatmul.mubr.f32.gmra.mrb[0].mxu0 %v207
      %v3748 = vpop.f32.mrb[0].mxu0
      %v3749 = vadd.f32 %v3084, %v3748
      %v3750 = vpop.f32.mrb[0].mxu0
      %3751 = vmatprep.mubr.f32.mxu0 %v216
      %3752 = vmatmul.mubr.f32.gmra.mrb[0].mxu0 %v215
      %v3753 = vpop.f32.mrb[0].mxu0
      %v3754 = vadd.f32 %v3089, %v3753
      %v3755 = vpop.f32.mrb[0].mxu0
      %3756 = vmatprep.mubr.f32.mxu0 %v224
      %3757 = vmatmul.mubr.f32.gmra.mrb[0].mxu0 %v223
      %v3758 = vpop.f32.mrb[0].mxu0
      %v3759 = vadd.f32 %v3094, %v3758
      %v3760 = vpop.f32.mrb[0].mxu0
      %3761 = vmatprep.mubr.f32.mxu0 %v232
      %3762 = vmatmul.mubr.f32.gmra.mrb[0].mxu0 %v231
      %v3763 = vpop.f32.mrb[0].mxu0
      %v3764 = vadd.f32 %v3099, %v3763
      %v3765 = vpop.f32.mrb[0].mxu0
      %3766 = vmatprep.mubr.f32.mxu0 %v240
      %3767 = vmatmul.mubr.f32.gmra.mrb[0].mxu0 %v239
      %v3768 = vpop.f32.mrb[0].mxu0
      %v3769 = vadd.f32 %v3104, %v3768
      %v3770 = vpop.f32.mrb[0].mxu0
      %3771 = vmatprep.mubr.f32.mxu0 %v248
      %3772 = vmatmul.mubr.f32.gmra.mrb[0].mxu0 %v247
      %v3773 = vpop.f32.mrb[0].mxu0
      %v3774 = vadd.f32 %v3109, %v3773
      %v3775 = vpop.f32.mrb[0].mxu0
      %3776 = vmatprep.mubr.f32.mxu0 %v256
      %3777 = vmatmul.mubr.f32.gmra.mrb[0].mxu0 %v255
      %v3778 = vpop.f32.mrb[0].mxu0
      %v3779 = vadd.f32 %v3114, %v3778
      %v3780 = vpop.f32.mrb[0].mxu0
      %3781 = vmatprep.mubr.f32.mxu0 %v264
      %3782 = vmatmul.mubr.f32.gmra.mrb[0].mxu0 %v263
      %v3783 = vpop.f32.mrb[0].mxu0
      %v3784 = vadd.f32 %v3119, %v3783
      %v3785 = vpop.f32.mrb[0].mxu0
      %3786 = vmatprep.mubr.f32.mxu0 %v272
      %3787 = vmatmul.mubr.f32.gmra.mrb[0].mxu0 %v271
      %v3788 = vpop.f32.mrb[0].mxu0
      %v3789 = vadd.f32 %v3124, %v3788
      %v3790 = vpop.f32.mrb[0].mxu0
      %3791 = vmatprep.mubr.f32.mxu0 %v280
      %3792 = vmatmul.mubr.f32.gmra.mrb[0].mxu0 %v279
      %v3793 = vpop.f32.mrb[0].mxu0
      %v3794 = vadd.f32 %v3129, %v3793
      %v3795 = vpop.f32.mrb[0].mxu0
      %3796 = vmatprep.mubr.f32.mxu0 %v288
      %3797 = vmatmul.mubr.f32.gmra.mrb[0].mxu0 %v287
      %v3798 = vpop.f32.mrb[0].mxu0
      %v3799 = vadd.f32 %v3134, %v3798
      %v3800 = vpop.f32.mrb[0].mxu0
      %3801 = vmatprep.mubr.f32.mxu0 %v296
      %3802 = vmatmul.mubr.f32.gmra.mrb[0].mxu0 %v295
      %v3803 = vpop.f32.mrb[0].mxu0
      %v3804 = vadd.f32 %v3139, %v3803
      %v3805 = vpop.f32.mrb[0].mxu0
      %3806 = vmatprep.mubr.f32.mxu0 %v304
      %3807 = vmatmul.mubr.f32.gmra.mrb[0].mxu0 %v303
      %v3808 = vpop.f32.mrb[0].mxu0
      %v3809 = vadd.f32 %v3144, %v3808
      %v3810 = vpop.f32.mrb[0].mxu0
      %3811 = vmatprep.mubr.f32.mxu0 %v312
      %3812 = vmatmul.mubr.f32.gmra.mrb[0].mxu0 %v311
      %v3813 = vpop.f32.mrb[0].mxu0
      %v3814 = vadd.f32 %v3149, %v3813
      %v3815 = vpop.f32.mrb[0].mxu0
      %3816 = vmatprep.mubr.f32.mxu0 %v320
      %3817 = vmatmul.mubr.f32.gmra.mrb[0].mxu0 %v319
      %v3818 = vpop.f32.mrb[0].mxu0
      %v3819 = vadd.f32 %v3154, %v3818
      %v3820 = vpop.f32.mrb[0].mxu0
      %3821 = vmatprep.mubr.f32.mxu0 %v328
      %3822 = vmatmul.mubr.f32.gmra.mrb[0].mxu0 %v327
      %v3823 = vpop.f32.mrb[0].mxu0
      %v3824 = vadd.f32 %v3159, %v3823
      %v3825 = vpop.f32.mrb[0].mxu0
      %3826 = vmatprep.mubr.f32.mxu0 %v336
      %3827 = vmatmul.mubr.f32.gmra.mrb[0].mxu0 %v335
      %v3828 = vpop.f32.mrb[0].mxu0
      %v3829 = vadd.f32 %v3164, %v3828
      %v3830 = vpop.f32.mrb[0].mxu0
      %3831 = vmatprep.mubr.f32.mxu0 %v344
      %3832 = vmatmul.mubr.f32.gmra.mrb[0].mxu0 %v343
      %v3833 = vpop.f32.mrb[0].mxu0
      %v3834 = vadd.f32 %v3169, %v3833
      %v3835 = vpop.f32.mrb[0].mxu0
      %3836 = vmatprep.mubr.f32.mxu0 %v352
      %3837 = vmatmul.mubr.f32.gmra.mrb[0].mxu0 %v351
      %v3838 = vpop.f32.mrb[0].mxu0
      %v3839 = vadd.f32 %v3174, %v3838
      %v3840 = vpop.f32.mrb[0].mxu0
      %3841 = vmatprep.mubr.f32.mxu0 %v360
      %3842 = vmatmul.mubr.f32.gmra.mrb[0].mxu0 %v359
      %v3843 = vpop.f32.mrb[0].mxu0
      %v3844 = vadd.f32 %v3179, %v3843
      %v3845 = vpop.f32.mrb[0].mxu0
      %3846 = vmatprep.mubr.f32.mxu0 %v368
      %3847 = vmatmul.mubr.f32.gmra.mrb[0].mxu0 %v367
      %v3848 = vpop.f32.mrb[0].mxu0
      %v3849 = vadd.f32 %v3184, %v3848
      %v3850 = vpop.f32.mrb[0].mxu0
      %3851 = vmatprep.mubr.f32.mxu0 %v376
      %3852 = vmatmul.mubr.f32.gmra.mrb[0].mxu0 %v375
      %v3853 = vpop.f32.mrb[0].mxu0
      %v3854 = vadd.f32 %v3189, %v3853
      %v3855 = vpop.f32.mrb[0].mxu0
      %3856 = vmatprep.mubr.f32.mxu0 %v384
      %3857 = vmatmul.mubr.f32.gmra.mrb[0].mxu0 %v383
      %v3858 = vpop.f32.mrb[0].mxu0
      %v3859 = vadd.f32 %v3194, %v3858
      %v3860 = vpop.f32.mrb[0].mxu0
      %3861 = vmatprep.mubr.f32.mxu0 %v392
      %3862 = vmatmul.mubr.f32.gmra.mrb[0].mxu0 %v391
      %v3863 = vpop.f32.mrb[0].mxu0
      %v3864 = vadd.f32 %v3199, %v3863
      %v3865 = vpop.f32.mrb[0].mxu0
      %3866 = vmatprep.mubr.f32.mxu0 %v400
      %3867 = vmatmul.mubr.f32.gmra.mrb[0].mxu0 %v399
      %v3868 = vpop.f32.mrb[0].mxu0
      %v3869 = vadd.f32 %v3204, %v3868
      %v3870 = vpop.f32.mrb[0].mxu0
      %3871 = vmatprep.mubr.f32.mxu0 %v408
      %3872 = vmatmul.mubr.f32.gmra.mrb[0].mxu0 %v407
      %v3873 = vpop.f32.mrb[0].mxu0
      %v3874 = vadd.f32 %v3209, %v3873
      %v3875 = vpop.f32.mrb[0].mxu0
      %3876 = vmatprep.mubr.f32.mxu0 %v416
      %3877 = vmatmul.mubr.f32.gmra.mrb[0].mxu0 %v415
      %v3878 = vpop.f32.mrb[0].mxu0
      %v3879 = vadd.f32 %v3214, %v3878
      %v3880 = vpop.f32.mrb[0].mxu0
      %3881 = vmatprep.mubr.f32.mxu0 %v424
      %3882 = vmatmul.mubr.f32.gmra.mrb[0].mxu0 %v423
      %v3883 = vpop.f32.mrb[0].mxu0
      %v3884 = vadd.f32 %v3219, %v3883
      %v3885 = vpop.f32.mrb[0].mxu0
      %3886 = vmatprep.mubr.f32.mxu0 %v432
      %3887 = vmatmul.mubr.f32.gmra.mrb[0].mxu0 %v431
      %v3888 = vpop.f32.mrb[0].mxu0
      %v3889 = vadd.f32 %v3224, %v3888
      %v3890 = vpop.f32.mrb[0].mxu0
      %3891 = vmatprep.mubr.f32.mxu0 %v440
      %3892 = vmatmul.mubr.f32.gmra.mrb[0].mxu0 %v439
      %v3893 = vpop.f32.mrb[0].mxu0
      %v3894 = vadd.f32 %v3229, %v3893
      %v3895 = vpop.f32.mrb[0].mxu0
      %3896 = vmatprep.mubr.f32.mxu0 %v448
      %3897 = vmatmul.mubr.f32.gmra.mrb[0].mxu0 %v447
      %v3898 = vpop.f32.mrb[0].mxu0
      %v3899 = vadd.f32 %v3234, %v3898
      %v3900 = vpop.f32.mrb[0].mxu0
      %3901 = vmatprep.mubr.f32.mxu0 %v456
      %3902 = vmatmul.mubr.f32.gmra.mrb[0].mxu0 %v455
      %v3903 = vpop.f32.mrb[0].mxu0
      %v3904 = vadd.f32 %v3239, %v3903
      %v3905 = vpop.f32.mrb[0].mxu0
      %3906 = vmatprep.mubr.f32.mxu0 %v464
      %3907 = vmatmul.mubr.f32.gmra.mrb[0].mxu0 %v463
      %v3908 = vpop.f32.mrb[0].mxu0
      %v3909 = vadd.f32 %v3244, %v3908
      %v3910 = vpop.f32.mrb[0].mxu0
      %3911 = vmatprep.mubr.f32.mxu0 %v472
      %3912 = vmatmul.mubr.f32.gmra.mrb[0].mxu0 %v471
      %v3913 = vpop.f32.mrb[0].mxu0
      %v3914 = vadd.f32 %v3249, %v3913
      %v3915 = vpop.f32.mrb[0].mxu0
      %3916 = vmatprep.mubr.f32.mxu0 %v480
      %3917 = vmatmul.mubr.f32.gmra.mrb[0].mxu0 %v479
      %v3918 = vpop.f32.mrb[0].mxu0
      %v3919 = vadd.f32 %v3254, %v3918
      %v3920 = vpop.f32.mrb[0].mxu0
      %3921 = vmatprep.mubr.f32.mxu0 %v488
      %3922 = vmatmul.mubr.f32.gmra.mrb[0].mxu0 %v487
      %v3923 = vpop.f32.mrb[0].mxu0
      %v3924 = vadd.f32 %v3259, %v3923
      %v3925 = vpop.f32.mrb[0].mxu0
      %3926 = vmatprep.mubr.f32.mxu0 %v496
      %3927 = vmatmul.mubr.f32.gmra.mrb[0].mxu0 %v495
      %v3928 = vpop.f32.mrb[0].mxu0
      %v3929 = vadd.f32 %v3264, %v3928
      %v3930 = vpop.f32.mrb[0].mxu0
      %3931 = vmatprep.mubr.f32.mxu0 %v504
      %3932 = vmatmul.mubr.f32.gmra.mrb[0].mxu0 %v503
      %v3933 = vpop.f32.mrb[0].mxu0
      %v3934 = vadd.f32 %v3269, %v3933
      %v3935 = vpop.f32.mrb[0].mxu0
      %3936 = vmatprep.mubr.f32.mxu0 %v512
      %3937 = vmatmul.mubr.f32.gmra.mrb[0].mxu0 %v511
      %v3938 = vpop.f32.mrb[0].mxu0
      %v3939 = vadd.f32 %v3274, %v3938
      %v3940 = vpop.f32.mrb[0].mxu0
      %3941 = vmatprep.mubr.f32.mxu0 %v520
      %3942 = vmatmul.mubr.f32.gmra.mrb[0].mxu0 %v519
      %v3943 = vpop.f32.mrb[0].mxu0
      %v3944 = vadd.f32 %v3279, %v3943
      %v3945 = vpop.f32.mrb[0].mxu0
      %3946 = vmatprep.mubr.f32.mxu0 %v528
      %3947 = vmatmul.mubr.f32.gmra.mrb[0].mxu0 %v527
      %v3948 = vpop.f32.mrb[0].mxu0
      %v3949 = vadd.f32 %v3284, %v3948
      %v3950 = vpop.f32.mrb[0].mxu0
      %3951 = vmatprep.mubr.f32.mxu0 %v536
      %3952 = vmatmul.mubr.f32.gmra.mrb[0].mxu0 %v535
      %v3953 = vpop.f32.mrb[0].mxu0
      %v3954 = vadd.f32 %v3289, %v3953
      %v3955 = vpop.f32.mrb[0].mxu0
      %3956 = vmatprep.mubr.f32.mxu0 %v544
      %3957 = vmatmul.mubr.f32.gmra.mrb[0].mxu0 %v543
      %v3958 = vpop.f32.mrb[0].mxu0
      %v3959 = vadd.f32 %v3294, %v3958
      %v3960 = vpop.f32.mrb[0].mxu0
      %3961 = vmatprep.mubr.f32.mxu0 %v552
      %3962 = vmatmul.mubr.f32.gmra.mrb[0].mxu0 %v551
      %v3963 = vpop.f32.mrb[0].mxu0
      %v3964 = vadd.f32 %v3299, %v3963
      %v3965 = vpop.f32.mrb[0].mxu0
      %3966 = vmatprep.mubr.f32.mxu0 %v560
      %3967 = vmatmul.mubr.f32.gmra.mrb[0].mxu0 %v559
      %v3968 = vpop.f32.mrb[0].mxu0
      %v3969 = vadd.f32 %v3304, %v3968
      %v3970 = vpop.f32.mrb[0].mxu0
      %3971 = vmatprep.mubr.f32.mxu0 %v568
      %3972 = vmatmul.mubr.f32.gmra.mrb[0].mxu0 %v567
      %v3973 = vpop.f32.mrb[0].mxu0
      %v3974 = vadd.f32 %v3309, %v3973
      %v3975 = vpop.f32.mrb[0].mxu0
      %3976 = vmatprep.mubr.f32.mxu0 %v576
      %3977 = vmatmul.mubr.f32.gmra.mrb[0].mxu0 %v575
      %v3978 = vpop.f32.mrb[0].mxu0
      %v3979 = vadd.f32 %v3314, %v3978
      %v3980 = vpop.f32.mrb[0].mxu0
      %3981 = vmatprep.mubr.f32.mxu0 %v584
      %3982 = vmatmul.mubr.f32.gmra.mrb[0].mxu0 %v583
      %v3983 = vpop.f32.mrb[0].mxu0
      %v3984 = vadd.f32 %v3319, %v3983
      %v3985 = vpop.f32.mrb[0].mxu0
      %3986 = vmatprep.mubr.f32.mxu0 %v592
      %3987 = vmatmul.mubr.f32.gmra.mrb[0].mxu0 %v591
      %v3988 = vpop.f32.mrb[0].mxu0
      %v3989 = vadd.f32 %v3324, %v3988
      %v3990 = vpop.f32.mrb[0].mxu0
      %3991 = vmatprep.mubr.f32.mxu0 %v600
      %3992 = vmatmul.mubr.f32.gmra.mrb[0].mxu0 %v599
      %v3993 = vpop.f32.mrb[0].mxu0
      %v3994 = vadd.f32 %v3329, %v3993
      %v3995 = vpop.f32.mrb[0].mxu0
      %3996 = vmatprep.mubr.f32.mxu0 %v608
      %3997 = vmatmul.mubr.f32.gmra.mrb[0].mxu0 %v607
      %v3998 = vpop.f32.mrb[0].mxu0
      %v3999 = vadd.f32 %v3334, %v3998
      %v4000 = vpop.f32.mrb[0].mxu0
      %4001 = vmatprep.mubr.f32.mxu0 %v616
      %4002 = vmatmul.mubr.f32.gmra.mrb[0].mxu0 %v615
      %v4003 = vpop.f32.mrb[0].mxu0
      %v4004 = vadd.f32 %v3339, %v4003
      %v4005 = vpop.f32.mrb[0].mxu0
      %4006 = vmatprep.mubr.f32.mxu0 %v624
      %4007 = vmatmul.mubr.f32.gmra.mrb[0].mxu0 %v623
      %v4008 = vpop.f32.mrb[0].mxu0
      %v4009 = vadd.f32 %v3344, %v4008
      %v4010 = vpop.f32.mrb[0].mxu0
      %4011 = vmatprep.mubr.f32.mxu0 %v632
      %4012 = vmatmul.mubr.f32.gmra.mrb[0].mxu0 %v631
      %v4013 = vpop.f32.mrb[0].mxu0
      %v4014 = vadd.f32 %v3349, %v4013
      %v4015 = vpop.f32.mrb[0].mxu0
      %4016 = vmatprep.mubr.f32.mxu0 %v640
      %4017 = vmatmul.mubr.f32.gmra.mrb[0].mxu0 %v639
      %v4018 = vpop.f32.mrb[0].mxu0
      %v4019 = vadd.f32 %v3354, %v4018
      %v4020 = vpop.f32.mrb[0].mxu0
      %4021 = vmatprep.mubr.f32.mxu0 %v648
      %4022 = vmatmul.mubr.f32.gmra.mrb[0].mxu0 %v647
      %v4023 = vpop.f32.mrb[0].mxu0
      %v4024 = vadd.f32 %v3359, %v4023
      %v4025 = vpop.f32.mrb[0].mxu0
      %4026 = vmatprep.mubr.f32.mxu0 %v656
      %4027 = vmatmul.mubr.f32.gmra.mrb[0].mxu0 %v655
      %v4028 = vpop.f32.mrb[0].mxu0
      %v4029 = vadd.f32 %v3364, %v4028
      %v4030 = vpop.f32.mrb[0].mxu0
      %4031 = vmatprep.mubr.f32.mxu0 %v664
      %4032 = vmatmul.mubr.f32.gmra.mrb[0].mxu0 %v663
      %v4033 = vpop.f32.mrb[0].mxu0
      %v4034 = vadd.f32 %v3369, %v4033
      %v4035 = vpop.f32.mrb[0].mxu0
      %4036 = vmatprep.mubr.f32.mxu0 %v672
      %4037 = vmatmul.mubr.f32.gmra.mrb[0].mxu0 %v671
      %v4038 = vpop.f32.mrb[0].mxu0
      %v4039 = vadd.f32 %v3374, %v4038
      %v4040 = vpop.f32.mrb[0].mxu0
      %4041 = vmatprep.mubr.f32.mxu0 %v680
      %4042 = vmatmul.mubr.f32.gmra.mrb[0].mxu0 %v679
      %v4043 = vpop.f32.mrb[0].mxu0
      %v4044 = vadd.f32 %v3379, %v4043
      %v4045 = vpop.f32.mrb[0].mxu0
      %4046 = vmatprep.mubr.f32.mxu0 %v688
      %4047 = vmatmul.mubr.f32.gmra.mrb[0].mxu0 %v687
      %v4048 = vpop.f32.mrb[0].mxu0
      %v4049 = vadd.f32 %v3384, %v4048
      %v4050 = vpop.f32.mrb[0].mxu0
      %4051 = vmatprep.mubr.f32.mxu0 %v696
      %4052 = vmatmul.mubr.f32.gmra.mrb[0].mxu0 %v695
      %v4053 = vpop.f32.mrb[0].mxu0
      %v4054 = vadd.f32 %v3389, %v4053
      %v4055 = vpop.f32.mrb[0].mxu0
      %4056 = vmatprep.mubr.f32.mxu0 %v704
      %4057 = vmatmul.mubr.f32.gmra.mrb[0].mxu0 %v703
      %v4058 = vpop.f32.mrb[0].mxu0
      %v4059 = vadd.f32 %v3394, %v4058
      %v4060 = vpop.f32.mrb[0].mxu0
      %4061 = vmatprep.mubr.f32.mxu0 %v712
      %4062 = vmatmul.mubr.f32.gmra.mrb[0].mxu0 %v711
      %v4063 = vpop.f32.mrb[0].mxu0
      %v4064 = vadd.f32 %v3399, %v4063
      %v4065 = vpop.f32.mrb[0].mxu0
      %4066 = vmatprep.mubr.f32.mxu0 %v720
      %4067 = vmatmul.mubr.f32.gmra.mrb[0].mxu0 %v719
      %v4068 = vpop.f32.mrb[0].mxu0
      %v4069 = vadd.f32 %v3404, %v4068
      %v4070 = vpop.f32.mrb[0].mxu0
      %4071 = vmatprep.mubr.f32.mxu0 %v728
      %4072 = vmatmul.mubr.f32.gmra.mrb[0].mxu0 %v727
      %v4073 = vpop.f32.mrb[0].mxu0
      %v4074 = vadd.f32 %v3409, %v4073
      %v4075 = vpop.f32.mrb[0].mxu0
      %4076 = vmatprep.mubr.f32.mxu0 %v736
      %4077 = vmatmul.mubr.f32.gmra.mrb[0].mxu0 %v735
      %v4078 = vpop.f32.mrb[0].mxu0
      %v4079 = vadd.f32 %v3414, %v4078
      %v4080 = vpop.f32.mrb[0].mxu0
      %4081 = vmatprep.mubr.f32.mxu0 %v744
      %4082 = vmatmul.mubr.f32.gmra.mrb[0].mxu0 %v743
      %v4083 = vpop.f32.mrb[0].mxu0
      %v4084 = vadd.f32 %v3419, %v4083
      %v4085 = vpop.f32.mrb[0].mxu0
      %4086 = vmatprep.mubr.f32.mxu0 %v752
      %4087 = vmatmul.mubr.f32.gmra.mrb[0].mxu0 %v751
      %v4088 = vpop.f32.mrb[0].mxu0
      %v4089 = vadd.f32 %v3424, %v4088
      %v4090 = vpop.f32.mrb[0].mxu0
      %4091 = vmatprep.mubr.f32.mxu0 %v760
      %4092 = vmatmul.mubr.f32.gmra.mrb[0].mxu0 %v759
      %v4093 = vpop.f32.mrb[0].mxu0
      %v4094 = vadd.f32 %v3429, %v4093
      %v4095 = vpop.f32.mrb[0].mxu0
      %4096 = vmatprep.mubr.f32.mxu0 %v768
      %4097 = vmatmul.mubr.f32.gmra.mrb[0].mxu0 %v767
      %v4098 = vpop.f32.mrb[0].mxu0
      %v4099 = vadd.f32 %v3434, %v4098
      %v4100 = vpop.f32.mrb[0].mxu0
      %4101 = vmatprep.mubr.f32.mxu0 %v776
      %4102 = vmatmul.mubr.f32.gmra.mrb[0].mxu0 %v775
      %v4103 = vpop.f32.mrb[0].mxu0
      %v4104 = vadd.f32 %v3439, %v4103
      %v4105 = vpop.f32.mrb[0].mxu0
      %4106 = vmatprep.mubr.f32.mxu0 %v784
      %4107 = vmatmul.mubr.f32.gmra.mrb[0].mxu0 %v783
      %v4108 = vpop.f32.mrb[0].mxu0
      %v4109 = vadd.f32 %v3444, %v4108
      %v4110 = vpop.f32.mrb[0].mxu0
      %4111 = vmatprep.mubr.f32.mxu0 %v792
      %4112 = vmatmul.mubr.f32.gmra.mrb[0].mxu0 %v791
      %v4113 = vpop.f32.mrb[0].mxu0
      %v4114 = vadd.f32 %v3449, %v4113
      %v4115 = vpop.f32.mrb[0].mxu0
      %4116 = vmatprep.mubr.f32.mxu0 %v800
      %4117 = vmatmul.mubr.f32.gmra.mrb[0].mxu0 %v799
      %v4118 = vpop.f32.mrb[0].mxu0
      %v4119 = vadd.f32 %v3454, %v4118
      %v4120 = vpop.f32.mrb[0].mxu0
      %4121 = vmatprep.mubr.f32.mxu0 %v808
      %4122 = vmatmul.mubr.f32.gmra.mrb[0].mxu0 %v807
      %v4123 = vpop.f32.mrb[0].mxu0
      %v4124 = vadd.f32 %v3459, %v4123
      %v4125 = vpop.f32.mrb[0].mxu0
      %4126 = vmatprep.mubr.f32.mxu0 %v816
      %4127 = vmatmul.mubr.f32.gmra.mrb[0].mxu0 %v815
      %v4128 = vpop.f32.mrb[0].mxu0
      %v4129 = vadd.f32 %v3464, %v4128
      %v4130 = vpop.f32.mrb[0].mxu0
      %4131 = vmatprep.mubr.f32.mxu0 %v824
      %4132 = vmatmul.mubr.f32.gmra.mrb[0].mxu0 %v823
      %v4133 = vpop.f32.mrb[0].mxu0
      %v4134 = vadd.f32 %v3469, %v4133
      %v4135 = vpop.f32.mrb[0].mxu0
      %4136 = vmatprep.mubr.f32.mxu0 %v832
      %4137 = vmatmul.mubr.f32.gmra.mrb[0].mxu0 %v831
      %v4138 = vpop.f32.mrb[0].mxu0
      %v4139 = vadd.f32 %v3474, %v4138
      %v4140 = vpop.f32.mrb[0].mxu0
      %4141 = vmatprep.mubr.f32.mxu0 %v840
      %4142 = vmatmul.mubr.f32.gmra.mrb[0].mxu0 %v839
      %v4143 = vpop.f32.mrb[0].mxu0
      %v4144 = vadd.f32 %v3479, %v4143
      %v4145 = vpop.f32.mrb[0].mxu0
      %4146 = vmatprep.mubr.f32.mxu0 %v848
      %4147 = vmatmul.mubr.f32.gmra.mrb[0].mxu0 %v847
      %v4148 = vpop.f32.mrb[0].mxu0
      %v4149 = vadd.f32 %v3484, %v4148
      %v4150 = vpop.f32.mrb[0].mxu0
      %4151 = vmatprep.mubr.f32.mxu0 %v856
      %4152 = vmatmul.mubr.f32.gmra.mrb[0].mxu0 %v855
      %v4153 = vpop.f32.mrb[0].mxu0
      %v4154 = vadd.f32 %v3489, %v4153
      %v4155 = vpop.f32.mrb[0].mxu0
      %4156 = vmatprep.mubr.f32.mxu0 %v864
      %4157 = vmatmul.mubr.f32.gmra.mrb[0].mxu0 %v863
      %v4158 = vpop.f32.mrb[0].mxu0
      %v4159 = vadd.f32 %v3494, %v4158
      %v4160 = vpop.f32.mrb[0].mxu0
      %4161 = vmatprep.mubr.f32.mxu0 %v872
      %4162 = vmatmul.mubr.f32.gmra.mrb[0].mxu0 %v871
      %v4163 = vpop.f32.mrb[0].mxu0
      %v4164 = vadd.f32 %v3499, %v4163
      %v4165 = vpop.f32.mrb[0].mxu0
      %4166 = vmatprep.mubr.f32.mxu0 %v880
      %4167 = vmatmul.mubr.f32.gmra.mrb[0].mxu0 %v879
      %v4168 = vpop.f32.mrb[0].mxu0
      %v4169 = vadd.f32 %v3504, %v4168
      %v4170 = vpop.f32.mrb[0].mxu0
      %4171 = vmatprep.mubr.f32.mxu0 %v888
      %4172 = vmatmul.mubr.f32.gmra.mrb[0].mxu0 %v887
      %v4173 = vpop.f32.mrb[0].mxu0
      %v4174 = vadd.f32 %v3509, %v4173
      %v4175 = vpop.f32.mrb[0].mxu0
      %4176 = vmatprep.mubr.f32.mxu0 %v896
      %4177 = vmatmul.mubr.f32.gmra.mrb[0].mxu0 %v895
      %v4178 = vpop.f32.mrb[0].mxu0
      %v4179 = vadd.f32 %v3514, %v4178
      %v4180 = vpop.f32.mrb[0].mxu0
      %4181 = vmatprep.mubr.f32.mxu0 %v904
      %4182 = vmatmul.mubr.f32.gmra.mrb[0].mxu0 %v903
      %v4183 = vpop.f32.mrb[0].mxu0
      %v4184 = vadd.f32 %v3519, %v4183
      %v4185 = vpop.f32.mrb[0].mxu0
      %4186 = vmatprep.mubr.f32.mxu0 %v912
      %4187 = vmatmul.mubr.f32.gmra.mrb[0].mxu0 %v911
      %v4188 = vpop.f32.mrb[0].mxu0
      %v4189 = vadd.f32 %v3524, %v4188
      %v4190 = vpop.f32.mrb[0].mxu0
      %4191 = vmatprep.mubr.f32.mxu0 %v920
      %4192 = vmatmul.mubr.f32.gmra.mrb[0].mxu0 %v919
      %v4193 = vpop.f32.mrb[0].mxu0
      %v4194 = vadd.f32 %v3529, %v4193
      %v4195 = vpop.f32.mrb[0].mxu0
      %4196 = vmatprep.mubr.f32.mxu0 %v928
      %4197 = vmatmul.mubr.f32.gmra.mrb[0].mxu0 %v927
      %v4198 = vpop.f32.mrb[0].mxu0
      %v4199 = vadd.f32 %v3534, %v4198
      %v4200 = vpop.f32.mrb[0].mxu0
      %4201 = vmatprep.mubr.f32.mxu0 %v936
      %4202 = vmatmul.mubr.f32.gmra.mrb[0].mxu0 %v935
      %v4203 = vpop.f32.mrb[0].mxu0
      %v4204 = vadd.f32 %v3539, %v4203
      %v4205 = vpop.f32.mrb[0].mxu0
      %4206 = vmatprep.mubr.f32.mxu0 %v944
      %4207 = vmatmul.mubr.f32.gmra.mrb[0].mxu0 %v943
      %v4208 = vpop.f32.mrb[0].mxu0
      %v4209 = vadd.f32 %v3544, %v4208
      %v4210 = vpop.f32.mrb[0].mxu0
      %4211 = vmatprep.mubr.f32.mxu0 %v952
      %4212 = vmatmul.mubr.f32.gmra.mrb[0].mxu0 %v951
      %v4213 = vpop.f32.mrb[0].mxu0
      %v4214 = vadd.f32 %v3549, %v4213
      %v4215 = vpop.f32.mrb[0].mxu0
      %4216 = vmatprep.mubr.f32.mxu0 %v960
      %4217 = vmatmul.mubr.f32.gmra.mrb[0].mxu0 %v959
      %v4218 = vpop.f32.mrb[0].mxu0
      %v4219 = vadd.f32 %v3554, %v4218
      %v4220 = vpop.f32.mrb[0].mxu0
      %4221 = vmatprep.mubr.f32.mxu0 %v968
      %4222 = vmatmul.mubr.f32.gmra.mrb[0].mxu0 %v967
      %v4223 = vpop.f32.mrb[0].mxu0
      %v4224 = vadd.f32 %v3559, %v4223
      %v4225 = vpop.f32.mrb[0].mxu0
      %4226 = vmatprep.mubr.f32.mxu0 %v976
      %4227 = vmatmul.mubr.f32.gmra.mrb[0].mxu0 %v975
      %v4228 = vpop.f32.mrb[0].mxu0
      %v4229 = vadd.f32 %v3564, %v4228
      %v4230 = vpop.f32.mrb[0].mxu0
      %4231 = vmatprep.mubr.f32.mxu0 %v984
      %4232 = vmatmul.mubr.f32.gmra.mrb[0].mxu0 %v983
      %v4233 = vpop.f32.mrb[0].mxu0
      %v4234 = vadd.f32 %v3569, %v4233
      %v4235 = vpop.f32.mrb[0].mxu0
      %4236 = vmatprep.mubr.f32.mxu0 %v992
      %4237 = vmatmul.mubr.f32.gmra.mrb[0].mxu0 %v991
      %v4238 = vpop.f32.mrb[0].mxu0
      %v4239 = vadd.f32 %v3574, %v4238
      %v4240 = vpop.f32.mrb[0].mxu0
      %4241 = vmatprep.mubr.f32.mxu0 %v1000
      %4242 = vmatmul.mubr.f32.gmra.mrb[0].mxu0 %v999
      %v4243 = vpop.f32.mrb[0].mxu0
      %v4244 = vadd.f32 %v3579, %v4243
      %v4245 = vpop.f32.mrb[0].mxu0
      %4246 = vmatprep.mubr.f32.mxu0 %v1008
      %4247 = vmatmul.mubr.f32.gmra.mrb[0].mxu0 %v1007
      %v4248 = vpop.f32.mrb[0].mxu0
      %v4249 = vadd.f32 %v3584, %v4248
      %v4250 = vpop.f32.mrb[0].mxu0
      %4251 = vmatprep.mubr.f32.mxu0 %v1016
      %4252 = vmatmul.mubr.f32.gmra.mrb[0].mxu0 %v1015
      %v4253 = vpop.f32.mrb[0].mxu0
      %v4254 = vadd.f32 %v3589, %v4253
      %v4255 = vpop.f32.mrb[0].mxu0
      %4256 = vmatprep.mubr.f32.mxu0 %v1024
      %4257 = vmatmul.mubr.f32.gmra.mrb[0].mxu0 %v1023
      %v4258 = vpop.f32.mrb[0].mxu0
      %v4259 = vadd.f32 %v3594, %v4258
      %v4260 = vpop.f32.mrb[0].mxu0
      %4261 = vmatprep.mubr.f32.mxu0 %v1032
      %4262 = vmatmul.mubr.f32.gmra.mrb[0].mxu0 %v1031
      %v4263 = vpop.f32.mrb[0].mxu0
      %v4264 = vadd.f32 %v3599, %v4263
      %v4265 = vpop.f32.mrb[0].mxu0
      %4266 = vmatprep.mubr.f32.mxu0 %v1040
      %4267 = vmatmul.mubr.f32.gmra.mrb[0].mxu0 %v1039
      %v4268 = vpop.f32.mrb[0].mxu0
      %v4269 = vadd.f32 %v3604, %v4268
      %v4270 = vpop.f32.mrb[0].mxu0
      %4271 = vmatprep.mubr.f32.mxu0 %v1048
      %4272 = vmatmul.mubr.f32.gmra.mrb[0].mxu0 %v1047
      %v4273 = vpop.f32.mrb[0].mxu0
      %v4274 = vadd.f32 %v3609, %v4273
      %v4275 = vpop.f32.mrb[0].mxu0
      %4276 = vmatprep.mubr.f32.mxu0 %v1056
      %4277 = vmatmul.mubr.f32.gmra.mrb[0].mxu0 %v1055
      %v4278 = vpop.f32.mrb[0].mxu0
      %v4279 = vadd.f32 %v3614, %v4278
      %v4280 = vpop.f32.mrb[0].mxu0
      %4281 = vmatprep.mubr.f32.mxu0 %v1064
      %4282 = vmatmul.mubr.f32.gmra.mrb[0].mxu0 %v1063
      %v4283 = vpop.f32.mrb[0].mxu0
      %v4284 = vadd.f32 %v3619, %v4283
      %v4285 = vpop.f32.mrb[0].mxu0
      %4286 = vmatprep.mubr.f32.mxu0 %v1072
      %4287 = vmatmul.mubr.f32.gmra.mrb[0].mxu0 %v1071
      %v4288 = vpop.f32.mrb[0].mxu0
      %v4289 = vadd.f32 %v3624, %v4288
      %v4290 = vpop.f32.mrb[0].mxu0
      %4291 = vmatprep.mubr.f32.mxu0 %v1080
      %4292 = vmatmul.mubr.f32.gmra.mrb[0].mxu0 %v1079
      %v4293 = vpop.f32.mrb[0].mxu0
      %v4294 = vadd.f32 %v3629, %v4293
      %v4295 = vpop.f32.mrb[0].mxu0
      %4296 = vmatprep.mubr.f32.mxu0 %v1088
      %4297 = vmatmul.mubr.f32.gmra.mrb[0].mxu0 %v1087
      %v4298 = vpop.f32.mrb[0].mxu0
      %v4299 = vadd.f32 %v3634, %v4298
      %v4300 = vpop.f32.mrb[0].mxu0
      %4301 = vmatprep.mubr.f32.mxu0 %v1096
      %4302 = vmatmul.mubr.f32.gmra.mrb[0].mxu0 %v1095
      %v4303 = vpop.f32.mrb[0].mxu0
      %v4304 = vadd.f32 %v3639, %v4303
      %v4305 = vpop.f32.mrb[0].mxu0
      %4306 = vmatprep.mubr.f32.mxu0 %v1104
      %4307 = vmatmul.mubr.f32.gmra.mrb[0].mxu0 %v1103
      %v4308 = vpop.f32.mrb[0].mxu0
      %v4309 = vadd.f32 %v3644, %v4308
      %v4310 = vpop.f32.mrb[0].mxu0
      %4311 = vmatprep.mubr.f32.mxu0 %v1112
      %4312 = vmatmul.mubr.f32.gmra.mrb[0].mxu0 %v1111
      %v4313 = vpop.f32.mrb[0].mxu0
      %v4314 = vadd.f32 %v3649, %v4313
      %v4315 = vpop.f32.mrb[0].mxu0
      %4316 = vmatprep.mubr.f32.mxu0 %v1120
      %4317 = vmatmul.mubr.f32.gmra.mrb[0].mxu0 %v1119
      %v4318 = vpop.f32.mrb[0].mxu0
      %v4319 = vadd.f32 %v3654, %v4318
      %v4320 = vpop.f32.mrb[0].mxu0
      %4321 = vmatprep.mubr.f32.mxu0 %v1128
      %4322 = vmatmul.mubr.f32.gmra.mrb[0].mxu0 %v1127
      %v4323 = vpop.f32.mrb[0].mxu0
      %v4324 = vadd.f32 %v3659, %v4323
      %v4325 = vpop.f32.mrb[0].mxu0
      %4326 = vdwg.mxu0
      %4327 = vmatprep.subr.mxu0 0.0
      %4328 = vmatpush1.msra.mxu0 %v1227
      %4329 = vmatprep.subr.mxu0 0.0
      %4330 = vmatpush1.msra.mxu0 %v1228
      %4331 = vmatprep.subr.mxu0 0.0
      %4332 = vmatpush1.msra.mxu0 %v1229
      %4333 = vmatprep.subr.mxu0 0.0
      %4334 = vmatpush1.msra.mxu0 %v1230
      %4335 = vmatprep.subr.mxu0 0.0
      %4336 = vmatpush1.msra.mxu0 %v1231
      %4337 = vmatprep.subr.mxu0 0.0
      %4338 = vmatpush1.msra.mxu0 %v1232
      %4339 = vmatprep.subr.mxu0 0.0
      %4340 = vmatpush1.msra.mxu0 %v1233
      %4341 = vmatprep.subr.mxu0 0.0
      %4342 = vmatpush1.msra.mxu0 %v1234
      %4343 = vmatprep.subr.mxu0 0.0
      %4344 = vmatpush1.msra.mxu0 %v1235
      %4345 = vmatprep.subr.mxu0 0.0
      %4346 = vmatpush1.msra.mxu0 %v1236
      %4347 = vmatprep.subr.mxu0 0.0
      %4348 = vmatpush1.msra.mxu0 %v1237
      %4349 = vmatprep.subr.mxu0 0.0
      %4350 = vmatpush1.msra.mxu0 %v1238
      %4351 = vmatprep.subr.mxu0 0.0
      %4352 = vmatpush1.msra.mxu0 %v1239
      %4353 = vmatprep.subr.mxu0 0.0
      %4354 = vmatpush1.msra.mxu0 %v1240
      %4355 = vmatprep.subr.mxu0 0.0
      %4356 = vmatpush1.msra.mxu0 %v1241
      %4357 = vmatprep.subr.mxu0 0.0
      %4358 = vmatpush1.msra.mxu0 %v1242
      %4359 = vmatprep.subr.mxu0 0.0
      %4360 = vmatpush1.msra.mxu0 %v1243
      %4361 = vmatprep.subr.mxu0 0.0
      %4362 = vmatpush1.msra.mxu0 %v1244
      %4363 = vmatprep.subr.mxu0 0.0
      %4364 = vmatpush1.msra.mxu0 %v1245
      %4365 = vmatprep.subr.mxu0 0.0
      %4366 = vmatpush1.msra.mxu0 %v1246
      %4367 = vmatprep.subr.mxu0 0.0
      %4368 = vmatpush1.msra.mxu0 %v1247
      %4369 = vmatprep.subr.mxu0 0.0
      %4370 = vmatpush1.msra.mxu0 %v1248
      %4371 = vmatprep.subr.mxu0 0.0
      %4372 = vmatpush1.msra.mxu0 %v1249
      %4373 = vmatprep.subr.mxu0 0.0
      %4374 = vmatpush1.msra.mxu0 %v1250
      %4375 = vmatprep.subr.mxu0 0.0
      %4376 = vmatpush1.msra.mxu0 0.0
      %4377 = vmatprep.subr.mxu0 0.0
      %4378 = vmatpush1.msra.mxu0 0.0
      %4379 = vmatprep.subr.mxu0 0.0
      %4380 = vmatpush1.msra.mxu0 0.0
      %4381 = vmatprep.subr.mxu0 0.0
      %4382 = vmatpush1.msra.mxu0 0.0
      %4383 = vmatprep.subr.mxu0 0.0
      %4384 = vmatpush1.msra.mxu0 0.0
      %4385 = vmatprep.subr.mxu0 0.0
      %4386 = vmatpush1.msra.mxu0 0.0
      %4387 = vmatprep.subr.mxu0 0.0
      %4388 = vmatpush1.msra.mxu0 0.0
      %4389 = vmatprep.subr.mxu0 0.0
      %4390 = vmatpush1.msra.mxu0 0.0
      %4391 = vmatprep.mubr.f32.mxu0 %v1973
      %4392 = vmatmul.mubr.f32.gmra.mrb[0].mxu0 %v177
      %v4393 = vpop.f32.mrb[0].mxu0
      %v4394 = vadd.f32 %v3729, %v4393
      %v4395 = vpop.f32.mrb[0].mxu0
      %4396 = vmatprep.mubr.f32.mxu0 %v1976
      %4397 = vmatmul.mubr.f32.gmra.mrb[0].mxu0 %v185
      %v4398 = vpop.f32.mrb[0].mxu0
      %v4399 = vadd.f32 %v3734, %v4398
      %v4400 = vpop.f32.mrb[0].mxu0
      %4401 = vmatprep.mubr.f32.mxu0 %v1979
      %4402 = vmatmul.mubr.f32.gmra.mrb[0].mxu0 %v193
      %v4403 = vpop.f32.mrb[0].mxu0
      %v4404 = vadd.f32 %v3739, %v4403
      %v4405 = vpop.f32.mrb[0].mxu0
      %4406 = vmatprep.mubr.f32.mxu0 %v1982
      %4407 = vmatmul.mubr.f32.gmra.mrb[0].mxu0 %v201
      %v4408 = vpop.f32.mrb[0].mxu0
      %v4409 = vadd.f32 %v3744, %v4408
      %v4410 = vpop.f32.mrb[0].mxu0
      %4411 = vmatprep.mubr.f32.mxu0 %v1985
      %4412 = vmatmul.mubr.f32.gmra.mrb[0].mxu0 %v209
      %v4413 = vpop.f32.mrb[0].mxu0
      %v4414 = vadd.f32 %v3749, %v4413
      %v4415 = vpop.f32.mrb[0].mxu0
      %4416 = vmatprep.mubr.f32.mxu0 %v1988
      %4417 = vmatmul.mubr.f32.gmra.mrb[0].mxu0 %v217
      %v4418 = vpop.f32.mrb[0].mxu0
      %v4419 = vadd.f32 %v3754, %v4418
      %v4420 = vpop.f32.mrb[0].mxu0
      %4421 = vmatprep.mubr.f32.mxu0 %v1991
      %4422 = vmatmul.mubr.f32.gmra.mrb[0].mxu0 %v225
      %v4423 = vpop.f32.mrb[0].mxu0
      %v4424 = vadd.f32 %v3759, %v4423
      %v4425 = vpop.f32.mrb[0].mxu0
      %4426 = vmatprep.mubr.f32.mxu0 %v1994
      %4427 = vmatmul.mubr.f32.gmra.mrb[0].mxu0 %v233
      %v4428 = vpop.f32.mrb[0].mxu0
      %v4429 = vadd.f32 %v3764, %v4428
      %v4430 = vpop.f32.mrb[0].mxu0
      %4431 = vmatprep.mubr.f32.mxu0 %v1997
      %4432 = vmatmul.mubr.f32.gmra.mrb[0].mxu0 %v241
      %v4433 = vpop.f32.mrb[0].mxu0
      %v4434 = vadd.f32 %v3769, %v4433
      %v4435 = vpop.f32.mrb[0].mxu0
      %4436 = vmatprep.mubr.f32.mxu0 %v2000
      %4437 = vmatmul.mubr.f32.gmra.mrb[0].mxu0 %v249
      %v4438 = vpop.f32.mrb[0].mxu0
      %v4439 = vadd.f32 %v3774, %v4438
      %v4440 = vpop.f32.mrb[0].mxu0
      %4441 = vmatprep.mubr.f32.mxu0 %v2003
      %4442 = vmatmul.mubr.f32.gmra.mrb[0].mxu0 %v257
      %v4443 = vpop.f32.mrb[0].mxu0
      %v4444 = vadd.f32 %v3779, %v4443
      %v4445 = vpop.f32.mrb[0].mxu0
      %4446 = vmatprep.mubr.f32.mxu0 %v2006
      %4447 = vmatmul.mubr.f32.gmra.mrb[0].mxu0 %v265
      %v4448 = vpop.f32.mrb[0].mxu0
      %v4449 = vadd.f32 %v3784, %v4448
      %v4450 = vpop.f32.mrb[0].mxu0
      %4451 = vmatprep.mubr.f32.mxu0 %v2009
      %4452 = vmatmul.mubr.f32.gmra.mrb[0].mxu0 %v273
      %v4453 = vpop.f32.mrb[0].mxu0
      %v4454 = vadd.f32 %v3789, %v4453
      %v4455 = vpop.f32.mrb[0].mxu0
      %4456 = vmatprep.mubr.f32.mxu0 %v2012
      %4457 = vmatmul.mubr.f32.gmra.mrb[0].mxu0 %v281
      %v4458 = vpop.f32.mrb[0].mxu0
      %v4459 = vadd.f32 %v3794, %v4458
      %v4460 = vpop.f32.mrb[0].mxu0
      %4461 = vmatprep.mubr.f32.mxu0 %v2015
      %4462 = vmatmul.mubr.f32.gmra.mrb[0].mxu0 %v289
      %v4463 = vpop.f32.mrb[0].mxu0
      %v4464 = vadd.f32 %v3799, %v4463
      %v4465 = vpop.f32.mrb[0].mxu0
      %4466 = vmatprep.mubr.f32.mxu0 %v2018
      %4467 = vmatmul.mubr.f32.gmra.mrb[0].mxu0 %v297
      %v4468 = vpop.f32.mrb[0].mxu0
      %v4469 = vadd.f32 %v3804, %v4468
      %v4470 = vpop.f32.mrb[0].mxu0
      %4471 = vmatprep.mubr.f32.mxu0 %v2021
      %4472 = vmatmul.mubr.f32.gmra.mrb[0].mxu0 %v305
      %v4473 = vpop.f32.mrb[0].mxu0
      %v4474 = vadd.f32 %v3809, %v4473
      %v4475 = vpop.f32.mrb[0].mxu0
      %4476 = vmatprep.mubr.f32.mxu0 %v2024
      %4477 = vmatmul.mubr.f32.gmra.mrb[0].mxu0 %v313
      %v4478 = vpop.f32.mrb[0].mxu0
      %v4479 = vadd.f32 %v3814, %v4478
      %v4480 = vpop.f32.mrb[0].mxu0
      %4481 = vmatprep.mubr.f32.mxu0 %v2027
      %4482 = vmatmul.mubr.f32.gmra.mrb[0].mxu0 %v321
      %v4483 = vpop.f32.mrb[0].mxu0
      %v4484 = vadd.f32 %v3819, %v4483
      %v4485 = vpop.f32.mrb[0].mxu0
      %4486 = vmatprep.mubr.f32.mxu0 %v2030
      %4487 = vmatmul.mubr.f32.gmra.mrb[0].mxu0 %v329
      %v4488 = vpop.f32.mrb[0].mxu0
      %v4489 = vadd.f32 %v3824, %v4488
      %v4490 = vpop.f32.mrb[0].mxu0
      %4491 = vmatprep.mubr.f32.mxu0 %v2033
      %4492 = vmatmul.mubr.f32.gmra.mrb[0].mxu0 %v337
      %v4493 = vpop.f32.mrb[0].mxu0
      %v4494 = vadd.f32 %v3829, %v4493
      %v4495 = vpop.f32.mrb[0].mxu0
      %4496 = vmatprep.mubr.f32.mxu0 %v2036
      %4497 = vmatmul.mubr.f32.gmra.mrb[0].mxu0 %v345
      %v4498 = vpop.f32.mrb[0].mxu0
      %v4499 = vadd.f32 %v3834, %v4498
      %v4500 = vpop.f32.mrb[0].mxu0
      %4501 = vmatprep.mubr.f32.mxu0 %v2039
      %4502 = vmatmul.mubr.f32.gmra.mrb[0].mxu0 %v353
      %v4503 = vpop.f32.mrb[0].mxu0
      %v4504 = vadd.f32 %v3839, %v4503
      %v4505 = vpop.f32.mrb[0].mxu0
      %4506 = vmatprep.mubr.f32.mxu0 %v2042
      %4507 = vmatmul.mubr.f32.gmra.mrb[0].mxu0 %v361
      %v4508 = vpop.f32.mrb[0].mxu0
      %v4509 = vadd.f32 %v3844, %v4508
      %v4510 = vpop.f32.mrb[0].mxu0
      %4511 = vmatprep.mubr.f32.mxu0 %v2045
      %4512 = vmatmul.mubr.f32.gmra.mrb[0].mxu0 %v369
      %v4513 = vpop.f32.mrb[0].mxu0
      %v4514 = vadd.f32 %v3849, %v4513
      %v4515 = vpop.f32.mrb[0].mxu0
      %4516 = vmatprep.mubr.f32.mxu0 %v2048
      %4517 = vmatmul.mubr.f32.gmra.mrb[0].mxu0 %v377
      %v4518 = vpop.f32.mrb[0].mxu0
      %v4519 = vadd.f32 %v3854, %v4518
      %v4520 = vpop.f32.mrb[0].mxu0
      %4521 = vmatprep.mubr.f32.mxu0 %v2051
      %4522 = vmatmul.mubr.f32.gmra.mrb[0].mxu0 %v385
      %v4523 = vpop.f32.mrb[0].mxu0
      %v4524 = vadd.f32 %v3859, %v4523
      %v4525 = vpop.f32.mrb[0].mxu0
      %4526 = vmatprep.mubr.f32.mxu0 %v2054
      %4527 = vmatmul.mubr.f32.gmra.mrb[0].mxu0 %v393
      %v4528 = vpop.f32.mrb[0].mxu0
      %v4529 = vadd.f32 %v3864, %v4528
      %v4530 = vpop.f32.mrb[0].mxu0
      %4531 = vmatprep.mubr.f32.mxu0 %v2057
      %4532 = vmatmul.mubr.f32.gmra.mrb[0].mxu0 %v401
      %v4533 = vpop.f32.mrb[0].mxu0
      %v4534 = vadd.f32 %v3869, %v4533
      %v4535 = vpop.f32.mrb[0].mxu0
      %4536 = vmatprep.mubr.f32.mxu0 %v2060
      %4537 = vmatmul.mubr.f32.gmra.mrb[0].mxu0 %v409
      %v4538 = vpop.f32.mrb[0].mxu0
      %v4539 = vadd.f32 %v3874, %v4538
      %v4540 = vpop.f32.mrb[0].mxu0
      %4541 = vmatprep.mubr.f32.mxu0 %v2063
      %4542 = vmatmul.mubr.f32.gmra.mrb[0].mxu0 %v417
      %v4543 = vpop.f32.mrb[0].mxu0
      %v4544 = vadd.f32 %v3879, %v4543
      %v4545 = vpop.f32.mrb[0].mxu0
      %4546 = vmatprep.mubr.f32.mxu0 %v2066
      %4547 = vmatmul.mubr.f32.gmra.mrb[0].mxu0 %v425
      %v4548 = vpop.f32.mrb[0].mxu0
      %v4549 = vadd.f32 %v3884, %v4548
      %v4550 = vpop.f32.mrb[0].mxu0
      %4551 = vmatprep.mubr.f32.mxu0 %v2069
      %4552 = vmatmul.mubr.f32.gmra.mrb[0].mxu0 %v433
      %v4553 = vpop.f32.mrb[0].mxu0
      %v4554 = vadd.f32 %v3889, %v4553
      %v4555 = vpop.f32.mrb[0].mxu0
      %4556 = vmatprep.mubr.f32.mxu0 %v2072
      %4557 = vmatmul.mubr.f32.gmra.mrb[0].mxu0 %v441
      %v4558 = vpop.f32.mrb[0].mxu0
      %v4559 = vadd.f32 %v3894, %v4558
      %v4560 = vpop.f32.mrb[0].mxu0
      %4561 = vmatprep.mubr.f32.mxu0 %v2075
      %4562 = vmatmul.mubr.f32.gmra.mrb[0].mxu0 %v449
      %v4563 = vpop.f32.mrb[0].mxu0
      %v4564 = vadd.f32 %v3899, %v4563
      %v4565 = vpop.f32.mrb[0].mxu0
      %4566 = vmatprep.mubr.f32.mxu0 %v2078
      %4567 = vmatmul.mubr.f32.gmra.mrb[0].mxu0 %v457
      %v4568 = vpop.f32.mrb[0].mxu0
      %v4569 = vadd.f32 %v3904, %v4568
      %v4570 = vpop.f32.mrb[0].mxu0
      %4571 = vmatprep.mubr.f32.mxu0 %v2081
      %4572 = vmatmul.mubr.f32.gmra.mrb[0].mxu0 %v465
      %v4573 = vpop.f32.mrb[0].mxu0
      %v4574 = vadd.f32 %v3909, %v4573
      %v4575 = vpop.f32.mrb[0].mxu0
      %4576 = vmatprep.mubr.f32.mxu0 %v2084
      %4577 = vmatmul.mubr.f32.gmra.mrb[0].mxu0 %v473
      %v4578 = vpop.f32.mrb[0].mxu0
      %v4579 = vadd.f32 %v3914, %v4578
      %v4580 = vpop.f32.mrb[0].mxu0
      %4581 = vmatprep.mubr.f32.mxu0 %v2087
      %4582 = vmatmul.mubr.f32.gmra.mrb[0].mxu0 %v481
      %v4583 = vpop.f32.mrb[0].mxu0
      %v4584 = vadd.f32 %v3919, %v4583
      %v4585 = vpop.f32.mrb[0].mxu0
      %4586 = vmatprep.mubr.f32.mxu0 %v2090
      %4587 = vmatmul.mubr.f32.gmra.mrb[0].mxu0 %v489
      %v4588 = vpop.f32.mrb[0].mxu0
      %v4589 = vadd.f32 %v3924, %v4588
      %v4590 = vpop.f32.mrb[0].mxu0
      %4591 = vmatprep.mubr.f32.mxu0 %v2093
      %4592 = vmatmul.mubr.f32.gmra.mrb[0].mxu0 %v497
      %v4593 = vpop.f32.mrb[0].mxu0
      %v4594 = vadd.f32 %v3929, %v4593
      %v4595 = vpop.f32.mrb[0].mxu0
      %4596 = vmatprep.mubr.f32.mxu0 %v2096
      %4597 = vmatmul.mubr.f32.gmra.mrb[0].mxu0 %v505
      %v4598 = vpop.f32.mrb[0].mxu0
      %v4599 = vadd.f32 %v3934, %v4598
      %v4600 = vpop.f32.mrb[0].mxu0
      %4601 = vmatprep.mubr.f32.mxu0 %v2099
      %4602 = vmatmul.mubr.f32.gmra.mrb[0].mxu0 %v513
      %v4603 = vpop.f32.mrb[0].mxu0
      %v4604 = vadd.f32 %v3939, %v4603
      %v4605 = vpop.f32.mrb[0].mxu0
      %4606 = vmatprep.mubr.f32.mxu0 %v2102
      %4607 = vmatmul.mubr.f32.gmra.mrb[0].mxu0 %v521
      %v4608 = vpop.f32.mrb[0].mxu0
      %v4609 = vadd.f32 %v3944, %v4608
      %v4610 = vpop.f32.mrb[0].mxu0
      %4611 = vmatprep.mubr.f32.mxu0 %v2105
      %4612 = vmatmul.mubr.f32.gmra.mrb[0].mxu0 %v529
      %v4613 = vpop.f32.mrb[0].mxu0
      %v4614 = vadd.f32 %v3949, %v4613
      %v4615 = vpop.f32.mrb[0].mxu0
      %4616 = vmatprep.mubr.f32.mxu0 %v2108
      %4617 = vmatmul.mubr.f32.gmra.mrb[0].mxu0 %v537
      %v4618 = vpop.f32.mrb[0].mxu0
      %v4619 = vadd.f32 %v3954, %v4618
      %v4620 = vpop.f32.mrb[0].mxu0
      %4621 = vmatprep.mubr.f32.mxu0 %v2111
      %4622 = vmatmul.mubr.f32.gmra.mrb[0].mxu0 %v545
      %v4623 = vpop.f32.mrb[0].mxu0
      %v4624 = vadd.f32 %v3959, %v4623
      %v4625 = vpop.f32.mrb[0].mxu0
      %4626 = vmatprep.mubr.f32.mxu0 %v2114
      %4627 = vmatmul.mubr.f32.gmra.mrb[0].mxu0 %v553
      %v4628 = vpop.f32.mrb[0].mxu0
      %v4629 = vadd.f32 %v3964, %v4628
      %v4630 = vpop.f32.mrb[0].mxu0
      %4631 = vmatprep.mubr.f32.mxu0 %v2117
      %4632 = vmatmul.mubr.f32.gmra.mrb[0].mxu0 %v561
      %v4633 = vpop.f32.mrb[0].mxu0
      %v4634 = vadd.f32 %v3969, %v4633
      %v4635 = vpop.f32.mrb[0].mxu0
      %4636 = vmatprep.mubr.f32.mxu0 %v2120
      %4637 = vmatmul.mubr.f32.gmra.mrb[0].mxu0 %v569
      %v4638 = vpop.f32.mrb[0].mxu0
      %v4639 = vadd.f32 %v3974, %v4638
      %v4640 = vpop.f32.mrb[0].mxu0
      %4641 = vmatprep.mubr.f32.mxu0 %v2123
      %4642 = vmatmul.mubr.f32.gmra.mrb[0].mxu0 %v577
      %v4643 = vpop.f32.mrb[0].mxu0
      %v4644 = vadd.f32 %v3979, %v4643
      %v4645 = vpop.f32.mrb[0].mxu0
      %4646 = vmatprep.mubr.f32.mxu0 %v2126
      %4647 = vmatmul.mubr.f32.gmra.mrb[0].mxu0 %v585
      %v4648 = vpop.f32.mrb[0].mxu0
      %v4649 = vadd.f32 %v3984, %v4648
      %v4650 = vpop.f32.mrb[0].mxu0
      %4651 = vmatprep.mubr.f32.mxu0 %v2129
      %4652 = vmatmul.mubr.f32.gmra.mrb[0].mxu0 %v593
      %v4653 = vpop.f32.mrb[0].mxu0
      %v4654 = vadd.f32 %v3989, %v4653
      %v4655 = vpop.f32.mrb[0].mxu0
      %4656 = vmatprep.mubr.f32.mxu0 %v2132
      %4657 = vmatmul.mubr.f32.gmra.mrb[0].mxu0 %v601
      %v4658 = vpop.f32.mrb[0].mxu0
      %v4659 = vadd.f32 %v3994, %v4658
      %v4660 = vpop.f32.mrb[0].mxu0
      %4661 = vmatprep.mubr.f32.mxu0 %v2135
      %4662 = vmatmul.mubr.f32.gmra.mrb[0].mxu0 %v609
      %v4663 = vpop.f32.mrb[0].mxu0
      %v4664 = vadd.f32 %v3999, %v4663
      %v4665 = vpop.f32.mrb[0].mxu0
      %4666 = vmatprep.mubr.f32.mxu0 %v2138
      %4667 = vmatmul.mubr.f32.gmra.mrb[0].mxu0 %v617
      %v4668 = vpop.f32.mrb[0].mxu0
      %v4669 = vadd.f32 %v4004, %v4668
      %v4670 = vpop.f32.mrb[0].mxu0
      %4671 = vmatprep.mubr.f32.mxu0 %v2141
      %4672 = vmatmul.mubr.f32.gmra.mrb[0].mxu0 %v625
      %v4673 = vpop.f32.mrb[0].mxu0
      %v4674 = vadd.f32 %v4009, %v4673
      %v4675 = vpop.f32.mrb[0].mxu0
      %4676 = vmatprep.mubr.f32.mxu0 %v2144
      %4677 = vmatmul.mubr.f32.gmra.mrb[0].mxu0 %v633
      %v4678 = vpop.f32.mrb[0].mxu0
      %v4679 = vadd.f32 %v4014, %v4678
      %v4680 = vpop.f32.mrb[0].mxu0
      %4681 = vmatprep.mubr.f32.mxu0 %v2147
      %4682 = vmatmul.mubr.f32.gmra.mrb[0].mxu0 %v641
      %v4683 = vpop.f32.mrb[0].mxu0
      %v4684 = vadd.f32 %v4019, %v4683
      %v4685 = vpop.f32.mrb[0].mxu0
      %4686 = vmatprep.mubr.f32.mxu0 %v2150
      %4687 = vmatmul.mubr.f32.gmra.mrb[0].mxu0 %v649
      %v4688 = vpop.f32.mrb[0].mxu0
      %v4689 = vadd.f32 %v4024, %v4688
      %v4690 = vpop.f32.mrb[0].mxu0
      %4691 = vmatprep.mubr.f32.mxu0 %v2153
      %4692 = vmatmul.mubr.f32.gmra.mrb[0].mxu0 %v657
      %v4693 = vpop.f32.mrb[0].mxu0
      %v4694 = vadd.f32 %v4029, %v4693
      %v4695 = vpop.f32.mrb[0].mxu0
      %4696 = vmatprep.mubr.f32.mxu0 %v2156
      %4697 = vmatmul.mubr.f32.gmra.mrb[0].mxu0 %v665
      %v4698 = vpop.f32.mrb[0].mxu0
      %v4699 = vadd.f32 %v4034, %v4698
      %v4700 = vpop.f32.mrb[0].mxu0
      %4701 = vmatprep.mubr.f32.mxu0 %v2159
      %4702 = vmatmul.mubr.f32.gmra.mrb[0].mxu0 %v673
      %v4703 = vpop.f32.mrb[0].mxu0
      %v4704 = vadd.f32 %v4039, %v4703
      %v4705 = vpop.f32.mrb[0].mxu0
      %4706 = vmatprep.mubr.f32.mxu0 %v2162
      %4707 = vmatmul.mubr.f32.gmra.mrb[0].mxu0 %v681
      %v4708 = vpop.f32.mrb[0].mxu0
      %v4709 = vadd.f32 %v4044, %v4708
      %v4710 = vpop.f32.mrb[0].mxu0
      %4711 = vmatprep.mubr.f32.mxu0 %v2165
      %4712 = vmatmul.mubr.f32.gmra.mrb[0].mxu0 %v689
      %v4713 = vpop.f32.mrb[0].mxu0
      %v4714 = vadd.f32 %v4049, %v4713
      %v4715 = vpop.f32.mrb[0].mxu0
      %4716 = vmatprep.mubr.f32.mxu0 %v2168
      %4717 = vmatmul.mubr.f32.gmra.mrb[0].mxu0 %v697
      %v4718 = vpop.f32.mrb[0].mxu0
      %v4719 = vadd.f32 %v4054, %v4718
      %v4720 = vpop.f32.mrb[0].mxu0
      %4721 = vmatprep.mubr.f32.mxu0 %v2171
      %4722 = vmatmul.mubr.f32.gmra.mrb[0].mxu0 %v705
      %v4723 = vpop.f32.mrb[0].mxu0
      %v4724 = vadd.f32 %v4059, %v4723
      %v4725 = vpop.f32.mrb[0].mxu0
      %4726 = vmatprep.mubr.f32.mxu0 %v2174
      %4727 = vmatmul.mubr.f32.gmra.mrb[0].mxu0 %v713
      %v4728 = vpop.f32.mrb[0].mxu0
      %v4729 = vadd.f32 %v4064, %v4728
      %v4730 = vpop.f32.mrb[0].mxu0
      %4731 = vmatprep.mubr.f32.mxu0 %v2177
      %4732 = vmatmul.mubr.f32.gmra.mrb[0].mxu0 %v721
      %v4733 = vpop.f32.mrb[0].mxu0
      %v4734 = vadd.f32 %v4069, %v4733
      %v4735 = vpop.f32.mrb[0].mxu0
      %4736 = vmatprep.mubr.f32.mxu0 %v2180
      %4737 = vmatmul.mubr.f32.gmra.mrb[0].mxu0 %v729
      %v4738 = vpop.f32.mrb[0].mxu0
      %v4739 = vadd.f32 %v4074, %v4738
      %v4740 = vpop.f32.mrb[0].mxu0
      %4741 = vmatprep.mubr.f32.mxu0 %v2183
      %4742 = vmatmul.mubr.f32.gmra.mrb[0].mxu0 %v737
      %v4743 = vpop.f32.mrb[0].mxu0
      %v4744 = vadd.f32 %v4079, %v4743
      %v4745 = vpop.f32.mrb[0].mxu0
      %4746 = vmatprep.mubr.f32.mxu0 %v2186
      %4747 = vmatmul.mubr.f32.gmra.mrb[0].mxu0 %v745
      %v4748 = vpop.f32.mrb[0].mxu0
      %v4749 = vadd.f32 %v4084, %v4748
      %v4750 = vpop.f32.mrb[0].mxu0
      %4751 = vmatprep.mubr.f32.mxu0 %v2189
      %4752 = vmatmul.mubr.f32.gmra.mrb[0].mxu0 %v753
      %v4753 = vpop.f32.mrb[0].mxu0
      %v4754 = vadd.f32 %v4089, %v4753
      %v4755 = vpop.f32.mrb[0].mxu0
      %4756 = vmatprep.mubr.f32.mxu0 %v2192
      %4757 = vmatmul.mubr.f32.gmra.mrb[0].mxu0 %v761
      %v4758 = vpop.f32.mrb[0].mxu0
      %v4759 = vadd.f32 %v4094, %v4758
      %v4760 = vpop.f32.mrb[0].mxu0
      %4761 = vmatprep.mubr.f32.mxu0 %v2195
      %4762 = vmatmul.mubr.f32.gmra.mrb[0].mxu0 %v769
      %v4763 = vpop.f32.mrb[0].mxu0
      %v4764 = vadd.f32 %v4099, %v4763
      %v4765 = vpop.f32.mrb[0].mxu0
      %4766 = vmatprep.mubr.f32.mxu0 %v2198
      %4767 = vmatmul.mubr.f32.gmra.mrb[0].mxu0 %v777
      %v4768 = vpop.f32.mrb[0].mxu0
      %v4769 = vadd.f32 %v4104, %v4768
      %v4770 = vpop.f32.mrb[0].mxu0
      %4771 = vmatprep.mubr.f32.mxu0 %v2201
      %4772 = vmatmul.mubr.f32.gmra.mrb[0].mxu0 %v785
      %v4773 = vpop.f32.mrb[0].mxu0
      %v4774 = vadd.f32 %v4109, %v4773
      %v4775 = vpop.f32.mrb[0].mxu0
      %4776 = vmatprep.mubr.f32.mxu0 %v2204
      %4777 = vmatmul.mubr.f32.gmra.mrb[0].mxu0 %v793
      %v4778 = vpop.f32.mrb[0].mxu0
      %v4779 = vadd.f32 %v4114, %v4778
      %v4780 = vpop.f32.mrb[0].mxu0
      %4781 = vmatprep.mubr.f32.mxu0 %v2207
      %4782 = vmatmul.mubr.f32.gmra.mrb[0].mxu0 %v801
      %v4783 = vpop.f32.mrb[0].mxu0
      %v4784 = vadd.f32 %v4119, %v4783
      %v4785 = vpop.f32.mrb[0].mxu0
      %4786 = vmatprep.mubr.f32.mxu0 %v2210
      %4787 = vmatmul.mubr.f32.gmra.mrb[0].mxu0 %v809
      %v4788 = vpop.f32.mrb[0].mxu0
      %v4789 = vadd.f32 %v4124, %v4788
      %v4790 = vpop.f32.mrb[0].mxu0
      %4791 = vmatprep.mubr.f32.mxu0 %v2213
      %4792 = vmatmul.mubr.f32.gmra.mrb[0].mxu0 %v817
      %v4793 = vpop.f32.mrb[0].mxu0
      %v4794 = vadd.f32 %v4129, %v4793
      %v4795 = vpop.f32.mrb[0].mxu0
      %4796 = vmatprep.mubr.f32.mxu0 %v2216
      %4797 = vmatmul.mubr.f32.gmra.mrb[0].mxu0 %v825
      %v4798 = vpop.f32.mrb[0].mxu0
      %v4799 = vadd.f32 %v4134, %v4798
      %v4800 = vpop.f32.mrb[0].mxu0
      %4801 = vmatprep.mubr.f32.mxu0 %v2219
      %4802 = vmatmul.mubr.f32.gmra.mrb[0].mxu0 %v833
      %v4803 = vpop.f32.mrb[0].mxu0
      %v4804 = vadd.f32 %v4139, %v4803
      %v4805 = vpop.f32.mrb[0].mxu0
      %4806 = vmatprep.mubr.f32.mxu0 %v2222
      %4807 = vmatmul.mubr.f32.gmra.mrb[0].mxu0 %v841
      %v4808 = vpop.f32.mrb[0].mxu0
      %v4809 = vadd.f32 %v4144, %v4808
      %v4810 = vpop.f32.mrb[0].mxu0
      %4811 = vmatprep.mubr.f32.mxu0 %v2225
      %4812 = vmatmul.mubr.f32.gmra.mrb[0].mxu0 %v849
      %v4813 = vpop.f32.mrb[0].mxu0
      %v4814 = vadd.f32 %v4149, %v4813
      %v4815 = vpop.f32.mrb[0].mxu0
      %4816 = vmatprep.mubr.f32.mxu0 %v2228
      %4817 = vmatmul.mubr.f32.gmra.mrb[0].mxu0 %v857
      %v4818 = vpop.f32.mrb[0].mxu0
      %v4819 = vadd.f32 %v4154, %v4818
      %v4820 = vpop.f32.mrb[0].mxu0
      %4821 = vmatprep.mubr.f32.mxu0 %v2231
      %4822 = vmatmul.mubr.f32.gmra.mrb[0].mxu0 %v865
      %v4823 = vpop.f32.mrb[0].mxu0
      %v4824 = vadd.f32 %v4159, %v4823
      %v4825 = vpop.f32.mrb[0].mxu0
      %4826 = vmatprep.mubr.f32.mxu0 %v2234
      %4827 = vmatmul.mubr.f32.gmra.mrb[0].mxu0 %v873
      %v4828 = vpop.f32.mrb[0].mxu0
      %v4829 = vadd.f32 %v4164, %v4828
      %v4830 = vpop.f32.mrb[0].mxu0
      %4831 = vmatprep.mubr.f32.mxu0 %v2237
      %4832 = vmatmul.mubr.f32.gmra.mrb[0].mxu0 %v881
      %v4833 = vpop.f32.mrb[0].mxu0
      %v4834 = vadd.f32 %v4169, %v4833
      %v4835 = vpop.f32.mrb[0].mxu0
      %4836 = vmatprep.mubr.f32.mxu0 %v2240
      %4837 = vmatmul.mubr.f32.gmra.mrb[0].mxu0 %v889
      %v4838 = vpop.f32.mrb[0].mxu0
      %v4839 = vadd.f32 %v4174, %v4838
      %v4840 = vpop.f32.mrb[0].mxu0
      %4841 = vmatprep.mubr.f32.mxu0 %v2243
      %4842 = vmatmul.mubr.f32.gmra.mrb[0].mxu0 %v897
      %v4843 = vpop.f32.mrb[0].mxu0
      %v4844 = vadd.f32 %v4179, %v4843
      %v4845 = vpop.f32.mrb[0].mxu0
      %4846 = vmatprep.mubr.f32.mxu0 %v2246
      %4847 = vmatmul.mubr.f32.gmra.mrb[0].mxu0 %v905
      %v4848 = vpop.f32.mrb[0].mxu0
      %v4849 = vadd.f32 %v4184, %v4848
      %v4850 = vpop.f32.mrb[0].mxu0
      %4851 = vmatprep.mubr.f32.mxu0 %v2249
      %4852 = vmatmul.mubr.f32.gmra.mrb[0].mxu0 %v913
      %v4853 = vpop.f32.mrb[0].mxu0
      %v4854 = vadd.f32 %v4189, %v4853
      %v4855 = vpop.f32.mrb[0].mxu0
      %4856 = vmatprep.mubr.f32.mxu0 %v2252
      %4857 = vmatmul.mubr.f32.gmra.mrb[0].mxu0 %v921
      %v4858 = vpop.f32.mrb[0].mxu0
      %v4859 = vadd.f32 %v4194, %v4858
      %v4860 = vpop.f32.mrb[0].mxu0
      %4861 = vmatprep.mubr.f32.mxu0 %v2255
      %4862 = vmatmul.mubr.f32.gmra.mrb[0].mxu0 %v929
      %v4863 = vpop.f32.mrb[0].mxu0
      %v4864 = vadd.f32 %v4199, %v4863
      %v4865 = vpop.f32.mrb[0].mxu0
      %4866 = vmatprep.mubr.f32.mxu0 %v2258
      %4867 = vmatmul.mubr.f32.gmra.mrb[0].mxu0 %v937
      %v4868 = vpop.f32.mrb[0].mxu0
      %v4869 = vadd.f32 %v4204, %v4868
      %v4870 = vpop.f32.mrb[0].mxu0
      %4871 = vmatprep.mubr.f32.mxu0 %v2261
      %4872 = vmatmul.mubr.f32.gmra.mrb[0].mxu0 %v945
      %v4873 = vpop.f32.mrb[0].mxu0
      %v4874 = vadd.f32 %v4209, %v4873
      %v4875 = vpop.f32.mrb[0].mxu0
      %4876 = vmatprep.mubr.f32.mxu0 %v2264
      %4877 = vmatmul.mubr.f32.gmra.mrb[0].mxu0 %v953
      %v4878 = vpop.f32.mrb[0].mxu0
      %v4879 = vadd.f32 %v4214, %v4878
      %v4880 = vpop.f32.mrb[0].mxu0
      %4881 = vmatprep.mubr.f32.mxu0 %v2267
      %4882 = vmatmul.mubr.f32.gmra.mrb[0].mxu0 %v961
      %v4883 = vpop.f32.mrb[0].mxu0
      %v4884 = vadd.f32 %v4219, %v4883
      %v4885 = vpop.f32.mrb[0].mxu0
      %4886 = vmatprep.mubr.f32.mxu0 %v2270
      %4887 = vmatmul.mubr.f32.gmra.mrb[0].mxu0 %v969
      %v4888 = vpop.f32.mrb[0].mxu0
      %v4889 = vadd.f32 %v4224, %v4888
      %v4890 = vpop.f32.mrb[0].mxu0
      %4891 = vmatprep.mubr.f32.mxu0 %v2273
      %4892 = vmatmul.mubr.f32.gmra.mrb[0].mxu0 %v977
      %v4893 = vpop.f32.mrb[0].mxu0
      %v4894 = vadd.f32 %v4229, %v4893
      %v4895 = vpop.f32.mrb[0].mxu0
      %4896 = vmatprep.mubr.f32.mxu0 %v2276
      %4897 = vmatmul.mubr.f32.gmra.mrb[0].mxu0 %v985
      %v4898 = vpop.f32.mrb[0].mxu0
      %v4899 = vadd.f32 %v4234, %v4898
      %v4900 = vpop.f32.mrb[0].mxu0
      %4901 = vmatprep.mubr.f32.mxu0 %v2279
      %4902 = vmatmul.mubr.f32.gmra.mrb[0].mxu0 %v993
      %v4903 = vpop.f32.mrb[0].mxu0
      %v4904 = vadd.f32 %v4239, %v4903
      %v4905 = vpop.f32.mrb[0].mxu0
      %4906 = vmatprep.mubr.f32.mxu0 %v2282
      %4907 = vmatmul.mubr.f32.gmra.mrb[0].mxu0 %v1001
      %v4908 = vpop.f32.mrb[0].mxu0
      %v4909 = vadd.f32 %v4244, %v4908
      %v4910 = vpop.f32.mrb[0].mxu0
      %4911 = vmatprep.mubr.f32.mxu0 %v2285
      %4912 = vmatmul.mubr.f32.gmra.mrb[0].mxu0 %v1009
      %v4913 = vpop.f32.mrb[0].mxu0
      %v4914 = vadd.f32 %v4249, %v4913
      %v4915 = vpop.f32.mrb[0].mxu0
      %4916 = vmatprep.mubr.f32.mxu0 %v2288
      %4917 = vmatmul.mubr.f32.gmra.mrb[0].mxu0 %v1017
      %v4918 = vpop.f32.mrb[0].mxu0
      %v4919 = vadd.f32 %v4254, %v4918
      %v4920 = vpop.f32.mrb[0].mxu0
      %4921 = vmatprep.mubr.f32.mxu0 %v2291
      %4922 = vmatmul.mubr.f32.gmra.mrb[0].mxu0 %v1025
      %v4923 = vpop.f32.mrb[0].mxu0
      %v4924 = vadd.f32 %v4259, %v4923
      %v4925 = vpop.f32.mrb[0].mxu0
      %4926 = vmatprep.mubr.f32.mxu0 %v2294
      %4927 = vmatmul.mubr.f32.gmra.mrb[0].mxu0 %v1033
      %v4928 = vpop.f32.mrb[0].mxu0
      %v4929 = vadd.f32 %v4264, %v4928
      %v4930 = vpop.f32.mrb[0].mxu0
      %4931 = vmatprep.mubr.f32.mxu0 %v2297
      %4932 = vmatmul.mubr.f32.gmra.mrb[0].mxu0 %v1041
      %v4933 = vpop.f32.mrb[0].mxu0
      %v4934 = vadd.f32 %v4269, %v4933
      %v4935 = vpop.f32.mrb[0].mxu0
      %4936 = vmatprep.mubr.f32.mxu0 %v2300
      %4937 = vmatmul.mubr.f32.gmra.mrb[0].mxu0 %v1049
      %v4938 = vpop.f32.mrb[0].mxu0
      %v4939 = vadd.f32 %v4274, %v4938
      %v4940 = vpop.f32.mrb[0].mxu0
      %4941 = vmatprep.mubr.f32.mxu0 %v2303
      %4942 = vmatmul.mubr.f32.gmra.mrb[0].mxu0 %v1057
      %v4943 = vpop.f32.mrb[0].mxu0
      %v4944 = vadd.f32 %v4279, %v4943
      %v4945 = vpop.f32.mrb[0].mxu0
      %4946 = vmatprep.mubr.f32.mxu0 %v2306
      %4947 = vmatmul.mubr.f32.gmra.mrb[0].mxu0 %v1065
      %v4948 = vpop.f32.mrb[0].mxu0
      %v4949 = vadd.f32 %v4284, %v4948
      %v4950 = vpop.f32.mrb[0].mxu0
      %4951 = vmatprep.mubr.f32.mxu0 %v2309
      %4952 = vmatmul.mubr.f32.gmra.mrb[0].mxu0 %v1073
      %v4953 = vpop.f32.mrb[0].mxu0
      %v4954 = vadd.f32 %v4289, %v4953
      %v4955 = vpop.f32.mrb[0].mxu0
      %4956 = vmatprep.mubr.f32.mxu0 %v2312
      %4957 = vmatmul.mubr.f32.gmra.mrb[0].mxu0 %v1081
      %v4958 = vpop.f32.mrb[0].mxu0
      %v4959 = vadd.f32 %v4294, %v4958
      %v4960 = vpop.f32.mrb[0].mxu0
      %4961 = vmatprep.mubr.f32.mxu0 %v2315
      %4962 = vmatmul.mubr.f32.gmra.mrb[0].mxu0 %v1089
      %v4963 = vpop.f32.mrb[0].mxu0
      %v4964 = vadd.f32 %v4299, %v4963
      %v4965 = vpop.f32.mrb[0].mxu0
      %4966 = vmatprep.mubr.f32.mxu0 %v2318
      %4967 = vmatmul.mubr.f32.gmra.mrb[0].mxu0 %v1097
      %v4968 = vpop.f32.mrb[0].mxu0
      %v4969 = vadd.f32 %v4304, %v4968
      %v4970 = vpop.f32.mrb[0].mxu0
      %4971 = vmatprep.mubr.f32.mxu0 %v2321
      %4972 = vmatmul.mubr.f32.gmra.mrb[0].mxu0 %v1105
      %v4973 = vpop.f32.mrb[0].mxu0
      %v4974 = vadd.f32 %v4309, %v4973
      %v4975 = vpop.f32.mrb[0].mxu0
      %4976 = vmatprep.mubr.f32.mxu0 %v2324
      %4977 = vmatmul.mubr.f32.gmra.mrb[0].mxu0 %v1113
      %v4978 = vpop.f32.mrb[0].mxu0
      %v4979 = vadd.f32 %v4314, %v4978
      %v4980 = vpop.f32.mrb[0].mxu0
      %4981 = vmatprep.mubr.f32.mxu0 %v2327
      %4982 = vmatmul.mubr.f32.gmra.mrb[0].mxu0 %v1121
      %v4983 = vpop.f32.mrb[0].mxu0
      %v4984 = vadd.f32 %v4319, %v4983
      %v4985 = vpop.f32.mrb[0].mxu0
      %4986 = vmatprep.mubr.f32.mxu0 %v2330
      %4987 = vmatmul.mubr.f32.gmra.mrb[0].mxu0 %v1129
      %v4988 = vpop.f32.mrb[0].mxu0
      %v4989 = vadd.f32 %v4324, %v4988
      %v4990 = vpop.f32.mrb[0].mxu0
      %4991 = vdwg.mxu0
      %v4992 = vmul.f32 %v4394, 0.2
      %v4993 = vmul.f32 %v4399, 0.2
      %v4994 = vmul.f32 %v4404, 0.2
      %v4995 = vmul.f32 %v4409, 0.2
      %v4996 = vmul.f32 %v4414, 0.2
      %v4997 = vmul.f32 %v4419, 0.2
      %v4998 = vmul.f32 %v4424, 0.2
      %v4999 = vmul.f32 %v4429, 0.2
      %v5000 = vmul.f32 %v4434, 0.2
      %v5001 = vmul.f32 %v4439, 0.2
      %v5002 = vmul.f32 %v4444, 0.2
      %v5003 = vmul.f32 %v4449, 0.2
      %v5004 = vmul.f32 %v4454, 0.2
      %v5005 = vmul.f32 %v4459, 0.2
      %v5006 = vmul.f32 %v4464, 0.2
      %v5007 = vmul.f32 %v4469, 0.2
      %v5008 = vmul.f32 %v4474, 0.2
      %v5009 = vmul.f32 %v4479, 0.2
      %v5010 = vmul.f32 %v4484, 0.2
      %v5011 = vmul.f32 %v4489, 0.2
      %v5012 = vmul.f32 %v4494, 0.2
      %v5013 = vmul.f32 %v4499, 0.2
      %v5014 = vmul.f32 %v4504, 0.2
      %v5015 = vmul.f32 %v4509, 0.2
      %v5016 = vmul.f32 %v4514, 0.2
      %v5017 = vmul.f32 %v4519, 0.2
      %v5018 = vmul.f32 %v4524, 0.2
      %v5019 = vmul.f32 %v4529, 0.2
      %v5020 = vmul.f32 %v4534, 0.2
      %v5021 = vmul.f32 %v4539, 0.2
      %v5022 = vmul.f32 %v4544, 0.2
      %v5023 = vmul.f32 %v4549, 0.2
      %v5024 = vmul.f32 %v4554, 0.2
      %v5025 = vmul.f32 %v4559, 0.2
      %v5026 = vmul.f32 %v4564, 0.2
      %v5027 = vmul.f32 %v4569, 0.2
      %v5028 = vmul.f32 %v4574, 0.2
      %v5029 = vmul.f32 %v4579, 0.2
      %v5030 = vmul.f32 %v4584, 0.2
      %v5031 = vmul.f32 %v4589, 0.2
      %v5032 = vmul.f32 %v4594, 0.2
      %v5033 = vmul.f32 %v4599, 0.2
      %v5034 = vmul.f32 %v4604, 0.2
      %v5035 = vmul.f32 %v4609, 0.2
      %v5036 = vmul.f32 %v4614, 0.2
      %v5037 = vmul.f32 %v4619, 0.2
      %v5038 = vmul.f32 %v4624, 0.2
      %v5039 = vmul.f32 %v4629, 0.2
      %v5040 = vmul.f32 %v4634, 0.2
      %v5041 = vmul.f32 %v4639, 0.2
      %v5042 = vmul.f32 %v4644, 0.2
      %v5043 = vmul.f32 %v4649, 0.2
      %v5044 = vmul.f32 %v4654, 0.2
      %v5045 = vmul.f32 %v4659, 0.2
      %v5046 = vmul.f32 %v4664, 0.2
      %v5047 = vmul.f32 %v4669, 0.2
      %v5048 = vmul.f32 %v4674, 0.2
      %v5049 = vmul.f32 %v4679, 0.2
      %v5050 = vmul.f32 %v4684, 0.2
      %v5051 = vmul.f32 %v4689, 0.2
      %v5052 = vmul.f32 %v4694, 0.2
      %v5053 = vmul.f32 %v4699, 0.2
      %v5054 = vmul.f32 %v4704, 0.2
      %v5055 = vmul.f32 %v4709, 0.2
      %v5056 = vmul.f32 %v4714, 0.2
      %v5057 = vmul.f32 %v4719, 0.2
      %v5058 = vmul.f32 %v4724, 0.2
      %v5059 = vmul.f32 %v4729, 0.2
      %v5060 = vmul.f32 %v4734, 0.2
      %v5061 = vmul.f32 %v4739, 0.2
      %v5062 = vmul.f32 %v4744, 0.2
      %v5063 = vmul.f32 %v4749, 0.2
      %v5064 = vmul.f32 %v4754, 0.2
      %v5065 = vmul.f32 %v4759, 0.2
      %v5066 = vmul.f32 %v4764, 0.2
      %v5067 = vmul.f32 %v4769, 0.2
      %v5068 = vmul.f32 %v4774, 0.2
      %v5069 = vmul.f32 %v4779, 0.2
      %v5070 = vmul.f32 %v4784, 0.2
      %v5071 = vmul.f32 %v4789, 0.2
      %v5072 = vmul.f32 %v4794, 0.2
      %v5073 = vmul.f32 %v4799, 0.2
      %v5074 = vmul.f32 %v4804, 0.2
      %v5075 = vmul.f32 %v4809, 0.2
      %v5076 = vmul.f32 %v4814, 0.2
      %v5077 = vmul.f32 %v4819, 0.2
      %v5078 = vmul.f32 %v4824, 0.2
      %v5079 = vmul.f32 %v4829, 0.2
      %v5080 = vmul.f32 %v4834, 0.2
      %v5081 = vmul.f32 %v4839, 0.2
      %v5082 = vmul.f32 %v4844, 0.2
      %v5083 = vmul.f32 %v4849, 0.2
      %v5084 = vmul.f32 %v4854, 0.2
      %v5085 = vmul.f32 %v4859, 0.2
      %v5086 = vmul.f32 %v4864, 0.2
      %v5087 = vmul.f32 %v4869, 0.2
      %v5088 = vmul.f32 %v4874, 0.2
      %v5089 = vmul.f32 %v4879, 0.2
      %v5090 = vmul.f32 %v4884, 0.2
      %v5091 = vmul.f32 %v4889, 0.2
      %v5092 = vmul.f32 %v4894, 0.2
      %v5093 = vmul.f32 %v4899, 0.2
      %v5094 = vmul.f32 %v4904, 0.2
      %v5095 = vmul.f32 %v4909, 0.2
      %v5096 = vmul.f32 %v4914, 0.2
      %v5097 = vmul.f32 %v4919, 0.2
      %v5098 = vmul.f32 %v4924, 0.2
      %v5099 = vmul.f32 %v4929, 0.2
      %v5100 = vmul.f32 %v4934, 0.2
      %v5101 = vmul.f32 %v4939, 0.2
      %v5102 = vmul.f32 %v4944, 0.2
      %v5103 = vmul.f32 %v4949, 0.2
      %v5104 = vmul.f32 %v4954, 0.2
      %v5105 = vmul.f32 %v4959, 0.2
      %v5106 = vmul.f32 %v4964, 0.2
      %v5107 = vmul.f32 %v4969, 0.2
      %v5108 = vmul.f32 %v4974, 0.2
      %v5109 = vmul.f32 %v4979, 0.2
      %v5110 = vmul.f32 %v4984, 0.2
      %v5111 = vmul.f32 %v4989, 0.2
      %v5112 = vmax.f32 %v4394, %v4992
      %v5113 = vmax.f32 %v4399, %v4993
      %v5114 = vmax.f32 %v4404, %v4994
      %v5115 = vmax.f32 %v4409, %v4995
      %v5116 = vmax.f32 %v4414, %v4996
      %v5117 = vmax.f32 %v4419, %v4997
      %v5118 = vmax.f32 %v4424, %v4998
      %v5119 = vmax.f32 %v4429, %v4999
      %v5120 = vmax.f32 %v4434, %v5000
      %v5121 = vmax.f32 %v4439, %v5001
      %v5122 = vmax.f32 %v4444, %v5002
      %v5123 = vmax.f32 %v4449, %v5003
      %v5124 = vmax.f32 %v4454, %v5004
      %v5125 = vmax.f32 %v4459, %v5005
      %v5126 = vmax.f32 %v4464, %v5006
      %v5127 = vmax.f32 %v4469, %v5007
      %v5128 = vmax.f32 %v4474, %v5008
      %v5129 = vmax.f32 %v4479, %v5009
      %v5130 = vmax.f32 %v4484, %v5010
      %v5131 = vmax.f32 %v4489, %v5011
      %v5132 = vmax.f32 %v4494, %v5012
      %v5133 = vmax.f32 %v4499, %v5013
      %v5134 = vmax.f32 %v4504, %v5014
      %v5135 = vmax.f32 %v4509, %v5015
      %v5136 = vmax.f32 %v4514, %v5016
      %v5137 = vmax.f32 %v4519, %v5017
      %v5138 = vmax.f32 %v4524, %v5018
      %v5139 = vmax.f32 %v4529, %v5019
      %v5140 = vmax.f32 %v4534, %v5020
      %v5141 = vmax.f32 %v4539, %v5021
      %v5142 = vmax.f32 %v4544, %v5022
      %v5143 = vmax.f32 %v4549, %v5023
      %v5144 = vmax.f32 %v4554, %v5024
      %v5145 = vmax.f32 %v4559, %v5025
      %v5146 = vmax.f32 %v4564, %v5026
      %v5147 = vmax.f32 %v4569, %v5027
      %v5148 = vmax.f32 %v4574, %v5028
      %v5149 = vmax.f32 %v4579, %v5029
      %v5150 = vmax.f32 %v4584, %v5030
      %v5151 = vmax.f32 %v4589, %v5031
      %v5152 = vmax.f32 %v4594, %v5032
      %v5153 = vmax.f32 %v4599, %v5033
      %v5154 = vmax.f32 %v4604, %v5034
      %v5155 = vmax.f32 %v4609, %v5035
      %v5156 = vmax.f32 %v4614, %v5036
      %v5157 = vmax.f32 %v4619, %v5037
      %v5158 = vmax.f32 %v4624, %v5038
      %v5159 = vmax.f32 %v4629, %v5039
      %v5160 = vmax.f32 %v4634, %v5040
      %v5161 = vmax.f32 %v4639, %v5041
      %v5162 = vmax.f32 %v4644, %v5042
      %v5163 = vmax.f32 %v4649, %v5043
      %v5164 = vmax.f32 %v4654, %v5044
      %v5165 = vmax.f32 %v4659, %v5045
      %v5166 = vmax.f32 %v4664, %v5046
      %v5167 = vmax.f32 %v4669, %v5047
      %v5168 = vmax.f32 %v4674, %v5048
      %v5169 = vmax.f32 %v4679, %v5049
      %v5170 = vmax.f32 %v4684, %v5050
      %v5171 = vmax.f32 %v4689, %v5051
      %v5172 = vmax.f32 %v4694, %v5052
      %v5173 = vmax.f32 %v4699, %v5053
      %v5174 = vmax.f32 %v4704, %v5054
      %v5175 = vmax.f32 %v4709, %v5055
      %v5176 = vmax.f32 %v4714, %v5056
      %v5177 = vmax.f32 %v4719, %v5057
      %v5178 = vmax.f32 %v4724, %v5058
      %v5179 = vmax.f32 %v4729, %v5059
      %v5180 = vmax.f32 %v4734, %v5060
      %v5181 = vmax.f32 %v4739, %v5061
      %v5182 = vmax.f32 %v4744, %v5062
      %v5183 = vmax.f32 %v4749, %v5063
      %v5184 = vmax.f32 %v4754, %v5064
      %v5185 = vmax.f32 %v4759, %v5065
      %v5186 = vmax.f32 %v4764, %v5066
      %v5187 = vmax.f32 %v4769, %v5067
      %v5188 = vmax.f32 %v4774, %v5068
      %v5189 = vmax.f32 %v4779, %v5069
      %v5190 = vmax.f32 %v4784, %v5070
      %v5191 = vmax.f32 %v4789, %v5071
      %v5192 = vmax.f32 %v4794, %v5072
      %v5193 = vmax.f32 %v4799, %v5073
      %v5194 = vmax.f32 %v4804, %v5074
      %v5195 = vmax.f32 %v4809, %v5075
      %v5196 = vmax.f32 %v4814, %v5076
      %v5197 = vmax.f32 %v4819, %v5077
      %v5198 = vmax.f32 %v4824, %v5078
      %v5199 = vmax.f32 %v4829, %v5079
      %v5200 = vmax.f32 %v4834, %v5080
      %v5201 = vmax.f32 %v4839, %v5081
      %v5202 = vmax.f32 %v4844, %v5082
      %v5203 = vmax.f32 %v4849, %v5083
      %v5204 = vmax.f32 %v4854, %v5084
      %v5205 = vmax.f32 %v4859, %v5085
      %v5206 = vmax.f32 %v4864, %v5086
      %v5207 = vmax.f32 %v4869, %v5087
      %v5208 = vmax.f32 %v4874, %v5088
      %v5209 = vmax.f32 %v4879, %v5089
      %v5210 = vmax.f32 %v4884, %v5090
      %v5211 = vmax.f32 %v4889, %v5091
      %v5212 = vmax.f32 %v4894, %v5092
      %v5213 = vmax.f32 %v4899, %v5093
      %v5214 = vmax.f32 %v4904, %v5094
      %v5215 = vmax.f32 %v4909, %v5095
      %v5216 = vmax.f32 %v4914, %v5096
      %v5217 = vmax.f32 %v4919, %v5097
      %v5218 = vmax.f32 %v4924, %v5098
      %v5219 = vmax.f32 %v4929, %v5099
      %v5220 = vmax.f32 %v4934, %v5100
      %v5221 = vmax.f32 %v4939, %v5101
      %v5222 = vmax.f32 %v4944, %v5102
      %v5223 = vmax.f32 %v4949, %v5103
      %v5224 = vmax.f32 %v4954, %v5104
      %v5225 = vmax.f32 %v4959, %v5105
      %v5226 = vmax.f32 %v4964, %v5106
      %v5227 = vmax.f32 %v4969, %v5107
      %v5228 = vmax.f32 %v4974, %v5108
      %v5229 = vmax.f32 %v4979, %v5109
      %v5230 = vmax.f32 %v4984, %v5110
      %v5231 = vmax.f32 %v4989, %v5111
      %5232 = vst [vmem:[%s170] sm:$0xff] %v5112
      %5233 = vst [vmem:[%s170 + $0x8] sm:$0xff] %v5113
      %5234 = vst [vmem:[%s170 + $0x10] sm:$0xff] %v5114
      %5235 = vst [vmem:[%s170 + $0x18] sm:$0xff] %v5115
      %5236 = vst [vmem:[%s170 + $0x20] sm:$0xff] %v5116
      %5237 = vst [vmem:[%s170 + $0x28] sm:$0xff] %v5117
      %5238 = vst [vmem:[%s170 + $0x30] sm:$0xff] %v5118
      %5239 = vst [vmem:[%s170 + $0x38] sm:$0xff] %v5119
      %5240 = vst [vmem:[%s170 + $0x40] sm:$0xff] %v5120
      %5241 = vst [vmem:[%s170 + $0x48] sm:$0xff] %v5121
      %5242 = vst [vmem:[%s170 + $0x50] sm:$0xff] %v5122
      %5243 = vst [vmem:[%s170 + $0x58] sm:$0xff] %v5123
      %5244 = vst [vmem:[%s170 + $0x60] sm:$0xff] %v5124
      %5245 = vst [vmem:[%s170 + $0x68] sm:$0xff] %v5125
      %5246 = vst [vmem:[%s170 + $0x70] sm:$0xff] %v5126
      %5247 = vst [vmem:[%s170 + $0x78] sm:$0xff] %v5127
      %5248 = vst [vmem:[%s170 + $0x80] sm:$0xff] %v5128
      %5249 = vst [vmem:[%s170 + $0x88] sm:$0xff] %v5129
      %5250 = vst [vmem:[%s170 + $0x90] sm:$0xff] %v5130
      %5251 = vst [vmem:[%s170 + $0x98] sm:$0xff] %v5131
      %5252 = vst [vmem:[%s170 + $0xa0] sm:$0xff] %v5132
      %5253 = vst [vmem:[%s170 + $0xa8] sm:$0xff] %v5133
      %5254 = vst [vmem:[%s170 + $0xb0] sm:$0xff] %v5134
      %5255 = vst [vmem:[%s170 + $0xb8] sm:$0xff] %v5135
      %5256 = vst [vmem:[%s170 + $0xc0] sm:$0xff] %v5136
      %5257 = vst [vmem:[%s170 + $0xc8] sm:$0xff] %v5137
      %5258 = vst [vmem:[%s170 + $0xd0] sm:$0xff] %v5138
      %5259 = vst [vmem:[%s170 + $0xd8] sm:$0xff] %v5139
      %5260 = vst [vmem:[%s170 + $0xe0] sm:$0xff] %v5140
      %5261 = vst [vmem:[%s170 + $0xe8] sm:$0xff] %v5141
      %5262 = vst [vmem:[%s170 + $0xf0] sm:$0xff] %v5142
      %5263 = vst [vmem:[%s170 + $0xf8] sm:$0xff] %v5143
      %5264 = vst [vmem:[%s170 + $0x100] sm:$0xff] %v5144
      %5265 = vst [vmem:[%s170 + $0x108] sm:$0xff] %v5145
      %5266 = vst [vmem:[%s170 + $0x110] sm:$0xff] %v5146
      %5267 = vst [vmem:[%s170 + $0x118] sm:$0xff] %v5147
      %5268 = vst [vmem:[%s170 + $0x120] sm:$0xff] %v5148
      %5269 = vst [vmem:[%s170 + $0x128] sm:$0xff] %v5149
      %5270 = vst [vmem:[%s170 + $0x130] sm:$0xff] %v5150
      %5271 = vst [vmem:[%s170 + $0x138] sm:$0xff] %v5151
      %5272 = vst [vmem:[%s170 + $0x140] sm:$0xff] %v5152
      %5273 = vst [vmem:[%s170 + $0x148] sm:$0xff] %v5153
      %5274 = vst [vmem:[%s170 + $0x150] sm:$0xff] %v5154
      %5275 = vst [vmem:[%s170 + $0x158] sm:$0xff] %v5155
      %5276 = vst [vmem:[%s170 + $0x160] sm:$0xff] %v5156
      %5277 = vst [vmem:[%s170 + $0x168] sm:$0xff] %v5157
      %5278 = vst [vmem:[%s170 + $0x170] sm:$0xff] %v5158
      %5279 = vst [vmem:[%s170 + $0x178] sm:$0xff] %v5159
      %5280 = vst [vmem:[%s170 + $0x180] sm:$0xff] %v5160
      %5281 = vst [vmem:[%s170 + $0x188] sm:$0xff] %v5161
      %5282 = vst [vmem:[%s170 + $0x190] sm:$0xff] %v5162
      %5283 = vst [vmem:[%s170 + $0x198] sm:$0xff] %v5163
      %5284 = vst [vmem:[%s170 + $0x1a0] sm:$0xff] %v5164
      %5285 = vst [vmem:[%s170 + $0x1a8] sm:$0xff] %v5165
      %5286 = vst [vmem:[%s170 + $0x1b0] sm:$0xff] %v5166
      %5287 = vst [vmem:[%s170 + $0x1b8] sm:$0xff] %v5167
      %5288 = vst [vmem:[%s170 + $0x1c0] sm:$0xff] %v5168
      %5289 = vst [vmem:[%s170 + $0x1c8] sm:$0xff] %v5169
      %5290 = vst [vmem:[%s170 + $0x1d0] sm:$0xff] %v5170
      %5291 = vst [vmem:[%s170 + $0x1d8] sm:$0xff] %v5171
      %5292 = vst [vmem:[%s170 + $0x1e0] sm:$0xff] %v5172
      %5293 = vst [vmem:[%s170 + $0x1e8] sm:$0xff] %v5173
      %5294 = vst [vmem:[%s170 + $0x1f0] sm:$0xff] %v5174
      %5295 = vst [vmem:[%s170 + $0x1f8] sm:$0xff] %v5175
      %5296 = vst [vmem:[%s170 + $0x200] sm:$0xff] %v5176
      %5297 = vst [vmem:[%s170 + $0x208] sm:$0xff] %v5177
      %5298 = vst [vmem:[%s170 + $0x210] sm:$0xff] %v5178
      %5299 = vst [vmem:[%s170 + $0x218] sm:$0xff] %v5179
      %5300 = vst [vmem:[%s170 + $0x220] sm:$0xff] %v5180
      %5301 = vst [vmem:[%s170 + $0x228] sm:$0xff] %v5181
      %5302 = vst [vmem:[%s170 + $0x230] sm:$0xff] %v5182
      %5303 = vst [vmem:[%s170 + $0x238] sm:$0xff] %v5183
      %5304 = vst [vmem:[%s170 + $0x240] sm:$0xff] %v5184
      %5305 = vst [vmem:[%s170 + $0x248] sm:$0xff] %v5185
      %5306 = vst [vmem:[%s170 + $0x250] sm:$0xff] %v5186
      %5307 = vst [vmem:[%s170 + $0x258] sm:$0xff] %v5187
      %5308 = vst [vmem:[%s170 + $0x260] sm:$0xff] %v5188
      %5309 = vst [vmem:[%s170 + $0x268] sm:$0xff] %v5189
      %5310 = vst [vmem:[%s170 + $0x270] sm:$0xff] %v5190
      %5311 = vst [vmem:[%s170 + $0x278] sm:$0xff] %v5191
      %5312 = vst [vmem:[%s170 + $0x280] sm:$0xff] %v5192
      %5313 = vst [vmem:[%s170 + $0x288] sm:$0xff] %v5193
      %5314 = vst [vmem:[%s170 + $0x290] sm:$0xff] %v5194
      %5315 = vst [vmem:[%s170 + $0x298] sm:$0xff] %v5195
      %5316 = vst [vmem:[%s170 + $0x2a0] sm:$0xff] %v5196
      %5317 = vst [vmem:[%s170 + $0x2a8] sm:$0xff] %v5197
      %5318 = vst [vmem:[%s170 + $0x2b0] sm:$0xff] %v5198
      %5319 = vst [vmem:[%s170 + $0x2b8] sm:$0xff] %v5199
      %5320 = vst [vmem:[%s170 + $0x2c0] sm:$0xff] %v5200
      %5321 = vst [vmem:[%s170 + $0x2c8] sm:$0xff] %v5201
      %5322 = vst [vmem:[%s170 + $0x2d0] sm:$0xff] %v5202
      %5323 = vst [vmem:[%s170 + $0x2d8] sm:$0xff] %v5203
      %5324 = vst [vmem:[%s170 + $0x2e0] sm:$0xff] %v5204
      %5325 = vst [vmem:[%s170 + $0x2e8] sm:$0xff] %v5205
      %5326 = vst [vmem:[%s170 + $0x2f0] sm:$0xff] %v5206
      %5327 = vst [vmem:[%s170 + $0x2f8] sm:$0xff] %v5207
      %5328 = vst [vmem:[%s170 + $0x300] sm:$0xff] %v5208
      %5329 = vst [vmem:[%s170 + $0x308] sm:$0xff] %v5209
      %5330 = vst [vmem:[%s170 + $0x310] sm:$0xff] %v5210
      %5331 = vst [vmem:[%s170 + $0x318] sm:$0xff] %v5211
      %5332 = vst [vmem:[%s170 + $0x320] sm:$0xff] %v5212
      %5333 = vst [vmem:[%s170 + $0x328] sm:$0xff] %v5213
      %5334 = vst [vmem:[%s170 + $0x330] sm:$0xff] %v5214
      %5335 = vst [vmem:[%s170 + $0x338] sm:$0xff] %v5215
      %5336 = vst [vmem:[%s170 + $0x340] sm:$0xff] %v5216
      %5337 = vst [vmem:[%s170 + $0x348] sm:$0xff] %v5217
      %5338 = vst [vmem:[%s170 + $0x350] sm:$0xff] %v5218
      %5339 = vst [vmem:[%s170 + $0x358] sm:$0xff] %v5219
      %5340 = vst [vmem:[%s170 + $0x360] sm:$0xff] %v5220
      %5341 = vst [vmem:[%s170 + $0x368] sm:$0xff] %v5221
      %5342 = vst [vmem:[%s170 + $0x370] sm:$0xff] %v5222
      %5343 = vst [vmem:[%s170 + $0x378] sm:$0xff] %v5223
      %5344 = vst [vmem:[%s170 + $0x380] sm:$0xff] %v5224
      %5345 = vst [vmem:[%s170 + $0x388] sm:$0xff] %v5225
      %5346 = vst [vmem:[%s170 + $0x390] sm:$0xff] %v5226
      %5347 = vst [vmem:[%s170 + $0x398] sm:$0xff] %v5227
      %5348 = vst [vmem:[%s170 + $0x3a0] sm:$0xff] %v5228
      %5349 = vst [vmem:[%s170 + $0x3a8] sm:$0xff] %v5229
      %5350 = vst [vmem:[%s170 + $0x3b0] sm:$0xff] %v5230
      %5351 = vst [vmem:[%s170 + $0x3b8] sm:$0xff] %v5231
      %p5352 = scmp.lt.s32.totalorder %s14, 1
      %s5353 = scalar_select %p5352, %s14, 1
      %s5354 = smul.addr %s5353, 120
      %s5355 = smul.addr %s5354, 8
      %s5356 = scalar_lea.vmem %s3, %s5355
      // Predicated region
      $region33: #{decoder_forward.5} parent=31 // pred_check
        %p5357 = pneg %p100
      $region34: #{decoder_forward.5} parent=31 // pred_check_branch
        %5359 = sbr.rel (%p5357) target = $region36
      $region35: #{decoder_forward.5} parent=31 // pred_region
        _
      $region36: #{decoder_forward.5} parent=31 // pred_fallthru
        _
    $region32: #{decoder_forward.5} parent=5 // pred_fallthru
      _
    %p5360 = scmp.le.s32.totalorder 2, %s9
    // Predicated region
    $region37: #{decoder_forward.5} parent=5 // pred_check
      %p5361 = pneg %p5360
    $region38: #{decoder_forward.5} parent=5 // pred_check_branch
      %5363 = sbr.rel (%p5361) target = $region40
    $region39: #{decoder_forward.5} parent=5 // pred_region
      %s5364 = ssub.s32 %s9, 2
      // Predicated region
      $region41: #{decoder_forward.5} parent=39 // pred_check
        %p5365 = pneg %p106
      $region42: #{decoder_forward.5} parent=39 // pred_check_branch
        %5367 = sbr.rel (%p5365) target = $region44
      $region43: #{decoder_forward.5} parent=39 // pred_region
        %p5368 = scmp.lt.s32.totalorder %s15, 1
        %s5369 = scalar_select %p5368, %s15, 1
        %s5370 = smul.addr %s5369, 120
        %s5371 = smul.addr %s5370, 8
        %s5372 = scalar_lea.vmem %s3, %s5371
      $region44: #{decoder_forward.5} parent=39 // pred_fallthru
        _
    $region40: #{decoder_forward.5} parent=5 // pred_fallthru
      _
  $region6: #{decoder_forward.5} parent=0 // loop_footer
    %s13 = sadd.s32 1, %s9
  $region7: #{decoder_forward.5} parent=0 // loop_footer_branch
    %8 = sbr.rel target = $region3
  $region8: #{decoder_forward.5} parent=0 // loop_exit
    _

// kernel: decoder_forward.6
$region0: #{decoder_forward.6}
  #allocation0 [shape = 'u32[]', space=smem, size = 0x4, offset = 0x4, fixed_abs, tag = 'smem constant byte address 0x4 - core index']
  #allocation1 [shape = 'u32[144,128]{1,0:T(1,128)}', space=vmem, size = 0x12000, scoped, tag = 'internal scratch']
  %s0 = inlined_call_operand.vmem [shape: f32[2,960,128], index: 0, kind: input, shape index: {}]
  %s1 = inlined_call_operand.vmem [shape: f32[64,960], index: 1, kind: input, shape index: {}]
  %s2 = inlined_call_operand.vmem [shape: f32[64,1], index: 2, kind: input, shape index: {}]
  %s3 = inlined_call_operand.vmem [shape: f32[2,64,128], index: 3, kind: output, shape index: {}]
  %s4 = sld [smem:[#allocation0]]
  $region45: #{decoder_forward.6} parent=0
    _
  %s6 = ssub.s32 1, %s4
  %s7 = scalar_select 0, %s6, %s4
  loop: start=0, step=1, limit=4
  $region2: #{decoder_forward.6} parent=0 // loop_pre_header
    _
  $region3: #{decoder_forward.6} parent=0 // loop_header
    %s9 = sphi 0, %s13
    %p10 = scmp.ge.s32.totalorder %s9, 4
    %s19 = sphi 0, %s21
    %s22 = sphi 0, %s19
    %s23 = sphi 0, %s22
    %s39 = sphi 0, %s23
    %s43 = sphi 0, %s43
    %s45 = sphi 0, %s43
    %s46 = sphi 0, %s45
    %s60 = sphi 0, %s46
    %s64 = sphi 0, %s64
    %s66 = sphi 0, %s64
    %s67 = sphi 0, %s66
    %s81 = sphi 0, %s67
    %s87 = sphi 0, %s89
    %s90 = sphi 0, %s87
    %s91 = sphi 0, %s90
    %s107 = sphi 0, %s91
  $region4: #{decoder_forward.6} parent=0 // loop_header_branch
    %12 = sbr.rel (%p10) target = $region8
  $region5: #{decoder_forward.6} parent=0 // loop_body
    %s14 = ssub.s32 %s9, 1
    %s15 = ssub.s32 %s9, 2
    %s16 = sadd.s32 %s9, 1
    %s17 = ssub.s32 %s9, %s16
    %p18 = scmp.eq.s32.totalorder %s17, 0
    %s20 = sadd.s32 %s19, 1
    %s21 = scalar_select %p18, %s19, %s20
    %p24 = pneg %p18
    %p25 = scmp.eq.s32.totalorder %s9, 1
    %p26 = por %p24, %p25
    %p27 = scmp.ne.s32.totalorder %s19, %s22
    %p28 = scmp.eq.s32.totalorder %s9, 0
    %p29 = por %p27, %p28
    %p30 = scmp.ne.s32.totalorder %s19, %s22
    %p31 = scmp.eq.s32.totalorder %s14, 1
    %p32 = por %p30, %p31
    %p33 = scmp.ne.s32.totalorder %s22, %s23
    %p34 = scmp.eq.s32.totalorder %s14, 0
    %p35 = por %p33, %p34
    %p36 = scmp.ne.s32.totalorder %s22, %s23
    %p37 = scmp.eq.s32.totalorder %s15, 1
    %p38 = por %p36, %p37
    %p40 = scmp.ne.s32.totalorder %s23, %s39
    %p41 = scmp.eq.s32.totalorder %s15, 0
    %p42 = por %p40, %p41
    %s44 = sadd.s32 %s43, 1
    %p47 = scmp.eq.s32.totalorder %s9, 1
    %p48 = scmp.ne.s32.totalorder %s43, %s45
    %p49 = scmp.eq.s32.totalorder %s9, 0
    %p50 = por %p48, %p49
    %p51 = scmp.ne.s32.totalorder %s43, %s45
    %p52 = scmp.eq.s32.totalorder %s14, 1
    %p53 = por %p51, %p52
    %p54 = scmp.ne.s32.totalorder %s45, %s46
    %p55 = scmp.eq.s32.totalorder %s14, 0
    %p56 = por %p54, %p55
    %p57 = scmp.ne.s32.totalorder %s45, %s46
    %p58 = scmp.eq.s32.totalorder %s15, 1
    %p59 = por %p57, %p58
    %p61 = scmp.ne.s32.totalorder %s46, %s60
    %p62 = scmp.eq.s32.totalorder %s15, 0
    %p63 = por %p61, %p62
    %s65 = sadd.s32 %s64, 1
    %p68 = scmp.eq.s32.totalorder %s9, 1
    %p69 = scmp.ne.s32.totalorder %s64, %s66
    %p70 = scmp.eq.s32.totalorder %s9, 0
    %p71 = por %p69, %p70
    %p72 = scmp.ne.s32.totalorder %s64, %s66
    %p73 = scmp.eq.s32.totalorder %s14, 1
    %p74 = por %p72, %p73
    %p75 = scmp.ne.s32.totalorder %s66, %s67
    %p76 = scmp.eq.s32.totalorder %s14, 0
    %p77 = por %p75, %p76
    %p78 = scmp.ne.s32.totalorder %s66, %s67
    %p79 = scmp.eq.s32.totalorder %s15, 1
    %p80 = por %p78, %p79
    %p82 = scmp.ne.s32.totalorder %s67, %s81
    %p83 = scmp.eq.s32.totalorder %s15, 0
    %p84 = por %p82, %p83
    %s85 = ssub.s32 %s9, %s16
    %p86 = scmp.eq.s32.totalorder %s85, 0
    %s88 = sadd.s32 %s87, 1
    %s89 = scalar_select %p86, %s87, %s88
    %p92 = pneg %p86
    %p93 = scmp.eq.s32.totalorder %s9, 1
    %p94 = por %p92, %p93
    %p95 = scmp.ne.s32.totalorder %s87, %s90
    %p96 = scmp.eq.s32.totalorder %s9, 0
    %p97 = por %p95, %p96
    %p98 = scmp.ne.s32.totalorder %s87, %s90
    %p99 = scmp.eq.s32.totalorder %s14, 1
    %p100 = por %p98, %p99
    %p101 = scmp.ne.s32.totalorder %s90, %s91
    %p102 = scmp.eq.s32.totalorder %s14, 0
    %p103 = por %p101, %p102
    %p104 = scmp.ne.s32.totalorder %s90, %s91
    %p105 = scmp.eq.s32.totalorder %s15, 1
    %p106 = por %p104, %p105
    %p108 = scmp.ne.s32.totalorder %s91, %s107
    %p109 = scmp.eq.s32.totalorder %s15, 0
    %p110 = por %p108, %p109
    %p111 = scmp.le.s32.totalorder 1, %s9
    %p112 = scmp.lt.s32.totalorder %s9, 3
    %p113 = pnand %p111, %p112
    %p114 = pneg %p113
    // Predicated region
    $region9: #{decoder_forward.6} parent=5 // pred_check
      _
    $region10: #{decoder_forward.6} parent=5 // pred_check_branch
      %116 = sbr.rel (%p113) target = $region12
    $region11: #{decoder_forward.6} parent=5 // pred_region
      %s117 = ssub.s32 %s9, 1
      // Predicated region
      $region13: #{decoder_forward.6} parent=11 // pred_check
        %p118 = pneg %p56
      $region14: #{decoder_forward.6} parent=11 // pred_check_branch
        %120 = sbr.rel (%p118) target = $region16
      $region15: #{decoder_forward.6} parent=11 // pred_region
        _
      $region16: #{decoder_forward.6} parent=11 // pred_fallthru
        _
      // Predicated region
      $region17: #{decoder_forward.6} parent=11 // pred_check
        %p121 = pneg %p77
      $region18: #{decoder_forward.6} parent=11 // pred_check_branch
        %123 = sbr.rel (%p121) target = $region20
      $region19: #{decoder_forward.6} parent=11 // pred_region
        _
      $region20: #{decoder_forward.6} parent=11 // pred_fallthru
        _
    $region12: #{decoder_forward.6} parent=5 // pred_fallthru
      _
    %p124 = scmp.lt.s32.totalorder %s9, 2
    // Predicated region
    $region21: #{decoder_forward.6} parent=5 // pred_check
      %p125 = pneg %p124
    $region22: #{decoder_forward.6} parent=5 // pred_check_branch
      %127 = sbr.rel (%p125) target = $region24
    $region23: #{decoder_forward.6} parent=5 // pred_region
      // Predicated region
      $region25: #{decoder_forward.6} parent=23 // pred_check
        %p128 = pneg %p29
      $region26: #{decoder_forward.6} parent=23 // pred_check_branch
        %130 = sbr.rel (%p128) target = $region28
      $region27: #{decoder_forward.6} parent=23 // pred_region
        %p131 = scmp.lt.s32.totalorder %s9, 1
        %s132 = scalar_select %p131, %s9, 1
        %s133 = smul.addr %s132, 120
        %s134 = smul.addr %s133, 8
        %s135 = scalar_lea.vmem %s0, %s134
      $region28: #{decoder_forward.6} parent=23 // pred_fallthru
        _
    $region24: #{decoder_forward.6} parent=5 // pred_fallthru
      _
    %p136 = scmp.le.s32.totalorder 1, %s9
    %p137 = scmp.lt.s32.totalorder %s9, 3
    %p138 = pnand %p136, %p137
    %p139 = pneg %p138
    // Predicated region
    $region29: #{decoder_forward.6} parent=5 // pred_check
      _
    $region30: #{decoder_forward.6} parent=5 // pred_check_branch
      %141 = sbr.rel (%p138) target = $region32
    $region31: #{decoder_forward.6} parent=5 // pred_region
      %s142 = ssub.s32 %s9, 1
      %p143 = scmp.lt.s32.totalorder %s14, 1
      %s144 = scalar_select %p143, %s14, 1
      %s145 = smul.addr %s144, 120
      %s146 = smul.addr %s145, 8
      %s147 = scalar_lea.vmem %s0, %s146
      %p148 = pneg %p35
      %p149 = pneg %p32
      %p150 = pneg %p56
      %p151 = pneg %p53
      %p152 = pneg %p77
      %p153 = pneg %p74
      %p154 = pneg %p103
      %p155 = pneg %p100
      %p156 = scmp.lt.s32.totalorder %s14, 1
      %s157 = scalar_select %p156, %s14, 1
      %s158 = smul.addr %s157, 8
      %s159 = smul.addr %s158, 8
      %s160 = scalar_lea.vmem %s3, %s159
      %p161 = scmp.lt.s32.totalorder %s14, 1
      %s162 = scalar_select %p161, %s14, 1
      %s163 = smul.addr %s162, 120
      %s164 = smul.addr %s163, 8
      %s165 = scalar_lea.vmem %s0, %s164
      %p166 = scmp.lt.s32.totalorder %s14, 1
      %s167 = scalar_select %p166, %s14, 1
      %s168 = smul.addr %s167, 8
      %s169 = smul.addr %s168, 8
      %s170 = scalar_lea.vmem %s3, %s169
      %v171 = vld [vmem:[%s1] sm:$0xff]
      %v172 = vld [vmem:[%s1 + $0x8] sm:$0xff]
      %v173 = vld [vmem:[%s1 + $0x10] sm:$0xff]
      %v174 = vld [vmem:[%s1 + $0x18] sm:$0xff]
      %v175 = vld [vmem:[%s1 + $0x20] sm:$0xff]
      %v176 = vld [vmem:[%s1 + $0x28] sm:$0xff]
      %v177 = vld [vmem:[%s1 + $0x30] sm:$0xff]
      %v178 = vld [vmem:[%s1 + $0x38] sm:$0xff]
      %v179 = vld [vmem:[%s1 + $0x40] sm:$0xff]
      %v180 = vld [vmem:[%s1 + $0x48] sm:$0xff]
      %v181 = vld [vmem:[%s1 + $0x50] sm:$0xff]
      %v182 = vld [vmem:[%s1 + $0x58] sm:$0xff]
      %v183 = vld [vmem:[%s1 + $0x60] sm:$0xff]
      %v184 = vld [vmem:[%s1 + $0x68] sm:$0xff]
      %v185 = vld [vmem:[%s1 + $0x70] sm:$0xff]
      %v186 = vld [vmem:[%s1 + $0x78] sm:$0xff]
      %v187 = vld [vmem:[%s1 + $0x80] sm:$0xff]
      %v188 = vld [vmem:[%s1 + $0x88] sm:$0xff]
      %v189 = vld [vmem:[%s1 + $0x90] sm:$0xff]
      %v190 = vld [vmem:[%s1 + $0x98] sm:$0xff]
      %v191 = vld [vmem:[%s1 + $0xa0] sm:$0xff]
      %v192 = vld [vmem:[%s1 + $0xa8] sm:$0xff]
      %v193 = vld [vmem:[%s1 + $0xb0] sm:$0xff]
      %v194 = vld [vmem:[%s1 + $0xb8] sm:$0xff]
      %v195 = vld [vmem:[%s1 + $0xc0] sm:$0xff]
      %v196 = vld [vmem:[%s1 + $0xc8] sm:$0xff]
      %v197 = vld [vmem:[%s1 + $0xd0] sm:$0xff]
      %v198 = vld [vmem:[%s1 + $0xd8] sm:$0xff]
      %v199 = vld [vmem:[%s1 + $0xe0] sm:$0xff]
      %v200 = vld [vmem:[%s1 + $0xe8] sm:$0xff]
      %v201 = vld [vmem:[%s1 + $0xf0] sm:$0xff]
      %v202 = vld [vmem:[%s1 + $0xf8] sm:$0xff]
      %v203 = vld [vmem:[%s1 + $0x100] sm:$0xff]
      %v204 = vld [vmem:[%s1 + $0x108] sm:$0xff]
      %v205 = vld [vmem:[%s1 + $0x110] sm:$0xff]
      %v206 = vld [vmem:[%s1 + $0x118] sm:$0xff]
      %v207 = vld [vmem:[%s1 + $0x120] sm:$0xff]
      %v208 = vld [vmem:[%s1 + $0x128] sm:$0xff]
      %v209 = vld [vmem:[%s1 + $0x130] sm:$0xff]
      %v210 = vld [vmem:[%s1 + $0x138] sm:$0xff]
      %v211 = vld [vmem:[%s1 + $0x140] sm:$0xff]
      %v212 = vld [vmem:[%s1 + $0x148] sm:$0xff]
      %v213 = vld [vmem:[%s1 + $0x150] sm:$0xff]
      %v214 = vld [vmem:[%s1 + $0x158] sm:$0xff]
      %v215 = vld [vmem:[%s1 + $0x160] sm:$0xff]
      %v216 = vld [vmem:[%s1 + $0x168] sm:$0xff]
      %v217 = vld [vmem:[%s1 + $0x170] sm:$0xff]
      %v218 = vld [vmem:[%s1 + $0x178] sm:$0xff]
      %v219 = vld [vmem:[%s1 + $0x180] sm:$0xff]
      %v220 = vld [vmem:[%s1 + $0x188] sm:$0xff]
      %v221 = vld [vmem:[%s1 + $0x190] sm:$0xff]
      %v222 = vld [vmem:[%s1 + $0x198] sm:$0xff]
      %v223 = vld [vmem:[%s1 + $0x1a0] sm:$0xff]
      %v224 = vld [vmem:[%s1 + $0x1a8] sm:$0xff]
      %v225 = vld [vmem:[%s1 + $0x1b0] sm:$0xff]
      %v226 = vld [vmem:[%s1 + $0x1b8] sm:$0xff]
      %v227 = vld [vmem:[%s1 + $0x1c0] sm:$0xff]
      %v228 = vld [vmem:[%s1 + $0x1c8] sm:$0xff]
      %v229 = vld [vmem:[%s1 + $0x1d0] sm:$0xff]
      %v230 = vld [vmem:[%s1 + $0x1d8] sm:$0xff]
      %v231 = vld [vmem:[%s1 + $0x1e0] sm:$0xff]
      %v232 = vld [vmem:[%s1 + $0x1e8] sm:$0xff]
      %v233 = vld [vmem:[%s1 + $0x1f0] sm:$0xff]
      %v234 = vld [vmem:[%s1 + $0x1f8] sm:$0xff]
      %v235 = vld [vmem:[%s165] sm:$0xff]
      %v236 = vld [vmem:[%s165 + $0x8] sm:$0xff]
      %v237 = vld [vmem:[%s165 + $0x10] sm:$0xff]
      %v238 = vld [vmem:[%s165 + $0x18] sm:$0xff]
      %v239 = vld [vmem:[%s165 + $0x20] sm:$0xff]
      %v240 = vld [vmem:[%s165 + $0x28] sm:$0xff]
      %v241 = vld [vmem:[%s165 + $0x30] sm:$0xff]
      %v242 = vld [vmem:[%s165 + $0x38] sm:$0xff]
      %v243 = vld [vmem:[%s165 + $0x40] sm:$0xff]
      %v244 = vld [vmem:[%s165 + $0x48] sm:$0xff]
      %v245 = vld [vmem:[%s165 + $0x50] sm:$0xff]
      %v246 = vld [vmem:[%s165 + $0x58] sm:$0xff]
      %v247 = vld [vmem:[%s165 + $0x60] sm:$0xff]
      %v248 = vld [vmem:[%s165 + $0x68] sm:$0xff]
      %v249 = vld [vmem:[%s165 + $0x70] sm:$0xff]
      %v250 = vld [vmem:[%s165 + $0x78] sm:$0xff]
      %v251 = vld [vmem:[%s165 + $0x80] sm:$0xff]
      %v252 = vld [vmem:[%s165 + $0x88] sm:$0xff]
      %v253 = vld [vmem:[%s165 + $0x90] sm:$0xff]
      %v254 = vld [vmem:[%s165 + $0x98] sm:$0xff]
      %v255 = vld [vmem:[%s165 + $0xa0] sm:$0xff]
      %v256 = vld [vmem:[%s165 + $0xa8] sm:$0xff]
      %v257 = vld [vmem:[%s165 + $0xb0] sm:$0xff]
      %v258 = vld [vmem:[%s165 + $0xb8] sm:$0xff]
      %v259 = vld [vmem:[%s165 + $0xc0] sm:$0xff]
      %v260 = vld [vmem:[%s165 + $0xc8] sm:$0xff]
      %v261 = vld [vmem:[%s165 + $0xd0] sm:$0xff]
      %v262 = vld [vmem:[%s165 + $0xd8] sm:$0xff]
      %v263 = vld [vmem:[%s165 + $0xe0] sm:$0xff]
      %v264 = vld [vmem:[%s165 + $0xe8] sm:$0xff]
      %v265 = vld [vmem:[%s165 + $0xf0] sm:$0xff]
      %v266 = vld [vmem:[%s165 + $0xf8] sm:$0xff]
      %v267 = vld [vmem:[%s165 + $0x100] sm:$0xff]
      %v268 = vld [vmem:[%s165 + $0x108] sm:$0xff]
      %v269 = vld [vmem:[%s165 + $0x110] sm:$0xff]
      %v270 = vld [vmem:[%s165 + $0x118] sm:$0xff]
      %v271 = vld [vmem:[%s165 + $0x120] sm:$0xff]
      %v272 = vld [vmem:[%s165 + $0x128] sm:$0xff]
      %v273 = vld [vmem:[%s165 + $0x130] sm:$0xff]
      %v274 = vld [vmem:[%s165 + $0x138] sm:$0xff]
      %v275 = vld [vmem:[%s165 + $0x140] sm:$0xff]
      %v276 = vld [vmem:[%s165 + $0x148] sm:$0xff]
      %v277 = vld [vmem:[%s165 + $0x150] sm:$0xff]
      %v278 = vld [vmem:[%s165 + $0x158] sm:$0xff]
      %v279 = vld [vmem:[%s165 + $0x160] sm:$0xff]
      %v280 = vld [vmem:[%s165 + $0x168] sm:$0xff]
      %v281 = vld [vmem:[%s165 + $0x170] sm:$0xff]
      %v282 = vld [vmem:[%s165 + $0x178] sm:$0xff]
      %v283 = vld [vmem:[%s165 + $0x180] sm:$0xff]
      %v284 = vld [vmem:[%s165 + $0x188] sm:$0xff]
      %v285 = vld [vmem:[%s165 + $0x190] sm:$0xff]
      %v286 = vld [vmem:[%s165 + $0x198] sm:$0xff]
      %v287 = vld [vmem:[%s165 + $0x1a0] sm:$0xff]
      %v288 = vld [vmem:[%s165 + $0x1a8] sm:$0xff]
      %v289 = vld [vmem:[%s165 + $0x1b0] sm:$0xff]
      %v290 = vld [vmem:[%s165 + $0x1b8] sm:$0xff]
      %v291 = vld [vmem:[%s165 + $0x1c0] sm:$0xff]
      %v292 = vld [vmem:[%s165 + $0x1c8] sm:$0xff]
      %v293 = vld [vmem:[%s165 + $0x1d0] sm:$0xff]
      %v294 = vld [vmem:[%s165 + $0x1d8] sm:$0xff]
      %v295 = vld [vmem:[%s165 + $0x1e0] sm:$0xff]
      %v296 = vld [vmem:[%s165 + $0x1e8] sm:$0xff]
      %v297 = vld [vmem:[%s165 + $0x1f0] sm:$0xff]
      %v298 = vld [vmem:[%s165 + $0x1f8] sm:$0xff]
      %v299 = vld [vmem:[%s165 + $0x200] sm:$0xff]
      %v300 = vld [vmem:[%s165 + $0x208] sm:$0xff]
      %v301 = vld [vmem:[%s165 + $0x210] sm:$0xff]
      %v302 = vld [vmem:[%s165 + $0x218] sm:$0xff]
      %v303 = vld [vmem:[%s165 + $0x220] sm:$0xff]
      %v304 = vld [vmem:[%s165 + $0x228] sm:$0xff]
      %v305 = vld [vmem:[%s165 + $0x230] sm:$0xff]
      %v306 = vld [vmem:[%s165 + $0x238] sm:$0xff]
      %v307 = vld [vmem:[%s165 + $0x240] sm:$0xff]
      %v308 = vld [vmem:[%s165 + $0x248] sm:$0xff]
      %v309 = vld [vmem:[%s165 + $0x250] sm:$0xff]
      %v310 = vld [vmem:[%s165 + $0x258] sm:$0xff]
      %v311 = vld [vmem:[%s165 + $0x260] sm:$0xff]
      %v312 = vld [vmem:[%s165 + $0x268] sm:$0xff]
      %v313 = vld [vmem:[%s165 + $0x270] sm:$0xff]
      %v314 = vld [vmem:[%s165 + $0x278] sm:$0xff]
      %v315 = vld [vmem:[%s165 + $0x280] sm:$0xff]
      %v316 = vld [vmem:[%s165 + $0x288] sm:$0xff]
      %v317 = vld [vmem:[%s165 + $0x290] sm:$0xff]
      %v318 = vld [vmem:[%s165 + $0x298] sm:$0xff]
      %v319 = vld [vmem:[%s165 + $0x2a0] sm:$0xff]
      %v320 = vld [vmem:[%s165 + $0x2a8] sm:$0xff]
      %v321 = vld [vmem:[%s165 + $0x2b0] sm:$0xff]
      %v322 = vld [vmem:[%s165 + $0x2b8] sm:$0xff]
      %v323 = vld [vmem:[%s165 + $0x2c0] sm:$0xff]
      %v324 = vld [vmem:[%s165 + $0x2c8] sm:$0xff]
      %v325 = vld [vmem:[%s165 + $0x2d0] sm:$0xff]
      %v326 = vld [vmem:[%s165 + $0x2d8] sm:$0xff]
      %v327 = vld [vmem:[%s165 + $0x2e0] sm:$0xff]
      %v328 = vld [vmem:[%s165 + $0x2e8] sm:$0xff]
      %v329 = vld [vmem:[%s165 + $0x2f0] sm:$0xff]
      %v330 = vld [vmem:[%s165 + $0x2f8] sm:$0xff]
      %v331 = vld [vmem:[%s165 + $0x300] sm:$0xff]
      %v332 = vld [vmem:[%s165 + $0x308] sm:$0xff]
      %v333 = vld [vmem:[%s165 + $0x310] sm:$0xff]
      %v334 = vld [vmem:[%s165 + $0x318] sm:$0xff]
      %v335 = vld [vmem:[%s165 + $0x320] sm:$0xff]
      %v336 = vld [vmem:[%s165 + $0x328] sm:$0xff]
      %v337 = vld [vmem:[%s165 + $0x330] sm:$0xff]
      %v338 = vld [vmem:[%s165 + $0x338] sm:$0xff]
      %v339 = vld [vmem:[%s165 + $0x340] sm:$0xff]
      %v340 = vld [vmem:[%s165 + $0x348] sm:$0xff]
      %v341 = vld [vmem:[%s165 + $0x350] sm:$0xff]
      %v342 = vld [vmem:[%s165 + $0x358] sm:$0xff]
      %v343 = vld [vmem:[%s165 + $0x360] sm:$0xff]
      %v344 = vld [vmem:[%s165 + $0x368] sm:$0xff]
      %v345 = vld [vmem:[%s165 + $0x370] sm:$0xff]
      %v346 = vld [vmem:[%s165 + $0x378] sm:$0xff]
      %v347 = vld [vmem:[%s165 + $0x380] sm:$0xff]
      %v348 = vld [vmem:[%s165 + $0x388] sm:$0xff]
      %v349 = vld [vmem:[%s165 + $0x390] sm:$0xff]
      %v350 = vld [vmem:[%s165 + $0x398] sm:$0xff]
      %v351 = vld [vmem:[%s165 + $0x3a0] sm:$0xff]
      %v352 = vld [vmem:[%s165 + $0x3a8] sm:$0xff]
      %v353 = vld [vmem:[%s165 + $0x3b0] sm:$0xff]
      %v354 = vld [vmem:[%s165 + $0x3b8] sm:$0xff]
      %v355 = vld [vmem:[%s2] sm:$0xff]
      %v356 = vld [vmem:[%s2 + $0x8] sm:$0xff]
      %v357 = vld [vmem:[%s2 + $0x10] sm:$0xff]
      %v358 = vld [vmem:[%s2 + $0x18] sm:$0xff]
      %v359 = vld [vmem:[%s2 + $0x20] sm:$0xff]
      %v360 = vld [vmem:[%s2 + $0x28] sm:$0xff]
      %v361 = vld [vmem:[%s2 + $0x30] sm:$0xff]
      %v362 = vld [vmem:[%s2 + $0x38] sm:$0xff]
      %364 = vset.pattern.permute.xlu0 0
      %365 = vperm.xlu0 %364, %v355
      %v366 = vpop.permute.xlu0 %365
      %369 = vset.pattern.permute.xlu0 0
      %370 = vperm.xlu0 %369, %v356
      %v371 = vpop.permute.xlu0 %370
      %374 = vset.pattern.permute.xlu0 0
      %375 = vperm.xlu0 %374, %v357
      %v376 = vpop.permute.xlu0 %375
      %379 = vset.pattern.permute.xlu0 0
      %380 = vperm.xlu0 %379, %v358
      %v381 = vpop.permute.xlu0 %380
      %384 = vset.pattern.permute.xlu0 0
      %385 = vperm.xlu0 %384, %v359
      %v386 = vpop.permute.xlu0 %385
      %389 = vset.pattern.permute.xlu0 0
      %390 = vperm.xlu0 %389, %v360
      %v391 = vpop.permute.xlu0 %390
      %394 = vset.pattern.permute.xlu0 0
      %395 = vperm.xlu0 %394, %v361
      %v396 = vpop.permute.xlu0 %395
      %399 = vset.pattern.permute.xlu0 0
      %400 = vperm.xlu0 %399, %v362
      %v401 = vpop.permute.xlu0 %400
      %vm403 = vcmask 523264
      %v405 = vsel %vm403, %v178, 0
      %v408 = vsel %vm403, %v186, 0
      %v411 = vsel %vm403, %v194, 0
      %v414 = vsel %vm403, %v202, 0
      %v417 = vsel %vm403, %v210, 0
      %v420 = vsel %vm403, %v218, 0
      %v423 = vsel %vm403, %v226, 0
      %v426 = vsel %vm403, %v234, 0
      %428 = vmatprep.subr.mxu0 0.0
      %429 = vmatpush1.msra.mxu0 %v235
      %430 = vmatprep.subr.mxu0 0.0
      %431 = vmatpush1.msra.mxu0 %v236
      %432 = vmatprep.subr.mxu0 0.0
      %433 = vmatpush1.msra.mxu0 %v237
      %434 = vmatprep.subr.mxu0 0.0
      %435 = vmatpush1.msra.mxu0 %v238
      %436 = vmatprep.subr.mxu0 0.0
      %437 = vmatpush1.msra.mxu0 %v239
      %438 = vmatprep.subr.mxu0 0.0
      %439 = vmatpush1.msra.mxu0 %v240
      %440 = vmatprep.subr.mxu0 0.0
      %441 = vmatpush1.msra.mxu0 %v241
      %442 = vmatprep.subr.mxu0 0.0
      %443 = vmatpush1.msra.mxu0 %v242
      %444 = vmatprep.subr.mxu0 0.0
      %445 = vmatpush1.msra.mxu0 %v243
      %446 = vmatprep.subr.mxu0 0.0
      %447 = vmatpush1.msra.mxu0 %v244
      %448 = vmatprep.subr.mxu0 0.0
      %449 = vmatpush1.msra.mxu0 %v245
      %450 = vmatprep.subr.mxu0 0.0
      %451 = vmatpush1.msra.mxu0 %v246
      %452 = vmatprep.subr.mxu0 0.0
      %453 = vmatpush1.msra.mxu0 %v247
      %454 = vmatprep.subr.mxu0 0.0
      %455 = vmatpush1.msra.mxu0 %v248
      %456 = vmatprep.subr.mxu0 0.0
      %457 = vmatpush1.msra.mxu0 %v249
      %458 = vmatprep.subr.mxu0 0.0
      %459 = vmatpush1.msra.mxu0 %v250
      %460 = vmatprep.subr.mxu0 0.0
      %461 = vmatpush1.msra.mxu0 %v251
      %462 = vmatprep.subr.mxu0 0.0
      %463 = vmatpush1.msra.mxu0 %v252
      %464 = vmatprep.subr.mxu0 0.0
      %465 = vmatpush1.msra.mxu0 %v253
      %466 = vmatprep.subr.mxu0 0.0
      %467 = vmatpush1.msra.mxu0 %v254
      %468 = vmatprep.subr.mxu0 0.0
      %469 = vmatpush1.msra.mxu0 %v255
      %470 = vmatprep.subr.mxu0 0.0
      %471 = vmatpush1.msra.mxu0 %v256
      %472 = vmatprep.subr.mxu0 0.0
      %473 = vmatpush1.msra.mxu0 %v257
      %474 = vmatprep.subr.mxu0 0.0
      %475 = vmatpush1.msra.mxu0 %v258
      %476 = vmatprep.subr.mxu0 0.0
      %477 = vmatpush1.msra.mxu0 %v259
      %478 = vmatprep.subr.mxu0 0.0
      %479 = vmatpush1.msra.mxu0 %v260
      %480 = vmatprep.subr.mxu0 0.0
      %481 = vmatpush1.msra.mxu0 %v261
      %482 = vmatprep.subr.mxu0 0.0
      %483 = vmatpush1.msra.mxu0 %v262
      %484 = vmatprep.subr.mxu0 0.0
      %485 = vmatpush1.msra.mxu0 %v263
      %486 = vmatprep.subr.mxu0 0.0
      %487 = vmatpush1.msra.mxu0 %v264
      %488 = vmatprep.subr.mxu0 0.0
      %489 = vmatpush1.msra.mxu0 %v265
      %490 = vmatprep.subr.mxu0 0.0
      %491 = vmatpush1.msra.mxu0 %v266
      %492 = vmatprep.mubr.f32.mxu0 %v172
      %493 = vmatmul.mubr.f32.gmra.mrb[0].mxu0 %v171
      %v494 = vpop.f32.mrb[0].mxu0
      %v495 = vadd.f32 %v366, %v494
      %v496 = vpop.f32.mrb[0].mxu0
      %497 = vmatprep.mubr.f32.mxu0 %v180
      %498 = vmatmul.mubr.f32.gmra.mrb[0].mxu0 %v179
      %v499 = vpop.f32.mrb[0].mxu0
      %v500 = vadd.f32 %v371, %v499
      %v501 = vpop.f32.mrb[0].mxu0
      %502 = vmatprep.mubr.f32.mxu0 %v188
      %503 = vmatmul.mubr.f32.gmra.mrb[0].mxu0 %v187
      %v504 = vpop.f32.mrb[0].mxu0
      %v505 = vadd.f32 %v376, %v504
      %v506 = vpop.f32.mrb[0].mxu0
      %507 = vmatprep.mubr.f32.mxu0 %v196
      %508 = vmatmul.mubr.f32.gmra.mrb[0].mxu0 %v195
      %v509 = vpop.f32.mrb[0].mxu0
      %v510 = vadd.f32 %v381, %v509
      %v511 = vpop.f32.mrb[0].mxu0
      %512 = vmatprep.mubr.f32.mxu0 %v204
      %513 = vmatmul.mubr.f32.gmra.mrb[0].mxu0 %v203
      %v514 = vpop.f32.mrb[0].mxu0
      %v515 = vadd.f32 %v386, %v514
      %v516 = vpop.f32.mrb[0].mxu0
      %517 = vmatprep.mubr.f32.mxu0 %v212
      %518 = vmatmul.mubr.f32.gmra.mrb[0].mxu0 %v211
      %v519 = vpop.f32.mrb[0].mxu0
      %v520 = vadd.f32 %v391, %v519
      %v521 = vpop.f32.mrb[0].mxu0
      %522 = vmatprep.mubr.f32.mxu0 %v220
      %523 = vmatmul.mubr.f32.gmra.mrb[0].mxu0 %v219
      %v524 = vpop.f32.mrb[0].mxu0
      %v525 = vadd.f32 %v396, %v524
      %v526 = vpop.f32.mrb[0].mxu0
      %527 = vmatprep.mubr.f32.mxu0 %v228
      %528 = vmatmul.mubr.f32.gmra.mrb[0].mxu0 %v227
      %v529 = vpop.f32.mrb[0].mxu0
      %v530 = vadd.f32 %v401, %v529
      %v531 = vpop.f32.mrb[0].mxu0
      %532 = vdwg.mxu0
      %533 = vmatprep.subr.mxu0 0.0
      %534 = vmatpush1.msra.mxu0 %v267
      %535 = vmatprep.subr.mxu0 0.0
      %536 = vmatpush1.msra.mxu0 %v268
      %537 = vmatprep.subr.mxu0 0.0
      %538 = vmatpush1.msra.mxu0 %v269
      %539 = vmatprep.subr.mxu0 0.0
      %540 = vmatpush1.msra.mxu0 %v270
      %541 = vmatprep.subr.mxu0 0.0
      %542 = vmatpush1.msra.mxu0 %v271
      %543 = vmatprep.subr.mxu0 0.0
      %544 = vmatpush1.msra.mxu0 %v272
      %545 = vmatprep.subr.mxu0 0.0
      %546 = vmatpush1.msra.mxu0 %v273
      %547 = vmatprep.subr.mxu0 0.0
      %548 = vmatpush1.msra.mxu0 %v274
      %549 = vmatprep.subr.mxu0 0.0
      %550 = vmatpush1.msra.mxu0 %v275
      %551 = vmatprep.subr.mxu0 0.0
      %552 = vmatpush1.msra.mxu0 %v276
      %553 = vmatprep.subr.mxu0 0.0
      %554 = vmatpush1.msra.mxu0 %v277
      %555 = vmatprep.subr.mxu0 0.0
      %556 = vmatpush1.msra.mxu0 %v278
      %557 = vmatprep.subr.mxu0 0.0
      %558 = vmatpush1.msra.mxu0 %v279
      %559 = vmatprep.subr.mxu0 0.0
      %560 = vmatpush1.msra.mxu0 %v280
      %561 = vmatprep.subr.mxu0 0.0
      %562 = vmatpush1.msra.mxu0 %v281
      %563 = vmatprep.subr.mxu0 0.0
      %564 = vmatpush1.msra.mxu0 %v282
      %565 = vmatprep.subr.mxu0 0.0
      %566 = vmatpush1.msra.mxu0 %v283
      %567 = vmatprep.subr.mxu0 0.0
      %568 = vmatpush1.msra.mxu0 %v284
      %569 = vmatprep.subr.mxu0 0.0
      %570 = vmatpush1.msra.mxu0 %v285
      %571 = vmatprep.subr.mxu0 0.0
      %572 = vmatpush1.msra.mxu0 %v286
      %573 = vmatprep.subr.mxu0 0.0
      %574 = vmatpush1.msra.mxu0 %v287
      %575 = vmatprep.subr.mxu0 0.0
      %576 = vmatpush1.msra.mxu0 %v288
      %577 = vmatprep.subr.mxu0 0.0
      %578 = vmatpush1.msra.mxu0 %v289
      %579 = vmatprep.subr.mxu0 0.0
      %580 = vmatpush1.msra.mxu0 %v290
      %581 = vmatprep.subr.mxu0 0.0
      %582 = vmatpush1.msra.mxu0 %v291
      %583 = vmatprep.subr.mxu0 0.0
      %584 = vmatpush1.msra.mxu0 %v292
      %585 = vmatprep.subr.mxu0 0.0
      %586 = vmatpush1.msra.mxu0 %v293
      %587 = vmatprep.subr.mxu0 0.0
      %588 = vmatpush1.msra.mxu0 %v294
      %589 = vmatprep.subr.mxu0 0.0
      %590 = vmatpush1.msra.mxu0 %v295
      %591 = vmatprep.subr.mxu0 0.0
      %592 = vmatpush1.msra.mxu0 %v296
      %593 = vmatprep.subr.mxu0 0.0
      %594 = vmatpush1.msra.mxu0 %v297
      %595 = vmatprep.subr.mxu0 0.0
      %596 = vmatpush1.msra.mxu0 %v298
      %597 = vmatprep.mubr.f32.mxu0 %v174
      %598 = vmatmul.mubr.f32.gmra.mrb[0].mxu0 %v173
      %v599 = vpop.f32.mrb[0].mxu0
      %v600 = vadd.f32 %v495, %v599
      %v601 = vpop.f32.mrb[0].mxu0
      %602 = vmatprep.mubr.f32.mxu0 %v182
      %603 = vmatmul.mubr.f32.gmra.mrb[0].mxu0 %v181
      %v604 = vpop.f32.mrb[0].mxu0
      %v605 = vadd.f32 %v500, %v604
      %v606 = vpop.f32.mrb[0].mxu0
      %607 = vmatprep.mubr.f32.mxu0 %v190
      %608 = vmatmul.mubr.f32.gmra.mrb[0].mxu0 %v189
      %v609 = vpop.f32.mrb[0].mxu0
      %v610 = vadd.f32 %v505, %v609
      %v611 = vpop.f32.mrb[0].mxu0
      %612 = vmatprep.mubr.f32.mxu0 %v198
      %613 = vmatmul.mubr.f32.gmra.mrb[0].mxu0 %v197
      %v614 = vpop.f32.mrb[0].mxu0
      %v615 = vadd.f32 %v510, %v614
      %v616 = vpop.f32.mrb[0].mxu0
      %617 = vmatprep.mubr.f32.mxu0 %v206
      %618 = vmatmul.mubr.f32.gmra.mrb[0].mxu0 %v205
      %v619 = vpop.f32.mrb[0].mxu0
      %v620 = vadd.f32 %v515, %v619
      %v621 = vpop.f32.mrb[0].mxu0
      %622 = vmatprep.mubr.f32.mxu0 %v214
      %623 = vmatmul.mubr.f32.gmra.mrb[0].mxu0 %v213
      %v624 = vpop.f32.mrb[0].mxu0
      %v625 = vadd.f32 %v520, %v624
      %v626 = vpop.f32.mrb[0].mxu0
      %627 = vmatprep.mubr.f32.mxu0 %v222
      %628 = vmatmul.mubr.f32.gmra.mrb[0].mxu0 %v221
      %v629 = vpop.f32.mrb[0].mxu0
      %v630 = vadd.f32 %v525, %v629
      %v631 = vpop.f32.mrb[0].mxu0
      %632 = vmatprep.mubr.f32.mxu0 %v230
      %633 = vmatmul.mubr.f32.gmra.mrb[0].mxu0 %v229
      %v634 = vpop.f32.mrb[0].mxu0
      %v635 = vadd.f32 %v530, %v634
      %v636 = vpop.f32.mrb[0].mxu0
      %637 = vdwg.mxu0
      %638 = vmatprep.subr.mxu0 0.0
      %639 = vmatpush1.msra.mxu0 %v299
      %640 = vmatprep.subr.mxu0 0.0
      %641 = vmatpush1.msra.mxu0 %v300
      %642 = vmatprep.subr.mxu0 0.0
      %643 = vmatpush1.msra.mxu0 %v301
      %644 = vmatprep.subr.mxu0 0.0
      %645 = vmatpush1.msra.mxu0 %v302
      %646 = vmatprep.subr.mxu0 0.0
      %647 = vmatpush1.msra.mxu0 %v303
      %648 = vmatprep.subr.mxu0 0.0
      %649 = vmatpush1.msra.mxu0 %v304
      %650 = vmatprep.subr.mxu0 0.0
      %651 = vmatpush1.msra.mxu0 %v305
      %652 = vmatprep.subr.mxu0 0.0
      %653 = vmatpush1.msra.mxu0 %v306
      %654 = vmatprep.subr.mxu0 0.0
      %655 = vmatpush1.msra.mxu0 %v307
      %656 = vmatprep.subr.mxu0 0.0
      %657 = vmatpush1.msra.mxu0 %v308
      %658 = vmatprep.subr.mxu0 0.0
      %659 = vmatpush1.msra.mxu0 %v309
      %660 = vmatprep.subr.mxu0 0.0
      %661 = vmatpush1.msra.mxu0 %v310
      %662 = vmatprep.subr.mxu0 0.0
      %663 = vmatpush1.msra.mxu0 %v311
      %664 = vmatprep.subr.mxu0 0.0
      %665 = vmatpush1.msra.mxu0 %v312
      %666 = vmatprep.subr.mxu0 0.0
      %667 = vmatpush1.msra.mxu0 %v313
      %668 = vmatprep.subr.mxu0 0.0
      %669 = vmatpush1.msra.mxu0 %v314
      %670 = vmatprep.subr.mxu0 0.0
      %671 = vmatpush1.msra.mxu0 %v315
      %672 = vmatprep.subr.mxu0 0.0
      %673 = vmatpush1.msra.mxu0 %v316
      %674 = vmatprep.subr.mxu0 0.0
      %675 = vmatpush1.msra.mxu0 %v317
      %676 = vmatprep.subr.mxu0 0.0
      %677 = vmatpush1.msra.mxu0 %v318
      %678 = vmatprep.subr.mxu0 0.0
      %679 = vmatpush1.msra.mxu0 %v319
      %680 = vmatprep.subr.mxu0 0.0
      %681 = vmatpush1.msra.mxu0 %v320
      %682 = vmatprep.subr.mxu0 0.0
      %683 = vmatpush1.msra.mxu0 %v321
      %684 = vmatprep.subr.mxu0 0.0
      %685 = vmatpush1.msra.mxu0 %v322
      %686 = vmatprep.subr.mxu0 0.0
      %687 = vmatpush1.msra.mxu0 %v323
      %688 = vmatprep.subr.mxu0 0.0
      %689 = vmatpush1.msra.mxu0 %v324
      %690 = vmatprep.subr.mxu0 0.0
      %691 = vmatpush1.msra.mxu0 %v325
      %692 = vmatprep.subr.mxu0 0.0
      %693 = vmatpush1.msra.mxu0 %v326
      %694 = vmatprep.subr.mxu0 0.0
      %695 = vmatpush1.msra.mxu0 %v327
      %696 = vmatprep.subr.mxu0 0.0
      %697 = vmatpush1.msra.mxu0 %v328
      %698 = vmatprep.subr.mxu0 0.0
      %699 = vmatpush1.msra.mxu0 %v329
      %700 = vmatprep.subr.mxu0 0.0
      %701 = vmatpush1.msra.mxu0 %v330
      %702 = vmatprep.mubr.f32.mxu0 %v176
      %703 = vmatmul.mubr.f32.gmra.mrb[0].mxu0 %v175
      %v704 = vpop.f32.mrb[0].mxu0
      %v705 = vadd.f32 %v600, %v704
      %v706 = vpop.f32.mrb[0].mxu0
      %707 = vmatprep.mubr.f32.mxu0 %v184
      %708 = vmatmul.mubr.f32.gmra.mrb[0].mxu0 %v183
      %v709 = vpop.f32.mrb[0].mxu0
      %v710 = vadd.f32 %v605, %v709
      %v711 = vpop.f32.mrb[0].mxu0
      %712 = vmatprep.mubr.f32.mxu0 %v192
      %713 = vmatmul.mubr.f32.gmra.mrb[0].mxu0 %v191
      %v714 = vpop.f32.mrb[0].mxu0
      %v715 = vadd.f32 %v610, %v714
      %v716 = vpop.f32.mrb[0].mxu0
      %717 = vmatprep.mubr.f32.mxu0 %v200
      %718 = vmatmul.mubr.f32.gmra.mrb[0].mxu0 %v199
      %v719 = vpop.f32.mrb[0].mxu0
      %v720 = vadd.f32 %v615, %v719
      %v721 = vpop.f32.mrb[0].mxu0
      %722 = vmatprep.mubr.f32.mxu0 %v208
      %723 = vmatmul.mubr.f32.gmra.mrb[0].mxu0 %v207
      %v724 = vpop.f32.mrb[0].mxu0
      %v725 = vadd.f32 %v620, %v724
      %v726 = vpop.f32.mrb[0].mxu0
      %727 = vmatprep.mubr.f32.mxu0 %v216
      %728 = vmatmul.mubr.f32.gmra.mrb[0].mxu0 %v215
      %v729 = vpop.f32.mrb[0].mxu0
      %v730 = vadd.f32 %v625, %v729
      %v731 = vpop.f32.mrb[0].mxu0
      %732 = vmatprep.mubr.f32.mxu0 %v224
      %733 = vmatmul.mubr.f32.gmra.mrb[0].mxu0 %v223
      %v734 = vpop.f32.mrb[0].mxu0
      %v735 = vadd.f32 %v630, %v734
      %v736 = vpop.f32.mrb[0].mxu0
      %737 = vmatprep.mubr.f32.mxu0 %v232
      %738 = vmatmul.mubr.f32.gmra.mrb[0].mxu0 %v231
      %v739 = vpop.f32.mrb[0].mxu0
      %v740 = vadd.f32 %v635, %v739
      %v741 = vpop.f32.mrb[0].mxu0
      %742 = vdwg.mxu0
      %743 = vmatprep.subr.mxu0 0.0
      %744 = vmatpush1.msra.mxu0 %v331
      %745 = vmatprep.subr.mxu0 0.0
      %746 = vmatpush1.msra.mxu0 %v332
      %747 = vmatprep.subr.mxu0 0.0
      %748 = vmatpush1.msra.mxu0 %v333
      %749 = vmatprep.subr.mxu0 0.0
      %750 = vmatpush1.msra.mxu0 %v334
      %751 = vmatprep.subr.mxu0 0.0
      %752 = vmatpush1.msra.mxu0 %v335
      %753 = vmatprep.subr.mxu0 0.0
      %754 = vmatpush1.msra.mxu0 %v336
      %755 = vmatprep.subr.mxu0 0.0
      %756 = vmatpush1.msra.mxu0 %v337
      %757 = vmatprep.subr.mxu0 0.0
      %758 = vmatpush1.msra.mxu0 %v338
      %759 = vmatprep.subr.mxu0 0.0
      %760 = vmatpush1.msra.mxu0 %v339
      %761 = vmatprep.subr.mxu0 0.0
      %762 = vmatpush1.msra.mxu0 %v340
      %763 = vmatprep.subr.mxu0 0.0
      %764 = vmatpush1.msra.mxu0 %v341
      %765 = vmatprep.subr.mxu0 0.0
      %766 = vmatpush1.msra.mxu0 %v342
      %767 = vmatprep.subr.mxu0 0.0
      %768 = vmatpush1.msra.mxu0 %v343
      %769 = vmatprep.subr.mxu0 0.0
      %770 = vmatpush1.msra.mxu0 %v344
      %771 = vmatprep.subr.mxu0 0.0
      %772 = vmatpush1.msra.mxu0 %v345
      %773 = vmatprep.subr.mxu0 0.0
      %774 = vmatpush1.msra.mxu0 %v346
      %775 = vmatprep.subr.mxu0 0.0
      %776 = vmatpush1.msra.mxu0 %v347
      %777 = vmatprep.subr.mxu0 0.0
      %778 = vmatpush1.msra.mxu0 %v348
      %779 = vmatprep.subr.mxu0 0.0
      %780 = vmatpush1.msra.mxu0 %v349
      %781 = vmatprep.subr.mxu0 0.0
      %782 = vmatpush1.msra.mxu0 %v350
      %783 = vmatprep.subr.mxu0 0.0
      %784 = vmatpush1.msra.mxu0 %v351
      %785 = vmatprep.subr.mxu0 0.0
      %786 = vmatpush1.msra.mxu0 %v352
      %787 = vmatprep.subr.mxu0 0.0
      %788 = vmatpush1.msra.mxu0 %v353
      %789 = vmatprep.subr.mxu0 0.0
      %790 = vmatpush1.msra.mxu0 %v354
      %791 = vmatprep.subr.mxu0 0.0
      %792 = vmatpush1.msra.mxu0 0.0
      %793 = vmatprep.subr.mxu0 0.0
      %794 = vmatpush1.msra.mxu0 0.0
      %795 = vmatprep.subr.mxu0 0.0
      %796 = vmatpush1.msra.mxu0 0.0
      %797 = vmatprep.subr.mxu0 0.0
      %798 = vmatpush1.msra.mxu0 0.0
      %799 = vmatprep.subr.mxu0 0.0
      %800 = vmatpush1.msra.mxu0 0.0
      %801 = vmatprep.subr.mxu0 0.0
      %802 = vmatpush1.msra.mxu0 0.0
      %803 = vmatprep.subr.mxu0 0.0
      %804 = vmatpush1.msra.mxu0 0.0
      %805 = vmatprep.subr.mxu0 0.0
      %806 = vmatpush1.msra.mxu0 0.0
      %807 = vmatprep.mubr.f32.mxu0 %v405
      %808 = vmatmul.mubr.f32.gmra.mrb[0].mxu0 %v177
      %v809 = vpop.f32.mrb[0].mxu0
      %v810 = vadd.f32 %v705, %v809
      %v811 = vpop.f32.mrb[0].mxu0
      %812 = vmatprep.mubr.f32.mxu0 %v408
      %813 = vmatmul.mubr.f32.gmra.mrb[0].mxu0 %v185
      %v814 = vpop.f32.mrb[0].mxu0
      %v815 = vadd.f32 %v710, %v814
      %v816 = vpop.f32.mrb[0].mxu0
      %817 = vmatprep.mubr.f32.mxu0 %v411
      %818 = vmatmul.mubr.f32.gmra.mrb[0].mxu0 %v193
      %v819 = vpop.f32.mrb[0].mxu0
      %v820 = vadd.f32 %v715, %v819
      %v821 = vpop.f32.mrb[0].mxu0
      %822 = vmatprep.mubr.f32.mxu0 %v414
      %823 = vmatmul.mubr.f32.gmra.mrb[0].mxu0 %v201
      %v824 = vpop.f32.mrb[0].mxu0
      %v825 = vadd.f32 %v720, %v824
      %v826 = vpop.f32.mrb[0].mxu0
      %827 = vmatprep.mubr.f32.mxu0 %v417
      %828 = vmatmul.mubr.f32.gmra.mrb[0].mxu0 %v209
      %v829 = vpop.f32.mrb[0].mxu0
      %v830 = vadd.f32 %v725, %v829
      %v831 = vpop.f32.mrb[0].mxu0
      %832 = vmatprep.mubr.f32.mxu0 %v420
      %833 = vmatmul.mubr.f32.gmra.mrb[0].mxu0 %v217
      %v834 = vpop.f32.mrb[0].mxu0
      %v835 = vadd.f32 %v730, %v834
      %v836 = vpop.f32.mrb[0].mxu0
      %837 = vmatprep.mubr.f32.mxu0 %v423
      %838 = vmatmul.mubr.f32.gmra.mrb[0].mxu0 %v225
      %v839 = vpop.f32.mrb[0].mxu0
      %v840 = vadd.f32 %v735, %v839
      %v841 = vpop.f32.mrb[0].mxu0
      %842 = vmatprep.mubr.f32.mxu0 %v426
      %843 = vmatmul.mubr.f32.gmra.mrb[0].mxu0 %v233
      %v844 = vpop.f32.mrb[0].mxu0
      %v845 = vadd.f32 %v740, %v844
      %v846 = vpop.f32.mrb[0].mxu0
      %847 = vdwg.mxu0
      %v848 = vmul.f32 %v810, 0.2
      %v849 = vmul.f32 %v815, 0.2
      %v850 = vmul.f32 %v820, 0.2
      %v851 = vmul.f32 %v825, 0.2
      %v852 = vmul.f32 %v830, 0.2
      %v853 = vmul.f32 %v835, 0.2
      %v854 = vmul.f32 %v840, 0.2
      %v855 = vmul.f32 %v845, 0.2
      %v856 = vmax.f32 %v810, %v848
      %v857 = vmax.f32 %v815, %v849
      %v858 = vmax.f32 %v820, %v850
      %v859 = vmax.f32 %v825, %v851
      %v860 = vmax.f32 %v830, %v852
      %v861 = vmax.f32 %v835, %v853
      %v862 = vmax.f32 %v840, %v854
      %v863 = vmax.f32 %v845, %v855
      %864 = vst [vmem:[%s170] sm:$0xff] %v856
      %865 = vst [vmem:[%s170 + $0x8] sm:$0xff] %v857
      %866 = vst [vmem:[%s170 + $0x10] sm:$0xff] %v858
      %867 = vst [vmem:[%s170 + $0x18] sm:$0xff] %v859
      %868 = vst [vmem:[%s170 + $0x20] sm:$0xff] %v860
      %869 = vst [vmem:[%s170 + $0x28] sm:$0xff] %v861
      %870 = vst [vmem:[%s170 + $0x30] sm:$0xff] %v862
      %871 = vst [vmem:[%s170 + $0x38] sm:$0xff] %v863
      %p872 = scmp.lt.s32.totalorder %s14, 1
      %s873 = scalar_select %p872, %s14, 1
      %s874 = smul.addr %s873, 8
      %s875 = smul.addr %s874, 8
      %s876 = scalar_lea.vmem %s3, %s875
      // Predicated region
      $region33: #{decoder_forward.6} parent=31 // pred_check
        %p877 = pneg %p100
      $region34: #{decoder_forward.6} parent=31 // pred_check_branch
        %879 = sbr.rel (%p877) target = $region36
      $region35: #{decoder_forward.6} parent=31 // pred_region
        _
      $region36: #{decoder_forward.6} parent=31 // pred_fallthru
        _
    $region32: #{decoder_forward.6} parent=5 // pred_fallthru
      _
    %p880 = scmp.le.s32.totalorder 2, %s9
    // Predicated region
    $region37: #{decoder_forward.6} parent=5 // pred_check
      %p881 = pneg %p880
    $region38: #{decoder_forward.6} parent=5 // pred_check_branch
      %883 = sbr.rel (%p881) target = $region40
    $region39: #{decoder_forward.6} parent=5 // pred_region
      %s884 = ssub.s32 %s9, 2
      // Predicated region
      $region41: #{decoder_forward.6} parent=39 // pred_check
        %p885 = pneg %p106
      $region42: #{decoder_forward.6} parent=39 // pred_check_branch
        %887 = sbr.rel (%p885) target = $region44
      $region43: #{decoder_forward.6} parent=39 // pred_region
        %p888 = scmp.lt.s32.totalorder %s15, 1
        %s889 = scalar_select %p888, %s15, 1
        %s890 = smul.addr %s889, 8
        %s891 = smul.addr %s890, 8
        %s892 = scalar_lea.vmem %s3, %s891
      $region44: #{decoder_forward.6} parent=39 // pred_fallthru
        _
    $region40: #{decoder_forward.6} parent=5 // pred_fallthru
      _
  $region6: #{decoder_forward.6} parent=0 // loop_footer
    %s13 = sadd.s32 1, %s9
  $region7: #{decoder_forward.6} parent=0 // loop_footer_branch
    %8 = sbr.rel target = $region3
  $region8: #{decoder_forward.6} parent=0 // loop_exit
    _

// kernel: decoder_forward.7
$region0: #{decoder_forward.7}
  #allocation0 [shape = 'u32[]', space=smem, size = 0x4, offset = 0x4, fixed_abs, tag = 'smem constant byte address 0x4 - core index']
  #allocation1 [shape = 'u32[144,128]{1,0:T(1,128)}', space=vmem, size = 0x12000, scoped, tag = 'internal scratch']
  %s0 = inlined_call_operand.vmem [shape: f32[2,64,256], index: 0, kind: input, shape index: {}]
  %s1 = inlined_call_operand.vmem [shape: f32[128,64], index: 1, kind: input, shape index: {}]
  %s2 = inlined_call_operand.vmem [shape: f32[128,1], index: 2, kind: input, shape index: {}]
  %s3 = inlined_call_operand.vmem [shape: f32[2,128,256], index: 3, kind: output, shape index: {}]
  %s4 = sld [smem:[#allocation0]]
  $region45: #{decoder_forward.7} parent=0
    _
  %s6 = ssub.s32 1, %s4
  %s7 = scalar_select 0, %s6, %s4
  loop: start=0, step=1, limit=4
  $region2: #{decoder_forward.7} parent=0 // loop_pre_header
    _
  $region3: #{decoder_forward.7} parent=0 // loop_header
    %s9 = sphi 0, %s13
    %p10 = scmp.ge.s32.totalorder %s9, 4
    %s19 = sphi 0, %s21
    %s22 = sphi 0, %s19
    %s23 = sphi 0, %s22
    %s39 = sphi 0, %s23
    %s43 = sphi 0, %s43
    %s45 = sphi 0, %s43
    %s46 = sphi 0, %s45
    %s60 = sphi 0, %s46
    %s64 = sphi 0, %s64
    %s66 = sphi 0, %s64
    %s67 = sphi 0, %s66
    %s81 = sphi 0, %s67
    %s87 = sphi 0, %s89
    %s90 = sphi 0, %s87
    %s91 = sphi 0, %s90
    %s107 = sphi 0, %s91
  $region4: #{decoder_forward.7} parent=0 // loop_header_branch
    %12 = sbr.rel (%p10) target = $region8
  $region5: #{decoder_forward.7} parent=0 // loop_body
    %s14 = ssub.s32 %s9, 1
    %s15 = ssub.s32 %s9, 2
    %s16 = sadd.s32 %s9, 1
    %s17 = ssub.s32 %s9, %s16
    %p18 = scmp.eq.s32.totalorder %s17, 0
    %s20 = sadd.s32 %s19, 1
    %s21 = scalar_select %p18, %s19, %s20
    %p24 = pneg %p18
    %p25 = scmp.eq.s32.totalorder %s9, 1
    %p26 = por %p24, %p25
    %p27 = scmp.ne.s32.totalorder %s19, %s22
    %p28 = scmp.eq.s32.totalorder %s9, 0
    %p29 = por %p27, %p28
    %p30 = scmp.ne.s32.totalorder %s19, %s22
    %p31 = scmp.eq.s32.totalorder %s14, 1
    %p32 = por %p30, %p31
    %p33 = scmp.ne.s32.totalorder %s22, %s23
    %p34 = scmp.eq.s32.totalorder %s14, 0
    %p35 = por %p33, %p34
    %p36 = scmp.ne.s32.totalorder %s22, %s23
    %p37 = scmp.eq.s32.totalorder %s15, 1
    %p38 = por %p36, %p37
    %p40 = scmp.ne.s32.totalorder %s23, %s39
    %p41 = scmp.eq.s32.totalorder %s15, 0
    %p42 = por %p40, %p41
    %s44 = sadd.s32 %s43, 1
    %p47 = scmp.eq.s32.totalorder %s9, 1
    %p48 = scmp.ne.s32.totalorder %s43, %s45
    %p49 = scmp.eq.s32.totalorder %s9, 0
    %p50 = por %p48, %p49
    %p51 = scmp.ne.s32.totalorder %s43, %s45
    %p52 = scmp.eq.s32.totalorder %s14, 1
    %p53 = por %p51, %p52
    %p54 = scmp.ne.s32.totalorder %s45, %s46
    %p55 = scmp.eq.s32.totalorder %s14, 0
    %p56 = por %p54, %p55
    %p57 = scmp.ne.s32.totalorder %s45, %s46
    %p58 = scmp.eq.s32.totalorder %s15, 1
    %p59 = por %p57, %p58
    %p61 = scmp.ne.s32.totalorder %s46, %s60
    %p62 = scmp.eq.s32.totalorder %s15, 0
    %p63 = por %p61, %p62
    %s65 = sadd.s32 %s64, 1
    %p68 = scmp.eq.s32.totalorder %s9, 1
    %p69 = scmp.ne.s32.totalorder %s64, %s66
    %p70 = scmp.eq.s32.totalorder %s9, 0
    %p71 = por %p69, %p70
    %p72 = scmp.ne.s32.totalorder %s64, %s66
    %p73 = scmp.eq.s32.totalorder %s14, 1
    %p74 = por %p72, %p73
    %p75 = scmp.ne.s32.totalorder %s66, %s67
    %p76 = scmp.eq.s32.totalorder %s14, 0
    %p77 = por %p75, %p76
    %p78 = scmp.ne.s32.totalorder %s66, %s67
    %p79 = scmp.eq.s32.totalorder %s15, 1
    %p80 = por %p78, %p79
    %p82 = scmp.ne.s32.totalorder %s67, %s81
    %p83 = scmp.eq.s32.totalorder %s15, 0
    %p84 = por %p82, %p83
    %s85 = ssub.s32 %s9, %s16
    %p86 = scmp.eq.s32.totalorder %s85, 0
    %s88 = sadd.s32 %s87, 1
    %s89 = scalar_select %p86, %s87, %s88
    %p92 = pneg %p86
    %p93 = scmp.eq.s32.totalorder %s9, 1
    %p94 = por %p92, %p93
    %p95 = scmp.ne.s32.totalorder %s87, %s90
    %p96 = scmp.eq.s32.totalorder %s9, 0
    %p97 = por %p95, %p96
    %p98 = scmp.ne.s32.totalorder %s87, %s90
    %p99 = scmp.eq.s32.totalorder %s14, 1
    %p100 = por %p98, %p99
    %p101 = scmp.ne.s32.totalorder %s90, %s91
    %p102 = scmp.eq.s32.totalorder %s14, 0
    %p103 = por %p101, %p102
    %p104 = scmp.ne.s32.totalorder %s90, %s91
    %p105 = scmp.eq.s32.totalorder %s15, 1
    %p106 = por %p104, %p105
    %p108 = scmp.ne.s32.totalorder %s91, %s107
    %p109 = scmp.eq.s32.totalorder %s15, 0
    %p110 = por %p108, %p109
    %p111 = scmp.le.s32.totalorder 1, %s9
    %p112 = scmp.lt.s32.totalorder %s9, 3
    %p113 = pnand %p111, %p112
    %p114 = pneg %p113
    // Predicated region
    $region9: #{decoder_forward.7} parent=5 // pred_check
      _
    $region10: #{decoder_forward.7} parent=5 // pred_check_branch
      %116 = sbr.rel (%p113) target = $region12
    $region11: #{decoder_forward.7} parent=5 // pred_region
      %s117 = ssub.s32 %s9, 1
      // Predicated region
      $region13: #{decoder_forward.7} parent=11 // pred_check
        %p118 = pneg %p56
      $region14: #{decoder_forward.7} parent=11 // pred_check_branch
        %120 = sbr.rel (%p118) target = $region16
      $region15: #{decoder_forward.7} parent=11 // pred_region
        _
      $region16: #{decoder_forward.7} parent=11 // pred_fallthru
        _
      // Predicated region
      $region17: #{decoder_forward.7} parent=11 // pred_check
        %p121 = pneg %p77
      $region18: #{decoder_forward.7} parent=11 // pred_check_branch
        %123 = sbr.rel (%p121) target = $region20
      $region19: #{decoder_forward.7} parent=11 // pred_region
        _
      $region20: #{decoder_forward.7} parent=11 // pred_fallthru
        _
    $region12: #{decoder_forward.7} parent=5 // pred_fallthru
      _
    %p124 = scmp.lt.s32.totalorder %s9, 2
    // Predicated region
    $region21: #{decoder_forward.7} parent=5 // pred_check
      %p125 = pneg %p124
    $region22: #{decoder_forward.7} parent=5 // pred_check_branch
      %127 = sbr.rel (%p125) target = $region24
    $region23: #{decoder_forward.7} parent=5 // pred_region
      // Predicated region
      $region25: #{decoder_forward.7} parent=23 // pred_check
        %p128 = pneg %p29
      $region26: #{decoder_forward.7} parent=23 // pred_check_branch
        %130 = sbr.rel (%p128) target = $region28
      $region27: #{decoder_forward.7} parent=23 // pred_region
        %p131 = scmp.lt.s32.totalorder %s9, 1
        %s132 = scalar_select %p131, %s9, 1
        %s133 = smul.addr %s132, 16
        %s134 = smul.addr %s133, 8
        %s135 = scalar_lea.vmem %s0, %s134
      $region28: #{decoder_forward.7} parent=23 // pred_fallthru
        _
    $region24: #{decoder_forward.7} parent=5 // pred_fallthru
      _
    %p136 = scmp.le.s32.totalorder 1, %s9
    %p137 = scmp.lt.s32.totalorder %s9, 3
    %p138 = pnand %p136, %p137
    %p139 = pneg %p138
    // Predicated region
    $region29: #{decoder_forward.7} parent=5 // pred_check
      _
    $region30: #{decoder_forward.7} parent=5 // pred_check_branch
      %141 = sbr.rel (%p138) target = $region32
    $region31: #{decoder_forward.7} parent=5 // pred_region
      %s142 = ssub.s32 %s9, 1
      %p143 = scmp.lt.s32.totalorder %s14, 1
      %s144 = scalar_select %p143, %s14, 1
      %s145 = smul.addr %s144, 16
      %s146 = smul.addr %s145, 8
      %s147 = scalar_lea.vmem %s0, %s146
      %p148 = pneg %p35
      %p149 = pneg %p32
      %p150 = pneg %p56
      %p151 = pneg %p53
      %p152 = pneg %p77
      %p153 = pneg %p74
      %p154 = pneg %p103
      %p155 = pneg %p100
      %p156 = scmp.lt.s32.totalorder %s14, 1
      %s157 = scalar_select %p156, %s14, 1
      %s158 = smul.addr %s157, 32
      %s159 = smul.addr %s158, 8
      %s160 = scalar_lea.vmem %s3, %s159
      %p161 = scmp.lt.s32.totalorder %s14, 1
      %s162 = scalar_select %p161, %s14, 1
      %s163 = smul.addr %s162, 16
      %s164 = smul.addr %s163, 8
      %s165 = scalar_lea.vmem %s0, %s164
      %p166 = scmp.lt.s32.totalorder %s14, 1
      %s167 = scalar_select %p166, %s14, 1
      %s168 = smul.addr %s167, 32
      %s169 = smul.addr %s168, 8
      %s170 = scalar_lea.vmem %s3, %s169
      %v171 = vld [vmem:[%s1] sm:$0xff]
      %v172 = vld [vmem:[%s1 + $0x8] sm:$0xff]
      %v173 = vld [vmem:[%s1 + $0x10] sm:$0xff]
      %v174 = vld [vmem:[%s1 + $0x18] sm:$0xff]
      %v175 = vld [vmem:[%s1 + $0x20] sm:$0xff]
      %v176 = vld [vmem:[%s1 + $0x28] sm:$0xff]
      %v177 = vld [vmem:[%s1 + $0x30] sm:$0xff]
      %v178 = vld [vmem:[%s1 + $0x38] sm:$0xff]
      %v179 = vld [vmem:[%s1 + $0x40] sm:$0xff]
      %v180 = vld [vmem:[%s1 + $0x48] sm:$0xff]
      %v181 = vld [vmem:[%s1 + $0x50] sm:$0xff]
      %v182 = vld [vmem:[%s1 + $0x58] sm:$0xff]
      %v183 = vld [vmem:[%s1 + $0x60] sm:$0xff]
      %v184 = vld [vmem:[%s1 + $0x68] sm:$0xff]
      %v185 = vld [vmem:[%s1 + $0x70] sm:$0xff]
      %v186 = vld [vmem:[%s1 + $0x78] sm:$0xff]
      %v187 = vld [vmem:[%s165] sm:$0xff]
      %v188 = vld [vmem:[%s165 + $0x8] sm:$0xff]
      %v189 = vld [vmem:[%s165 + $0x10] sm:$0xff]
      %v190 = vld [vmem:[%s165 + $0x18] sm:$0xff]
      %v191 = vld [vmem:[%s165 + $0x20] sm:$0xff]
      %v192 = vld [vmem:[%s165 + $0x28] sm:$0xff]
      %v193 = vld [vmem:[%s165 + $0x30] sm:$0xff]
      %v194 = vld [vmem:[%s165 + $0x38] sm:$0xff]
      %v195 = vld [vmem:[%s165 + $0x40] sm:$0xff]
      %v196 = vld [vmem:[%s165 + $0x48] sm:$0xff]
      %v197 = vld [vmem:[%s165 + $0x50] sm:$0xff]
      %v198 = vld [vmem:[%s165 + $0x58] sm:$0xff]
      %v199 = vld [vmem:[%s165 + $0x60] sm:$0xff]
      %v200 = vld [vmem:[%s165 + $0x68] sm:$0xff]
      %v201 = vld [vmem:[%s165 + $0x70] sm:$0xff]
      %v202 = vld [vmem:[%s165 + $0x78] sm:$0xff]
      %v203 = vld [vmem:[%s2] sm:$0xff]
      %v204 = vld [vmem:[%s2 + $0x8] sm:$0xff]
      %v205 = vld [vmem:[%s2 + $0x10] sm:$0xff]
      %v206 = vld [vmem:[%s2 + $0x18] sm:$0xff]
      %v207 = vld [vmem:[%s2 + $0x20] sm:$0xff]
      %v208 = vld [vmem:[%s2 + $0x28] sm:$0xff]
      %v209 = vld [vmem:[%s2 + $0x30] sm:$0xff]
      %v210 = vld [vmem:[%s2 + $0x38] sm:$0xff]
      %v211 = vld [vmem:[%s2 + $0x40] sm:$0xff]
      %v212 = vld [vmem:[%s2 + $0x48] sm:$0xff]
      %v213 = vld [vmem:[%s2 + $0x50] sm:$0xff]
      %v214 = vld [vmem:[%s2 + $0x58] sm:$0xff]
      %v215 = vld [vmem:[%s2 + $0x60] sm:$0xff]
      %v216 = vld [vmem:[%s2 + $0x68] sm:$0xff]
      %v217 = vld [vmem:[%s2 + $0x70] sm:$0xff]
      %v218 = vld [vmem:[%s2 + $0x78] sm:$0xff]
      %220 = vset.pattern.permute.xlu0 0
      %221 = vperm.xlu0 %220, %v203
      %v222 = vpop.permute.xlu0 %221
      %225 = vset.pattern.permute.xlu0 0
      %226 = vperm.xlu0 %225, %v204
      %v227 = vpop.permute.xlu0 %226
      %230 = vset.pattern.permute.xlu0 0
      %231 = vperm.xlu0 %230, %v205
      %v232 = vpop.permute.xlu0 %231
      %235 = vset.pattern.permute.xlu0 0
      %236 = vperm.xlu0 %235, %v206
      %v237 = vpop.permute.xlu0 %236
      %240 = vset.pattern.permute.xlu0 0
      %241 = vperm.xlu0 %240, %v207
      %v242 = vpop.permute.xlu0 %241
      %245 = vset.pattern.permute.xlu0 0
      %246 = vperm.xlu0 %245, %v208
      %v247 = vpop.permute.xlu0 %246
      %250 = vset.pattern.permute.xlu0 0
      %251 = vperm.xlu0 %250, %v209
      %v252 = vpop.permute.xlu0 %251
      %255 = vset.pattern.permute.xlu0 0
      %256 = vperm.xlu0 %255, %v210
      %v257 = vpop.permute.xlu0 %256
      %260 = vset.pattern.permute.xlu0 0
      %261 = vperm.xlu0 %260, %v211
      %v262 = vpop.permute.xlu0 %261
      %265 = vset.pattern.permute.xlu0 0
      %266 = vperm.xlu0 %265, %v212
      %v267 = vpop.permute.xlu0 %266
      %270 = vset.pattern.permute.xlu0 0
      %271 = vperm.xlu0 %270, %v213
      %v272 = vpop.permute.xlu0 %271
      %275 = vset.pattern.permute.xlu0 0
      %276 = vperm.xlu0 %275, %v214
      %v277 = vpop.permute.xlu0 %276
      %280 = vset.pattern.permute.xlu0 0
      %281 = vperm.xlu0 %280, %v215
      %v282 = vpop.permute.xlu0 %281
      %285 = vset.pattern.permute.xlu0 0
      %286 = vperm.xlu0 %285, %v216
      %v287 = vpop.permute.xlu0 %286
      %290 = vset.pattern.permute.xlu0 0
      %291 = vperm.xlu0 %290, %v217
      %v292 = vpop.permute.xlu0 %291
      %295 = vset.pattern.permute.xlu0 0
      %296 = vperm.xlu0 %295, %v218
      %v297 = vpop.permute.xlu0 %296
      %vm299 = vcmask 523264
      %v301 = vsel %vm299, %v171, 0
      %v304 = vsel %vm299, %v172, 0
      %v307 = vsel %vm299, %v173, 0
      %v310 = vsel %vm299, %v174, 0
      %v313 = vsel %vm299, %v175, 0
      %v316 = vsel %vm299, %v176, 0
      %v319 = vsel %vm299, %v177, 0
      %v322 = vsel %vm299, %v178, 0
      %v325 = vsel %vm299, %v179, 0
      %v328 = vsel %vm299, %v180, 0
      %v331 = vsel %vm299, %v181, 0
      %v334 = vsel %vm299, %v182, 0
      %v337 = vsel %vm299, %v183, 0
      %v340 = vsel %vm299, %v184, 0
      %v343 = vsel %vm299, %v185, 0
      %v346 = vsel %vm299, %v186, 0
      %348 = vmatprep.subr.mxu0 %v188
      %349 = vmatpush1.msra.mxu0 %v187
      %350 = vmatprep.subr.mxu0 %v190
      %351 = vmatpush1.msra.mxu0 %v189
      %352 = vmatprep.subr.mxu0 %v192
      %353 = vmatpush1.msra.mxu0 %v191
      %354 = vmatprep.subr.mxu0 %v194
      %355 = vmatpush1.msra.mxu0 %v193
      %356 = vmatprep.subr.mxu0 %v196
      %357 = vmatpush1.msra.mxu0 %v195
      %358 = vmatprep.subr.mxu0 %v198
      %359 = vmatpush1.msra.mxu0 %v197
      %360 = vmatprep.subr.mxu0 %v200
      %361 = vmatpush1.msra.mxu0 %v199
      %362 = vmatprep.subr.mxu0 %v202
      %363 = vmatpush1.msra.mxu0 %v201
      %364 = vmatprep.subr.mxu0 0.0
      %365 = vmatpush1.msra.mxu0 0.0
      %366 = vmatprep.subr.mxu0 0.0
      %367 = vmatpush1.msra.mxu0 0.0
      %368 = vmatprep.subr.mxu0 0.0
      %369 = vmatpush1.msra.mxu0 0.0
      %370 = vmatprep.subr.mxu0 0.0
      %371 = vmatpush1.msra.mxu0 0.0
      %372 = vmatprep.subr.mxu0 0.0
      %373 = vmatpush1.msra.mxu0 0.0
      %374 = vmatprep.subr.mxu0 0.0
      %375 = vmatpush1.msra.mxu0 0.0
      %376 = vmatprep.subr.mxu0 0.0
      %377 = vmatpush1.msra.mxu0 0.0
      %378 = vmatprep.subr.mxu0 0.0
      %379 = vmatpush1.msra.mxu0 0.0
      %380 = vmatprep.subr.mxu0 0.0
      %381 = vmatpush1.msra.mxu0 0.0
      %382 = vmatprep.subr.mxu0 0.0
      %383 = vmatpush1.msra.mxu0 0.0
      %384 = vmatprep.subr.mxu0 0.0
      %385 = vmatpush1.msra.mxu0 0.0
      %386 = vmatprep.subr.mxu0 0.0
      %387 = vmatpush1.msra.mxu0 0.0
      %388 = vmatprep.subr.mxu0 0.0
      %389 = vmatpush1.msra.mxu0 0.0
      %390 = vmatprep.subr.mxu0 0.0
      %391 = vmatpush1.msra.mxu0 0.0
      %392 = vmatprep.subr.mxu0 0.0
      %393 = vmatpush1.msra.mxu0 0.0
      %394 = vmatprep.subr.mxu0 0.0
      %395 = vmatpush1.msra.mxu0 0.0
      %396 = vmatprep.subr.mxu0 0.0
      %397 = vmatpush1.msra.mxu0 0.0
      %398 = vmatprep.subr.mxu0 0.0
      %399 = vmatpush1.msra.mxu0 0.0
      %400 = vmatprep.subr.mxu0 0.0
      %401 = vmatpush1.msra.mxu0 0.0
      %402 = vmatprep.subr.mxu0 0.0
      %403 = vmatpush1.msra.mxu0 0.0
      %404 = vmatprep.subr.mxu0 0.0
      %405 = vmatpush1.msra.mxu0 0.0
      %406 = vmatprep.subr.mxu0 0.0
      %407 = vmatpush1.msra.mxu0 0.0
      %408 = vmatprep.subr.mxu0 0.0
      %409 = vmatpush1.msra.mxu0 0.0
      %410 = vmatprep.subr.mxu0 0.0
      %411 = vmatpush1.msra.mxu0 0.0
      %412 = vmatprep.mubr.f32.mxu0 0.0
      %413 = vmatmul.mubr.f32.gmra.mrb[0].mxu0 %v301
      %v414 = vpop.f32.mrb[0].mxu0
      %v415 = vadd.f32 %v222, %v414
      %v416 = vpop.f32.mrb[0].mxu0
      %v417 = vadd.f32 %v222, %v416
      %418 = vmatprep.mubr.f32.mxu0 0.0
      %419 = vmatmul.mubr.f32.gmra.mrb[0].mxu0 %v304
      %v420 = vpop.f32.mrb[0].mxu0
      %v421 = vadd.f32 %v227, %v420
      %v422 = vpop.f32.mrb[0].mxu0
      %v423 = vadd.f32 %v227, %v422
      %424 = vmatprep.mubr.f32.mxu0 0.0
      %425 = vmatmul.mubr.f32.gmra.mrb[0].mxu0 %v307
      %v426 = vpop.f32.mrb[0].mxu0
      %v427 = vadd.f32 %v232, %v426
      %v428 = vpop.f32.mrb[0].mxu0
      %v429 = vadd.f32 %v232, %v428
      %430 = vmatprep.mubr.f32.mxu0 0.0
      %431 = vmatmul.mubr.f32.gmra.mrb[0].mxu0 %v310
      %v432 = vpop.f32.mrb[0].mxu0
      %v433 = vadd.f32 %v237, %v432
      %v434 = vpop.f32.mrb[0].mxu0
      %v435 = vadd.f32 %v237, %v434
      %436 = vmatprep.mubr.f32.mxu0 0.0
      %437 = vmatmul.mubr.f32.gmra.mrb[0].mxu0 %v313
      %v438 = vpop.f32.mrb[0].mxu0
      %v439 = vadd.f32 %v242, %v438
      %v440 = vpop.f32.mrb[0].mxu0
      %v441 = vadd.f32 %v242, %v440
      %442 = vmatprep.mubr.f32.mxu0 0.0
      %443 = vmatmul.mubr.f32.gmra.mrb[0].mxu0 %v316
      %v444 = vpop.f32.mrb[0].mxu0
      %v445 = vadd.f32 %v247, %v444
      %v446 = vpop.f32.mrb[0].mxu0
      %v447 = vadd.f32 %v247, %v446
      %448 = vmatprep.mubr.f32.mxu0 0.0
      %449 = vmatmul.mubr.f32.gmra.mrb[0].mxu0 %v319
      %v450 = vpop.f32.mrb[0].mxu0
      %v451 = vadd.f32 %v252, %v450
      %v452 = vpop.f32.mrb[0].mxu0
      %v453 = vadd.f32 %v252, %v452
      %454 = vmatprep.mubr.f32.mxu0 0.0
      %455 = vmatmul.mubr.f32.gmra.mrb[0].mxu0 %v322
      %v456 = vpop.f32.mrb[0].mxu0
      %v457 = vadd.f32 %v257, %v456
      %v458 = vpop.f32.mrb[0].mxu0
      %v459 = vadd.f32 %v257, %v458
      %460 = vmatprep.mubr.f32.mxu0 0.0
      %461 = vmatmul.mubr.f32.gmra.mrb[0].mxu0 %v325
      %v462 = vpop.f32.mrb[0].mxu0
      %v463 = vadd.f32 %v262, %v462
      %v464 = vpop.f32.mrb[0].mxu0
      %v465 = vadd.f32 %v262, %v464
      %466 = vmatprep.mubr.f32.mxu0 0.0
      %467 = vmatmul.mubr.f32.gmra.mrb[0].mxu0 %v328
      %v468 = vpop.f32.mrb[0].mxu0
      %v469 = vadd.f32 %v267, %v468
      %v470 = vpop.f32.mrb[0].mxu0
      %v471 = vadd.f32 %v267, %v470
      %472 = vmatprep.mubr.f32.mxu0 0.0
      %473 = vmatmul.mubr.f32.gmra.mrb[0].mxu0 %v331
      %v474 = vpop.f32.mrb[0].mxu0
      %v475 = vadd.f32 %v272, %v474
      %v476 = vpop.f32.mrb[0].mxu0
      %v477 = vadd.f32 %v272, %v476
      %478 = vmatprep.mubr.f32.mxu0 0.0
      %479 = vmatmul.mubr.f32.gmra.mrb[0].mxu0 %v334
      %v480 = vpop.f32.mrb[0].mxu0
      %v481 = vadd.f32 %v277, %v480
      %v482 = vpop.f32.mrb[0].mxu0
      %v483 = vadd.f32 %v277, %v482
      %484 = vmatprep.mubr.f32.mxu0 0.0
      %485 = vmatmul.mubr.f32.gmra.mrb[0].mxu0 %v337
      %v486 = vpop.f32.mrb[0].mxu0
      %v487 = vadd.f32 %v282, %v486
      %v488 = vpop.f32.mrb[0].mxu0
      %v489 = vadd.f32 %v282, %v488
      %490 = vmatprep.mubr.f32.mxu0 0.0
      %491 = vmatmul.mubr.f32.gmra.mrb[0].mxu0 %v340
      %v492 = vpop.f32.mrb[0].mxu0
      %v493 = vadd.f32 %v287, %v492
      %v494 = vpop.f32.mrb[0].mxu0
      %v495 = vadd.f32 %v287, %v494
      %496 = vmatprep.mubr.f32.mxu0 0.0
      %497 = vmatmul.mubr.f32.gmra.mrb[0].mxu0 %v343
      %v498 = vpop.f32.mrb[0].mxu0
      %v499 = vadd.f32 %v292, %v498
      %v500 = vpop.f32.mrb[0].mxu0
      %v501 = vadd.f32 %v292, %v500
      %502 = vmatprep.mubr.f32.mxu0 0.0
      %503 = vmatmul.mubr.f32.gmra.mrb[0].mxu0 %v346
      %v504 = vpop.f32.mrb[0].mxu0
      %v505 = vadd.f32 %v297, %v504
      %v506 = vpop.f32.mrb[0].mxu0
      %v507 = vadd.f32 %v297, %v506
      %508 = vdwg.mxu0
      %v509 = vmul.f32 %v415, 0.2
      %v510 = vmul.f32 %v417, 0.2
      %v511 = vmul.f32 %v421, 0.2
      %v512 = vmul.f32 %v423, 0.2
      %v513 = vmul.f32 %v427, 0.2
      %v514 = vmul.f32 %v429, 0.2
      %v515 = vmul.f32 %v433, 0.2
      %v516 = vmul.f32 %v435, 0.2
      %v517 = vmul.f32 %v439, 0.2
      %v518 = vmul.f32 %v441, 0.2
      %v519 = vmul.f32 %v445, 0.2
      %v520 = vmul.f32 %v447, 0.2
      %v521 = vmul.f32 %v451, 0.2
      %v522 = vmul.f32 %v453, 0.2
      %v523 = vmul.f32 %v457, 0.2
      %v524 = vmul.f32 %v459, 0.2
      %v525 = vmul.f32 %v463, 0.2
      %v526 = vmul.f32 %v465, 0.2
      %v527 = vmul.f32 %v469, 0.2
      %v528 = vmul.f32 %v471, 0.2
      %v529 = vmul.f32 %v475, 0.2
      %v530 = vmul.f32 %v477, 0.2
      %v531 = vmul.f32 %v481, 0.2
      %v532 = vmul.f32 %v483, 0.2
      %v533 = vmul.f32 %v487, 0.2
      %v534 = vmul.f32 %v489, 0.2
      %v535 = vmul.f32 %v493, 0.2
      %v536 = vmul.f32 %v495, 0.2
      %v537 = vmul.f32 %v499, 0.2
      %v538 = vmul.f32 %v501, 0.2
      %v539 = vmul.f32 %v505, 0.2
      %v540 = vmul.f32 %v507, 0.2
      %v541 = vmax.f32 %v415, %v509
      %v542 = vmax.f32 %v417, %v510
      %v543 = vmax.f32 %v421, %v511
      %v544 = vmax.f32 %v423, %v512
      %v545 = vmax.f32 %v427, %v513
      %v546 = vmax.f32 %v429, %v514
      %v547 = vmax.f32 %v433, %v515
      %v548 = vmax.f32 %v435, %v516
      %v549 = vmax.f32 %v439, %v517
      %v550 = vmax.f32 %v441, %v518
      %v551 = vmax.f32 %v445, %v519
      %v552 = vmax.f32 %v447, %v520
      %v553 = vmax.f32 %v451, %v521
      %v554 = vmax.f32 %v453, %v522
      %v555 = vmax.f32 %v457, %v523
      %v556 = vmax.f32 %v459, %v524
      %v557 = vmax.f32 %v463, %v525
      %v558 = vmax.f32 %v465, %v526
      %v559 = vmax.f32 %v469, %v527
      %v560 = vmax.f32 %v471, %v528
      %v561 = vmax.f32 %v475, %v529
      %v562 = vmax.f32 %v477, %v530
      %v563 = vmax.f32 %v481, %v531
      %v564 = vmax.f32 %v483, %v532
      %v565 = vmax.f32 %v487, %v533
      %v566 = vmax.f32 %v489, %v534
      %v567 = vmax.f32 %v493, %v535
      %v568 = vmax.f32 %v495, %v536
      %v569 = vmax.f32 %v499, %v537
      %v570 = vmax.f32 %v501, %v538
      %v571 = vmax.f32 %v505, %v539
      %v572 = vmax.f32 %v507, %v540
      %573 = vst [vmem:[%s170] sm:$0xff] %v541
      %574 = vst [vmem:[%s170 + $0x8] sm:$0xff] %v542
      %575 = vst [vmem:[%s170 + $0x10] sm:$0xff] %v543
      %576 = vst [vmem:[%s170 + $0x18] sm:$0xff] %v544
      %577 = vst [vmem:[%s170 + $0x20] sm:$0xff] %v545
      %578 = vst [vmem:[%s170 + $0x28] sm:$0xff] %v546
      %579 = vst [vmem:[%s170 + $0x30] sm:$0xff] %v547
      %580 = vst [vmem:[%s170 + $0x38] sm:$0xff] %v548
      %581 = vst [vmem:[%s170 + $0x40] sm:$0xff] %v549
      %582 = vst [vmem:[%s170 + $0x48] sm:$0xff] %v550
      %583 = vst [vmem:[%s170 + $0x50] sm:$0xff] %v551
      %584 = vst [vmem:[%s170 + $0x58] sm:$0xff] %v552
      %585 = vst [vmem:[%s170 + $0x60] sm:$0xff] %v553
      %586 = vst [vmem:[%s170 + $0x68] sm:$0xff] %v554
      %587 = vst [vmem:[%s170 + $0x70] sm:$0xff] %v555
      %588 = vst [vmem:[%s170 + $0x78] sm:$0xff] %v556
      %589 = vst [vmem:[%s170 + $0x80] sm:$0xff] %v557
      %590 = vst [vmem:[%s170 + $0x88] sm:$0xff] %v558
      %591 = vst [vmem:[%s170 + $0x90] sm:$0xff] %v559
      %592 = vst [vmem:[%s170 + $0x98] sm:$0xff] %v560
      %593 = vst [vmem:[%s170 + $0xa0] sm:$0xff] %v561
      %594 = vst [vmem:[%s170 + $0xa8] sm:$0xff] %v562
      %595 = vst [vmem:[%s170 + $0xb0] sm:$0xff] %v563
      %596 = vst [vmem:[%s170 + $0xb8] sm:$0xff] %v564
      %597 = vst [vmem:[%s170 + $0xc0] sm:$0xff] %v565
      %598 = vst [vmem:[%s170 + $0xc8] sm:$0xff] %v566
      %599 = vst [vmem:[%s170 + $0xd0] sm:$0xff] %v567
      %600 = vst [vmem:[%s170 + $0xd8] sm:$0xff] %v568
      %601 = vst [vmem:[%s170 + $0xe0] sm:$0xff] %v569
      %602 = vst [vmem:[%s170 + $0xe8] sm:$0xff] %v570
      %603 = vst [vmem:[%s170 + $0xf0] sm:$0xff] %v571
      %604 = vst [vmem:[%s170 + $0xf8] sm:$0xff] %v572
      %p605 = scmp.lt.s32.totalorder %s14, 1
      %s606 = scalar_select %p605, %s14, 1
      %s607 = smul.addr %s606, 32
      %s608 = smul.addr %s607, 8
      %s609 = scalar_lea.vmem %s3, %s608
      // Predicated region
      $region33: #{decoder_forward.7} parent=31 // pred_check
        %p610 = pneg %p100
      $region34: #{decoder_forward.7} parent=31 // pred_check_branch
        %612 = sbr.rel (%p610) target = $region36
      $region35: #{decoder_forward.7} parent=31 // pred_region
        _
      $region36: #{decoder_forward.7} parent=31 // pred_fallthru
        _
    $region32: #{decoder_forward.7} parent=5 // pred_fallthru
      _
    %p613 = scmp.le.s32.totalorder 2, %s9
    // Predicated region
    $region37: #{decoder_forward.7} parent=5 // pred_check
      %p614 = pneg %p613
    $region38: #{decoder_forward.7} parent=5 // pred_check_branch
      %616 = sbr.rel (%p614) target = $region40
    $region39: #{decoder_forward.7} parent=5 // pred_region
      %s617 = ssub.s32 %s9, 2
      // Predicated region
      $region41: #{decoder_forward.7} parent=39 // pred_check
        %p618 = pneg %p106
      $region42: #{decoder_forward.7} parent=39 // pred_check_branch
        %620 = sbr.rel (%p618) target = $region44
      $region43: #{decoder_forward.7} parent=39 // pred_region
        %p621 = scmp.lt.s32.totalorder %s15, 1
        %s622 = scalar_select %p621, %s15, 1
        %s623 = smul.addr %s622, 32
        %s624 = smul.addr %s623, 8
        %s625 = scalar_lea.vmem %s3, %s624
      $region44: #{decoder_forward.7} parent=39 // pred_fallthru
        _
    $region40: #{decoder_forward.7} parent=5 // pred_fallthru
      _
  $region6: #{decoder_forward.7} parent=0 // loop_footer
    %s13 = sadd.s32 1, %s9
  $region7: #{decoder_forward.7} parent=0 // loop_footer_branch
    %8 = sbr.rel target = $region3
  $region8: #{decoder_forward.7} parent=0 // loop_exit
    _

// kernel: decoder_forward.8
$region0: #{decoder_forward.8}
  #allocation0 [shape = 'u32[]', space=smem, size = 0x4, offset = 0x4, fixed_abs, tag = 'smem constant byte address 0x4 - core index']
  #allocation1 [shape = 'u32[144,128]{1,0:T(1,128)}', space=vmem, size = 0x12000, scoped, tag = 'internal scratch']
  %s0 = inlined_call_operand.vmem [shape: f32[2,128,1024], index: 0, kind: input, shape index: {}]
  %s1 = inlined_call_operand.vmem [shape: f32[128,128], index: 1, kind: input, shape index: {}]
  %s2 = inlined_call_operand.vmem [shape: f32[128,1], index: 2, kind: input, shape index: {}]
  %s3 = inlined_call_operand.vmem [shape: f32[2,128,1024], index: 3, kind: output, shape index: {}]
  %s4 = sld [smem:[#allocation0]]
  $region45: #{decoder_forward.8} parent=0
    _
  %s6 = ssub.s32 1, %s4
  %s7 = scalar_select 0, %s6, %s4
  loop: start=0, step=1, limit=4
  $region2: #{decoder_forward.8} parent=0 // loop_pre_header
    _
  $region3: #{decoder_forward.8} parent=0 // loop_header
    %s9 = sphi 0, %s13
    %p10 = scmp.ge.s32.totalorder %s9, 4
    %s19 = sphi 0, %s21
    %s22 = sphi 0, %s19
    %s23 = sphi 0, %s22
    %s39 = sphi 0, %s23
    %s43 = sphi 0, %s43
    %s45 = sphi 0, %s43
    %s46 = sphi 0, %s45
    %s60 = sphi 0, %s46
    %s64 = sphi 0, %s64
    %s66 = sphi 0, %s64
    %s67 = sphi 0, %s66
    %s81 = sphi 0, %s67
    %s87 = sphi 0, %s89
    %s90 = sphi 0, %s87
    %s91 = sphi 0, %s90
    %s107 = sphi 0, %s91
  $region4: #{decoder_forward.8} parent=0 // loop_header_branch
    %12 = sbr.rel (%p10) target = $region8
  $region5: #{decoder_forward.8} parent=0 // loop_body
    %s14 = ssub.s32 %s9, 1
    %s15 = ssub.s32 %s9, 2
    %s16 = sadd.s32 %s9, 1
    %s17 = ssub.s32 %s9, %s16
    %p18 = scmp.eq.s32.totalorder %s17, 0
    %s20 = sadd.s32 %s19, 1
    %s21 = scalar_select %p18, %s19, %s20
    %p24 = pneg %p18
    %p25 = scmp.eq.s32.totalorder %s9, 1
    %p26 = por %p24, %p25
    %p27 = scmp.ne.s32.totalorder %s19, %s22
    %p28 = scmp.eq.s32.totalorder %s9, 0
    %p29 = por %p27, %p28
    %p30 = scmp.ne.s32.totalorder %s19, %s22
    %p31 = scmp.eq.s32.totalorder %s14, 1
    %p32 = por %p30, %p31
    %p33 = scmp.ne.s32.totalorder %s22, %s23
    %p34 = scmp.eq.s32.totalorder %s14, 0
    %p35 = por %p33, %p34
    %p36 = scmp.ne.s32.totalorder %s22, %s23
    %p37 = scmp.eq.s32.totalorder %s15, 1
    %p38 = por %p36, %p37
    %p40 = scmp.ne.s32.totalorder %s23, %s39
    %p41 = scmp.eq.s32.totalorder %s15, 0
    %p42 = por %p40, %p41
    %s44 = sadd.s32 %s43, 1
    %p47 = scmp.eq.s32.totalorder %s9, 1
    %p48 = scmp.ne.s32.totalorder %s43, %s45
    %p49 = scmp.eq.s32.totalorder %s9, 0
    %p50 = por %p48, %p49
    %p51 = scmp.ne.s32.totalorder %s43, %s45
    %p52 = scmp.eq.s32.totalorder %s14, 1
    %p53 = por %p51, %p52
    %p54 = scmp.ne.s32.totalorder %s45, %s46
    %p55 = scmp.eq.s32.totalorder %s14, 0
    %p56 = por %p54, %p55
    %p57 = scmp.ne.s32.totalorder %s45, %s46
    %p58 = scmp.eq.s32.totalorder %s15, 1
    %p59 = por %p57, %p58
    %p61 = scmp.ne.s32.totalorder %s46, %s60
    %p62 = scmp.eq.s32.totalorder %s15, 0
    %p63 = por %p61, %p62
    %s65 = sadd.s32 %s64, 1
    %p68 = scmp.eq.s32.totalorder %s9, 1
    %p69 = scmp.ne.s32.totalorder %s64, %s66
    %p70 = scmp.eq.s32.totalorder %s9, 0
    %p71 = por %p69, %p70
    %p72 = scmp.ne.s32.totalorder %s64, %s66
    %p73 = scmp.eq.s32.totalorder %s14, 1
    %p74 = por %p72, %p73
    %p75 = scmp.ne.s32.totalorder %s66, %s67
    %p76 = scmp.eq.s32.totalorder %s14, 0
    %p77 = por %p75, %p76
    %p78 = scmp.ne.s32.totalorder %s66, %s67
    %p79 = scmp.eq.s32.totalorder %s15, 1
    %p80 = por %p78, %p79
    %p82 = scmp.ne.s32.totalorder %s67, %s81
    %p83 = scmp.eq.s32.totalorder %s15, 0
    %p84 = por %p82, %p83
    %s85 = ssub.s32 %s9, %s16
    %p86 = scmp.eq.s32.totalorder %s85, 0
    %s88 = sadd.s32 %s87, 1
    %s89 = scalar_select %p86, %s87, %s88
    %p92 = pneg %p86
    %p93 = scmp.eq.s32.totalorder %s9, 1
    %p94 = por %p92, %p93
    %p95 = scmp.ne.s32.totalorder %s87, %s90
    %p96 = scmp.eq.s32.totalorder %s9, 0
    %p97 = por %p95, %p96
    %p98 = scmp.ne.s32.totalorder %s87, %s90
    %p99 = scmp.eq.s32.totalorder %s14, 1
    %p100 = por %p98, %p99
    %p101 = scmp.ne.s32.totalorder %s90, %s91
    %p102 = scmp.eq.s32.totalorder %s14, 0
    %p103 = por %p101, %p102
    %p104 = scmp.ne.s32.totalorder %s90, %s91
    %p105 = scmp.eq.s32.totalorder %s15, 1
    %p106 = por %p104, %p105
    %p108 = scmp.ne.s32.totalorder %s91, %s107
    %p109 = scmp.eq.s32.totalorder %s15, 0
    %p110 = por %p108, %p109
    %p111 = scmp.le.s32.totalorder 1, %s9
    %p112 = scmp.lt.s32.totalorder %s9, 3
    %p113 = pnand %p111, %p112
    %p114 = pneg %p113
    // Predicated region
    $region9: #{decoder_forward.8} parent=5 // pred_check
      _
    $region10: #{decoder_forward.8} parent=5 // pred_check_branch
      %116 = sbr.rel (%p113) target = $region12
    $region11: #{decoder_forward.8} parent=5 // pred_region
      %s117 = ssub.s32 %s9, 1
      // Predicated region
      $region13: #{decoder_forward.8} parent=11 // pred_check
        %p118 = pneg %p56
      $region14: #{decoder_forward.8} parent=11 // pred_check_branch
        %120 = sbr.rel (%p118) target = $region16
      $region15: #{decoder_forward.8} parent=11 // pred_region
        _
      $region16: #{decoder_forward.8} parent=11 // pred_fallthru
        _
      // Predicated region
      $region17: #{decoder_forward.8} parent=11 // pred_check
        %p121 = pneg %p77
      $region18: #{decoder_forward.8} parent=11 // pred_check_branch
        %123 = sbr.rel (%p121) target = $region20
      $region19: #{decoder_forward.8} parent=11 // pred_region
        _
      $region20: #{decoder_forward.8} parent=11 // pred_fallthru
        _
    $region12: #{decoder_forward.8} parent=5 // pred_fallthru
      _
    %p124 = scmp.lt.s32.totalorder %s9, 2
    // Predicated region
    $region21: #{decoder_forward.8} parent=5 // pred_check
      %p125 = pneg %p124
    $region22: #{decoder_forward.8} parent=5 // pred_check_branch
      %127 = sbr.rel (%p125) target = $region24
    $region23: #{decoder_forward.8} parent=5 // pred_region
      // Predicated region
      $region25: #{decoder_forward.8} parent=23 // pred_check
        %p128 = pneg %p29
      $region26: #{decoder_forward.8} parent=23 // pred_check_branch
        %130 = sbr.rel (%p128) target = $region28
      $region27: #{decoder_forward.8} parent=23 // pred_region
        %p131 = scmp.lt.s32.totalorder %s9, 1
        %s132 = scalar_select %p131, %s9, 1
        %s133 = smul.addr %s132, 128
        %s134 = smul.addr %s133, 8
        %s135 = scalar_lea.vmem %s0, %s134
      $region28: #{decoder_forward.8} parent=23 // pred_fallthru
        _
    $region24: #{decoder_forward.8} parent=5 // pred_fallthru
      _
    %p136 = scmp.le.s32.totalorder 1, %s9
    %p137 = scmp.lt.s32.totalorder %s9, 3
    %p138 = pnand %p136, %p137
    %p139 = pneg %p138
    // Predicated region
    $region29: #{decoder_forward.8} parent=5 // pred_check
      _
    $region30: #{decoder_forward.8} parent=5 // pred_check_branch
      %141 = sbr.rel (%p138) target = $region32
    $region31: #{decoder_forward.8} parent=5 // pred_region
      %s142 = ssub.s32 %s9, 1
      %p143 = scmp.lt.s32.totalorder %s14, 1
      %s144 = scalar_select %p143, %s14, 1
      %s145 = smul.addr %s144, 128
      %s146 = smul.addr %s145, 8
      %s147 = scalar_lea.vmem %s0, %s146
      %p148 = pneg %p35
      %p149 = pneg %p32
      %p150 = pneg %p56
      %p151 = pneg %p53
      %p152 = pneg %p77
      %p153 = pneg %p74
      %p154 = pneg %p103
      %p155 = pneg %p100
      %p156 = scmp.lt.s32.totalorder %s14, 1
      %s157 = scalar_select %p156, %s14, 1
      %s158 = smul.addr %s157, 128
      %s159 = smul.addr %s158, 8
      %s160 = scalar_lea.vmem %s3, %s159
      %p161 = scmp.lt.s32.totalorder %s14, 1
      %s162 = scalar_select %p161, %s14, 1
      %s163 = smul.addr %s162, 128
      %s164 = smul.addr %s163, 8
      %s165 = scalar_lea.vmem %s0, %s164
      %p166 = scmp.lt.s32.totalorder %s14, 1
      %s167 = scalar_select %p166, %s14, 1
      %s168 = smul.addr %s167, 128
      %s169 = smul.addr %s168, 8
      %s170 = scalar_lea.vmem %s3, %s169
      %v171 = vld [vmem:[%s1] sm:$0xff]
      %v172 = vld [vmem:[%s1 + $0x8] sm:$0xff]
      %v173 = vld [vmem:[%s1 + $0x10] sm:$0xff]
      %v174 = vld [vmem:[%s1 + $0x18] sm:$0xff]
      %v175 = vld [vmem:[%s1 + $0x20] sm:$0xff]
      %v176 = vld [vmem:[%s1 + $0x28] sm:$0xff]
      %v177 = vld [vmem:[%s1 + $0x30] sm:$0xff]
      %v178 = vld [vmem:[%s1 + $0x38] sm:$0xff]
      %v179 = vld [vmem:[%s1 + $0x40] sm:$0xff]
      %v180 = vld [vmem:[%s1 + $0x48] sm:$0xff]
      %v181 = vld [vmem:[%s1 + $0x50] sm:$0xff]
      %v182 = vld [vmem:[%s1 + $0x58] sm:$0xff]
      %v183 = vld [vmem:[%s1 + $0x60] sm:$0xff]
      %v184 = vld [vmem:[%s1 + $0x68] sm:$0xff]
      %v185 = vld [vmem:[%s1 + $0x70] sm:$0xff]
      %v186 = vld [vmem:[%s1 + $0x78] sm:$0xff]
      %v187 = vld [vmem:[%s165] sm:$0xff]
      %v188 = vld [vmem:[%s165 + $0x8] sm:$0xff]
      %v189 = vld [vmem:[%s165 + $0x10] sm:$0xff]
      %v190 = vld [vmem:[%s165 + $0x18] sm:$0xff]
      %v191 = vld [vmem:[%s165 + $0x20] sm:$0xff]
      %v192 = vld [vmem:[%s165 + $0x28] sm:$0xff]
      %v193 = vld [vmem:[%s165 + $0x30] sm:$0xff]
      %v194 = vld [vmem:[%s165 + $0x38] sm:$0xff]
      %v195 = vld [vmem:[%s165 + $0x40] sm:$0xff]
      %v196 = vld [vmem:[%s165 + $0x48] sm:$0xff]
      %v197 = vld [vmem:[%s165 + $0x50] sm:$0xff]
      %v198 = vld [vmem:[%s165 + $0x58] sm:$0xff]
      %v199 = vld [vmem:[%s165 + $0x60] sm:$0xff]
      %v200 = vld [vmem:[%s165 + $0x68] sm:$0xff]
      %v201 = vld [vmem:[%s165 + $0x70] sm:$0xff]
      %v202 = vld [vmem:[%s165 + $0x78] sm:$0xff]
      %v203 = vld [vmem:[%s165 + $0x80] sm:$0xff]
      %v204 = vld [vmem:[%s165 + $0x88] sm:$0xff]
      %v205 = vld [vmem:[%s165 + $0x90] sm:$0xff]
      %v206 = vld [vmem:[%s165 + $0x98] sm:$0xff]
      %v207 = vld [vmem:[%s165 + $0xa0] sm:$0xff]
      %v208 = vld [vmem:[%s165 + $0xa8] sm:$0xff]
      %v209 = vld [vmem:[%s165 + $0xb0] sm:$0xff]
      %v210 = vld [vmem:[%s165 + $0xb8] sm:$0xff]
      %v211 = vld [vmem:[%s165 + $0xc0] sm:$0xff]
      %v212 = vld [vmem:[%s165 + $0xc8] sm:$0xff]
      %v213 = vld [vmem:[%s165 + $0xd0] sm:$0xff]
      %v214 = vld [vmem:[%s165 + $0xd8] sm:$0xff]
      %v215 = vld [vmem:[%s165 + $0xe0] sm:$0xff]
      %v216 = vld [vmem:[%s165 + $0xe8] sm:$0xff]
      %v217 = vld [vmem:[%s165 + $0xf0] sm:$0xff]
      %v218 = vld [vmem:[%s165 + $0xf8] sm:$0xff]
      %v219 = vld [vmem:[%s165 + $0x100] sm:$0xff]
      %v220 = vld [vmem:[%s165 + $0x108] sm:$0xff]
      %v221 = vld [vmem:[%s165 + $0x110] sm:$0xff]
      %v222 = vld [vmem:[%s165 + $0x118] sm:$0xff]
      %v223 = vld [vmem:[%s165 + $0x120] sm:$0xff]
      %v224 = vld [vmem:[%s165 + $0x128] sm:$0xff]
      %v225 = vld [vmem:[%s165 + $0x130] sm:$0xff]
      %v226 = vld [vmem:[%s165 + $0x138] sm:$0xff]
      %v227 = vld [vmem:[%s165 + $0x140] sm:$0xff]
      %v228 = vld [vmem:[%s165 + $0x148] sm:$0xff]
      %v229 = vld [vmem:[%s165 + $0x150] sm:$0xff]
      %v230 = vld [vmem:[%s165 + $0x158] sm:$0xff]
      %v231 = vld [vmem:[%s165 + $0x160] sm:$0xff]
      %v232 = vld [vmem:[%s165 + $0x168] sm:$0xff]
      %v233 = vld [vmem:[%s165 + $0x170] sm:$0xff]
      %v234 = vld [vmem:[%s165 + $0x178] sm:$0xff]
      %v235 = vld [vmem:[%s165 + $0x180] sm:$0xff]
      %v236 = vld [vmem:[%s165 + $0x188] sm:$0xff]
      %v237 = vld [vmem:[%s165 + $0x190] sm:$0xff]
      %v238 = vld [vmem:[%s165 + $0x198] sm:$0xff]
      %v239 = vld [vmem:[%s165 + $0x1a0] sm:$0xff]
      %v240 = vld [vmem:[%s165 + $0x1a8] sm:$0xff]
      %v241 = vld [vmem:[%s165 + $0x1b0] sm:$0xff]
      %v242 = vld [vmem:[%s165 + $0x1b8] sm:$0xff]
      %v243 = vld [vmem:[%s165 + $0x1c0] sm:$0xff]
      %v244 = vld [vmem:[%s165 + $0x1c8] sm:$0xff]
      %v245 = vld [vmem:[%s165 + $0x1d0] sm:$0xff]
      %v246 = vld [vmem:[%s165 + $0x1d8] sm:$0xff]
      %v247 = vld [vmem:[%s165 + $0x1e0] sm:$0xff]
      %v248 = vld [vmem:[%s165 + $0x1e8] sm:$0xff]
      %v249 = vld [vmem:[%s165 + $0x1f0] sm:$0xff]
      %v250 = vld [vmem:[%s165 + $0x1f8] sm:$0xff]
      %v251 = vld [vmem:[%s165 + $0x200] sm:$0xff]
      %v252 = vld [vmem:[%s165 + $0x208] sm:$0xff]
      %v253 = vld [vmem:[%s165 + $0x210] sm:$0xff]
      %v254 = vld [vmem:[%s165 + $0x218] sm:$0xff]
      %v255 = vld [vmem:[%s165 + $0x220] sm:$0xff]
      %v256 = vld [vmem:[%s165 + $0x228] sm:$0xff]
      %v257 = vld [vmem:[%s165 + $0x230] sm:$0xff]
      %v258 = vld [vmem:[%s165 + $0x238] sm:$0xff]
      %v259 = vld [vmem:[%s165 + $0x240] sm:$0xff]
      %v260 = vld [vmem:[%s165 + $0x248] sm:$0xff]
      %v261 = vld [vmem:[%s165 + $0x250] sm:$0xff]
      %v262 = vld [vmem:[%s165 + $0x258] sm:$0xff]
      %v263 = vld [vmem:[%s165 + $0x260] sm:$0xff]
      %v264 = vld [vmem:[%s165 + $0x268] sm:$0xff]
      %v265 = vld [vmem:[%s165 + $0x270] sm:$0xff]
      %v266 = vld [vmem:[%s165 + $0x278] sm:$0xff]
      %v267 = vld [vmem:[%s165 + $0x280] sm:$0xff]
      %v268 = vld [vmem:[%s165 + $0x288] sm:$0xff]
      %v269 = vld [vmem:[%s165 + $0x290] sm:$0xff]
      %v270 = vld [vmem:[%s165 + $0x298] sm:$0xff]
      %v271 = vld [vmem:[%s165 + $0x2a0] sm:$0xff]
      %v272 = vld [vmem:[%s165 + $0x2a8] sm:$0xff]
      %v273 = vld [vmem:[%s165 + $0x2b0] sm:$0xff]
      %v274 = vld [vmem:[%s165 + $0x2b8] sm:$0xff]
      %v275 = vld [vmem:[%s165 + $0x2c0] sm:$0xff]
      %v276 = vld [vmem:[%s165 + $0x2c8] sm:$0xff]
      %v277 = vld [vmem:[%s165 + $0x2d0] sm:$0xff]
      %v278 = vld [vmem:[%s165 + $0x2d8] sm:$0xff]
      %v279 = vld [vmem:[%s165 + $0x2e0] sm:$0xff]
      %v280 = vld [vmem:[%s165 + $0x2e8] sm:$0xff]
      %v281 = vld [vmem:[%s165 + $0x2f0] sm:$0xff]
      %v282 = vld [vmem:[%s165 + $0x2f8] sm:$0xff]
      %v283 = vld [vmem:[%s165 + $0x300] sm:$0xff]
      %v284 = vld [vmem:[%s165 + $0x308] sm:$0xff]
      %v285 = vld [vmem:[%s165 + $0x310] sm:$0xff]
      %v286 = vld [vmem:[%s165 + $0x318] sm:$0xff]
      %v287 = vld [vmem:[%s165 + $0x320] sm:$0xff]
      %v288 = vld [vmem:[%s165 + $0x328] sm:$0xff]
      %v289 = vld [vmem:[%s165 + $0x330] sm:$0xff]
      %v290 = vld [vmem:[%s165 + $0x338] sm:$0xff]
      %v291 = vld [vmem:[%s165 + $0x340] sm:$0xff]
      %v292 = vld [vmem:[%s165 + $0x348] sm:$0xff]
      %v293 = vld [vmem:[%s165 + $0x350] sm:$0xff]
      %v294 = vld [vmem:[%s165 + $0x358] sm:$0xff]
      %v295 = vld [vmem:[%s165 + $0x360] sm:$0xff]
      %v296 = vld [vmem:[%s165 + $0x368] sm:$0xff]
      %v297 = vld [vmem:[%s165 + $0x370] sm:$0xff]
      %v298 = vld [vmem:[%s165 + $0x378] sm:$0xff]
      %v299 = vld [vmem:[%s165 + $0x380] sm:$0xff]
      %v300 = vld [vmem:[%s165 + $0x388] sm:$0xff]
      %v301 = vld [vmem:[%s165 + $0x390] sm:$0xff]
      %v302 = vld [vmem:[%s165 + $0x398] sm:$0xff]
      %v303 = vld [vmem:[%s165 + $0x3a0] sm:$0xff]
      %v304 = vld [vmem:[%s165 + $0x3a8] sm:$0xff]
      %v305 = vld [vmem:[%s165 + $0x3b0] sm:$0xff]
      %v306 = vld [vmem:[%s165 + $0x3b8] sm:$0xff]
      %v307 = vld [vmem:[%s165 + $0x3c0] sm:$0xff]
      %v308 = vld [vmem:[%s165 + $0x3c8] sm:$0xff]
      %v309 = vld [vmem:[%s165 + $0x3d0] sm:$0xff]
      %v310 = vld [vmem:[%s165 + $0x3d8] sm:$0xff]
      %v311 = vld [vmem:[%s165 + $0x3e0] sm:$0xff]
      %v312 = vld [vmem:[%s165 + $0x3e8] sm:$0xff]
      %v313 = vld [vmem:[%s165 + $0x3f0] sm:$0xff]
      %v314 = vld [vmem:[%s165 + $0x3f8] sm:$0xff]
      %v315 = vld [vmem:[%s2] sm:$0xff]
      %v316 = vld [vmem:[%s2 + $0x8] sm:$0xff]
      %v317 = vld [vmem:[%s2 + $0x10] sm:$0xff]
      %v318 = vld [vmem:[%s2 + $0x18] sm:$0xff]
      %v319 = vld [vmem:[%s2 + $0x20] sm:$0xff]
      %v320 = vld [vmem:[%s2 + $0x28] sm:$0xff]
      %v321 = vld [vmem:[%s2 + $0x30] sm:$0xff]
      %v322 = vld [vmem:[%s2 + $0x38] sm:$0xff]
      %v323 = vld [vmem:[%s2 + $0x40] sm:$0xff]
      %v324 = vld [vmem:[%s2 + $0x48] sm:$0xff]
      %v325 = vld [vmem:[%s2 + $0x50] sm:$0xff]
      %v326 = vld [vmem:[%s2 + $0x58] sm:$0xff]
      %v327 = vld [vmem:[%s2 + $0x60] sm:$0xff]
      %v328 = vld [vmem:[%s2 + $0x68] sm:$0xff]
      %v329 = vld [vmem:[%s2 + $0x70] sm:$0xff]
      %v330 = vld [vmem:[%s2 + $0x78] sm:$0xff]
      %332 = vset.pattern.permute.xlu0 0
      %333 = vperm.xlu0 %332, %v315
      %v334 = vpop.permute.xlu0 %333
      %337 = vset.pattern.permute.xlu0 0
      %338 = vperm.xlu0 %337, %v316
      %v339 = vpop.permute.xlu0 %338
      %342 = vset.pattern.permute.xlu0 0
      %343 = vperm.xlu0 %342, %v317
      %v344 = vpop.permute.xlu0 %343
      %347 = vset.pattern.permute.xlu0 0
      %348 = vperm.xlu0 %347, %v318
      %v349 = vpop.permute.xlu0 %348
      %352 = vset.pattern.permute.xlu0 0
      %353 = vperm.xlu0 %352, %v319
      %v354 = vpop.permute.xlu0 %353
      %357 = vset.pattern.permute.xlu0 0
      %358 = vperm.xlu0 %357, %v320
      %v359 = vpop.permute.xlu0 %358
      %362 = vset.pattern.permute.xlu0 0
      %363 = vperm.xlu0 %362, %v321
      %v364 = vpop.permute.xlu0 %363
      %367 = vset.pattern.permute.xlu0 0
      %368 = vperm.xlu0 %367, %v322
      %v369 = vpop.permute.xlu0 %368
      %372 = vset.pattern.permute.xlu0 0
      %373 = vperm.xlu0 %372, %v323
      %v374 = vpop.permute.xlu0 %373
      %377 = vset.pattern.permute.xlu0 0
      %378 = vperm.xlu0 %377, %v324
      %v379 = vpop.permute.xlu0 %378
      %382 = vset.pattern.permute.xlu0 0
      %383 = vperm.xlu0 %382, %v325
      %v384 = vpop.permute.xlu0 %383
      %387 = vset.pattern.permute.xlu0 0
      %388 = vperm.xlu0 %387, %v326
      %v389 = vpop.permute.xlu0 %388
      %392 = vset.pattern.permute.xlu0 0
      %393 = vperm.xlu0 %392, %v327
      %v394 = vpop.permute.xlu0 %393
      %397 = vset.pattern.permute.xlu0 0
      %398 = vperm.xlu0 %397, %v328
      %v399 = vpop.permute.xlu0 %398
      %402 = vset.pattern.permute.xlu0 0
      %403 = vperm.xlu0 %402, %v329
      %v404 = vpop.permute.xlu0 %403
      %407 = vset.pattern.permute.xlu0 0
      %408 = vperm.xlu0 %407, %v330
      %v409 = vpop.permute.xlu0 %408
      %411 = vmatprep.subr.mxu0 %v188
      %412 = vmatpush1.msra.mxu0 %v187
      %413 = vmatprep.subr.mxu0 %v196
      %414 = vmatpush1.msra.mxu0 %v195
      %415 = vmatprep.subr.mxu0 %v204
      %416 = vmatpush1.msra.mxu0 %v203
      %417 = vmatprep.subr.mxu0 %v212
      %418 = vmatpush1.msra.mxu0 %v211
      %419 = vmatprep.subr.mxu0 %v220
      %420 = vmatpush1.msra.mxu0 %v219
      %421 = vmatprep.subr.mxu0 %v228
      %422 = vmatpush1.msra.mxu0 %v227
      %423 = vmatprep.subr.mxu0 %v236
      %424 = vmatpush1.msra.mxu0 %v235
      %425 = vmatprep.subr.mxu0 %v244
      %426 = vmatpush1.msra.mxu0 %v243
      %427 = vmatprep.subr.mxu0 %v252
      %428 = vmatpush1.msra.mxu0 %v251
      %429 = vmatprep.subr.mxu0 %v260
      %430 = vmatpush1.msra.mxu0 %v259
      %431 = vmatprep.subr.mxu0 %v268
      %432 = vmatpush1.msra.mxu0 %v267
      %433 = vmatprep.subr.mxu0 %v276
      %434 = vmatpush1.msra.mxu0 %v275
      %435 = vmatprep.subr.mxu0 %v284
      %436 = vmatpush1.msra.mxu0 %v283
      %437 = vmatprep.subr.mxu0 %v292
      %438 = vmatpush1.msra.mxu0 %v291
      %439 = vmatprep.subr.mxu0 %v300
      %440 = vmatpush1.msra.mxu0 %v299
      %441 = vmatprep.subr.mxu0 %v308
      %442 = vmatpush1.msra.mxu0 %v307
      %443 = vmatprep.subr.mxu0 0.0
      %444 = vmatpush1.msra.mxu0 0.0
      %445 = vmatprep.subr.mxu0 0.0
      %446 = vmatpush1.msra.mxu0 0.0
      %447 = vmatprep.subr.mxu0 0.0
      %448 = vmatpush1.msra.mxu0 0.0
      %449 = vmatprep.subr.mxu0 0.0
      %450 = vmatpush1.msra.mxu0 0.0
      %451 = vmatprep.subr.mxu0 0.0
      %452 = vmatpush1.msra.mxu0 0.0
      %453 = vmatprep.subr.mxu0 0.0
      %454 = vmatpush1.msra.mxu0 0.0
      %455 = vmatprep.subr.mxu0 0.0
      %456 = vmatpush1.msra.mxu0 0.0
      %457 = vmatprep.subr.mxu0 0.0
      %458 = vmatpush1.msra.mxu0 0.0
      %459 = vmatprep.subr.mxu0 0.0
      %460 = vmatpush1.msra.mxu0 0.0
      %461 = vmatprep.subr.mxu0 0.0
      %462 = vmatpush1.msra.mxu0 0.0
      %463 = vmatprep.subr.mxu0 0.0
      %464 = vmatpush1.msra.mxu0 0.0
      %465 = vmatprep.subr.mxu0 0.0
      %466 = vmatpush1.msra.mxu0 0.0
      %467 = vmatprep.subr.mxu0 0.0
      %468 = vmatpush1.msra.mxu0 0.0
      %469 = vmatprep.subr.mxu0 0.0
      %470 = vmatpush1.msra.mxu0 0.0
      %471 = vmatprep.subr.mxu0 0.0
      %472 = vmatpush1.msra.mxu0 0.0
      %473 = vmatprep.subr.mxu0 0.0
      %474 = vmatpush1.msra.mxu0 0.0
      %475 = vmatprep.mubr.f32.mxu0 0.0
      %476 = vmatmul.mubr.f32.gmra.mrb[0].mxu0 %v171
      %v477 = vpop.f32.mrb[0].mxu0
      %v478 = vadd.f32 %v334, %v477
      %v479 = vpop.f32.mrb[0].mxu0
      %v480 = vadd.f32 %v334, %v479
      %481 = vmatprep.mubr.f32.mxu0 0.0
      %482 = vmatmul.mubr.f32.gmra.mrb[0].mxu0 %v172
      %v483 = vpop.f32.mrb[0].mxu0
      %v484 = vadd.f32 %v339, %v483
      %v485 = vpop.f32.mrb[0].mxu0
      %v486 = vadd.f32 %v339, %v485
      %487 = vmatprep.mubr.f32.mxu0 0.0
      %488 = vmatmul.mubr.f32.gmra.mrb[0].mxu0 %v173
      %v489 = vpop.f32.mrb[0].mxu0
      %v490 = vadd.f32 %v344, %v489
      %v491 = vpop.f32.mrb[0].mxu0
      %v492 = vadd.f32 %v344, %v491
      %493 = vmatprep.mubr.f32.mxu0 0.0
      %494 = vmatmul.mubr.f32.gmra.mrb[0].mxu0 %v174
      %v495 = vpop.f32.mrb[0].mxu0
      %v496 = vadd.f32 %v349, %v495
      %v497 = vpop.f32.mrb[0].mxu0
      %v498 = vadd.f32 %v349, %v497
      %499 = vmatprep.mubr.f32.mxu0 0.0
      %500 = vmatmul.mubr.f32.gmra.mrb[0].mxu0 %v175
      %v501 = vpop.f32.mrb[0].mxu0
      %v502 = vadd.f32 %v354, %v501
      %v503 = vpop.f32.mrb[0].mxu0
      %v504 = vadd.f32 %v354, %v503
      %505 = vmatprep.mubr.f32.mxu0 0.0
      %506 = vmatmul.mubr.f32.gmra.mrb[0].mxu0 %v176
      %v507 = vpop.f32.mrb[0].mxu0
      %v508 = vadd.f32 %v359, %v507
      %v509 = vpop.f32.mrb[0].mxu0
      %v510 = vadd.f32 %v359, %v509
      %511 = vmatprep.mubr.f32.mxu0 0.0
      %512 = vmatmul.mubr.f32.gmra.mrb[0].mxu0 %v177
      %v513 = vpop.f32.mrb[0].mxu0
      %v514 = vadd.f32 %v364, %v513
      %v515 = vpop.f32.mrb[0].mxu0
      %v516 = vadd.f32 %v364, %v515
      %517 = vmatprep.mubr.f32.mxu0 0.0
      %518 = vmatmul.mubr.f32.gmra.mrb[0].mxu0 %v178
      %v519 = vpop.f32.mrb[0].mxu0
      %v520 = vadd.f32 %v369, %v519
      %v521 = vpop.f32.mrb[0].mxu0
      %v522 = vadd.f32 %v369, %v521
      %523 = vmatprep.mubr.f32.mxu0 0.0
      %524 = vmatmul.mubr.f32.gmra.mrb[0].mxu0 %v179
      %v525 = vpop.f32.mrb[0].mxu0
      %v526 = vadd.f32 %v374, %v525
      %v527 = vpop.f32.mrb[0].mxu0
      %v528 = vadd.f32 %v374, %v527
      %529 = vmatprep.mubr.f32.mxu0 0.0
      %530 = vmatmul.mubr.f32.gmra.mrb[0].mxu0 %v180
      %v531 = vpop.f32.mrb[0].mxu0
      %v532 = vadd.f32 %v379, %v531
      %v533 = vpop.f32.mrb[0].mxu0
      %v534 = vadd.f32 %v379, %v533
      %535 = vmatprep.mubr.f32.mxu0 0.0
      %536 = vmatmul.mubr.f32.gmra.mrb[0].mxu0 %v181
      %v537 = vpop.f32.mrb[0].mxu0
      %v538 = vadd.f32 %v384, %v537
      %v539 = vpop.f32.mrb[0].mxu0
      %v540 = vadd.f32 %v384, %v539
      %541 = vmatprep.mubr.f32.mxu0 0.0
      %542 = vmatmul.mubr.f32.gmra.mrb[0].mxu0 %v182
      %v543 = vpop.f32.mrb[0].mxu0
      %v544 = vadd.f32 %v389, %v543
      %v545 = vpop.f32.mrb[0].mxu0
      %v546 = vadd.f32 %v389, %v545
      %547 = vmatprep.mubr.f32.mxu0 0.0
      %548 = vmatmul.mubr.f32.gmra.mrb[0].mxu0 %v183
      %v549 = vpop.f32.mrb[0].mxu0
      %v550 = vadd.f32 %v394, %v549
      %v551 = vpop.f32.mrb[0].mxu0
      %v552 = vadd.f32 %v394, %v551
      %553 = vmatprep.mubr.f32.mxu0 0.0
      %554 = vmatmul.mubr.f32.gmra.mrb[0].mxu0 %v184
      %v555 = vpop.f32.mrb[0].mxu0
      %v556 = vadd.f32 %v399, %v555
      %v557 = vpop.f32.mrb[0].mxu0
      %v558 = vadd.f32 %v399, %v557
      %559 = vmatprep.mubr.f32.mxu0 0.0
      %560 = vmatmul.mubr.f32.gmra.mrb[0].mxu0 %v185
      %v561 = vpop.f32.mrb[0].mxu0
      %v562 = vadd.f32 %v404, %v561
      %v563 = vpop.f32.mrb[0].mxu0
      %v564 = vadd.f32 %v404, %v563
      %565 = vmatprep.mubr.f32.mxu0 0.0
      %566 = vmatmul.mubr.f32.gmra.mrb[0].mxu0 %v186
      %v567 = vpop.f32.mrb[0].mxu0
      %v568 = vadd.f32 %v409, %v567
      %v569 = vpop.f32.mrb[0].mxu0
      %v570 = vadd.f32 %v409, %v569
      %571 = vdwg.mxu0
      %572 = vmatprep.subr.mxu0 %v190
      %573 = vmatpush1.msra.mxu0 %v189
      %574 = vmatprep.subr.mxu0 %v198
      %575 = vmatpush1.msra.mxu0 %v197
      %576 = vmatprep.subr.mxu0 %v206
      %577 = vmatpush1.msra.mxu0 %v205
      %578 = vmatprep.subr.mxu0 %v214
      %579 = vmatpush1.msra.mxu0 %v213
      %580 = vmatprep.subr.mxu0 %v222
      %581 = vmatpush1.msra.mxu0 %v221
      %582 = vmatprep.subr.mxu0 %v230
      %583 = vmatpush1.msra.mxu0 %v229
      %584 = vmatprep.subr.mxu0 %v238
      %585 = vmatpush1.msra.mxu0 %v237
      %586 = vmatprep.subr.mxu0 %v246
      %587 = vmatpush1.msra.mxu0 %v245
      %588 = vmatprep.subr.mxu0 %v254
      %589 = vmatpush1.msra.mxu0 %v253
      %590 = vmatprep.subr.mxu0 %v262
      %591 = vmatpush1.msra.mxu0 %v261
      %592 = vmatprep.subr.mxu0 %v270
      %593 = vmatpush1.msra.mxu0 %v269
      %594 = vmatprep.subr.mxu0 %v278
      %595 = vmatpush1.msra.mxu0 %v277
      %596 = vmatprep.subr.mxu0 %v286
      %597 = vmatpush1.msra.mxu0 %v285
      %598 = vmatprep.subr.mxu0 %v294
      %599 = vmatpush1.msra.mxu0 %v293
      %600 = vmatprep.subr.mxu0 %v302
      %601 = vmatpush1.msra.mxu0 %v301
      %602 = vmatprep.subr.mxu0 %v310
      %603 = vmatpush1.msra.mxu0 %v309
      %604 = vmatprep.subr.mxu0 0.0
      %605 = vmatpush1.msra.mxu0 0.0
      %606 = vmatprep.subr.mxu0 0.0
      %607 = vmatpush1.msra.mxu0 0.0
      %608 = vmatprep.subr.mxu0 0.0
      %609 = vmatpush1.msra.mxu0 0.0
      %610 = vmatprep.subr.mxu0 0.0
      %611 = vmatpush1.msra.mxu0 0.0
      %612 = vmatprep.subr.mxu0 0.0
      %613 = vmatpush1.msra.mxu0 0.0
      %614 = vmatprep.subr.mxu0 0.0
      %615 = vmatpush1.msra.mxu0 0.0
      %616 = vmatprep.subr.mxu0 0.0
      %617 = vmatpush1.msra.mxu0 0.0
      %618 = vmatprep.subr.mxu0 0.0
      %619 = vmatpush1.msra.mxu0 0.0
      %620 = vmatprep.subr.mxu0 0.0
      %621 = vmatpush1.msra.mxu0 0.0
      %622 = vmatprep.subr.mxu0 0.0
      %623 = vmatpush1.msra.mxu0 0.0
      %624 = vmatprep.subr.mxu0 0.0
      %625 = vmatpush1.msra.mxu0 0.0
      %626 = vmatprep.subr.mxu0 0.0
      %627 = vmatpush1.msra.mxu0 0.0
      %628 = vmatprep.subr.mxu0 0.0
      %629 = vmatpush1.msra.mxu0 0.0
      %630 = vmatprep.subr.mxu0 0.0
      %631 = vmatpush1.msra.mxu0 0.0
      %632 = vmatprep.subr.mxu0 0.0
      %633 = vmatpush1.msra.mxu0 0.0
      %634 = vmatprep.subr.mxu0 0.0
      %635 = vmatpush1.msra.mxu0 0.0
      %636 = vmatprep.mubr.f32.mxu0 0.0
      %637 = vmatmul.mubr.f32.gmra.mrb[0].mxu0 %v171
      %v638 = vpop.f32.mrb[0].mxu0
      %v639 = vadd.f32 %v334, %v638
      %v640 = vpop.f32.mrb[0].mxu0
      %v641 = vadd.f32 %v334, %v640
      %642 = vmatprep.mubr.f32.mxu0 0.0
      %643 = vmatmul.mubr.f32.gmra.mrb[0].mxu0 %v172
      %v644 = vpop.f32.mrb[0].mxu0
      %v645 = vadd.f32 %v339, %v644
      %v646 = vpop.f32.mrb[0].mxu0
      %v647 = vadd.f32 %v339, %v646
      %648 = vmatprep.mubr.f32.mxu0 0.0
      %649 = vmatmul.mubr.f32.gmra.mrb[0].mxu0 %v173
      %v650 = vpop.f32.mrb[0].mxu0
      %v651 = vadd.f32 %v344, %v650
      %v652 = vpop.f32.mrb[0].mxu0
      %v653 = vadd.f32 %v344, %v652
      %654 = vmatprep.mubr.f32.mxu0 0.0
      %655 = vmatmul.mubr.f32.gmra.mrb[0].mxu0 %v174
      %v656 = vpop.f32.mrb[0].mxu0
      %v657 = vadd.f32 %v349, %v656
      %v658 = vpop.f32.mrb[0].mxu0
      %v659 = vadd.f32 %v349, %v658
      %660 = vmatprep.mubr.f32.mxu0 0.0
      %661 = vmatmul.mubr.f32.gmra.mrb[0].mxu0 %v175
      %v662 = vpop.f32.mrb[0].mxu0
      %v663 = vadd.f32 %v354, %v662
      %v664 = vpop.f32.mrb[0].mxu0
      %v665 = vadd.f32 %v354, %v664
      %666 = vmatprep.mubr.f32.mxu0 0.0
      %667 = vmatmul.mubr.f32.gmra.mrb[0].mxu0 %v176
      %v668 = vpop.f32.mrb[0].mxu0
      %v669 = vadd.f32 %v359, %v668
      %v670 = vpop.f32.mrb[0].mxu0
      %v671 = vadd.f32 %v359, %v670
      %672 = vmatprep.mubr.f32.mxu0 0.0
      %673 = vmatmul.mubr.f32.gmra.mrb[0].mxu0 %v177
      %v674 = vpop.f32.mrb[0].mxu0
      %v675 = vadd.f32 %v364, %v674
      %v676 = vpop.f32.mrb[0].mxu0
      %v677 = vadd.f32 %v364, %v676
      %678 = vmatprep.mubr.f32.mxu0 0.0
      %679 = vmatmul.mubr.f32.gmra.mrb[0].mxu0 %v178
      %v680 = vpop.f32.mrb[0].mxu0
      %v681 = vadd.f32 %v369, %v680
      %v682 = vpop.f32.mrb[0].mxu0
      %v683 = vadd.f32 %v369, %v682
      %684 = vmatprep.mubr.f32.mxu0 0.0
      %685 = vmatmul.mubr.f32.gmra.mrb[0].mxu0 %v179
      %v686 = vpop.f32.mrb[0].mxu0
      %v687 = vadd.f32 %v374, %v686
      %v688 = vpop.f32.mrb[0].mxu0
      %v689 = vadd.f32 %v374, %v688
      %690 = vmatprep.mubr.f32.mxu0 0.0
      %691 = vmatmul.mubr.f32.gmra.mrb[0].mxu0 %v180
      %v692 = vpop.f32.mrb[0].mxu0
      %v693 = vadd.f32 %v379, %v692
      %v694 = vpop.f32.mrb[0].mxu0
      %v695 = vadd.f32 %v379, %v694
      %696 = vmatprep.mubr.f32.mxu0 0.0
      %697 = vmatmul.mubr.f32.gmra.mrb[0].mxu0 %v181
      %v698 = vpop.f32.mrb[0].mxu0
      %v699 = vadd.f32 %v384, %v698
      %v700 = vpop.f32.mrb[0].mxu0
      %v701 = vadd.f32 %v384, %v700
      %702 = vmatprep.mubr.f32.mxu0 0.0
      %703 = vmatmul.mubr.f32.gmra.mrb[0].mxu0 %v182
      %v704 = vpop.f32.mrb[0].mxu0
      %v705 = vadd.f32 %v389, %v704
      %v706 = vpop.f32.mrb[0].mxu0
      %v707 = vadd.f32 %v389, %v706
      %708 = vmatprep.mubr.f32.mxu0 0.0
      %709 = vmatmul.mubr.f32.gmra.mrb[0].mxu0 %v183
      %v710 = vpop.f32.mrb[0].mxu0
      %v711 = vadd.f32 %v394, %v710
      %v712 = vpop.f32.mrb[0].mxu0
      %v713 = vadd.f32 %v394, %v712
      %714 = vmatprep.mubr.f32.mxu0 0.0
      %715 = vmatmul.mubr.f32.gmra.mrb[0].mxu0 %v184
      %v716 = vpop.f32.mrb[0].mxu0
      %v717 = vadd.f32 %v399, %v716
      %v718 = vpop.f32.mrb[0].mxu0
      %v719 = vadd.f32 %v399, %v718
      %720 = vmatprep.mubr.f32.mxu0 0.0
      %721 = vmatmul.mubr.f32.gmra.mrb[0].mxu0 %v185
      %v722 = vpop.f32.mrb[0].mxu0
      %v723 = vadd.f32 %v404, %v722
      %v724 = vpop.f32.mrb[0].mxu0
      %v725 = vadd.f32 %v404, %v724
      %726 = vmatprep.mubr.f32.mxu0 0.0
      %727 = vmatmul.mubr.f32.gmra.mrb[0].mxu0 %v186
      %v728 = vpop.f32.mrb[0].mxu0
      %v729 = vadd.f32 %v409, %v728
      %v730 = vpop.f32.mrb[0].mxu0
      %v731 = vadd.f32 %v409, %v730
      %732 = vdwg.mxu0
      %733 = vmatprep.subr.mxu0 %v192
      %734 = vmatpush1.msra.mxu0 %v191
      %735 = vmatprep.subr.mxu0 %v200
      %736 = vmatpush1.msra.mxu0 %v199
      %737 = vmatprep.subr.mxu0 %v208
      %738 = vmatpush1.msra.mxu0 %v207
      %739 = vmatprep.subr.mxu0 %v216
      %740 = vmatpush1.msra.mxu0 %v215
      %741 = vmatprep.subr.mxu0 %v224
      %742 = vmatpush1.msra.mxu0 %v223
      %743 = vmatprep.subr.mxu0 %v232
      %744 = vmatpush1.msra.mxu0 %v231
      %745 = vmatprep.subr.mxu0 %v240
      %746 = vmatpush1.msra.mxu0 %v239
      %747 = vmatprep.subr.mxu0 %v248
      %748 = vmatpush1.msra.mxu0 %v247
      %749 = vmatprep.subr.mxu0 %v256
      %750 = vmatpush1.msra.mxu0 %v255
      %751 = vmatprep.subr.mxu0 %v264
      %752 = vmatpush1.msra.mxu0 %v263
      %753 = vmatprep.subr.mxu0 %v272
      %754 = vmatpush1.msra.mxu0 %v271
      %755 = vmatprep.subr.mxu0 %v280
      %756 = vmatpush1.msra.mxu0 %v279
      %757 = vmatprep.subr.mxu0 %v288
      %758 = vmatpush1.msra.mxu0 %v287
      %759 = vmatprep.subr.mxu0 %v296
      %760 = vmatpush1.msra.mxu0 %v295
      %761 = vmatprep.subr.mxu0 %v304
      %762 = vmatpush1.msra.mxu0 %v303
      %763 = vmatprep.subr.mxu0 %v312
      %764 = vmatpush1.msra.mxu0 %v311
      %765 = vmatprep.subr.mxu0 0.0
      %766 = vmatpush1.msra.mxu0 0.0
      %767 = vmatprep.subr.mxu0 0.0
      %768 = vmatpush1.msra.mxu0 0.0
      %769 = vmatprep.subr.mxu0 0.0
      %770 = vmatpush1.msra.mxu0 0.0
      %771 = vmatprep.subr.mxu0 0.0
      %772 = vmatpush1.msra.mxu0 0.0
      %773 = vmatprep.subr.mxu0 0.0
      %774 = vmatpush1.msra.mxu0 0.0
      %775 = vmatprep.subr.mxu0 0.0
      %776 = vmatpush1.msra.mxu0 0.0
      %777 = vmatprep.subr.mxu0 0.0
      %778 = vmatpush1.msra.mxu0 0.0
      %779 = vmatprep.subr.mxu0 0.0
      %780 = vmatpush1.msra.mxu0 0.0
      %781 = vmatprep.subr.mxu0 0.0
      %782 = vmatpush1.msra.mxu0 0.0
      %783 = vmatprep.subr.mxu0 0.0
      %784 = vmatpush1.msra.mxu0 0.0
      %785 = vmatprep.subr.mxu0 0.0
      %786 = vmatpush1.msra.mxu0 0.0
      %787 = vmatprep.subr.mxu0 0.0
      %788 = vmatpush1.msra.mxu0 0.0
      %789 = vmatprep.subr.mxu0 0.0
      %790 = vmatpush1.msra.mxu0 0.0
      %791 = vmatprep.subr.mxu0 0.0
      %792 = vmatpush1.msra.mxu0 0.0
      %793 = vmatprep.subr.mxu0 0.0
      %794 = vmatpush1.msra.mxu0 0.0
      %795 = vmatprep.subr.mxu0 0.0
      %796 = vmatpush1.msra.mxu0 0.0
      %797 = vmatprep.mubr.f32.mxu0 0.0
      %798 = vmatmul.mubr.f32.gmra.mrb[0].mxu0 %v171
      %v799 = vpop.f32.mrb[0].mxu0
      %v800 = vadd.f32 %v334, %v799
      %v801 = vpop.f32.mrb[0].mxu0
      %v802 = vadd.f32 %v334, %v801
      %803 = vmatprep.mubr.f32.mxu0 0.0
      %804 = vmatmul.mubr.f32.gmra.mrb[0].mxu0 %v172
      %v805 = vpop.f32.mrb[0].mxu0
      %v806 = vadd.f32 %v339, %v805
      %v807 = vpop.f32.mrb[0].mxu0
      %v808 = vadd.f32 %v339, %v807
      %809 = vmatprep.mubr.f32.mxu0 0.0
      %810 = vmatmul.mubr.f32.gmra.mrb[0].mxu0 %v173
      %v811 = vpop.f32.mrb[0].mxu0
      %v812 = vadd.f32 %v344, %v811
      %v813 = vpop.f32.mrb[0].mxu0
      %v814 = vadd.f32 %v344, %v813
      %815 = vmatprep.mubr.f32.mxu0 0.0
      %816 = vmatmul.mubr.f32.gmra.mrb[0].mxu0 %v174
      %v817 = vpop.f32.mrb[0].mxu0
      %v818 = vadd.f32 %v349, %v817
      %v819 = vpop.f32.mrb[0].mxu0
      %v820 = vadd.f32 %v349, %v819
      %821 = vmatprep.mubr.f32.mxu0 0.0
      %822 = vmatmul.mubr.f32.gmra.mrb[0].mxu0 %v175
      %v823 = vpop.f32.mrb[0].mxu0
      %v824 = vadd.f32 %v354, %v823
      %v825 = vpop.f32.mrb[0].mxu0
      %v826 = vadd.f32 %v354, %v825
      %827 = vmatprep.mubr.f32.mxu0 0.0
      %828 = vmatmul.mubr.f32.gmra.mrb[0].mxu0 %v176
      %v829 = vpop.f32.mrb[0].mxu0
      %v830 = vadd.f32 %v359, %v829
      %v831 = vpop.f32.mrb[0].mxu0
      %v832 = vadd.f32 %v359, %v831
      %833 = vmatprep.mubr.f32.mxu0 0.0
      %834 = vmatmul.mubr.f32.gmra.mrb[0].mxu0 %v177
      %v835 = vpop.f32.mrb[0].mxu0
      %v836 = vadd.f32 %v364, %v835
      %v837 = vpop.f32.mrb[0].mxu0
      %v838 = vadd.f32 %v364, %v837
      %839 = vmatprep.mubr.f32.mxu0 0.0
      %840 = vmatmul.mubr.f32.gmra.mrb[0].mxu0 %v178
      %v841 = vpop.f32.mrb[0].mxu0
      %v842 = vadd.f32 %v369, %v841
      %v843 = vpop.f32.mrb[0].mxu0
      %v844 = vadd.f32 %v369, %v843
      %845 = vmatprep.mubr.f32.mxu0 0.0
      %846 = vmatmul.mubr.f32.gmra.mrb[0].mxu0 %v179
      %v847 = vpop.f32.mrb[0].mxu0
      %v848 = vadd.f32 %v374, %v847
      %v849 = vpop.f32.mrb[0].mxu0
      %v850 = vadd.f32 %v374, %v849
      %851 = vmatprep.mubr.f32.mxu0 0.0
      %852 = vmatmul.mubr.f32.gmra.mrb[0].mxu0 %v180
      %v853 = vpop.f32.mrb[0].mxu0
      %v854 = vadd.f32 %v379, %v853
      %v855 = vpop.f32.mrb[0].mxu0
      %v856 = vadd.f32 %v379, %v855
      %857 = vmatprep.mubr.f32.mxu0 0.0
      %858 = vmatmul.mubr.f32.gmra.mrb[0].mxu0 %v181
      %v859 = vpop.f32.mrb[0].mxu0
      %v860 = vadd.f32 %v384, %v859
      %v861 = vpop.f32.mrb[0].mxu0
      %v862 = vadd.f32 %v384, %v861
      %863 = vmatprep.mubr.f32.mxu0 0.0
      %864 = vmatmul.mubr.f32.gmra.mrb[0].mxu0 %v182
      %v865 = vpop.f32.mrb[0].mxu0
      %v866 = vadd.f32 %v389, %v865
      %v867 = vpop.f32.mrb[0].mxu0
      %v868 = vadd.f32 %v389, %v867
      %869 = vmatprep.mubr.f32.mxu0 0.0
      %870 = vmatmul.mubr.f32.gmra.mrb[0].mxu0 %v183
      %v871 = vpop.f32.mrb[0].mxu0
      %v872 = vadd.f32 %v394, %v871
      %v873 = vpop.f32.mrb[0].mxu0
      %v874 = vadd.f32 %v394, %v873
      %875 = vmatprep.mubr.f32.mxu0 0.0
      %876 = vmatmul.mubr.f32.gmra.mrb[0].mxu0 %v184
      %v877 = vpop.f32.mrb[0].mxu0
      %v878 = vadd.f32 %v399, %v877
      %v879 = vpop.f32.mrb[0].mxu0
      %v880 = vadd.f32 %v399, %v879
      %881 = vmatprep.mubr.f32.mxu0 0.0
      %882 = vmatmul.mubr.f32.gmra.mrb[0].mxu0 %v185
      %v883 = vpop.f32.mrb[0].mxu0
      %v884 = vadd.f32 %v404, %v883
      %v885 = vpop.f32.mrb[0].mxu0
      %v886 = vadd.f32 %v404, %v885
      %887 = vmatprep.mubr.f32.mxu0 0.0
      %888 = vmatmul.mubr.f32.gmra.mrb[0].mxu0 %v186
      %v889 = vpop.f32.mrb[0].mxu0
      %v890 = vadd.f32 %v409, %v889
      %v891 = vpop.f32.mrb[0].mxu0
      %v892 = vadd.f32 %v409, %v891
      %893 = vdwg.mxu0
      %894 = vmatprep.subr.mxu0 %v194
      %895 = vmatpush1.msra.mxu0 %v193
      %896 = vmatprep.subr.mxu0 %v202
      %897 = vmatpush1.msra.mxu0 %v201
      %898 = vmatprep.subr.mxu0 %v210
      %899 = vmatpush1.msra.mxu0 %v209
      %900 = vmatprep.subr.mxu0 %v218
      %901 = vmatpush1.msra.mxu0 %v217
      %902 = vmatprep.subr.mxu0 %v226
      %903 = vmatpush1.msra.mxu0 %v225
      %904 = vmatprep.subr.mxu0 %v234
      %905 = vmatpush1.msra.mxu0 %v233
      %906 = vmatprep.subr.mxu0 %v242
      %907 = vmatpush1.msra.mxu0 %v241
      %908 = vmatprep.subr.mxu0 %v250
      %909 = vmatpush1.msra.mxu0 %v249
      %910 = vmatprep.subr.mxu0 %v258
      %911 = vmatpush1.msra.mxu0 %v257
      %912 = vmatprep.subr.mxu0 %v266
      %913 = vmatpush1.msra.mxu0 %v265
      %914 = vmatprep.subr.mxu0 %v274
      %915 = vmatpush1.msra.mxu0 %v273
      %916 = vmatprep.subr.mxu0 %v282
      %917 = vmatpush1.msra.mxu0 %v281
      %918 = vmatprep.subr.mxu0 %v290
      %919 = vmatpush1.msra.mxu0 %v289
      %920 = vmatprep.subr.mxu0 %v298
      %921 = vmatpush1.msra.mxu0 %v297
      %922 = vmatprep.subr.mxu0 %v306
      %923 = vmatpush1.msra.mxu0 %v305
      %924 = vmatprep.subr.mxu0 %v314
      %925 = vmatpush1.msra.mxu0 %v313
      %926 = vmatprep.subr.mxu0 0.0
      %927 = vmatpush1.msra.mxu0 0.0
      %928 = vmatprep.subr.mxu0 0.0
      %929 = vmatpush1.msra.mxu0 0.0
      %930 = vmatprep.subr.mxu0 0.0
      %931 = vmatpush1.msra.mxu0 0.0
      %932 = vmatprep.subr.mxu0 0.0
      %933 = vmatpush1.msra.mxu0 0.0
      %934 = vmatprep.subr.mxu0 0.0
      %935 = vmatpush1.msra.mxu0 0.0
      %936 = vmatprep.subr.mxu0 0.0
      %937 = vmatpush1.msra.mxu0 0.0
      %938 = vmatprep.subr.mxu0 0.0
      %939 = vmatpush1.msra.mxu0 0.0
      %940 = vmatprep.subr.mxu0 0.0
      %941 = vmatpush1.msra.mxu0 0.0
      %942 = vmatprep.subr.mxu0 0.0
      %943 = vmatpush1.msra.mxu0 0.0
      %944 = vmatprep.subr.mxu0 0.0
      %945 = vmatpush1.msra.mxu0 0.0
      %946 = vmatprep.subr.mxu0 0.0
      %947 = vmatpush1.msra.mxu0 0.0
      %948 = vmatprep.subr.mxu0 0.0
      %949 = vmatpush1.msra.mxu0 0.0
      %950 = vmatprep.subr.mxu0 0.0
      %951 = vmatpush1.msra.mxu0 0.0
      %952 = vmatprep.subr.mxu0 0.0
      %953 = vmatpush1.msra.mxu0 0.0
      %954 = vmatprep.subr.mxu0 0.0
      %955 = vmatpush1.msra.mxu0 0.0
      %956 = vmatprep.subr.mxu0 0.0
      %957 = vmatpush1.msra.mxu0 0.0
      %958 = vmatprep.mubr.f32.mxu0 0.0
      %959 = vmatmul.mubr.f32.gmra.mrb[0].mxu0 %v171
      %v960 = vpop.f32.mrb[0].mxu0
      %v961 = vadd.f32 %v334, %v960
      %v962 = vpop.f32.mrb[0].mxu0
      %v963 = vadd.f32 %v334, %v962
      %964 = vmatprep.mubr.f32.mxu0 0.0
      %965 = vmatmul.mubr.f32.gmra.mrb[0].mxu0 %v172
      %v966 = vpop.f32.mrb[0].mxu0
      %v967 = vadd.f32 %v339, %v966
      %v968 = vpop.f32.mrb[0].mxu0
      %v969 = vadd.f32 %v339, %v968
      %970 = vmatprep.mubr.f32.mxu0 0.0
      %971 = vmatmul.mubr.f32.gmra.mrb[0].mxu0 %v173
      %v972 = vpop.f32.mrb[0].mxu0
      %v973 = vadd.f32 %v344, %v972
      %v974 = vpop.f32.mrb[0].mxu0
      %v975 = vadd.f32 %v344, %v974
      %976 = vmatprep.mubr.f32.mxu0 0.0
      %977 = vmatmul.mubr.f32.gmra.mrb[0].mxu0 %v174
      %v978 = vpop.f32.mrb[0].mxu0
      %v979 = vadd.f32 %v349, %v978
      %v980 = vpop.f32.mrb[0].mxu0
      %v981 = vadd.f32 %v349, %v980
      %982 = vmatprep.mubr.f32.mxu0 0.0
      %983 = vmatmul.mubr.f32.gmra.mrb[0].mxu0 %v175
      %v984 = vpop.f32.mrb[0].mxu0
      %v985 = vadd.f32 %v354, %v984
      %v986 = vpop.f32.mrb[0].mxu0
      %v987 = vadd.f32 %v354, %v986
      %988 = vmatprep.mubr.f32.mxu0 0.0
      %989 = vmatmul.mubr.f32.gmra.mrb[0].mxu0 %v176
      %v990 = vpop.f32.mrb[0].mxu0
      %v991 = vadd.f32 %v359, %v990
      %v992 = vpop.f32.mrb[0].mxu0
      %v993 = vadd.f32 %v359, %v992
      %994 = vmatprep.mubr.f32.mxu0 0.0
      %995 = vmatmul.mubr.f32.gmra.mrb[0].mxu0 %v177
      %v996 = vpop.f32.mrb[0].mxu0
      %v997 = vadd.f32 %v364, %v996
      %v998 = vpop.f32.mrb[0].mxu0
      %v999 = vadd.f32 %v364, %v998
      %1000 = vmatprep.mubr.f32.mxu0 0.0
      %1001 = vmatmul.mubr.f32.gmra.mrb[0].mxu0 %v178
      %v1002 = vpop.f32.mrb[0].mxu0
      %v1003 = vadd.f32 %v369, %v1002
      %v1004 = vpop.f32.mrb[0].mxu0
      %v1005 = vadd.f32 %v369, %v1004
      %1006 = vmatprep.mubr.f32.mxu0 0.0
      %1007 = vmatmul.mubr.f32.gmra.mrb[0].mxu0 %v179
      %v1008 = vpop.f32.mrb[0].mxu0
      %v1009 = vadd.f32 %v374, %v1008
      %v1010 = vpop.f32.mrb[0].mxu0
      %v1011 = vadd.f32 %v374, %v1010
      %1012 = vmatprep.mubr.f32.mxu0 0.0
      %1013 = vmatmul.mubr.f32.gmra.mrb[0].mxu0 %v180
      %v1014 = vpop.f32.mrb[0].mxu0
      %v1015 = vadd.f32 %v379, %v1014
      %v1016 = vpop.f32.mrb[0].mxu0
      %v1017 = vadd.f32 %v379, %v1016
      %1018 = vmatprep.mubr.f32.mxu0 0.0
      %1019 = vmatmul.mubr.f32.gmra.mrb[0].mxu0 %v181
      %v1020 = vpop.f32.mrb[0].mxu0
      %v1021 = vadd.f32 %v384, %v1020
      %v1022 = vpop.f32.mrb[0].mxu0
      %v1023 = vadd.f32 %v384, %v1022
      %1024 = vmatprep.mubr.f32.mxu0 0.0
      %1025 = vmatmul.mubr.f32.gmra.mrb[0].mxu0 %v182
      %v1026 = vpop.f32.mrb[0].mxu0
      %v1027 = vadd.f32 %v389, %v1026
      %v1028 = vpop.f32.mrb[0].mxu0
      %v1029 = vadd.f32 %v389, %v1028
      %1030 = vmatprep.mubr.f32.mxu0 0.0
      %1031 = vmatmul.mubr.f32.gmra.mrb[0].mxu0 %v183
      %v1032 = vpop.f32.mrb[0].mxu0
      %v1033 = vadd.f32 %v394, %v1032
      %v1034 = vpop.f32.mrb[0].mxu0
      %v1035 = vadd.f32 %v394, %v1034
      %1036 = vmatprep.mubr.f32.mxu0 0.0
      %1037 = vmatmul.mubr.f32.gmra.mrb[0].mxu0 %v184
      %v1038 = vpop.f32.mrb[0].mxu0
      %v1039 = vadd.f32 %v399, %v1038
      %v1040 = vpop.f32.mrb[0].mxu0
      %v1041 = vadd.f32 %v399, %v1040
      %1042 = vmatprep.mubr.f32.mxu0 0.0
      %1043 = vmatmul.mubr.f32.gmra.mrb[0].mxu0 %v185
      %v1044 = vpop.f32.mrb[0].mxu0
      %v1045 = vadd.f32 %v404, %v1044
      %v1046 = vpop.f32.mrb[0].mxu0
      %v1047 = vadd.f32 %v404, %v1046
      %1048 = vmatprep.mubr.f32.mxu0 0.0
      %1049 = vmatmul.mubr.f32.gmra.mrb[0].mxu0 %v186
      %v1050 = vpop.f32.mrb[0].mxu0
      %v1051 = vadd.f32 %v409, %v1050
      %v1052 = vpop.f32.mrb[0].mxu0
      %v1053 = vadd.f32 %v409, %v1052
      %1054 = vdwg.mxu0
      %v1055 = vmul.f32 %v478, 0.2
      %v1056 = vmul.f32 %v480, 0.2
      %v1057 = vmul.f32 %v639, 0.2
      %v1058 = vmul.f32 %v641, 0.2
      %v1059 = vmul.f32 %v800, 0.2
      %v1060 = vmul.f32 %v802, 0.2
      %v1061 = vmul.f32 %v961, 0.2
      %v1062 = vmul.f32 %v963, 0.2
      %v1063 = vmul.f32 %v484, 0.2
      %v1064 = vmul.f32 %v486, 0.2
      %v1065 = vmul.f32 %v645, 0.2
      %v1066 = vmul.f32 %v647, 0.2
      %v1067 = vmul.f32 %v806, 0.2
      %v1068 = vmul.f32 %v808, 0.2
      %v1069 = vmul.f32 %v967, 0.2
      %v1070 = vmul.f32 %v969, 0.2
      %v1071 = vmul.f32 %v490, 0.2
      %v1072 = vmul.f32 %v492, 0.2
      %v1073 = vmul.f32 %v651, 0.2
      %v1074 = vmul.f32 %v653, 0.2
      %v1075 = vmul.f32 %v812, 0.2
      %v1076 = vmul.f32 %v814, 0.2
      %v1077 = vmul.f32 %v973, 0.2
      %v1078 = vmul.f32 %v975, 0.2
      %v1079 = vmul.f32 %v496, 0.2
      %v1080 = vmul.f32 %v498, 0.2
      %v1081 = vmul.f32 %v657, 0.2
      %v1082 = vmul.f32 %v659, 0.2
      %v1083 = vmul.f32 %v818, 0.2
      %v1084 = vmul.f32 %v820, 0.2
      %v1085 = vmul.f32 %v979, 0.2
      %v1086 = vmul.f32 %v981, 0.2
      %v1087 = vmul.f32 %v502, 0.2
      %v1088 = vmul.f32 %v504, 0.2
      %v1089 = vmul.f32 %v663, 0.2
      %v1090 = vmul.f32 %v665, 0.2
      %v1091 = vmul.f32 %v824, 0.2
      %v1092 = vmul.f32 %v826, 0.2
      %v1093 = vmul.f32 %v985, 0.2
      %v1094 = vmul.f32 %v987, 0.2
      %v1095 = vmul.f32 %v508, 0.2
      %v1096 = vmul.f32 %v510, 0.2
      %v1097 = vmul.f32 %v669, 0.2
      %v1098 = vmul.f32 %v671, 0.2
      %v1099 = vmul.f32 %v830, 0.2
      %v1100 = vmul.f32 %v832, 0.2
      %v1101 = vmul.f32 %v991, 0.2
      %v1102 = vmul.f32 %v993, 0.2
      %v1103 = vmul.f32 %v514, 0.2
      %v1104 = vmul.f32 %v516, 0.2
      %v1105 = vmul.f32 %v675, 0.2
      %v1106 = vmul.f32 %v677, 0.2
      %v1107 = vmul.f32 %v836, 0.2
      %v1108 = vmul.f32 %v838, 0.2
      %v1109 = vmul.f32 %v997, 0.2
      %v1110 = vmul.f32 %v999, 0.2
      %v1111 = vmul.f32 %v520, 0.2
      %v1112 = vmul.f32 %v522, 0.2
      %v1113 = vmul.f32 %v681, 0.2
      %v1114 = vmul.f32 %v683, 0.2
      %v1115 = vmul.f32 %v842, 0.2
      %v1116 = vmul.f32 %v844, 0.2
      %v1117 = vmul.f32 %v1003, 0.2
      %v1118 = vmul.f32 %v1005, 0.2
      %v1119 = vmul.f32 %v526, 0.2
      %v1120 = vmul.f32 %v528, 0.2
      %v1121 = vmul.f32 %v687, 0.2
      %v1122 = vmul.f32 %v689, 0.2
      %v1123 = vmul.f32 %v848, 0.2
      %v1124 = vmul.f32 %v850, 0.2
      %v1125 = vmul.f32 %v1009, 0.2
      %v1126 = vmul.f32 %v1011, 0.2
      %v1127 = vmul.f32 %v532, 0.2
      %v1128 = vmul.f32 %v534, 0.2
      %v1129 = vmul.f32 %v693, 0.2
      %v1130 = vmul.f32 %v695, 0.2
      %v1131 = vmul.f32 %v854, 0.2
      %v1132 = vmul.f32 %v856, 0.2
      %v1133 = vmul.f32 %v1015, 0.2
      %v1134 = vmul.f32 %v1017, 0.2
      %v1135 = vmul.f32 %v538, 0.2
      %v1136 = vmul.f32 %v540, 0.2
      %v1137 = vmul.f32 %v699, 0.2
      %v1138 = vmul.f32 %v701, 0.2
      %v1139 = vmul.f32 %v860, 0.2
      %v1140 = vmul.f32 %v862, 0.2
      %v1141 = vmul.f32 %v1021, 0.2
      %v1142 = vmul.f32 %v1023, 0.2
      %v1143 = vmul.f32 %v544, 0.2
      %v1144 = vmul.f32 %v546, 0.2
      %v1145 = vmul.f32 %v705, 0.2
      %v1146 = vmul.f32 %v707, 0.2
      %v1147 = vmul.f32 %v866, 0.2
      %v1148 = vmul.f32 %v868, 0.2
      %v1149 = vmul.f32 %v1027, 0.2
      %v1150 = vmul.f32 %v1029, 0.2
      %v1151 = vmul.f32 %v550, 0.2
      %v1152 = vmul.f32 %v552, 0.2
      %v1153 = vmul.f32 %v711, 0.2
      %v1154 = vmul.f32 %v713, 0.2
      %v1155 = vmul.f32 %v872, 0.2
      %v1156 = vmul.f32 %v874, 0.2
      %v1157 = vmul.f32 %v1033, 0.2
      %v1158 = vmul.f32 %v1035, 0.2
      %v1159 = vmul.f32 %v556, 0.2
      %v1160 = vmul.f32 %v558, 0.2
      %v1161 = vmul.f32 %v717, 0.2
      %v1162 = vmul.f32 %v719, 0.2
      %v1163 = vmul.f32 %v878, 0.2
      %v1164 = vmul.f32 %v880, 0.2
      %v1165 = vmul.f32 %v1039, 0.2
      %v1166 = vmul.f32 %v1041, 0.2
      %v1167 = vmul.f32 %v562, 0.2
      %v1168 = vmul.f32 %v564, 0.2
      %v1169 = vmul.f32 %v723, 0.2
      %v1170 = vmul.f32 %v725, 0.2
      %v1171 = vmul.f32 %v884, 0.2
      %v1172 = vmul.f32 %v886, 0.2
      %v1173 = vmul.f32 %v1045, 0.2
      %v1174 = vmul.f32 %v1047, 0.2
      %v1175 = vmul.f32 %v568, 0.2
      %v1176 = vmul.f32 %v570, 0.2
      %v1177 = vmul.f32 %v729, 0.2
      %v1178 = vmul.f32 %v731, 0.2
      %v1179 = vmul.f32 %v890, 0.2
      %v1180 = vmul.f32 %v892, 0.2
      %v1181 = vmul.f32 %v1051, 0.2
      %v1182 = vmul.f32 %v1053, 0.2
      %v1183 = vmax.f32 %v478, %v1055
      %v1184 = vmax.f32 %v480, %v1056
      %v1185 = vmax.f32 %v639, %v1057
      %v1186 = vmax.f32 %v641, %v1058
      %v1187 = vmax.f32 %v800, %v1059
      %v1188 = vmax.f32 %v802, %v1060
      %v1189 = vmax.f32 %v961, %v1061
      %v1190 = vmax.f32 %v963, %v1062
      %v1191 = vmax.f32 %v484, %v1063
      %v1192 = vmax.f32 %v486, %v1064
      %v1193 = vmax.f32 %v645, %v1065
      %v1194 = vmax.f32 %v647, %v1066
      %v1195 = vmax.f32 %v806, %v1067
      %v1196 = vmax.f32 %v808, %v1068
      %v1197 = vmax.f32 %v967, %v1069
      %v1198 = vmax.f32 %v969, %v1070
      %v1199 = vmax.f32 %v490, %v1071
      %v1200 = vmax.f32 %v492, %v1072
      %v1201 = vmax.f32 %v651, %v1073
      %v1202 = vmax.f32 %v653, %v1074
      %v1203 = vmax.f32 %v812, %v1075
      %v1204 = vmax.f32 %v814, %v1076
      %v1205 = vmax.f32 %v973, %v1077
      %v1206 = vmax.f32 %v975, %v1078
      %v1207 = vmax.f32 %v496, %v1079
      %v1208 = vmax.f32 %v498, %v1080
      %v1209 = vmax.f32 %v657, %v1081
      %v1210 = vmax.f32 %v659, %v1082
      %v1211 = vmax.f32 %v818, %v1083
      %v1212 = vmax.f32 %v820, %v1084
      %v1213 = vmax.f32 %v979, %v1085
      %v1214 = vmax.f32 %v981, %v1086
      %v1215 = vmax.f32 %v502, %v1087
      %v1216 = vmax.f32 %v504, %v1088
      %v1217 = vmax.f32 %v663, %v1089
      %v1218 = vmax.f32 %v665, %v1090
      %v1219 = vmax.f32 %v824, %v1091
      %v1220 = vmax.f32 %v826, %v1092
      %v1221 = vmax.f32 %v985, %v1093
      %v1222 = vmax.f32 %v987, %v1094
      %v1223 = vmax.f32 %v508, %v1095
      %v1224 = vmax.f32 %v510, %v1096
      %v1225 = vmax.f32 %v669, %v1097
      %v1226 = vmax.f32 %v671, %v1098
      %v1227 = vmax.f32 %v830, %v1099
      %v1228 = vmax.f32 %v832, %v1100
      %v1229 = vmax.f32 %v991, %v1101
      %v1230 = vmax.f32 %v993, %v1102
      %v1231 = vmax.f32 %v514, %v1103
      %v1232 = vmax.f32 %v516, %v1104
      %v1233 = vmax.f32 %v675, %v1105
      %v1234 = vmax.f32 %v677, %v1106
      %v1235 = vmax.f32 %v836, %v1107
      %v1236 = vmax.f32 %v838, %v1108
      %v1237 = vmax.f32 %v997, %v1109
      %v1238 = vmax.f32 %v999, %v1110
      %v1239 = vmax.f32 %v520, %v1111
      %v1240 = vmax.f32 %v522, %v1112
      %v1241 = vmax.f32 %v681, %v1113
      %v1242 = vmax.f32 %v683, %v1114
      %v1243 = vmax.f32 %v842, %v1115
      %v1244 = vmax.f32 %v844, %v1116
      %v1245 = vmax.f32 %v1003, %v1117
      %v1246 = vmax.f32 %v1005, %v1118
      %v1247 = vmax.f32 %v526, %v1119
      %v1248 = vmax.f32 %v528, %v1120
      %v1249 = vmax.f32 %v687, %v1121
      %v1250 = vmax.f32 %v689, %v1122
      %v1251 = vmax.f32 %v848, %v1123
      %v1252 = vmax.f32 %v850, %v1124
      %v1253 = vmax.f32 %v1009, %v1125
      %v1254 = vmax.f32 %v1011, %v1126
      %v1255 = vmax.f32 %v532, %v1127
      %v1256 = vmax.f32 %v534, %v1128
      %v1257 = vmax.f32 %v693, %v1129
      %v1258 = vmax.f32 %v695, %v1130
      %v1259 = vmax.f32 %v854, %v1131
      %v1260 = vmax.f32 %v856, %v1132
      %v1261 = vmax.f32 %v1015, %v1133
      %v1262 = vmax.f32 %v1017, %v1134
      %v1263 = vmax.f32 %v538, %v1135
      %v1264 = vmax.f32 %v540, %v1136
      %v1265 = vmax.f32 %v699, %v1137
      %v1266 = vmax.f32 %v701, %v1138
      %v1267 = vmax.f32 %v860, %v1139
      %v1268 = vmax.f32 %v862, %v1140
      %v1269 = vmax.f32 %v1021, %v1141
      %v1270 = vmax.f32 %v1023, %v1142
      %v1271 = vmax.f32 %v544, %v1143
      %v1272 = vmax.f32 %v546, %v1144
      %v1273 = vmax.f32 %v705, %v1145
      %v1274 = vmax.f32 %v707, %v1146
      %v1275 = vmax.f32 %v866, %v1147
      %v1276 = vmax.f32 %v868, %v1148
      %v1277 = vmax.f32 %v1027, %v1149
      %v1278 = vmax.f32 %v1029, %v1150
      %v1279 = vmax.f32 %v550, %v1151
      %v1280 = vmax.f32 %v552, %v1152
      %v1281 = vmax.f32 %v711, %v1153
      %v1282 = vmax.f32 %v713, %v1154
      %v1283 = vmax.f32 %v872, %v1155
      %v1284 = vmax.f32 %v874, %v1156
      %v1285 = vmax.f32 %v1033, %v1157
      %v1286 = vmax.f32 %v1035, %v1158
      %v1287 = vmax.f32 %v556, %v1159
      %v1288 = vmax.f32 %v558, %v1160
      %v1289 = vmax.f32 %v717, %v1161
      %v1290 = vmax.f32 %v719, %v1162
      %v1291 = vmax.f32 %v878, %v1163
      %v1292 = vmax.f32 %v880, %v1164
      %v1293 = vmax.f32 %v1039, %v1165
      %v1294 = vmax.f32 %v1041, %v1166
      %v1295 = vmax.f32 %v562, %v1167
      %v1296 = vmax.f32 %v564, %v1168
      %v1297 = vmax.f32 %v723, %v1169
      %v1298 = vmax.f32 %v725, %v1170
      %v1299 = vmax.f32 %v884, %v1171
      %v1300 = vmax.f32 %v886, %v1172
      %v1301 = vmax.f32 %v1045, %v1173
      %v1302 = vmax.f32 %v1047, %v1174
      %v1303 = vmax.f32 %v568, %v1175
      %v1304 = vmax.f32 %v570, %v1176
      %v1305 = vmax.f32 %v729, %v1177
      %v1306 = vmax.f32 %v731, %v1178
      %v1307 = vmax.f32 %v890, %v1179
      %v1308 = vmax.f32 %v892, %v1180
      %v1309 = vmax.f32 %v1051, %v1181
      %v1310 = vmax.f32 %v1053, %v1182
      %1311 = vst [vmem:[%s170] sm:$0xff] %v1183
      %1312 = vst [vmem:[%s170 + $0x8] sm:$0xff] %v1184
      %1313 = vst [vmem:[%s170 + $0x10] sm:$0xff] %v1185
      %1314 = vst [vmem:[%s170 + $0x18] sm:$0xff] %v1186
      %1315 = vst [vmem:[%s170 + $0x20] sm:$0xff] %v1187
      %1316 = vst [vmem:[%s170 + $0x28] sm:$0xff] %v1188
      %1317 = vst [vmem:[%s170 + $0x30] sm:$0xff] %v1189
      %1318 = vst [vmem:[%s170 + $0x38] sm:$0xff] %v1190
      %1319 = vst [vmem:[%s170 + $0x40] sm:$0xff] %v1191
      %1320 = vst [vmem:[%s170 + $0x48] sm:$0xff] %v1192
      %1321 = vst [vmem:[%s170 + $0x50] sm:$0xff] %v1193
      %1322 = vst [vmem:[%s170 + $0x58] sm:$0xff] %v1194
      %1323 = vst [vmem:[%s170 + $0x60] sm:$0xff] %v1195
      %1324 = vst [vmem:[%s170 + $0x68] sm:$0xff] %v1196
      %1325 = vst [vmem:[%s170 + $0x70] sm:$0xff] %v1197
      %1326 = vst [vmem:[%s170 + $0x78] sm:$0xff] %v1198
      %1327 = vst [vmem:[%s170 + $0x80] sm:$0xff] %v1199
      %1328 = vst [vmem:[%s170 + $0x88] sm:$0xff] %v1200
      %1329 = vst [vmem:[%s170 + $0x90] sm:$0xff] %v1201
      %1330 = vst [vmem:[%s170 + $0x98] sm:$0xff] %v1202
      %1331 = vst [vmem:[%s170 + $0xa0] sm:$0xff] %v1203
      %1332 = vst [vmem:[%s170 + $0xa8] sm:$0xff] %v1204
      %1333 = vst [vmem:[%s170 + $0xb0] sm:$0xff] %v1205
      %1334 = vst [vmem:[%s170 + $0xb8] sm:$0xff] %v1206
      %1335 = vst [vmem:[%s170 + $0xc0] sm:$0xff] %v1207
      %1336 = vst [vmem:[%s170 + $0xc8] sm:$0xff] %v1208
      %1337 = vst [vmem:[%s170 + $0xd0] sm:$0xff] %v1209
      %1338 = vst [vmem:[%s170 + $0xd8] sm:$0xff] %v1210
      %1339 = vst [vmem:[%s170 + $0xe0] sm:$0xff] %v1211
      %1340 = vst [vmem:[%s170 + $0xe8] sm:$0xff] %v1212
      %1341 = vst [vmem:[%s170 + $0xf0] sm:$0xff] %v1213
      %1342 = vst [vmem:[%s170 + $0xf8] sm:$0xff] %v1214
      %1343 = vst [vmem:[%s170 + $0x100] sm:$0xff] %v1215
      %1344 = vst [vmem:[%s170 + $0x108] sm:$0xff] %v1216
      %1345 = vst [vmem:[%s170 + $0x110] sm:$0xff] %v1217
      %1346 = vst [vmem:[%s170 + $0x118] sm:$0xff] %v1218
      %1347 = vst [vmem:[%s170 + $0x120] sm:$0xff] %v1219
      %1348 = vst [vmem:[%s170 + $0x128] sm:$0xff] %v1220
      %1349 = vst [vmem:[%s170 + $0x130] sm:$0xff] %v1221
      %1350 = vst [vmem:[%s170 + $0x138] sm:$0xff] %v1222
      %1351 = vst [vmem:[%s170 + $0x140] sm:$0xff] %v1223
      %1352 = vst [vmem:[%s170 + $0x148] sm:$0xff] %v1224
      %1353 = vst [vmem:[%s170 + $0x150] sm:$0xff] %v1225
      %1354 = vst [vmem:[%s170 + $0x158] sm:$0xff] %v1226
      %1355 = vst [vmem:[%s170 + $0x160] sm:$0xff] %v1227
      %1356 = vst [vmem:[%s170 + $0x168] sm:$0xff] %v1228
      %1357 = vst [vmem:[%s170 + $0x170] sm:$0xff] %v1229
      %1358 = vst [vmem:[%s170 + $0x178] sm:$0xff] %v1230
      %1359 = vst [vmem:[%s170 + $0x180] sm:$0xff] %v1231
      %1360 = vst [vmem:[%s170 + $0x188] sm:$0xff] %v1232
      %1361 = vst [vmem:[%s170 + $0x190] sm:$0xff] %v1233
      %1362 = vst [vmem:[%s170 + $0x198] sm:$0xff] %v1234
      %1363 = vst [vmem:[%s170 + $0x1a0] sm:$0xff] %v1235
      %1364 = vst [vmem:[%s170 + $0x1a8] sm:$0xff] %v1236
      %1365 = vst [vmem:[%s170 + $0x1b0] sm:$0xff] %v1237
      %1366 = vst [vmem:[%s170 + $0x1b8] sm:$0xff] %v1238
      %1367 = vst [vmem:[%s170 + $0x1c0] sm:$0xff] %v1239
      %1368 = vst [vmem:[%s170 + $0x1c8] sm:$0xff] %v1240
      %1369 = vst [vmem:[%s170 + $0x1d0] sm:$0xff] %v1241
      %1370 = vst [vmem:[%s170 + $0x1d8] sm:$0xff] %v1242
      %1371 = vst [vmem:[%s170 + $0x1e0] sm:$0xff] %v1243
      %1372 = vst [vmem:[%s170 + $0x1e8] sm:$0xff] %v1244
      %1373 = vst [vmem:[%s170 + $0x1f0] sm:$0xff] %v1245
      %1374 = vst [vmem:[%s170 + $0x1f8] sm:$0xff] %v1246
      %1375 = vst [vmem:[%s170 + $0x200] sm:$0xff] %v1247
      %1376 = vst [vmem:[%s170 + $0x208] sm:$0xff] %v1248
      %1377 = vst [vmem:[%s170 + $0x210] sm:$0xff] %v1249
      %1378 = vst [vmem:[%s170 + $0x218] sm:$0xff] %v1250
      %1379 = vst [vmem:[%s170 + $0x220] sm:$0xff] %v1251
      %1380 = vst [vmem:[%s170 + $0x228] sm:$0xff] %v1252
      %1381 = vst [vmem:[%s170 + $0x230] sm:$0xff] %v1253
      %1382 = vst [vmem:[%s170 + $0x238] sm:$0xff] %v1254
      %1383 = vst [vmem:[%s170 + $0x240] sm:$0xff] %v1255
      %1384 = vst [vmem:[%s170 + $0x248] sm:$0xff] %v1256
      %1385 = vst [vmem:[%s170 + $0x250] sm:$0xff] %v1257
      %1386 = vst [vmem:[%s170 + $0x258] sm:$0xff] %v1258
      %1387 = vst [vmem:[%s170 + $0x260] sm:$0xff] %v1259
      %1388 = vst [vmem:[%s170 + $0x268] sm:$0xff] %v1260
      %1389 = vst [vmem:[%s170 + $0x270] sm:$0xff] %v1261
      %1390 = vst [vmem:[%s170 + $0x278] sm:$0xff] %v1262
      %1391 = vst [vmem:[%s170 + $0x280] sm:$0xff] %v1263
      %1392 = vst [vmem:[%s170 + $0x288] sm:$0xff] %v1264
      %1393 = vst [vmem:[%s170 + $0x290] sm:$0xff] %v1265
      %1394 = vst [vmem:[%s170 + $0x298] sm:$0xff] %v1266
      %1395 = vst [vmem:[%s170 + $0x2a0] sm:$0xff] %v1267
      %1396 = vst [vmem:[%s170 + $0x2a8] sm:$0xff] %v1268
      %1397 = vst [vmem:[%s170 + $0x2b0] sm:$0xff] %v1269
      %1398 = vst [vmem:[%s170 + $0x2b8] sm:$0xff] %v1270
      %1399 = vst [vmem:[%s170 + $0x2c0] sm:$0xff] %v1271
      %1400 = vst [vmem:[%s170 + $0x2c8] sm:$0xff] %v1272
      %1401 = vst [vmem:[%s170 + $0x2d0] sm:$0xff] %v1273
      %1402 = vst [vmem:[%s170 + $0x2d8] sm:$0xff] %v1274
      %1403 = vst [vmem:[%s170 + $0x2e0] sm:$0xff] %v1275
      %1404 = vst [vmem:[%s170 + $0x2e8] sm:$0xff] %v1276
      %1405 = vst [vmem:[%s170 + $0x2f0] sm:$0xff] %v1277
      %1406 = vst [vmem:[%s170 + $0x2f8] sm:$0xff] %v1278
      %1407 = vst [vmem:[%s170 + $0x300] sm:$0xff] %v1279
      %1408 = vst [vmem:[%s170 + $0x308] sm:$0xff] %v1280
      %1409 = vst [vmem:[%s170 + $0x310] sm:$0xff] %v1281
      %1410 = vst [vmem:[%s170 + $0x318] sm:$0xff] %v1282
      %1411 = vst [vmem:[%s170 + $0x320] sm:$0xff] %v1283
      %1412 = vst [vmem:[%s170 + $0x328] sm:$0xff] %v1284
      %1413 = vst [vmem:[%s170 + $0x330] sm:$0xff] %v1285
      %1414 = vst [vmem:[%s170 + $0x338] sm:$0xff] %v1286
      %1415 = vst [vmem:[%s170 + $0x340] sm:$0xff] %v1287
      %1416 = vst [vmem:[%s170 + $0x348] sm:$0xff] %v1288
      %1417 = vst [vmem:[%s170 + $0x350] sm:$0xff] %v1289
      %1418 = vst [vmem:[%s170 + $0x358] sm:$0xff] %v1290
      %1419 = vst [vmem:[%s170 + $0x360] sm:$0xff] %v1291
      %1420 = vst [vmem:[%s170 + $0x368] sm:$0xff] %v1292
      %1421 = vst [vmem:[%s170 + $0x370] sm:$0xff] %v1293
      %1422 = vst [vmem:[%s170 + $0x378] sm:$0xff] %v1294
      %1423 = vst [vmem:[%s170 + $0x380] sm:$0xff] %v1295
      %1424 = vst [vmem:[%s170 + $0x388] sm:$0xff] %v1296
      %1425 = vst [vmem:[%s170 + $0x390] sm:$0xff] %v1297
      %1426 = vst [vmem:[%s170 + $0x398] sm:$0xff] %v1298
      %1427 = vst [vmem:[%s170 + $0x3a0] sm:$0xff] %v1299
      %1428 = vst [vmem:[%s170 + $0x3a8] sm:$0xff] %v1300
      %1429 = vst [vmem:[%s170 + $0x3b0] sm:$0xff] %v1301
      %1430 = vst [vmem:[%s170 + $0x3b8] sm:$0xff] %v1302
      %1431 = vst [vmem:[%s170 + $0x3c0] sm:$0xff] %v1303
      %1432 = vst [vmem:[%s170 + $0x3c8] sm:$0xff] %v1304
      %1433 = vst [vmem:[%s170 + $0x3d0] sm:$0xff] %v1305
      %1434 = vst [vmem:[%s170 + $0x3d8] sm:$0xff] %v1306
      %1435 = vst [vmem:[%s170 + $0x3e0] sm:$0xff] %v1307
      %1436 = vst [vmem:[%s170 + $0x3e8] sm:$0xff] %v1308
      %1437 = vst [vmem:[%s170 + $0x3f0] sm:$0xff] %v1309
      %1438 = vst [vmem:[%s170 + $0x3f8] sm:$0xff] %v1310
      %p1439 = scmp.lt.s32.totalorder %s14, 1
      %s1440 = scalar_select %p1439, %s14, 1
      %s1441 = smul.addr %s1440, 128
      %s1442 = smul.addr %s1441, 8
      %s1443 = scalar_lea.vmem %s3, %s1442
      // Predicated region
      $region33: #{decoder_forward.8} parent=31 // pred_check
        %p1444 = pneg %p100
      $region34: #{decoder_forward.8} parent=31 // pred_check_branch
        %1446 = sbr.rel (%p1444) target = $region36
      $region35: #{decoder_forward.8} parent=31 // pred_region
        _
      $region36: #{decoder_forward.8} parent=31 // pred_fallthru
        _
    $region32: #{decoder_forward.8} parent=5 // pred_fallthru
      _
    %p1447 = scmp.le.s32.totalorder 2, %s9
    // Predicated region
    $region37: #{decoder_forward.8} parent=5 // pred_check
      %p1448 = pneg %p1447
    $region38: #{decoder_forward.8} parent=5 // pred_check_branch
      %1450 = sbr.rel (%p1448) target = $region40
    $region39: #{decoder_forward.8} parent=5 // pred_region
      %s1451 = ssub.s32 %s9, 2
      // Predicated region
      $region41: #{decoder_forward.8} parent=39 // pred_check
        %p1452 = pneg %p106
      $region42: #{decoder_forward.8} parent=39 // pred_check_branch
        %1454 = sbr.rel (%p1452) target = $region44
      $region43: #{decoder_forward.8} parent=39 // pred_region
        %p1455 = scmp.lt.s32.totalorder %s15, 1
        %s1456 = scalar_select %p1455, %s15, 1
        %s1457 = smul.addr %s1456, 128
        %s1458 = smul.addr %s1457, 8
        %s1459 = scalar_lea.vmem %s3, %s1458
      $region44: #{decoder_forward.8} parent=39 // pred_fallthru
        _
    $region40: #{decoder_forward.8} parent=5 // pred_fallthru
      _
  $region6: #{decoder_forward.8} parent=0 // loop_footer
    %s13 = sadd.s32 1, %s9
  $region7: #{decoder_forward.8} parent=0 // loop_footer_branch
    %8 = sbr.rel target = $region3
  $region8: #{decoder_forward.8} parent=0 // loop_exit
    _

// kernel: decoder_forward.9
$region0: #{decoder_forward.9}
  #allocation0 [shape = 'u32[]', space=smem, size = 0x4, offset = 0x4, fixed_abs, tag = 'smem constant byte address 0x4 - core index']
  #allocation1 [shape = 'u32[144,128]{1,0:T(1,128)}', space=vmem, size = 0x12000, scoped, tag = 'internal scratch']
  %s0 = inlined_call_operand.vmem [shape: f32[2,128,3968], index: 0, kind: input, shape index: {}]
  %s1 = inlined_call_operand.vmem [shape: f32[12,128], index: 1, kind: input, shape index: {}]
  %s2 = inlined_call_operand.vmem [shape: f32[12,1], index: 2, kind: input, shape index: {}]
  %s3 = inlined_call_operand.vmem [shape: f32[2,12,3968], index: 3, kind: output, shape index: {}]
  %s4 = sld [smem:[#allocation0]]
  $region45: #{decoder_forward.9} parent=0
    _
  %s6 = ssub.s32 1, %s4
  %s7 = scalar_select 0, %s6, %s4
  loop: start=0, step=1, limit=4
  $region2: #{decoder_forward.9} parent=0 // loop_pre_header
    _
  $region3: #{decoder_forward.9} parent=0 // loop_header
    %s9 = sphi 0, %s13
    %p10 = scmp.ge.s32.totalorder %s9, 4
    %s19 = sphi 0, %s21
    %s22 = sphi 0, %s19
    %s23 = sphi 0, %s22
    %s39 = sphi 0, %s23
    %s43 = sphi 0, %s43
    %s45 = sphi 0, %s43
    %s46 = sphi 0, %s45
    %s60 = sphi 0, %s46
    %s64 = sphi 0, %s64
    %s66 = sphi 0, %s64
    %s67 = sphi 0, %s66
    %s81 = sphi 0, %s67
    %s87 = sphi 0, %s89
    %s90 = sphi 0, %s87
    %s91 = sphi 0, %s90
    %s107 = sphi 0, %s91
  $region4: #{decoder_forward.9} parent=0 // loop_header_branch
    %12 = sbr.rel (%p10) target = $region8
  $region5: #{decoder_forward.9} parent=0 // loop_body
    %s14 = ssub.s32 %s9, 1
    %s15 = ssub.s32 %s9, 2
    %s16 = sadd.s32 %s9, 1
    %s17 = ssub.s32 %s9, %s16
    %p18 = scmp.eq.s32.totalorder %s17, 0
    %s20 = sadd.s32 %s19, 1
    %s21 = scalar_select %p18, %s19, %s20
    %p24 = pneg %p18
    %p25 = scmp.eq.s32.totalorder %s9, 1
    %p26 = por %p24, %p25
    %p27 = scmp.ne.s32.totalorder %s19, %s22
    %p28 = scmp.eq.s32.totalorder %s9, 0
    %p29 = por %p27, %p28
    %p30 = scmp.ne.s32.totalorder %s19, %s22
    %p31 = scmp.eq.s32.totalorder %s14, 1
    %p32 = por %p30, %p31
    %p33 = scmp.ne.s32.totalorder %s22, %s23
    %p34 = scmp.eq.s32.totalorder %s14, 0
    %p35 = por %p33, %p34
    %p36 = scmp.ne.s32.totalorder %s22, %s23
    %p37 = scmp.eq.s32.totalorder %s15, 1
    %p38 = por %p36, %p37
    %p40 = scmp.ne.s32.totalorder %s23, %s39
    %p41 = scmp.eq.s32.totalorder %s15, 0
    %p42 = por %p40, %p41
    %s44 = sadd.s32 %s43, 1
    %p47 = scmp.eq.s32.totalorder %s9, 1
    %p48 = scmp.ne.s32.totalorder %s43, %s45
    %p49 = scmp.eq.s32.totalorder %s9, 0
    %p50 = por %p48, %p49
    %p51 = scmp.ne.s32.totalorder %s43, %s45
    %p52 = scmp.eq.s32.totalorder %s14, 1
    %p53 = por %p51, %p52
    %p54 = scmp.ne.s32.totalorder %s45, %s46
    %p55 = scmp.eq.s32.totalorder %s14, 0
    %p56 = por %p54, %p55
    %p57 = scmp.ne.s32.totalorder %s45, %s46
    %p58 = scmp.eq.s32.totalorder %s15, 1
    %p59 = por %p57, %p58
    %p61 = scmp.ne.s32.totalorder %s46, %s60
    %p62 = scmp.eq.s32.totalorder %s15, 0
    %p63 = por %p61, %p62
    %s65 = sadd.s32 %s64, 1
    %p68 = scmp.eq.s32.totalorder %s9, 1
    %p69 = scmp.ne.s32.totalorder %s64, %s66
    %p70 = scmp.eq.s32.totalorder %s9, 0
    %p71 = por %p69, %p70
    %p72 = scmp.ne.s32.totalorder %s64, %s66
    %p73 = scmp.eq.s32.totalorder %s14, 1
    %p74 = por %p72, %p73
    %p75 = scmp.ne.s32.totalorder %s66, %s67
    %p76 = scmp.eq.s32.totalorder %s14, 0
    %p77 = por %p75, %p76
    %p78 = scmp.ne.s32.totalorder %s66, %s67
    %p79 = scmp.eq.s32.totalorder %s15, 1
    %p80 = por %p78, %p79
    %p82 = scmp.ne.s32.totalorder %s67, %s81
    %p83 = scmp.eq.s32.totalorder %s15, 0
    %p84 = por %p82, %p83
    %s85 = ssub.s32 %s9, %s16
    %p86 = scmp.eq.s32.totalorder %s85, 0
    %s88 = sadd.s32 %s87, 1
    %s89 = scalar_select %p86, %s87, %s88
    %p92 = pneg %p86
    %p93 = scmp.eq.s32.totalorder %s9, 1
    %p94 = por %p92, %p93
    %p95 = scmp.ne.s32.totalorder %s87, %s90
    %p96 = scmp.eq.s32.totalorder %s9, 0
    %p97 = por %p95, %p96
    %p98 = scmp.ne.s32.totalorder %s87, %s90
    %p99 = scmp.eq.s32.totalorder %s14, 1
    %p100 = por %p98, %p99
    %p101 = scmp.ne.s32.totalorder %s90, %s91
    %p102 = scmp.eq.s32.totalorder %s14, 0
    %p103 = por %p101, %p102
    %p104 = scmp.ne.s32.totalorder %s90, %s91
    %p105 = scmp.eq.s32.totalorder %s15, 1
    %p106 = por %p104, %p105
    %p108 = scmp.ne.s32.totalorder %s91, %s107
    %p109 = scmp.eq.s32.totalorder %s15, 0
    %p110 = por %p108, %p109
    %p111 = scmp.le.s32.totalorder 1, %s9
    %p112 = scmp.lt.s32.totalorder %s9, 3
    %p113 = pnand %p111, %p112
    %p114 = pneg %p113
    // Predicated region
    $region9: #{decoder_forward.9} parent=5 // pred_check
      _
    $region10: #{decoder_forward.9} parent=5 // pred_check_branch
      %116 = sbr.rel (%p113) target = $region12
    $region11: #{decoder_forward.9} parent=5 // pred_region
      %s117 = ssub.s32 %s9, 1
      // Predicated region
      $region13: #{decoder_forward.9} parent=11 // pred_check
        %p118 = pneg %p56
      $region14: #{decoder_forward.9} parent=11 // pred_check_branch
        %120 = sbr.rel (%p118) target = $region16
      $region15: #{decoder_forward.9} parent=11 // pred_region
        _
      $region16: #{decoder_forward.9} parent=11 // pred_fallthru
        _
      // Predicated region
      $region17: #{decoder_forward.9} parent=11 // pred_check
        %p121 = pneg %p77
      $region18: #{decoder_forward.9} parent=11 // pred_check_branch
        %123 = sbr.rel (%p121) target = $region20
      $region19: #{decoder_forward.9} parent=11 // pred_region
        _
      $region20: #{decoder_forward.9} parent=11 // pred_fallthru
        _
    $region12: #{decoder_forward.9} parent=5 // pred_fallthru
      _
    %p124 = scmp.lt.s32.totalorder %s9, 2
    // Predicated region
    $region21: #{decoder_forward.9} parent=5 // pred_check
      %p125 = pneg %p124
    $region22: #{decoder_forward.9} parent=5 // pred_check_branch
      %127 = sbr.rel (%p125) target = $region24
    $region23: #{decoder_forward.9} parent=5 // pred_region
      // Predicated region
      $region25: #{decoder_forward.9} parent=23 // pred_check
        %p128 = pneg %p29
      $region26: #{decoder_forward.9} parent=23 // pred_check_branch
        %130 = sbr.rel (%p128) target = $region28
      $region27: #{decoder_forward.9} parent=23 // pred_region
        %p131 = scmp.lt.s32.totalorder %s9, 1
        %s132 = scalar_select %p131, %s9, 1
        %s133 = smul.addr %s132, 496
        %s134 = smul.addr %s133, 8
        %s135 = scalar_lea.vmem %s0, %s134
      $region28: #{decoder_forward.9} parent=23 // pred_fallthru
        _
    $region24: #{decoder_forward.9} parent=5 // pred_fallthru
      _
    %p136 = scmp.le.s32.totalorder 1, %s9
    %p137 = scmp.lt.s32.totalorder %s9, 3
    %p138 = pnand %p136, %p137
    %p139 = pneg %p138
    // Predicated region
    $region29: #{decoder_forward.9} parent=5 // pred_check
      _
    $region30: #{decoder_forward.9} parent=5 // pred_check_branch
      %141 = sbr.rel (%p138) target = $region32
    $region31: #{decoder_forward.9} parent=5 // pred_region
      %s142 = ssub.s32 %s9, 1
      %p143 = scmp.lt.s32.totalorder %s14, 1
      %s144 = scalar_select %p143, %s14, 1
      %s145 = smul.addr %s144, 496
      %s146 = smul.addr %s145, 8
      %s147 = scalar_lea.vmem %s0, %s146
      %p148 = pneg %p35
      %p149 = pneg %p32
      %p150 = pneg %p56
      %p151 = pneg %p53
      %p152 = pneg %p77
      %p153 = pneg %p74
      %p154 = pneg %p103
      %p155 = pneg %p100
      %p156 = scmp.lt.s32.totalorder %s14, 1
      %s157 = scalar_select %p156, %s14, 1
      %s158 = smul.addr %s157, 62
      %s159 = smul.addr %s158, 8
      %s160 = scalar_lea.vmem %s3, %s159
      %p161 = scmp.lt.s32.totalorder %s14, 1
      %s162 = scalar_select %p161, %s14, 1
      %s163 = smul.addr %s162, 496
      %s164 = smul.addr %s163, 8
      %s165 = scalar_lea.vmem %s0, %s164
      %p166 = scmp.lt.s32.totalorder %s14, 1
      %s167 = scalar_select %p166, %s14, 1
      %s168 = smul.addr %s167, 62
      %s169 = smul.addr %s168, 8
      %s170 = scalar_lea.vmem %s3, %s169
      %v171 = vld [vmem:[%s1] sm:$0xff]
      %v172 = vld [vmem:[%s1 + $0x8] sm:$0xf]
      %v173 = vld [vmem:[%s165] sm:$0xff]
      %v174 = vld [vmem:[%s165 + $0x8] sm:$0xff]
      %v175 = vld [vmem:[%s165 + $0x10] sm:$0xff]
      %v176 = vld [vmem:[%s165 + $0x18] sm:$0xff]
      %v177 = vld [vmem:[%s165 + $0x20] sm:$0xff]
      %v178 = vld [vmem:[%s165 + $0x28] sm:$0xff]
      %v179 = vld [vmem:[%s165 + $0x30] sm:$0xff]
      %v180 = vld [vmem:[%s165 + $0x38] sm:$0xff]
      %v181 = vld [vmem:[%s165 + $0x40] sm:$0xff]
      %v182 = vld [vmem:[%s165 + $0x48] sm:$0xff]
      %v183 = vld [vmem:[%s165 + $0x50] sm:$0xff]
      %v184 = vld [vmem:[%s165 + $0x58] sm:$0xff]
      %v185 = vld [vmem:[%s165 + $0x60] sm:$0xff]
      %v186 = vld [vmem:[%s165 + $0x68] sm:$0xff]
      %v187 = vld [vmem:[%s165 + $0x70] sm:$0xff]
      %v188 = vld [vmem:[%s165 + $0x78] sm:$0xff]
      %v189 = vld [vmem:[%s165 + $0x80] sm:$0xff]
      %v190 = vld [vmem:[%s165 + $0x88] sm:$0xff]
      %v191 = vld [vmem:[%s165 + $0x90] sm:$0xff]
      %v192 = vld [vmem:[%s165 + $0x98] sm:$0xff]
      %v193 = vld [vmem:[%s165 + $0xa0] sm:$0xff]
      %v194 = vld [vmem:[%s165 + $0xa8] sm:$0xff]
      %v195 = vld [vmem:[%s165 + $0xb0] sm:$0xff]
      %v196 = vld [vmem:[%s165 + $0xb8] sm:$0xff]
      %v197 = vld [vmem:[%s165 + $0xc0] sm:$0xff]
      %v198 = vld [vmem:[%s165 + $0xc8] sm:$0xff]
      %v199 = vld [vmem:[%s165 + $0xd0] sm:$0xff]
      %v200 = vld [vmem:[%s165 + $0xd8] sm:$0xff]
      %v201 = vld [vmem:[%s165 + $0xe0] sm:$0xff]
      %v202 = vld [vmem:[%s165 + $0xe8] sm:$0xff]
      %v203 = vld [vmem:[%s165 + $0xf0] sm:$0xff]
      %v204 = vld [vmem:[%s165 + $0xf8] sm:$0xff]
      %v205 = vld [vmem:[%s165 + $0x100] sm:$0xff]
      %v206 = vld [vmem:[%s165 + $0x108] sm:$0xff]
      %v207 = vld [vmem:[%s165 + $0x110] sm:$0xff]
      %v208 = vld [vmem:[%s165 + $0x118] sm:$0xff]
      %v209 = vld [vmem:[%s165 + $0x120] sm:$0xff]
      %v210 = vld [vmem:[%s165 + $0x128] sm:$0xff]
      %v211 = vld [vmem:[%s165 + $0x130] sm:$0xff]
      %v212 = vld [vmem:[%s165 + $0x138] sm:$0xff]
      %v213 = vld [vmem:[%s165 + $0x140] sm:$0xff]
      %v214 = vld [vmem:[%s165 + $0x148] sm:$0xff]
      %v215 = vld [vmem:[%s165 + $0x150] sm:$0xff]
      %v216 = vld [vmem:[%s165 + $0x158] sm:$0xff]
      %v217 = vld [vmem:[%s165 + $0x160] sm:$0xff]
      %v218 = vld [vmem:[%s165 + $0x168] sm:$0xff]
      %v219 = vld [vmem:[%s165 + $0x170] sm:$0xff]
      %v220 = vld [vmem:[%s165 + $0x178] sm:$0xff]
      %v221 = vld [vmem:[%s165 + $0x180] sm:$0xff]
      %v222 = vld [vmem:[%s165 + $0x188] sm:$0xff]
      %v223 = vld [vmem:[%s165 + $0x190] sm:$0xff]
      %v224 = vld [vmem:[%s165 + $0x198] sm:$0xff]
      %v225 = vld [vmem:[%s165 + $0x1a0] sm:$0xff]
      %v226 = vld [vmem:[%s165 + $0x1a8] sm:$0xff]
      %v227 = vld [vmem:[%s165 + $0x1b0] sm:$0xff]
      %v228 = vld [vmem:[%s165 + $0x1b8] sm:$0xff]
      %v229 = vld [vmem:[%s165 + $0x1c0] sm:$0xff]
      %v230 = vld [vmem:[%s165 + $0x1c8] sm:$0xff]
      %v231 = vld [vmem:[%s165 + $0x1d0] sm:$0xff]
      %v232 = vld [vmem:[%s165 + $0x1d8] sm:$0xff]
      %v233 = vld [vmem:[%s165 + $0x1e0] sm:$0xff]
      %v234 = vld [vmem:[%s165 + $0x1e8] sm:$0xff]
      %v235 = vld [vmem:[%s165 + $0x1f0] sm:$0xff]
      %v236 = vld [vmem:[%s165 + $0x1f8] sm:$0xff]
      %v237 = vld [vmem:[%s165 + $0x200] sm:$0xff]
      %v238 = vld [vmem:[%s165 + $0x208] sm:$0xff]
      %v239 = vld [vmem:[%s165 + $0x210] sm:$0xff]
      %v240 = vld [vmem:[%s165 + $0x218] sm:$0xff]
      %v241 = vld [vmem:[%s165 + $0x220] sm:$0xff]
      %v242 = vld [vmem:[%s165 + $0x228] sm:$0xff]
      %v243 = vld [vmem:[%s165 + $0x230] sm:$0xff]
      %v244 = vld [vmem:[%s165 + $0x238] sm:$0xff]
      %v245 = vld [vmem:[%s165 + $0x240] sm:$0xff]
      %v246 = vld [vmem:[%s165 + $0x248] sm:$0xff]
      %v247 = vld [vmem:[%s165 + $0x250] sm:$0xff]
      %v248 = vld [vmem:[%s165 + $0x258] sm:$0xff]
      %v249 = vld [vmem:[%s165 + $0x260] sm:$0xff]
      %v250 = vld [vmem:[%s165 + $0x268] sm:$0xff]
      %v251 = vld [vmem:[%s165 + $0x270] sm:$0xff]
      %v252 = vld [vmem:[%s165 + $0x278] sm:$0xff]
      %v253 = vld [vmem:[%s165 + $0x280] sm:$0xff]
      %v254 = vld [vmem:[%s165 + $0x288] sm:$0xff]
      %v255 = vld [vmem:[%s165 + $0x290] sm:$0xff]
      %v256 = vld [vmem:[%s165 + $0x298] sm:$0xff]
      %v257 = vld [vmem:[%s165 + $0x2a0] sm:$0xff]
      %v258 = vld [vmem:[%s165 + $0x2a8] sm:$0xff]
      %v259 = vld [vmem:[%s165 + $0x2b0] sm:$0xff]
      %v260 = vld [vmem:[%s165 + $0x2b8] sm:$0xff]
      %v261 = vld [vmem:[%s165 + $0x2c0] sm:$0xff]
      %v262 = vld [vmem:[%s165 + $0x2c8] sm:$0xff]
      %v263 = vld [vmem:[%s165 + $0x2d0] sm:$0xff]
      %v264 = vld [vmem:[%s165 + $0x2d8] sm:$0xff]
      %v265 = vld [vmem:[%s165 + $0x2e0] sm:$0xff]
      %v266 = vld [vmem:[%s165 + $0x2e8] sm:$0xff]
      %v267 = vld [vmem:[%s165 + $0x2f0] sm:$0xff]
      %v268 = vld [vmem:[%s165 + $0x2f8] sm:$0xff]
      %v269 = vld [vmem:[%s165 + $0x300] sm:$0xff]
      %v270 = vld [vmem:[%s165 + $0x308] sm:$0xff]
      %v271 = vld [vmem:[%s165 + $0x310] sm:$0xff]
      %v272 = vld [vmem:[%s165 + $0x318] sm:$0xff]
      %v273 = vld [vmem:[%s165 + $0x320] sm:$0xff]
      %v274 = vld [vmem:[%s165 + $0x328] sm:$0xff]
      %v275 = vld [vmem:[%s165 + $0x330] sm:$0xff]
      %v276 = vld [vmem:[%s165 + $0x338] sm:$0xff]
      %v277 = vld [vmem:[%s165 + $0x340] sm:$0xff]
      %v278 = vld [vmem:[%s165 + $0x348] sm:$0xff]
      %v279 = vld [vmem:[%s165 + $0x350] sm:$0xff]
      %v280 = vld [vmem:[%s165 + $0x358] sm:$0xff]
      %v281 = vld [vmem:[%s165 + $0x360] sm:$0xff]
      %v282 = vld [vmem:[%s165 + $0x368] sm:$0xff]
      %v283 = vld [vmem:[%s165 + $0x370] sm:$0xff]
      %v284 = vld [vmem:[%s165 + $0x378] sm:$0xff]
      %v285 = vld [vmem:[%s165 + $0x380] sm:$0xff]
      %v286 = vld [vmem:[%s165 + $0x388] sm:$0xff]
      %v287 = vld [vmem:[%s165 + $0x390] sm:$0xff]
      %v288 = vld [vmem:[%s165 + $0x398] sm:$0xff]
      %v289 = vld [vmem:[%s165 + $0x3a0] sm:$0xff]
      %v290 = vld [vmem:[%s165 + $0x3a8] sm:$0xff]
      %v291 = vld [vmem:[%s165 + $0x3b0] sm:$0xff]
      %v292 = vld [vmem:[%s165 + $0x3b8] sm:$0xff]
      %v293 = vld [vmem:[%s165 + $0x3c0] sm:$0xff]
      %v294 = vld [vmem:[%s165 + $0x3c8] sm:$0xff]
      %v295 = vld [vmem:[%s165 + $0x3d0] sm:$0xff]
      %v296 = vld [vmem:[%s165 + $0x3d8] sm:$0xff]
      %v297 = vld [vmem:[%s165 + $0x3e0] sm:$0xff]
      %v298 = vld [vmem:[%s165 + $0x3e8] sm:$0xff]
      %v299 = vld [vmem:[%s165 + $0x3f0] sm:$0xff]
      %v300 = vld [vmem:[%s165 + $0x3f8] sm:$0xff]
      %v301 = vld [vmem:[%s165 + $0x400] sm:$0xff]
      %v302 = vld [vmem:[%s165 + $0x408] sm:$0xff]
      %v303 = vld [vmem:[%s165 + $0x410] sm:$0xff]
      %v304 = vld [vmem:[%s165 + $0x418] sm:$0xff]
      %v305 = vld [vmem:[%s165 + $0x420] sm:$0xff]
      %v306 = vld [vmem:[%s165 + $0x428] sm:$0xff]
      %v307 = vld [vmem:[%s165 + $0x430] sm:$0xff]
      %v308 = vld [vmem:[%s165 + $0x438] sm:$0xff]
      %v309 = vld [vmem:[%s165 + $0x440] sm:$0xff]
      %v310 = vld [vmem:[%s165 + $0x448] sm:$0xff]
      %v311 = vld [vmem:[%s165 + $0x450] sm:$0xff]
      %v312 = vld [vmem:[%s165 + $0x458] sm:$0xff]
      %v313 = vld [vmem:[%s165 + $0x460] sm:$0xff]
      %v314 = vld [vmem:[%s165 + $0x468] sm:$0xff]
      %v315 = vld [vmem:[%s165 + $0x470] sm:$0xff]
      %v316 = vld [vmem:[%s165 + $0x478] sm:$0xff]
      %v317 = vld [vmem:[%s165 + $0x480] sm:$0xff]
      %v318 = vld [vmem:[%s165 + $0x488] sm:$0xff]
      %v319 = vld [vmem:[%s165 + $0x490] sm:$0xff]
      %v320 = vld [vmem:[%s165 + $0x498] sm:$0xff]
      %v321 = vld [vmem:[%s165 + $0x4a0] sm:$0xff]
      %v322 = vld [vmem:[%s165 + $0x4a8] sm:$0xff]
      %v323 = vld [vmem:[%s165 + $0x4b0] sm:$0xff]
      %v324 = vld [vmem:[%s165 + $0x4b8] sm:$0xff]
      %v325 = vld [vmem:[%s165 + $0x4c0] sm:$0xff]
      %v326 = vld [vmem:[%s165 + $0x4c8] sm:$0xff]
      %v327 = vld [vmem:[%s165 + $0x4d0] sm:$0xff]
      %v328 = vld [vmem:[%s165 + $0x4d8] sm:$0xff]
      %v329 = vld [vmem:[%s165 + $0x4e0] sm:$0xff]
      %v330 = vld [vmem:[%s165 + $0x4e8] sm:$0xff]
      %v331 = vld [vmem:[%s165 + $0x4f0] sm:$0xff]
      %v332 = vld [vmem:[%s165 + $0x4f8] sm:$0xff]
      %v333 = vld [vmem:[%s165 + $0x500] sm:$0xff]
      %v334 = vld [vmem:[%s165 + $0x508] sm:$0xff]
      %v335 = vld [vmem:[%s165 + $0x510] sm:$0xff]
      %v336 = vld [vmem:[%s165 + $0x518] sm:$0xff]
      %v337 = vld [vmem:[%s165 + $0x520] sm:$0xff]
      %v338 = vld [vmem:[%s165 + $0x528] sm:$0xff]
      %v339 = vld [vmem:[%s165 + $0x530] sm:$0xff]
      %v340 = vld [vmem:[%s165 + $0x538] sm:$0xff]
      %v341 = vld [vmem:[%s165 + $0x540] sm:$0xff]
      %v342 = vld [vmem:[%s165 + $0x548] sm:$0xff]
      %v343 = vld [vmem:[%s165 + $0x550] sm:$0xff]
      %v344 = vld [vmem:[%s165 + $0x558] sm:$0xff]
      %v345 = vld [vmem:[%s165 + $0x560] sm:$0xff]
      %v346 = vld [vmem:[%s165 + $0x568] sm:$0xff]
      %v347 = vld [vmem:[%s165 + $0x570] sm:$0xff]
      %v348 = vld [vmem:[%s165 + $0x578] sm:$0xff]
      %v349 = vld [vmem:[%s165 + $0x580] sm:$0xff]
      %v350 = vld [vmem:[%s165 + $0x588] sm:$0xff]
      %v351 = vld [vmem:[%s165 + $0x590] sm:$0xff]
      %v352 = vld [vmem:[%s165 + $0x598] sm:$0xff]
      %v353 = vld [vmem:[%s165 + $0x5a0] sm:$0xff]
      %v354 = vld [vmem:[%s165 + $0x5a8] sm:$0xff]
      %v355 = vld [vmem:[%s165 + $0x5b0] sm:$0xff]
      %v356 = vld [vmem:[%s165 + $0x5b8] sm:$0xff]
      %v357 = vld [vmem:[%s165 + $0x5c0] sm:$0xff]
      %v358 = vld [vmem:[%s165 + $0x5c8] sm:$0xff]
      %v359 = vld [vmem:[%s165 + $0x5d0] sm:$0xff]
      %v360 = vld [vmem:[%s165 + $0x5d8] sm:$0xff]
      %v361 = vld [vmem:[%s165 + $0x5e0] sm:$0xff]
      %v362 = vld [vmem:[%s165 + $0x5e8] sm:$0xff]
      %v363 = vld [vmem:[%s165 + $0x5f0] sm:$0xff]
      %v364 = vld [vmem:[%s165 + $0x5f8] sm:$0xff]
      %v365 = vld [vmem:[%s165 + $0x600] sm:$0xff]
      %v366 = vld [vmem:[%s165 + $0x608] sm:$0xff]
      %v367 = vld [vmem:[%s165 + $0x610] sm:$0xff]
      %v368 = vld [vmem:[%s165 + $0x618] sm:$0xff]
      %v369 = vld [vmem:[%s165 + $0x620] sm:$0xff]
      %v370 = vld [vmem:[%s165 + $0x628] sm:$0xff]
      %v371 = vld [vmem:[%s165 + $0x630] sm:$0xff]
      %v372 = vld [vmem:[%s165 + $0x638] sm:$0xff]
      %v373 = vld [vmem:[%s165 + $0x640] sm:$0xff]
      %v374 = vld [vmem:[%s165 + $0x648] sm:$0xff]
      %v375 = vld [vmem:[%s165 + $0x650] sm:$0xff]
      %v376 = vld [vmem:[%s165 + $0x658] sm:$0xff]
      %v377 = vld [vmem:[%s165 + $0x660] sm:$0xff]
      %v378 = vld [vmem:[%s165 + $0x668] sm:$0xff]
      %v379 = vld [vmem:[%s165 + $0x670] sm:$0xff]
      %v380 = vld [vmem:[%s165 + $0x678] sm:$0xff]
      %v381 = vld [vmem:[%s165 + $0x680] sm:$0xff]
      %v382 = vld [vmem:[%s165 + $0x688] sm:$0xff]
      %v383 = vld [vmem:[%s165 + $0x690] sm:$0xff]
      %v384 = vld [vmem:[%s165 + $0x698] sm:$0xff]
      %v385 = vld [vmem:[%s165 + $0x6a0] sm:$0xff]
      %v386 = vld [vmem:[%s165 + $0x6a8] sm:$0xff]
      %v387 = vld [vmem:[%s165 + $0x6b0] sm:$0xff]
      %v388 = vld [vmem:[%s165 + $0x6b8] sm:$0xff]
      %v389 = vld [vmem:[%s165 + $0x6c0] sm:$0xff]
      %v390 = vld [vmem:[%s165 + $0x6c8] sm:$0xff]
      %v391 = vld [vmem:[%s165 + $0x6d0] sm:$0xff]
      %v392 = vld [vmem:[%s165 + $0x6d8] sm:$0xff]
      %v393 = vld [vmem:[%s165 + $0x6e0] sm:$0xff]
      %v394 = vld [vmem:[%s165 + $0x6e8] sm:$0xff]
      %v395 = vld [vmem:[%s165 + $0x6f0] sm:$0xff]
      %v396 = vld [vmem:[%s165 + $0x6f8] sm:$0xff]
      %v397 = vld [vmem:[%s165 + $0x700] sm:$0xff]
      %v398 = vld [vmem:[%s165 + $0x708] sm:$0xff]
      %v399 = vld [vmem:[%s165 + $0x710] sm:$0xff]
      %v400 = vld [vmem:[%s165 + $0x718] sm:$0xff]
      %v401 = vld [vmem:[%s165 + $0x720] sm:$0xff]
      %v402 = vld [vmem:[%s165 + $0x728] sm:$0xff]
      %v403 = vld [vmem:[%s165 + $0x730] sm:$0xff]
      %v404 = vld [vmem:[%s165 + $0x738] sm:$0xff]
      %v405 = vld [vmem:[%s165 + $0x740] sm:$0xff]
      %v406 = vld [vmem:[%s165 + $0x748] sm:$0xff]
      %v407 = vld [vmem:[%s165 + $0x750] sm:$0xff]
      %v408 = vld [vmem:[%s165 + $0x758] sm:$0xff]
      %v409 = vld [vmem:[%s165 + $0x760] sm:$0xff]
      %v410 = vld [vmem:[%s165 + $0x768] sm:$0xff]
      %v411 = vld [vmem:[%s165 + $0x770] sm:$0xff]
      %v412 = vld [vmem:[%s165 + $0x778] sm:$0xff]
      %v413 = vld [vmem:[%s165 + $0x780] sm:$0xff]
      %v414 = vld [vmem:[%s165 + $0x788] sm:$0xff]
      %v415 = vld [vmem:[%s165 + $0x790] sm:$0xff]
      %v416 = vld [vmem:[%s165 + $0x798] sm:$0xff]
      %v417 = vld [vmem:[%s165 + $0x7a0] sm:$0xff]
      %v418 = vld [vmem:[%s165 + $0x7a8] sm:$0xff]
      %v419 = vld [vmem:[%s165 + $0x7b0] sm:$0xff]
      %v420 = vld [vmem:[%s165 + $0x7b8] sm:$0xff]
      %v421 = vld [vmem:[%s165 + $0x7c0] sm:$0xff]
      %v422 = vld [vmem:[%s165 + $0x7c8] sm:$0xff]
      %v423 = vld [vmem:[%s165 + $0x7d0] sm:$0xff]
      %v424 = vld [vmem:[%s165 + $0x7d8] sm:$0xff]
      %v425 = vld [vmem:[%s165 + $0x7e0] sm:$0xff]
      %v426 = vld [vmem:[%s165 + $0x7e8] sm:$0xff]
      %v427 = vld [vmem:[%s165 + $0x7f0] sm:$0xff]
      %v428 = vld [vmem:[%s165 + $0x7f8] sm:$0xff]
      %v429 = vld [vmem:[%s165 + $0x800] sm:$0xff]
      %v430 = vld [vmem:[%s165 + $0x808] sm:$0xff]
      %v431 = vld [vmem:[%s165 + $0x810] sm:$0xff]
      %v432 = vld [vmem:[%s165 + $0x818] sm:$0xff]
      %v433 = vld [vmem:[%s165 + $0x820] sm:$0xff]
      %v434 = vld [vmem:[%s165 + $0x828] sm:$0xff]
      %v435 = vld [vmem:[%s165 + $0x830] sm:$0xff]
      %v436 = vld [vmem:[%s165 + $0x838] sm:$0xff]
      %v437 = vld [vmem:[%s165 + $0x840] sm:$0xff]
      %v438 = vld [vmem:[%s165 + $0x848] sm:$0xff]
      %v439 = vld [vmem:[%s165 + $0x850] sm:$0xff]
      %v440 = vld [vmem:[%s165 + $0x858] sm:$0xff]
      %v441 = vld [vmem:[%s165 + $0x860] sm:$0xff]
      %v442 = vld [vmem:[%s165 + $0x868] sm:$0xff]
      %v443 = vld [vmem:[%s165 + $0x870] sm:$0xff]
      %v444 = vld [vmem:[%s165 + $0x878] sm:$0xff]
      %v445 = vld [vmem:[%s165 + $0x880] sm:$0xff]
      %v446 = vld [vmem:[%s165 + $0x888] sm:$0xff]
      %v447 = vld [vmem:[%s165 + $0x890] sm:$0xff]
      %v448 = vld [vmem:[%s165 + $0x898] sm:$0xff]
      %v449 = vld [vmem:[%s165 + $0x8a0] sm:$0xff]
      %v450 = vld [vmem:[%s165 + $0x8a8] sm:$0xff]
      %v451 = vld [vmem:[%s165 + $0x8b0] sm:$0xff]
      %v452 = vld [vmem:[%s165 + $0x8b8] sm:$0xff]
      %v453 = vld [vmem:[%s165 + $0x8c0] sm:$0xff]
      %v454 = vld [vmem:[%s165 + $0x8c8] sm:$0xff]
      %v455 = vld [vmem:[%s165 + $0x8d0] sm:$0xff]
      %v456 = vld [vmem:[%s165 + $0x8d8] sm:$0xff]
      %v457 = vld [vmem:[%s165 + $0x8e0] sm:$0xff]
      %v458 = vld [vmem:[%s165 + $0x8e8] sm:$0xff]
      %v459 = vld [vmem:[%s165 + $0x8f0] sm:$0xff]
      %v460 = vld [vmem:[%s165 + $0x8f8] sm:$0xff]
      %v461 = vld [vmem:[%s165 + $0x900] sm:$0xff]
      %v462 = vld [vmem:[%s165 + $0x908] sm:$0xff]
      %v463 = vld [vmem:[%s165 + $0x910] sm:$0xff]
      %v464 = vld [vmem:[%s165 + $0x918] sm:$0xff]
      %v465 = vld [vmem:[%s165 + $0x920] sm:$0xff]
      %v466 = vld [vmem:[%s165 + $0x928] sm:$0xff]
      %v467 = vld [vmem:[%s165 + $0x930] sm:$0xff]
      %v468 = vld [vmem:[%s165 + $0x938] sm:$0xff]
      %v469 = vld [vmem:[%s165 + $0x940] sm:$0xff]
      %v470 = vld [vmem:[%s165 + $0x948] sm:$0xff]
      %v471 = vld [vmem:[%s165 + $0x950] sm:$0xff]
      %v472 = vld [vmem:[%s165 + $0x958] sm:$0xff]
      %v473 = vld [vmem:[%s165 + $0x960] sm:$0xff]
      %v474 = vld [vmem:[%s165 + $0x968] sm:$0xff]
      %v475 = vld [vmem:[%s165 + $0x970] sm:$0xff]
      %v476 = vld [vmem:[%s165 + $0x978] sm:$0xff]
      %v477 = vld [vmem:[%s165 + $0x980] sm:$0xff]
      %v478 = vld [vmem:[%s165 + $0x988] sm:$0xff]
      %v479 = vld [vmem:[%s165 + $0x990] sm:$0xff]
      %v480 = vld [vmem:[%s165 + $0x998] sm:$0xff]
      %v481 = vld [vmem:[%s165 + $0x9a0] sm:$0xff]
      %v482 = vld [vmem:[%s165 + $0x9a8] sm:$0xff]
      %v483 = vld [vmem:[%s165 + $0x9b0] sm:$0xff]
      %v484 = vld [vmem:[%s165 + $0x9b8] sm:$0xff]
      %v485 = vld [vmem:[%s165 + $0x9c0] sm:$0xff]
      %v486 = vld [vmem:[%s165 + $0x9c8] sm:$0xff]
      %v487 = vld [vmem:[%s165 + $0x9d0] sm:$0xff]
      %v488 = vld [vmem:[%s165 + $0x9d8] sm:$0xff]
      %v489 = vld [vmem:[%s165 + $0x9e0] sm:$0xff]
      %v490 = vld [vmem:[%s165 + $0x9e8] sm:$0xff]
      %v491 = vld [vmem:[%s165 + $0x9f0] sm:$0xff]
      %v492 = vld [vmem:[%s165 + $0x9f8] sm:$0xff]
      %v493 = vld [vmem:[%s165 + $0xa00] sm:$0xff]
      %v494 = vld [vmem:[%s165 + $0xa08] sm:$0xff]
      %v495 = vld [vmem:[%s165 + $0xa10] sm:$0xff]
      %v496 = vld [vmem:[%s165 + $0xa18] sm:$0xff]
      %v497 = vld [vmem:[%s165 + $0xa20] sm:$0xff]
      %v498 = vld [vmem:[%s165 + $0xa28] sm:$0xff]
      %v499 = vld [vmem:[%s165 + $0xa30] sm:$0xff]
      %v500 = vld [vmem:[%s165 + $0xa38] sm:$0xff]
      %v501 = vld [vmem:[%s165 + $0xa40] sm:$0xff]
      %v502 = vld [vmem:[%s165 + $0xa48] sm:$0xff]
      %v503 = vld [vmem:[%s165 + $0xa50] sm:$0xff]
      %v504 = vld [vmem:[%s165 + $0xa58] sm:$0xff]
      %v505 = vld [vmem:[%s165 + $0xa60] sm:$0xff]
      %v506 = vld [vmem:[%s165 + $0xa68] sm:$0xff]
      %v507 = vld [vmem:[%s165 + $0xa70] sm:$0xff]
      %v508 = vld [vmem:[%s165 + $0xa78] sm:$0xff]
      %v509 = vld [vmem:[%s165 + $0xa80] sm:$0xff]
      %v510 = vld [vmem:[%s165 + $0xa88] sm:$0xff]
      %v511 = vld [vmem:[%s165 + $0xa90] sm:$0xff]
      %v512 = vld [vmem:[%s165 + $0xa98] sm:$0xff]
      %v513 = vld [vmem:[%s165 + $0xaa0] sm:$0xff]
      %v514 = vld [vmem:[%s165 + $0xaa8] sm:$0xff]
      %v515 = vld [vmem:[%s165 + $0xab0] sm:$0xff]
      %v516 = vld [vmem:[%s165 + $0xab8] sm:$0xff]
      %v517 = vld [vmem:[%s165 + $0xac0] sm:$0xff]
      %v518 = vld [vmem:[%s165 + $0xac8] sm:$0xff]
      %v519 = vld [vmem:[%s165 + $0xad0] sm:$0xff]
      %v520 = vld [vmem:[%s165 + $0xad8] sm:$0xff]
      %v521 = vld [vmem:[%s165 + $0xae0] sm:$0xff]
      %v522 = vld [vmem:[%s165 + $0xae8] sm:$0xff]
      %v523 = vld [vmem:[%s165 + $0xaf0] sm:$0xff]
      %v524 = vld [vmem:[%s165 + $0xaf8] sm:$0xff]
      %v525 = vld [vmem:[%s165 + $0xb00] sm:$0xff]
      %v526 = vld [vmem:[%s165 + $0xb08] sm:$0xff]
      %v527 = vld [vmem:[%s165 + $0xb10] sm:$0xff]
      %v528 = vld [vmem:[%s165 + $0xb18] sm:$0xff]
      %v529 = vld [vmem:[%s165 + $0xb20] sm:$0xff]
      %v530 = vld [vmem:[%s165 + $0xb28] sm:$0xff]
      %v531 = vld [vmem:[%s165 + $0xb30] sm:$0xff]
      %v532 = vld [vmem:[%s165 + $0xb38] sm:$0xff]
      %v533 = vld [vmem:[%s165 + $0xb40] sm:$0xff]
      %v534 = vld [vmem:[%s165 + $0xb48] sm:$0xff]
      %v535 = vld [vmem:[%s165 + $0xb50] sm:$0xff]
      %v536 = vld [vmem:[%s165 + $0xb58] sm:$0xff]
      %v537 = vld [vmem:[%s165 + $0xb60] sm:$0xff]
      %v538 = vld [vmem:[%s165 + $0xb68] sm:$0xff]
      %v539 = vld [vmem:[%s165 + $0xb70] sm:$0xff]
      %v540 = vld [vmem:[%s165 + $0xb78] sm:$0xff]
      %v541 = vld [vmem:[%s165 + $0xb80] sm:$0xff]
      %v542 = vld [vmem:[%s165 + $0xb88] sm:$0xff]
      %v543 = vld [vmem:[%s165 + $0xb90] sm:$0xff]
      %v544 = vld [vmem:[%s165 + $0xb98] sm:$0xff]
      %v545 = vld [vmem:[%s165 + $0xba0] sm:$0xff]
      %v546 = vld [vmem:[%s165 + $0xba8] sm:$0xff]
      %v547 = vld [vmem:[%s165 + $0xbb0] sm:$0xff]
      %v548 = vld [vmem:[%s165 + $0xbb8] sm:$0xff]
      %v549 = vld [vmem:[%s165 + $0xbc0] sm:$0xff]
      %v550 = vld [vmem:[%s165 + $0xbc8] sm:$0xff]
      %v551 = vld [vmem:[%s165 + $0xbd0] sm:$0xff]
      %v552 = vld [vmem:[%s165 + $0xbd8] sm:$0xff]
      %v553 = vld [vmem:[%s165 + $0xbe0] sm:$0xff]
      %v554 = vld [vmem:[%s165 + $0xbe8] sm:$0xff]
      %v555 = vld [vmem:[%s165 + $0xbf0] sm:$0xff]
      %v556 = vld [vmem:[%s165 + $0xbf8] sm:$0xff]
      %v557 = vld [vmem:[%s165 + $0xc00] sm:$0xff]
      %v558 = vld [vmem:[%s165 + $0xc08] sm:$0xff]
      %v559 = vld [vmem:[%s165 + $0xc10] sm:$0xff]
      %v560 = vld [vmem:[%s165 + $0xc18] sm:$0xff]
      %v561 = vld [vmem:[%s165 + $0xc20] sm:$0xff]
      %v562 = vld [vmem:[%s165 + $0xc28] sm:$0xff]
      %v563 = vld [vmem:[%s165 + $0xc30] sm:$0xff]
      %v564 = vld [vmem:[%s165 + $0xc38] sm:$0xff]
      %v565 = vld [vmem:[%s165 + $0xc40] sm:$0xff]
      %v566 = vld [vmem:[%s165 + $0xc48] sm:$0xff]
      %v567 = vld [vmem:[%s165 + $0xc50] sm:$0xff]
      %v568 = vld [vmem:[%s165 + $0xc58] sm:$0xff]
      %v569 = vld [vmem:[%s165 + $0xc60] sm:$0xff]
      %v570 = vld [vmem:[%s165 + $0xc68] sm:$0xff]
      %v571 = vld [vmem:[%s165 + $0xc70] sm:$0xff]
      %v572 = vld [vmem:[%s165 + $0xc78] sm:$0xff]
      %v573 = vld [vmem:[%s165 + $0xc80] sm:$0xff]
      %v574 = vld [vmem:[%s165 + $0xc88] sm:$0xff]
      %v575 = vld [vmem:[%s165 + $0xc90] sm:$0xff]
      %v576 = vld [vmem:[%s165 + $0xc98] sm:$0xff]
      %v577 = vld [vmem:[%s165 + $0xca0] sm:$0xff]
      %v578 = vld [vmem:[%s165 + $0xca8] sm:$0xff]
      %v579 = vld [vmem:[%s165 + $0xcb0] sm:$0xff]
      %v580 = vld [vmem:[%s165 + $0xcb8] sm:$0xff]
      %v581 = vld [vmem:[%s165 + $0xcc0] sm:$0xff]
      %v582 = vld [vmem:[%s165 + $0xcc8] sm:$0xff]
      %v583 = vld [vmem:[%s165 + $0xcd0] sm:$0xff]
      %v584 = vld [vmem:[%s165 + $0xcd8] sm:$0xff]
      %v585 = vld [vmem:[%s165 + $0xce0] sm:$0xff]
      %v586 = vld [vmem:[%s165 + $0xce8] sm:$0xff]
      %v587 = vld [vmem:[%s165 + $0xcf0] sm:$0xff]
      %v588 = vld [vmem:[%s165 + $0xcf8] sm:$0xff]
      %v589 = vld [vmem:[%s165 + $0xd00] sm:$0xff]
      %v590 = vld [vmem:[%s165 + $0xd08] sm:$0xff]
      %v591 = vld [vmem:[%s165 + $0xd10] sm:$0xff]
      %v592 = vld [vmem:[%s165 + $0xd18] sm:$0xff]
      %v593 = vld [vmem:[%s165 + $0xd20] sm:$0xff]
      %v594 = vld [vmem:[%s165 + $0xd28] sm:$0xff]
      %v595 = vld [vmem:[%s165 + $0xd30] sm:$0xff]
      %v596 = vld [vmem:[%s165 + $0xd38] sm:$0xff]
      %v597 = vld [vmem:[%s165 + $0xd40] sm:$0xff]
      %v598 = vld [vmem:[%s165 + $0xd48] sm:$0xff]
      %v599 = vld [vmem:[%s165 + $0xd50] sm:$0xff]
      %v600 = vld [vmem:[%s165 + $0xd58] sm:$0xff]
      %v601 = vld [vmem:[%s165 + $0xd60] sm:$0xff]
      %v602 = vld [vmem:[%s165 + $0xd68] sm:$0xff]
      %v603 = vld [vmem:[%s165 + $0xd70] sm:$0xff]
      %v604 = vld [vmem:[%s165 + $0xd78] sm:$0xff]
      %v605 = vld [vmem:[%s165 + $0xd80] sm:$0xff]
      %v606 = vld [vmem:[%s165 + $0xd88] sm:$0xff]
      %v607 = vld [vmem:[%s165 + $0xd90] sm:$0xff]
      %v608 = vld [vmem:[%s165 + $0xd98] sm:$0xff]
      %v609 = vld [vmem:[%s165 + $0xda0] sm:$0xff]
      %v610 = vld [vmem:[%s165 + $0xda8] sm:$0xff]
      %v611 = vld [vmem:[%s165 + $0xdb0] sm:$0xff]
      %v612 = vld [vmem:[%s165 + $0xdb8] sm:$0xff]
      %v613 = vld [vmem:[%s165 + $0xdc0] sm:$0xff]
      %v614 = vld [vmem:[%s165 + $0xdc8] sm:$0xff]
      %v615 = vld [vmem:[%s165 + $0xdd0] sm:$0xff]
      %v616 = vld [vmem:[%s165 + $0xdd8] sm:$0xff]
      %v617 = vld [vmem:[%s165 + $0xde0] sm:$0xff]
      %v618 = vld [vmem:[%s165 + $0xde8] sm:$0xff]
      %v619 = vld [vmem:[%s165 + $0xdf0] sm:$0xff]
      %v620 = vld [vmem:[%s165 + $0xdf8] sm:$0xff]
      %v621 = vld [vmem:[%s165 + $0xe00] sm:$0xff]
      %v622 = vld [vmem:[%s165 + $0xe08] sm:$0xff]
      %v623 = vld [vmem:[%s165 + $0xe10] sm:$0xff]
      %v624 = vld [vmem:[%s165 + $0xe18] sm:$0xff]
      %v625 = vld [vmem:[%s165 + $0xe20] sm:$0xff]
      %v626 = vld [vmem:[%s165 + $0xe28] sm:$0xff]
      %v627 = vld [vmem:[%s165 + $0xe30] sm:$0xff]
      %v628 = vld [vmem:[%s165 + $0xe38] sm:$0xff]
      %v629 = vld [vmem:[%s165 + $0xe40] sm:$0xff]
      %v630 = vld [vmem:[%s165 + $0xe48] sm:$0xff]
      %v631 = vld [vmem:[%s165 + $0xe50] sm:$0xff]
      %v632 = vld [vmem:[%s165 + $0xe58] sm:$0xff]
      %v633 = vld [vmem:[%s165 + $0xe60] sm:$0xff]
      %v634 = vld [vmem:[%s165 + $0xe68] sm:$0xff]
      %v635 = vld [vmem:[%s165 + $0xe70] sm:$0xff]
      %v636 = vld [vmem:[%s165 + $0xe78] sm:$0xff]
      %v637 = vld [vmem:[%s165 + $0xe80] sm:$0xff]
      %v638 = vld [vmem:[%s165 + $0xe88] sm:$0xff]
      %v639 = vld [vmem:[%s165 + $0xe90] sm:$0xff]
      %v640 = vld [vmem:[%s165 + $0xe98] sm:$0xff]
      %v641 = vld [vmem:[%s165 + $0xea0] sm:$0xff]
      %v642 = vld [vmem:[%s165 + $0xea8] sm:$0xff]
      %v643 = vld [vmem:[%s165 + $0xeb0] sm:$0xff]
      %v644 = vld [vmem:[%s165 + $0xeb8] sm:$0xff]
      %v645 = vld [vmem:[%s165 + $0xec0] sm:$0xff]
      %v646 = vld [vmem:[%s165 + $0xec8] sm:$0xff]
      %v647 = vld [vmem:[%s165 + $0xed0] sm:$0xff]
      %v648 = vld [vmem:[%s165 + $0xed8] sm:$0xff]
      %v649 = vld [vmem:[%s165 + $0xee0] sm:$0xff]
      %v650 = vld [vmem:[%s165 + $0xee8] sm:$0xff]
      %v651 = vld [vmem:[%s165 + $0xef0] sm:$0xff]
      %v652 = vld [vmem:[%s165 + $0xef8] sm:$0xff]
      %v653 = vld [vmem:[%s165 + $0xf00] sm:$0xff]
      %v654 = vld [vmem:[%s165 + $0xf08] sm:$0xff]
      %v655 = vld [vmem:[%s165 + $0xf10] sm:$0xff]
      %v656 = vld [vmem:[%s165 + $0xf18] sm:$0xff]
      %v657 = vld [vmem:[%s165 + $0xf20] sm:$0xff]
      %v658 = vld [vmem:[%s165 + $0xf28] sm:$0xff]
      %v659 = vld [vmem:[%s165 + $0xf30] sm:$0xff]
      %v660 = vld [vmem:[%s165 + $0xf38] sm:$0xff]
      %v661 = vld [vmem:[%s165 + $0xf40] sm:$0xff]
      %v662 = vld [vmem:[%s165 + $0xf48] sm:$0xff]
      %v663 = vld [vmem:[%s165 + $0xf50] sm:$0xff]
      %v664 = vld [vmem:[%s165 + $0xf58] sm:$0xff]
      %v665 = vld [vmem:[%s165 + $0xf60] sm:$0xff]
      %v666 = vld [vmem:[%s165 + $0xf68] sm:$0xff]
      %v667 = vld [vmem:[%s165 + $0xf70] sm:$0xff]
      %v668 = vld [vmem:[%s165 + $0xf78] sm:$0xff]
      %v669 = vld [vmem:[%s2] sm:$0xff]
      %v670 = vld [vmem:[%s2 + $0x8] sm:$0xf]
      %672 = vset.pattern.permute.xlu0 0
      %673 = vperm.xlu0 %672, %v669
      %v674 = vpop.permute.xlu0 %673
      %677 = vset.pattern.permute.xlu0 0
      %678 = vperm.xlu0 %677, %v670
      %v679 = vpop.permute.xlu0 %678
      %681 = vmatprep.subr.mxu0 %v174
      %682 = vmatpush1.msra.mxu0 %v173
      %683 = vmatprep.subr.mxu0 %v205
      %684 = vmatpush1.msra.mxu0 %v204
      %685 = vmatprep.subr.mxu0 %v236
      %686 = vmatpush1.msra.mxu0 %v235
      %687 = vmatprep.subr.mxu0 %v267
      %688 = vmatpush1.msra.mxu0 %v266
      %689 = vmatprep.subr.mxu0 %v298
      %690 = vmatpush1.msra.mxu0 %v297
      %691 = vmatprep.subr.mxu0 %v329
      %692 = vmatpush1.msra.mxu0 %v328
      %693 = vmatprep.subr.mxu0 %v360
      %694 = vmatpush1.msra.mxu0 %v359
      %695 = vmatprep.subr.mxu0 %v391
      %696 = vmatpush1.msra.mxu0 %v390
      %697 = vmatprep.subr.mxu0 %v422
      %698 = vmatpush1.msra.mxu0 %v421
      %699 = vmatprep.subr.mxu0 %v453
      %700 = vmatpush1.msra.mxu0 %v452
      %701 = vmatprep.subr.mxu0 %v484
      %702 = vmatpush1.msra.mxu0 %v483
      %703 = vmatprep.subr.mxu0 %v515
      %704 = vmatpush1.msra.mxu0 %v514
      %705 = vmatprep.subr.mxu0 %v546
      %706 = vmatpush1.msra.mxu0 %v545
      %707 = vmatprep.subr.mxu0 %v577
      %708 = vmatpush1.msra.mxu0 %v576
      %709 = vmatprep.subr.mxu0 %v608
      %710 = vmatpush1.msra.mxu0 %v607
      %711 = vmatprep.subr.mxu0 %v639
      %712 = vmatpush1.msra.mxu0 %v638
      %713 = vmatprep.subr.mxu0 0.0
      %714 = vmatpush1.msra.mxu0 0.0
      %715 = vmatprep.subr.mxu0 0.0
      %716 = vmatpush1.msra.mxu0 0.0
      %717 = vmatprep.subr.mxu0 0.0
      %718 = vmatpush1.msra.mxu0 0.0
      %719 = vmatprep.subr.mxu0 0.0
      %720 = vmatpush1.msra.mxu0 0.0
      %721 = vmatprep.subr.mxu0 0.0
      %722 = vmatpush1.msra.mxu0 0.0
      %723 = vmatprep.subr.mxu0 0.0
      %724 = vmatpush1.msra.mxu0 0.0
      %725 = vmatprep.subr.mxu0 0.0
      %726 = vmatpush1.msra.mxu0 0.0
      %727 = vmatprep.subr.mxu0 0.0
      %728 = vmatpush1.msra.mxu0 0.0
      %729 = vmatprep.subr.mxu0 0.0
      %730 = vmatpush1.msra.mxu0 0.0
      %731 = vmatprep.subr.mxu0 0.0
      %732 = vmatpush1.msra.mxu0 0.0
      %733 = vmatprep.subr.mxu0 0.0
      %734 = vmatpush1.msra.mxu0 0.0
      %735 = vmatprep.subr.mxu0 0.0
      %736 = vmatpush1.msra.mxu0 0.0
      %737 = vmatprep.subr.mxu0 0.0
      %738 = vmatpush1.msra.mxu0 0.0
      %739 = vmatprep.subr.mxu0 0.0
      %740 = vmatpush1.msra.mxu0 0.0
      %741 = vmatprep.subr.mxu0 0.0
      %742 = vmatpush1.msra.mxu0 0.0
      %743 = vmatprep.subr.mxu0 0.0
      %744 = vmatpush1.msra.mxu0 0.0
      %745 = vmatprep.mubr.f32.mxu0 0.0
      %746 = vmatmul.mubr.f32.gmra.mrb[0].mxu0 %v171
      %v747 = vpop.f32.mrb[0].mxu0
      %v748 = vadd.f32 %v674, %v747
      %v749 = vpop.f32.mrb[0].mxu0
      %v750 = vadd.f32 %v674, %v749
      %751 = vmatprep.mubr.f32.mxu0 0.0
      %752 = vmatmul.mubr.f32.gmra.mrb[0].mxu0 %v172
      %v753 = vpop.f32.mrb[0].mxu0
      %v754 = vadd.f32 %v679, %v753
      %v755 = vpop.f32.mrb[0].mxu0
      %v756 = vadd.f32 %v679, %v755
      %757 = vdwg.mxu0
      %758 = vmatprep.subr.mxu0 %v176
      %759 = vmatpush1.msra.mxu0 %v175
      %760 = vmatprep.subr.mxu0 %v207
      %761 = vmatpush1.msra.mxu0 %v206
      %762 = vmatprep.subr.mxu0 %v238
      %763 = vmatpush1.msra.mxu0 %v237
      %764 = vmatprep.subr.mxu0 %v269
      %765 = vmatpush1.msra.mxu0 %v268
      %766 = vmatprep.subr.mxu0 %v300
      %767 = vmatpush1.msra.mxu0 %v299
      %768 = vmatprep.subr.mxu0 %v331
      %769 = vmatpush1.msra.mxu0 %v330
      %770 = vmatprep.subr.mxu0 %v362
      %771 = vmatpush1.msra.mxu0 %v361
      %772 = vmatprep.subr.mxu0 %v393
      %773 = vmatpush1.msra.mxu0 %v392
      %774 = vmatprep.subr.mxu0 %v424
      %775 = vmatpush1.msra.mxu0 %v423
      %776 = vmatprep.subr.mxu0 %v455
      %777 = vmatpush1.msra.mxu0 %v454
      %778 = vmatprep.subr.mxu0 %v486
      %779 = vmatpush1.msra.mxu0 %v485
      %780 = vmatprep.subr.mxu0 %v517
      %781 = vmatpush1.msra.mxu0 %v516
      %782 = vmatprep.subr.mxu0 %v548
      %783 = vmatpush1.msra.mxu0 %v547
      %784 = vmatprep.subr.mxu0 %v579
      %785 = vmatpush1.msra.mxu0 %v578
      %786 = vmatprep.subr.mxu0 %v610
      %787 = vmatpush1.msra.mxu0 %v609
      %788 = vmatprep.subr.mxu0 %v641
      %789 = vmatpush1.msra.mxu0 %v640
      %790 = vmatprep.subr.mxu0 0.0
      %791 = vmatpush1.msra.mxu0 0.0
      %792 = vmatprep.subr.mxu0 0.0
      %793 = vmatpush1.msra.mxu0 0.0
      %794 = vmatprep.subr.mxu0 0.0
      %795 = vmatpush1.msra.mxu0 0.0
      %796 = vmatprep.subr.mxu0 0.0
      %797 = vmatpush1.msra.mxu0 0.0
      %798 = vmatprep.subr.mxu0 0.0
      %799 = vmatpush1.msra.mxu0 0.0
      %800 = vmatprep.subr.mxu0 0.0
      %801 = vmatpush1.msra.mxu0 0.0
      %802 = vmatprep.subr.mxu0 0.0
      %803 = vmatpush1.msra.mxu0 0.0
      %804 = vmatprep.subr.mxu0 0.0
      %805 = vmatpush1.msra.mxu0 0.0
      %806 = vmatprep.subr.mxu0 0.0
      %807 = vmatpush1.msra.mxu0 0.0
      %808 = vmatprep.subr.mxu0 0.0
      %809 = vmatpush1.msra.mxu0 0.0
      %810 = vmatprep.subr.mxu0 0.0
      %811 = vmatpush1.msra.mxu0 0.0
      %812 = vmatprep.subr.mxu0 0.0
      %813 = vmatpush1.msra.mxu0 0.0
      %814 = vmatprep.subr.mxu0 0.0
      %815 = vmatpush1.msra.mxu0 0.0
      %816 = vmatprep.subr.mxu0 0.0
      %817 = vmatpush1.msra.mxu0 0.0
      %818 = vmatprep.subr.mxu0 0.0
      %819 = vmatpush1.msra.mxu0 0.0
      %820 = vmatprep.subr.mxu0 0.0
      %821 = vmatpush1.msra.mxu0 0.0
      %822 = vmatprep.mubr.f32.mxu0 0.0
      %823 = vmatmul.mubr.f32.gmra.mrb[0].mxu0 %v171
      %v824 = vpop.f32.mrb[0].mxu0
      %v825 = vadd.f32 %v674, %v824
      %v826 = vpop.f32.mrb[0].mxu0
      %v827 = vadd.f32 %v674, %v826
      %828 = vmatprep.mubr.f32.mxu0 0.0
      %829 = vmatmul.mubr.f32.gmra.mrb[0].mxu0 %v172
      %v830 = vpop.f32.mrb[0].mxu0
      %v831 = vadd.f32 %v679, %v830
      %v832 = vpop.f32.mrb[0].mxu0
      %v833 = vadd.f32 %v679, %v832
      %834 = vdwg.mxu0
      %835 = vmatprep.subr.mxu0 %v178
      %836 = vmatpush1.msra.mxu0 %v177
      %837 = vmatprep.subr.mxu0 %v209
      %838 = vmatpush1.msra.mxu0 %v208
      %839 = vmatprep.subr.mxu0 %v240
      %840 = vmatpush1.msra.mxu0 %v239
      %841 = vmatprep.subr.mxu0 %v271
      %842 = vmatpush1.msra.mxu0 %v270
      %843 = vmatprep.subr.mxu0 %v302
      %844 = vmatpush1.msra.mxu0 %v301
      %845 = vmatprep.subr.mxu0 %v333
      %846 = vmatpush1.msra.mxu0 %v332
      %847 = vmatprep.subr.mxu0 %v364
      %848 = vmatpush1.msra.mxu0 %v363
      %849 = vmatprep.subr.mxu0 %v395
      %850 = vmatpush1.msra.mxu0 %v394
      %851 = vmatprep.subr.mxu0 %v426
      %852 = vmatpush1.msra.mxu0 %v425
      %853 = vmatprep.subr.mxu0 %v457
      %854 = vmatpush1.msra.mxu0 %v456
      %855 = vmatprep.subr.mxu0 %v488
      %856 = vmatpush1.msra.mxu0 %v487
      %857 = vmatprep.subr.mxu0 %v519
      %858 = vmatpush1.msra.mxu0 %v518
      %859 = vmatprep.subr.mxu0 %v550
      %860 = vmatpush1.msra.mxu0 %v549
      %861 = vmatprep.subr.mxu0 %v581
      %862 = vmatpush1.msra.mxu0 %v580
      %863 = vmatprep.subr.mxu0 %v612
      %864 = vmatpush1.msra.mxu0 %v611
      %865 = vmatprep.subr.mxu0 %v643
      %866 = vmatpush1.msra.mxu0 %v642
      %867 = vmatprep.subr.mxu0 0.0
      %868 = vmatpush1.msra.mxu0 0.0
      %869 = vmatprep.subr.mxu0 0.0
      %870 = vmatpush1.msra.mxu0 0.0
      %871 = vmatprep.subr.mxu0 0.0
      %872 = vmatpush1.msra.mxu0 0.0
      %873 = vmatprep.subr.mxu0 0.0
      %874 = vmatpush1.msra.mxu0 0.0
      %875 = vmatprep.subr.mxu0 0.0
      %876 = vmatpush1.msra.mxu0 0.0
      %877 = vmatprep.subr.mxu0 0.0
      %878 = vmatpush1.msra.mxu0 0.0
      %879 = vmatprep.subr.mxu0 0.0
      %880 = vmatpush1.msra.mxu0 0.0
      %881 = vmatprep.subr.mxu0 0.0
      %882 = vmatpush1.msra.mxu0 0.0
      %883 = vmatprep.subr.mxu0 0.0
      %884 = vmatpush1.msra.mxu0 0.0
      %885 = vmatprep.subr.mxu0 0.0
      %886 = vmatpush1.msra.mxu0 0.0
      %887 = vmatprep.subr.mxu0 0.0
      %888 = vmatpush1.msra.mxu0 0.0
      %889 = vmatprep.subr.mxu0 0.0
      %890 = vmatpush1.msra.mxu0 0.0
      %891 = vmatprep.subr.mxu0 0.0
      %892 = vmatpush1.msra.mxu0 0.0
      %893 = vmatprep.subr.mxu0 0.0
      %894 = vmatpush1.msra.mxu0 0.0
      %895 = vmatprep.subr.mxu0 0.0
      %896 = vmatpush1.msra.mxu0 0.0
      %897 = vmatprep.subr.mxu0 0.0
      %898 = vmatpush1.msra.mxu0 0.0
      %899 = vmatprep.mubr.f32.mxu0 0.0
      %900 = vmatmul.mubr.f32.gmra.mrb[0].mxu0 %v171
      %v901 = vpop.f32.mrb[0].mxu0
      %v902 = vadd.f32 %v674, %v901
      %v903 = vpop.f32.mrb[0].mxu0
      %v904 = vadd.f32 %v674, %v903
      %905 = vmatprep.mubr.f32.mxu0 0.0
      %906 = vmatmul.mubr.f32.gmra.mrb[0].mxu0 %v172
      %v907 = vpop.f32.mrb[0].mxu0
      %v908 = vadd.f32 %v679, %v907
      %v909 = vpop.f32.mrb[0].mxu0
      %v910 = vadd.f32 %v679, %v909
      %911 = vdwg.mxu0
      %912 = vmatprep.subr.mxu0 %v180
      %913 = vmatpush1.msra.mxu0 %v179
      %914 = vmatprep.subr.mxu0 %v211
      %915 = vmatpush1.msra.mxu0 %v210
      %916 = vmatprep.subr.mxu0 %v242
      %917 = vmatpush1.msra.mxu0 %v241
      %918 = vmatprep.subr.mxu0 %v273
      %919 = vmatpush1.msra.mxu0 %v272
      %920 = vmatprep.subr.mxu0 %v304
      %921 = vmatpush1.msra.mxu0 %v303
      %922 = vmatprep.subr.mxu0 %v335
      %923 = vmatpush1.msra.mxu0 %v334
      %924 = vmatprep.subr.mxu0 %v366
      %925 = vmatpush1.msra.mxu0 %v365
      %926 = vmatprep.subr.mxu0 %v397
      %927 = vmatpush1.msra.mxu0 %v396
      %928 = vmatprep.subr.mxu0 %v428
      %929 = vmatpush1.msra.mxu0 %v427
      %930 = vmatprep.subr.mxu0 %v459
      %931 = vmatpush1.msra.mxu0 %v458
      %932 = vmatprep.subr.mxu0 %v490
      %933 = vmatpush1.msra.mxu0 %v489
      %934 = vmatprep.subr.mxu0 %v521
      %935 = vmatpush1.msra.mxu0 %v520
      %936 = vmatprep.subr.mxu0 %v552
      %937 = vmatpush1.msra.mxu0 %v551
      %938 = vmatprep.subr.mxu0 %v583
      %939 = vmatpush1.msra.mxu0 %v582
      %940 = vmatprep.subr.mxu0 %v614
      %941 = vmatpush1.msra.mxu0 %v613
      %942 = vmatprep.subr.mxu0 %v645
      %943 = vmatpush1.msra.mxu0 %v644
      %944 = vmatprep.subr.mxu0 0.0
      %945 = vmatpush1.msra.mxu0 0.0
      %946 = vmatprep.subr.mxu0 0.0
      %947 = vmatpush1.msra.mxu0 0.0
      %948 = vmatprep.subr.mxu0 0.0
      %949 = vmatpush1.msra.mxu0 0.0
      %950 = vmatprep.subr.mxu0 0.0
      %951 = vmatpush1.msra.mxu0 0.0
      %952 = vmatprep.subr.mxu0 0.0
      %953 = vmatpush1.msra.mxu0 0.0
      %954 = vmatprep.subr.mxu0 0.0
      %955 = vmatpush1.msra.mxu0 0.0
      %956 = vmatprep.subr.mxu0 0.0
      %957 = vmatpush1.msra.mxu0 0.0
      %958 = vmatprep.subr.mxu0 0.0
      %959 = vmatpush1.msra.mxu0 0.0
      %960 = vmatprep.subr.mxu0 0.0
      %961 = vmatpush1.msra.mxu0 0.0
      %962 = vmatprep.subr.mxu0 0.0
      %963 = vmatpush1.msra.mxu0 0.0
      %964 = vmatprep.subr.mxu0 0.0
      %965 = vmatpush1.msra.mxu0 0.0
      %966 = vmatprep.subr.mxu0 0.0
      %967 = vmatpush1.msra.mxu0 0.0
      %968 = vmatprep.subr.mxu0 0.0
      %969 = vmatpush1.msra.mxu0 0.0
      %970 = vmatprep.subr.mxu0 0.0
      %971 = vmatpush1.msra.mxu0 0.0
      %972 = vmatprep.subr.mxu0 0.0
      %973 = vmatpush1.msra.mxu0 0.0
      %974 = vmatprep.subr.mxu0 0.0
      %975 = vmatpush1.msra.mxu0 0.0
      %976 = vmatprep.mubr.f32.mxu0 0.0
      %977 = vmatmul.mubr.f32.gmra.mrb[0].mxu0 %v171
      %v978 = vpop.f32.mrb[0].mxu0
      %v979 = vadd.f32 %v674, %v978
      %v980 = vpop.f32.mrb[0].mxu0
      %v981 = vadd.f32 %v674, %v980
      %982 = vmatprep.mubr.f32.mxu0 0.0
      %983 = vmatmul.mubr.f32.gmra.mrb[0].mxu0 %v172
      %v984 = vpop.f32.mrb[0].mxu0
      %v985 = vadd.f32 %v679, %v984
      %v986 = vpop.f32.mrb[0].mxu0
      %v987 = vadd.f32 %v679, %v986
      %988 = vdwg.mxu0
      %989 = vmatprep.subr.mxu0 %v182
      %990 = vmatpush1.msra.mxu0 %v181
      %991 = vmatprep.subr.mxu0 %v213
      %992 = vmatpush1.msra.mxu0 %v212
      %993 = vmatprep.subr.mxu0 %v244
      %994 = vmatpush1.msra.mxu0 %v243
      %995 = vmatprep.subr.mxu0 %v275
      %996 = vmatpush1.msra.mxu0 %v274
      %997 = vmatprep.subr.mxu0 %v306
      %998 = vmatpush1.msra.mxu0 %v305
      %999 = vmatprep.subr.mxu0 %v337
      %1000 = vmatpush1.msra.mxu0 %v336
      %1001 = vmatprep.subr.mxu0 %v368
      %1002 = vmatpush1.msra.mxu0 %v367
      %1003 = vmatprep.subr.mxu0 %v399
      %1004 = vmatpush1.msra.mxu0 %v398
      %1005 = vmatprep.subr.mxu0 %v430
      %1006 = vmatpush1.msra.mxu0 %v429
      %1007 = vmatprep.subr.mxu0 %v461
      %1008 = vmatpush1.msra.mxu0 %v460
      %1009 = vmatprep.subr.mxu0 %v492
      %1010 = vmatpush1.msra.mxu0 %v491
      %1011 = vmatprep.subr.mxu0 %v523
      %1012 = vmatpush1.msra.mxu0 %v522
      %1013 = vmatprep.subr.mxu0 %v554
      %1014 = vmatpush1.msra.mxu0 %v553
      %1015 = vmatprep.subr.mxu0 %v585
      %1016 = vmatpush1.msra.mxu0 %v584
      %1017 = vmatprep.subr.mxu0 %v616
      %1018 = vmatpush1.msra.mxu0 %v615
      %1019 = vmatprep.subr.mxu0 %v647
      %1020 = vmatpush1.msra.mxu0 %v646
      %1021 = vmatprep.subr.mxu0 0.0
      %1022 = vmatpush1.msra.mxu0 0.0
      %1023 = vmatprep.subr.mxu0 0.0
      %1024 = vmatpush1.msra.mxu0 0.0
      %1025 = vmatprep.subr.mxu0 0.0
      %1026 = vmatpush1.msra.mxu0 0.0
      %1027 = vmatprep.subr.mxu0 0.0
      %1028 = vmatpush1.msra.mxu0 0.0
      %1029 = vmatprep.subr.mxu0 0.0
      %1030 = vmatpush1.msra.mxu0 0.0
      %1031 = vmatprep.subr.mxu0 0.0
      %1032 = vmatpush1.msra.mxu0 0.0
      %1033 = vmatprep.subr.mxu0 0.0
      %1034 = vmatpush1.msra.mxu0 0.0
      %1035 = vmatprep.subr.mxu0 0.0
      %1036 = vmatpush1.msra.mxu0 0.0
      %1037 = vmatprep.subr.mxu0 0.0
      %1038 = vmatpush1.msra.mxu0 0.0
      %1039 = vmatprep.subr.mxu0 0.0
      %1040 = vmatpush1.msra.mxu0 0.0
      %1041 = vmatprep.subr.mxu0 0.0
      %1042 = vmatpush1.msra.mxu0 0.0
      %1043 = vmatprep.subr.mxu0 0.0
      %1044 = vmatpush1.msra.mxu0 0.0
      %1045 = vmatprep.subr.mxu0 0.0
      %1046 = vmatpush1.msra.mxu0 0.0
      %1047 = vmatprep.subr.mxu0 0.0
      %1048 = vmatpush1.msra.mxu0 0.0
      %1049 = vmatprep.subr.mxu0 0.0
      %1050 = vmatpush1.msra.mxu0 0.0
      %1051 = vmatprep.subr.mxu0 0.0
      %1052 = vmatpush1.msra.mxu0 0.0
      %1053 = vmatprep.mubr.f32.mxu0 0.0
      %1054 = vmatmul.mubr.f32.gmra.mrb[0].mxu0 %v171
      %v1055 = vpop.f32.mrb[0].mxu0
      %v1056 = vadd.f32 %v674, %v1055
      %v1057 = vpop.f32.mrb[0].mxu0
      %v1058 = vadd.f32 %v674, %v1057
      %1059 = vmatprep.mubr.f32.mxu0 0.0
      %1060 = vmatmul.mubr.f32.gmra.mrb[0].mxu0 %v172
      %v1061 = vpop.f32.mrb[0].mxu0
      %v1062 = vadd.f32 %v679, %v1061
      %v1063 = vpop.f32.mrb[0].mxu0
      %v1064 = vadd.f32 %v679, %v1063
      %1065 = vdwg.mxu0
      %1066 = vmatprep.subr.mxu0 %v184
      %1067 = vmatpush1.msra.mxu0 %v183
      %1068 = vmatprep.subr.mxu0 %v215
      %1069 = vmatpush1.msra.mxu0 %v214
      %1070 = vmatprep.subr.mxu0 %v246
      %1071 = vmatpush1.msra.mxu0 %v245
      %1072 = vmatprep.subr.mxu0 %v277
      %1073 = vmatpush1.msra.mxu0 %v276
      %1074 = vmatprep.subr.mxu0 %v308
      %1075 = vmatpush1.msra.mxu0 %v307
      %1076 = vmatprep.subr.mxu0 %v339
      %1077 = vmatpush1.msra.mxu0 %v338
      %1078 = vmatprep.subr.mxu0 %v370
      %1079 = vmatpush1.msra.mxu0 %v369
      %1080 = vmatprep.subr.mxu0 %v401
      %1081 = vmatpush1.msra.mxu0 %v400
      %1082 = vmatprep.subr.mxu0 %v432
      %1083 = vmatpush1.msra.mxu0 %v431
      %1084 = vmatprep.subr.mxu0 %v463
      %1085 = vmatpush1.msra.mxu0 %v462
      %1086 = vmatprep.subr.mxu0 %v494
      %1087 = vmatpush1.msra.mxu0 %v493
      %1088 = vmatprep.subr.mxu0 %v525
      %1089 = vmatpush1.msra.mxu0 %v524
      %1090 = vmatprep.subr.mxu0 %v556
      %1091 = vmatpush1.msra.mxu0 %v555
      %1092 = vmatprep.subr.mxu0 %v587
      %1093 = vmatpush1.msra.mxu0 %v586
      %1094 = vmatprep.subr.mxu0 %v618
      %1095 = vmatpush1.msra.mxu0 %v617
      %1096 = vmatprep.subr.mxu0 %v649
      %1097 = vmatpush1.msra.mxu0 %v648
      %1098 = vmatprep.subr.mxu0 0.0
      %1099 = vmatpush1.msra.mxu0 0.0
      %1100 = vmatprep.subr.mxu0 0.0
      %1101 = vmatpush1.msra.mxu0 0.0
      %1102 = vmatprep.subr.mxu0 0.0
      %1103 = vmatpush1.msra.mxu0 0.0
      %1104 = vmatprep.subr.mxu0 0.0
      %1105 = vmatpush1.msra.mxu0 0.0
      %1106 = vmatprep.subr.mxu0 0.0
      %1107 = vmatpush1.msra.mxu0 0.0
      %1108 = vmatprep.subr.mxu0 0.0
      %1109 = vmatpush1.msra.mxu0 0.0
      %1110 = vmatprep.subr.mxu0 0.0
      %1111 = vmatpush1.msra.mxu0 0.0
      %1112 = vmatprep.subr.mxu0 0.0
      %1113 = vmatpush1.msra.mxu0 0.0
      %1114 = vmatprep.subr.mxu0 0.0
      %1115 = vmatpush1.msra.mxu0 0.0
      %1116 = vmatprep.subr.mxu0 0.0
      %1117 = vmatpush1.msra.mxu0 0.0
      %1118 = vmatprep.subr.mxu0 0.0
      %1119 = vmatpush1.msra.mxu0 0.0
      %1120 = vmatprep.subr.mxu0 0.0
      %1121 = vmatpush1.msra.mxu0 0.0
      %1122 = vmatprep.subr.mxu0 0.0
      %1123 = vmatpush1.msra.mxu0 0.0
      %1124 = vmatprep.subr.mxu0 0.0
      %1125 = vmatpush1.msra.mxu0 0.0
      %1126 = vmatprep.subr.mxu0 0.0
      %1127 = vmatpush1.msra.mxu0 0.0
      %1128 = vmatprep.subr.mxu0 0.0
      %1129 = vmatpush1.msra.mxu0 0.0
      %1130 = vmatprep.mubr.f32.mxu0 0.0
      %1131 = vmatmul.mubr.f32.gmra.mrb[0].mxu0 %v171
      %v1132 = vpop.f32.mrb[0].mxu0
      %v1133 = vadd.f32 %v674, %v1132
      %v1134 = vpop.f32.mrb[0].mxu0
      %v1135 = vadd.f32 %v674, %v1134
      %1136 = vmatprep.mubr.f32.mxu0 0.0
      %1137 = vmatmul.mubr.f32.gmra.mrb[0].mxu0 %v172
      %v1138 = vpop.f32.mrb[0].mxu0
      %v1139 = vadd.f32 %v679, %v1138
      %v1140 = vpop.f32.mrb[0].mxu0
      %v1141 = vadd.f32 %v679, %v1140
      %1142 = vdwg.mxu0
      %1143 = vmatprep.subr.mxu0 %v186
      %1144 = vmatpush1.msra.mxu0 %v185
      %1145 = vmatprep.subr.mxu0 %v217
      %1146 = vmatpush1.msra.mxu0 %v216
      %1147 = vmatprep.subr.mxu0 %v248
      %1148 = vmatpush1.msra.mxu0 %v247
      %1149 = vmatprep.subr.mxu0 %v279
      %1150 = vmatpush1.msra.mxu0 %v278
      %1151 = vmatprep.subr.mxu0 %v310
      %1152 = vmatpush1.msra.mxu0 %v309
      %1153 = vmatprep.subr.mxu0 %v341
      %1154 = vmatpush1.msra.mxu0 %v340
      %1155 = vmatprep.subr.mxu0 %v372
      %1156 = vmatpush1.msra.mxu0 %v371
      %1157 = vmatprep.subr.mxu0 %v403
      %1158 = vmatpush1.msra.mxu0 %v402
      %1159 = vmatprep.subr.mxu0 %v434
      %1160 = vmatpush1.msra.mxu0 %v433
      %1161 = vmatprep.subr.mxu0 %v465
      %1162 = vmatpush1.msra.mxu0 %v464
      %1163 = vmatprep.subr.mxu0 %v496
      %1164 = vmatpush1.msra.mxu0 %v495
      %1165 = vmatprep.subr.mxu0 %v527
      %1166 = vmatpush1.msra.mxu0 %v526
      %1167 = vmatprep.subr.mxu0 %v558
      %1168 = vmatpush1.msra.mxu0 %v557
      %1169 = vmatprep.subr.mxu0 %v589
      %1170 = vmatpush1.msra.mxu0 %v588
      %1171 = vmatprep.subr.mxu0 %v620
      %1172 = vmatpush1.msra.mxu0 %v619
      %1173 = vmatprep.subr.mxu0 %v651
      %1174 = vmatpush1.msra.mxu0 %v650
      %1175 = vmatprep.subr.mxu0 0.0
      %1176 = vmatpush1.msra.mxu0 0.0
      %1177 = vmatprep.subr.mxu0 0.0
      %1178 = vmatpush1.msra.mxu0 0.0
      %1179 = vmatprep.subr.mxu0 0.0
      %1180 = vmatpush1.msra.mxu0 0.0
      %1181 = vmatprep.subr.mxu0 0.0
      %1182 = vmatpush1.msra.mxu0 0.0
      %1183 = vmatprep.subr.mxu0 0.0
      %1184 = vmatpush1.msra.mxu0 0.0
      %1185 = vmatprep.subr.mxu0 0.0
      %1186 = vmatpush1.msra.mxu0 0.0
      %1187 = vmatprep.subr.mxu0 0.0
      %1188 = vmatpush1.msra.mxu0 0.0
      %1189 = vmatprep.subr.mxu0 0.0
      %1190 = vmatpush1.msra.mxu0 0.0
      %1191 = vmatprep.subr.mxu0 0.0
      %1192 = vmatpush1.msra.mxu0 0.0
      %1193 = vmatprep.subr.mxu0 0.0
      %1194 = vmatpush1.msra.mxu0 0.0
      %1195 = vmatprep.subr.mxu0 0.0
      %1196 = vmatpush1.msra.mxu0 0.0
      %1197 = vmatprep.subr.mxu0 0.0
      %1198 = vmatpush1.msra.mxu0 0.0
      %1199 = vmatprep.subr.mxu0 0.0
      %1200 = vmatpush1.msra.mxu0 0.0
      %1201 = vmatprep.subr.mxu0 0.0
      %1202 = vmatpush1.msra.mxu0 0.0
      %1203 = vmatprep.subr.mxu0 0.0
      %1204 = vmatpush1.msra.mxu0 0.0
      %1205 = vmatprep.subr.mxu0 0.0
      %1206 = vmatpush1.msra.mxu0 0.0
      %1207 = vmatprep.mubr.f32.mxu0 0.0
      %1208 = vmatmul.mubr.f32.gmra.mrb[0].mxu0 %v171
      %v1209 = vpop.f32.mrb[0].mxu0
      %v1210 = vadd.f32 %v674, %v1209
      %v1211 = vpop.f32.mrb[0].mxu0
      %v1212 = vadd.f32 %v674, %v1211
      %1213 = vmatprep.mubr.f32.mxu0 0.0
      %1214 = vmatmul.mubr.f32.gmra.mrb[0].mxu0 %v172
      %v1215 = vpop.f32.mrb[0].mxu0
      %v1216 = vadd.f32 %v679, %v1215
      %v1217 = vpop.f32.mrb[0].mxu0
      %v1218 = vadd.f32 %v679, %v1217
      %1219 = vdwg.mxu0
      %1220 = vmatprep.subr.mxu0 %v188
      %1221 = vmatpush1.msra.mxu0 %v187
      %1222 = vmatprep.subr.mxu0 %v219
      %1223 = vmatpush1.msra.mxu0 %v218
      %1224 = vmatprep.subr.mxu0 %v250
      %1225 = vmatpush1.msra.mxu0 %v249
      %1226 = vmatprep.subr.mxu0 %v281
      %1227 = vmatpush1.msra.mxu0 %v280
      %1228 = vmatprep.subr.mxu0 %v312
      %1229 = vmatpush1.msra.mxu0 %v311
      %1230 = vmatprep.subr.mxu0 %v343
      %1231 = vmatpush1.msra.mxu0 %v342
      %1232 = vmatprep.subr.mxu0 %v374
      %1233 = vmatpush1.msra.mxu0 %v373
      %1234 = vmatprep.subr.mxu0 %v405
      %1235 = vmatpush1.msra.mxu0 %v404
      %1236 = vmatprep.subr.mxu0 %v436
      %1237 = vmatpush1.msra.mxu0 %v435
      %1238 = vmatprep.subr.mxu0 %v467
      %1239 = vmatpush1.msra.mxu0 %v466
      %1240 = vmatprep.subr.mxu0 %v498
      %1241 = vmatpush1.msra.mxu0 %v497
      %1242 = vmatprep.subr.mxu0 %v529
      %1243 = vmatpush1.msra.mxu0 %v528
      %1244 = vmatprep.subr.mxu0 %v560
      %1245 = vmatpush1.msra.mxu0 %v559
      %1246 = vmatprep.subr.mxu0 %v591
      %1247 = vmatpush1.msra.mxu0 %v590
      %1248 = vmatprep.subr.mxu0 %v622
      %1249 = vmatpush1.msra.mxu0 %v621
      %1250 = vmatprep.subr.mxu0 %v653
      %1251 = vmatpush1.msra.mxu0 %v652
      %1252 = vmatprep.subr.mxu0 0.0
      %1253 = vmatpush1.msra.mxu0 0.0
      %1254 = vmatprep.subr.mxu0 0.0
      %1255 = vmatpush1.msra.mxu0 0.0
      %1256 = vmatprep.subr.mxu0 0.0
      %1257 = vmatpush1.msra.mxu0 0.0
      %1258 = vmatprep.subr.mxu0 0.0
      %1259 = vmatpush1.msra.mxu0 0.0
      %1260 = vmatprep.subr.mxu0 0.0
      %1261 = vmatpush1.msra.mxu0 0.0
      %1262 = vmatprep.subr.mxu0 0.0
      %1263 = vmatpush1.msra.mxu0 0.0
      %1264 = vmatprep.subr.mxu0 0.0
      %1265 = vmatpush1.msra.mxu0 0.0
      %1266 = vmatprep.subr.mxu0 0.0
      %1267 = vmatpush1.msra.mxu0 0.0
      %1268 = vmatprep.subr.mxu0 0.0
      %1269 = vmatpush1.msra.mxu0 0.0
      %1270 = vmatprep.subr.mxu0 0.0
      %1271 = vmatpush1.msra.mxu0 0.0
      %1272 = vmatprep.subr.mxu0 0.0
      %1273 = vmatpush1.msra.mxu0 0.0
      %1274 = vmatprep.subr.mxu0 0.0
      %1275 = vmatpush1.msra.mxu0 0.0
      %1276 = vmatprep.subr.mxu0 0.0
      %1277 = vmatpush1.msra.mxu0 0.0
      %1278 = vmatprep.subr.mxu0 0.0
      %1279 = vmatpush1.msra.mxu0 0.0
      %1280 = vmatprep.subr.mxu0 0.0
      %1281 = vmatpush1.msra.mxu0 0.0
      %1282 = vmatprep.subr.mxu0 0.0
      %1283 = vmatpush1.msra.mxu0 0.0
      %1284 = vmatprep.mubr.f32.mxu0 0.0
      %1285 = vmatmul.mubr.f32.gmra.mrb[0].mxu0 %v171
      %v1286 = vpop.f32.mrb[0].mxu0
      %v1287 = vadd.f32 %v674, %v1286
      %v1288 = vpop.f32.mrb[0].mxu0
      %v1289 = vadd.f32 %v674, %v1288
      %1290 = vmatprep.mubr.f32.mxu0 0.0
      %1291 = vmatmul.mubr.f32.gmra.mrb[0].mxu0 %v172
      %v1292 = vpop.f32.mrb[0].mxu0
      %v1293 = vadd.f32 %v679, %v1292
      %v1294 = vpop.f32.mrb[0].mxu0
      %v1295 = vadd.f32 %v679, %v1294
      %1296 = vdwg.mxu0
      %1297 = vmatprep.subr.mxu0 %v190
      %1298 = vmatpush1.msra.mxu0 %v189
      %1299 = vmatprep.subr.mxu0 %v221
      %1300 = vmatpush1.msra.mxu0 %v220
      %1301 = vmatprep.subr.mxu0 %v252
      %1302 = vmatpush1.msra.mxu0 %v251
      %1303 = vmatprep.subr.mxu0 %v283
      %1304 = vmatpush1.msra.mxu0 %v282
      %1305 = vmatprep.subr.mxu0 %v314
      %1306 = vmatpush1.msra.mxu0 %v313
      %1307 = vmatprep.subr.mxu0 %v345
      %1308 = vmatpush1.msra.mxu0 %v344
      %1309 = vmatprep.subr.mxu0 %v376
      %1310 = vmatpush1.msra.mxu0 %v375
      %1311 = vmatprep.subr.mxu0 %v407
      %1312 = vmatpush1.msra.mxu0 %v406
      %1313 = vmatprep.subr.mxu0 %v438
      %1314 = vmatpush1.msra.mxu0 %v437
      %1315 = vmatprep.subr.mxu0 %v469
      %1316 = vmatpush1.msra.mxu0 %v468
      %1317 = vmatprep.subr.mxu0 %v500
      %1318 = vmatpush1.msra.mxu0 %v499
      %1319 = vmatprep.subr.mxu0 %v531
      %1320 = vmatpush1.msra.mxu0 %v530
      %1321 = vmatprep.subr.mxu0 %v562
      %1322 = vmatpush1.msra.mxu0 %v561
      %1323 = vmatprep.subr.mxu0 %v593
      %1324 = vmatpush1.msra.mxu0 %v592
      %1325 = vmatprep.subr.mxu0 %v624
      %1326 = vmatpush1.msra.mxu0 %v623
      %1327 = vmatprep.subr.mxu0 %v655
      %1328 = vmatpush1.msra.mxu0 %v654
      %1329 = vmatprep.subr.mxu0 0.0
      %1330 = vmatpush1.msra.mxu0 0.0
      %1331 = vmatprep.subr.mxu0 0.0
      %1332 = vmatpush1.msra.mxu0 0.0
      %1333 = vmatprep.subr.mxu0 0.0
      %1334 = vmatpush1.msra.mxu0 0.0
      %1335 = vmatprep.subr.mxu0 0.0
      %1336 = vmatpush1.msra.mxu0 0.0
      %1337 = vmatprep.subr.mxu0 0.0
      %1338 = vmatpush1.msra.mxu0 0.0
      %1339 = vmatprep.subr.mxu0 0.0
      %1340 = vmatpush1.msra.mxu0 0.0
      %1341 = vmatprep.subr.mxu0 0.0
      %1342 = vmatpush1.msra.mxu0 0.0
      %1343 = vmatprep.subr.mxu0 0.0
      %1344 = vmatpush1.msra.mxu0 0.0
      %1345 = vmatprep.subr.mxu0 0.0
      %1346 = vmatpush1.msra.mxu0 0.0
      %1347 = vmatprep.subr.mxu0 0.0
      %1348 = vmatpush1.msra.mxu0 0.0
      %1349 = vmatprep.subr.mxu0 0.0
      %1350 = vmatpush1.msra.mxu0 0.0
      %1351 = vmatprep.subr.mxu0 0.0
      %1352 = vmatpush1.msra.mxu0 0.0
      %1353 = vmatprep.subr.mxu0 0.0
      %1354 = vmatpush1.msra.mxu0 0.0
      %1355 = vmatprep.subr.mxu0 0.0
      %1356 = vmatpush1.msra.mxu0 0.0
      %1357 = vmatprep.subr.mxu0 0.0
      %1358 = vmatpush1.msra.mxu0 0.0
      %1359 = vmatprep.subr.mxu0 0.0
      %1360 = vmatpush1.msra.mxu0 0.0
      %1361 = vmatprep.mubr.f32.mxu0 0.0
      %1362 = vmatmul.mubr.f32.gmra.mrb[0].mxu0 %v171
      %v1363 = vpop.f32.mrb[0].mxu0
      %v1364 = vadd.f32 %v674, %v1363
      %v1365 = vpop.f32.mrb[0].mxu0
      %v1366 = vadd.f32 %v674, %v1365
      %1367 = vmatprep.mubr.f32.mxu0 0.0
      %1368 = vmatmul.mubr.f32.gmra.mrb[0].mxu0 %v172
      %v1369 = vpop.f32.mrb[0].mxu0
      %v1370 = vadd.f32 %v679, %v1369
      %v1371 = vpop.f32.mrb[0].mxu0
      %v1372 = vadd.f32 %v679, %v1371
      %1373 = vdwg.mxu0
      %1374 = vmatprep.subr.mxu0 %v192
      %1375 = vmatpush1.msra.mxu0 %v191
      %1376 = vmatprep.subr.mxu0 %v223
      %1377 = vmatpush1.msra.mxu0 %v222
      %1378 = vmatprep.subr.mxu0 %v254
      %1379 = vmatpush1.msra.mxu0 %v253
      %1380 = vmatprep.subr.mxu0 %v285
      %1381 = vmatpush1.msra.mxu0 %v284
      %1382 = vmatprep.subr.mxu0 %v316
      %1383 = vmatpush1.msra.mxu0 %v315
      %1384 = vmatprep.subr.mxu0 %v347
      %1385 = vmatpush1.msra.mxu0 %v346
      %1386 = vmatprep.subr.mxu0 %v378
      %1387 = vmatpush1.msra.mxu0 %v377
      %1388 = vmatprep.subr.mxu0 %v409
      %1389 = vmatpush1.msra.mxu0 %v408
      %1390 = vmatprep.subr.mxu0 %v440
      %1391 = vmatpush1.msra.mxu0 %v439
      %1392 = vmatprep.subr.mxu0 %v471
      %1393 = vmatpush1.msra.mxu0 %v470
      %1394 = vmatprep.subr.mxu0 %v502
      %1395 = vmatpush1.msra.mxu0 %v501
      %1396 = vmatprep.subr.mxu0 %v533
      %1397 = vmatpush1.msra.mxu0 %v532
      %1398 = vmatprep.subr.mxu0 %v564
      %1399 = vmatpush1.msra.mxu0 %v563
      %1400 = vmatprep.subr.mxu0 %v595
      %1401 = vmatpush1.msra.mxu0 %v594
      %1402 = vmatprep.subr.mxu0 %v626
      %1403 = vmatpush1.msra.mxu0 %v625
      %1404 = vmatprep.subr.mxu0 %v657
      %1405 = vmatpush1.msra.mxu0 %v656
      %1406 = vmatprep.subr.mxu0 0.0
      %1407 = vmatpush1.msra.mxu0 0.0
      %1408 = vmatprep.subr.mxu0 0.0
      %1409 = vmatpush1.msra.mxu0 0.0
      %1410 = vmatprep.subr.mxu0 0.0
      %1411 = vmatpush1.msra.mxu0 0.0
      %1412 = vmatprep.subr.mxu0 0.0
      %1413 = vmatpush1.msra.mxu0 0.0
      %1414 = vmatprep.subr.mxu0 0.0
      %1415 = vmatpush1.msra.mxu0 0.0
      %1416 = vmatprep.subr.mxu0 0.0
      %1417 = vmatpush1.msra.mxu0 0.0
      %1418 = vmatprep.subr.mxu0 0.0
      %1419 = vmatpush1.msra.mxu0 0.0
      %1420 = vmatprep.subr.mxu0 0.0
      %1421 = vmatpush1.msra.mxu0 0.0
      %1422 = vmatprep.subr.mxu0 0.0
      %1423 = vmatpush1.msra.mxu0 0.0
      %1424 = vmatprep.subr.mxu0 0.0
      %1425 = vmatpush1.msra.mxu0 0.0
      %1426 = vmatprep.subr.mxu0 0.0
      %1427 = vmatpush1.msra.mxu0 0.0
      %1428 = vmatprep.subr.mxu0 0.0
      %1429 = vmatpush1.msra.mxu0 0.0
      %1430 = vmatprep.subr.mxu0 0.0
      %1431 = vmatpush1.msra.mxu0 0.0
      %1432 = vmatprep.subr.mxu0 0.0
      %1433 = vmatpush1.msra.mxu0 0.0
      %1434 = vmatprep.subr.mxu0 0.0
      %1435 = vmatpush1.msra.mxu0 0.0
      %1436 = vmatprep.subr.mxu0 0.0
      %1437 = vmatpush1.msra.mxu0 0.0
      %1438 = vmatprep.mubr.f32.mxu0 0.0
      %1439 = vmatmul.mubr.f32.gmra.mrb[0].mxu0 %v171
      %v1440 = vpop.f32.mrb[0].mxu0
      %v1441 = vadd.f32 %v674, %v1440
      %v1442 = vpop.f32.mrb[0].mxu0
      %v1443 = vadd.f32 %v674, %v1442
      %1444 = vmatprep.mubr.f32.mxu0 0.0
      %1445 = vmatmul.mubr.f32.gmra.mrb[0].mxu0 %v172
      %v1446 = vpop.f32.mrb[0].mxu0
      %v1447 = vadd.f32 %v679, %v1446
      %v1448 = vpop.f32.mrb[0].mxu0
      %v1449 = vadd.f32 %v679, %v1448
      %1450 = vdwg.mxu0
      %1451 = vmatprep.subr.mxu0 %v194
      %1452 = vmatpush1.msra.mxu0 %v193
      %1453 = vmatprep.subr.mxu0 %v225
      %1454 = vmatpush1.msra.mxu0 %v224
      %1455 = vmatprep.subr.mxu0 %v256
      %1456 = vmatpush1.msra.mxu0 %v255
      %1457 = vmatprep.subr.mxu0 %v287
      %1458 = vmatpush1.msra.mxu0 %v286
      %1459 = vmatprep.subr.mxu0 %v318
      %1460 = vmatpush1.msra.mxu0 %v317
      %1461 = vmatprep.subr.mxu0 %v349
      %1462 = vmatpush1.msra.mxu0 %v348
      %1463 = vmatprep.subr.mxu0 %v380
      %1464 = vmatpush1.msra.mxu0 %v379
      %1465 = vmatprep.subr.mxu0 %v411
      %1466 = vmatpush1.msra.mxu0 %v410
      %1467 = vmatprep.subr.mxu0 %v442
      %1468 = vmatpush1.msra.mxu0 %v441
      %1469 = vmatprep.subr.mxu0 %v473
      %1470 = vmatpush1.msra.mxu0 %v472
      %1471 = vmatprep.subr.mxu0 %v504
      %1472 = vmatpush1.msra.mxu0 %v503
      %1473 = vmatprep.subr.mxu0 %v535
      %1474 = vmatpush1.msra.mxu0 %v534
      %1475 = vmatprep.subr.mxu0 %v566
      %1476 = vmatpush1.msra.mxu0 %v565
      %1477 = vmatprep.subr.mxu0 %v597
      %1478 = vmatpush1.msra.mxu0 %v596
      %1479 = vmatprep.subr.mxu0 %v628
      %1480 = vmatpush1.msra.mxu0 %v627
      %1481 = vmatprep.subr.mxu0 %v659
      %1482 = vmatpush1.msra.mxu0 %v658
      %1483 = vmatprep.subr.mxu0 0.0
      %1484 = vmatpush1.msra.mxu0 0.0
      %1485 = vmatprep.subr.mxu0 0.0
      %1486 = vmatpush1.msra.mxu0 0.0
      %1487 = vmatprep.subr.mxu0 0.0
      %1488 = vmatpush1.msra.mxu0 0.0
      %1489 = vmatprep.subr.mxu0 0.0
      %1490 = vmatpush1.msra.mxu0 0.0
      %1491 = vmatprep.subr.mxu0 0.0
      %1492 = vmatpush1.msra.mxu0 0.0
      %1493 = vmatprep.subr.mxu0 0.0
      %1494 = vmatpush1.msra.mxu0 0.0
      %1495 = vmatprep.subr.mxu0 0.0
      %1496 = vmatpush1.msra.mxu0 0.0
      %1497 = vmatprep.subr.mxu0 0.0
      %1498 = vmatpush1.msra.mxu0 0.0
      %1499 = vmatprep.subr.mxu0 0.0
      %1500 = vmatpush1.msra.mxu0 0.0
      %1501 = vmatprep.subr.mxu0 0.0
      %1502 = vmatpush1.msra.mxu0 0.0
      %1503 = vmatprep.subr.mxu0 0.0
      %1504 = vmatpush1.msra.mxu0 0.0
      %1505 = vmatprep.subr.mxu0 0.0
      %1506 = vmatpush1.msra.mxu0 0.0
      %1507 = vmatprep.subr.mxu0 0.0
      %1508 = vmatpush1.msra.mxu0 0.0
      %1509 = vmatprep.subr.mxu0 0.0
      %1510 = vmatpush1.msra.mxu0 0.0
      %1511 = vmatprep.subr.mxu0 0.0
      %1512 = vmatpush1.msra.mxu0 0.0
      %1513 = vmatprep.subr.mxu0 0.0
      %1514 = vmatpush1.msra.mxu0 0.0
      %1515 = vmatprep.mubr.f32.mxu0 0.0
      %1516 = vmatmul.mubr.f32.gmra.mrb[0].mxu0 %v171
      %v1517 = vpop.f32.mrb[0].mxu0
      %v1518 = vadd.f32 %v674, %v1517
      %v1519 = vpop.f32.mrb[0].mxu0
      %v1520 = vadd.f32 %v674, %v1519
      %1521 = vmatprep.mubr.f32.mxu0 0.0
      %1522 = vmatmul.mubr.f32.gmra.mrb[0].mxu0 %v172
      %v1523 = vpop.f32.mrb[0].mxu0
      %v1524 = vadd.f32 %v679, %v1523
      %v1525 = vpop.f32.mrb[0].mxu0
      %v1526 = vadd.f32 %v679, %v1525
      %1527 = vdwg.mxu0
      %1528 = vmatprep.subr.mxu0 %v196
      %1529 = vmatpush1.msra.mxu0 %v195
      %1530 = vmatprep.subr.mxu0 %v227
      %1531 = vmatpush1.msra.mxu0 %v226
      %1532 = vmatprep.subr.mxu0 %v258
      %1533 = vmatpush1.msra.mxu0 %v257
      %1534 = vmatprep.subr.mxu0 %v289
      %1535 = vmatpush1.msra.mxu0 %v288
      %1536 = vmatprep.subr.mxu0 %v320
      %1537 = vmatpush1.msra.mxu0 %v319
      %1538 = vmatprep.subr.mxu0 %v351
      %1539 = vmatpush1.msra.mxu0 %v350
      %1540 = vmatprep.subr.mxu0 %v382
      %1541 = vmatpush1.msra.mxu0 %v381
      %1542 = vmatprep.subr.mxu0 %v413
      %1543 = vmatpush1.msra.mxu0 %v412
      %1544 = vmatprep.subr.mxu0 %v444
      %1545 = vmatpush1.msra.mxu0 %v443
      %1546 = vmatprep.subr.mxu0 %v475
      %1547 = vmatpush1.msra.mxu0 %v474
      %1548 = vmatprep.subr.mxu0 %v506
      %1549 = vmatpush1.msra.mxu0 %v505
      %1550 = vmatprep.subr.mxu0 %v537
      %1551 = vmatpush1.msra.mxu0 %v536
      %1552 = vmatprep.subr.mxu0 %v568
      %1553 = vmatpush1.msra.mxu0 %v567
      %1554 = vmatprep.subr.mxu0 %v599
      %1555 = vmatpush1.msra.mxu0 %v598
      %1556 = vmatprep.subr.mxu0 %v630
      %1557 = vmatpush1.msra.mxu0 %v629
      %1558 = vmatprep.subr.mxu0 %v661
      %1559 = vmatpush1.msra.mxu0 %v660
      %1560 = vmatprep.subr.mxu0 0.0
      %1561 = vmatpush1.msra.mxu0 0.0
      %1562 = vmatprep.subr.mxu0 0.0
      %1563 = vmatpush1.msra.mxu0 0.0
      %1564 = vmatprep.subr.mxu0 0.0
      %1565 = vmatpush1.msra.mxu0 0.0
      %1566 = vmatprep.subr.mxu0 0.0
      %1567 = vmatpush1.msra.mxu0 0.0
      %1568 = vmatprep.subr.mxu0 0.0
      %1569 = vmatpush1.msra.mxu0 0.0
      %1570 = vmatprep.subr.mxu0 0.0
      %1571 = vmatpush1.msra.mxu0 0.0
      %1572 = vmatprep.subr.mxu0 0.0
      %1573 = vmatpush1.msra.mxu0 0.0
      %1574 = vmatprep.subr.mxu0 0.0
      %1575 = vmatpush1.msra.mxu0 0.0
      %1576 = vmatprep.subr.mxu0 0.0
      %1577 = vmatpush1.msra.mxu0 0.0
      %1578 = vmatprep.subr.mxu0 0.0
      %1579 = vmatpush1.msra.mxu0 0.0
      %1580 = vmatprep.subr.mxu0 0.0
      %1581 = vmatpush1.msra.mxu0 0.0
      %1582 = vmatprep.subr.mxu0 0.0
      %1583 = vmatpush1.msra.mxu0 0.0
      %1584 = vmatprep.subr.mxu0 0.0
      %1585 = vmatpush1.msra.mxu0 0.0
      %1586 = vmatprep.subr.mxu0 0.0
      %1587 = vmatpush1.msra.mxu0 0.0
      %1588 = vmatprep.subr.mxu0 0.0
      %1589 = vmatpush1.msra.mxu0 0.0
      %1590 = vmatprep.subr.mxu0 0.0
      %1591 = vmatpush1.msra.mxu0 0.0
      %1592 = vmatprep.mubr.f32.mxu0 0.0
      %1593 = vmatmul.mubr.f32.gmra.mrb[0].mxu0 %v171
      %v1594 = vpop.f32.mrb[0].mxu0
      %v1595 = vadd.f32 %v674, %v1594
      %v1596 = vpop.f32.mrb[0].mxu0
      %v1597 = vadd.f32 %v674, %v1596
      %1598 = vmatprep.mubr.f32.mxu0 0.0
      %1599 = vmatmul.mubr.f32.gmra.mrb[0].mxu0 %v172
      %v1600 = vpop.f32.mrb[0].mxu0
      %v1601 = vadd.f32 %v679, %v1600
      %v1602 = vpop.f32.mrb[0].mxu0
      %v1603 = vadd.f32 %v679, %v1602
      %1604 = vdwg.mxu0
      %1605 = vmatprep.subr.mxu0 %v198
      %1606 = vmatpush1.msra.mxu0 %v197
      %1607 = vmatprep.subr.mxu0 %v229
      %1608 = vmatpush1.msra.mxu0 %v228
      %1609 = vmatprep.subr.mxu0 %v260
      %1610 = vmatpush1.msra.mxu0 %v259
      %1611 = vmatprep.subr.mxu0 %v291
      %1612 = vmatpush1.msra.mxu0 %v290
      %1613 = vmatprep.subr.mxu0 %v322
      %1614 = vmatpush1.msra.mxu0 %v321
      %1615 = vmatprep.subr.mxu0 %v353
      %1616 = vmatpush1.msra.mxu0 %v352
      %1617 = vmatprep.subr.mxu0 %v384
      %1618 = vmatpush1.msra.mxu0 %v383
      %1619 = vmatprep.subr.mxu0 %v415
      %1620 = vmatpush1.msra.mxu0 %v414
      %1621 = vmatprep.subr.mxu0 %v446
      %1622 = vmatpush1.msra.mxu0 %v445
      %1623 = vmatprep.subr.mxu0 %v477
      %1624 = vmatpush1.msra.mxu0 %v476
      %1625 = vmatprep.subr.mxu0 %v508
      %1626 = vmatpush1.msra.mxu0 %v507
      %1627 = vmatprep.subr.mxu0 %v539
      %1628 = vmatpush1.msra.mxu0 %v538
      %1629 = vmatprep.subr.mxu0 %v570
      %1630 = vmatpush1.msra.mxu0 %v569
      %1631 = vmatprep.subr.mxu0 %v601
      %1632 = vmatpush1.msra.mxu0 %v600
      %1633 = vmatprep.subr.mxu0 %v632
      %1634 = vmatpush1.msra.mxu0 %v631
      %1635 = vmatprep.subr.mxu0 %v663
      %1636 = vmatpush1.msra.mxu0 %v662
      %1637 = vmatprep.subr.mxu0 0.0
      %1638 = vmatpush1.msra.mxu0 0.0
      %1639 = vmatprep.subr.mxu0 0.0
      %1640 = vmatpush1.msra.mxu0 0.0
      %1641 = vmatprep.subr.mxu0 0.0
      %1642 = vmatpush1.msra.mxu0 0.0
      %1643 = vmatprep.subr.mxu0 0.0
      %1644 = vmatpush1.msra.mxu0 0.0
      %1645 = vmatprep.subr.mxu0 0.0
      %1646 = vmatpush1.msra.mxu0 0.0
      %1647 = vmatprep.subr.mxu0 0.0
      %1648 = vmatpush1.msra.mxu0 0.0
      %1649 = vmatprep.subr.mxu0 0.0
      %1650 = vmatpush1.msra.mxu0 0.0
      %1651 = vmatprep.subr.mxu0 0.0
      %1652 = vmatpush1.msra.mxu0 0.0
      %1653 = vmatprep.subr.mxu0 0.0
      %1654 = vmatpush1.msra.mxu0 0.0
      %1655 = vmatprep.subr.mxu0 0.0
      %1656 = vmatpush1.msra.mxu0 0.0
      %1657 = vmatprep.subr.mxu0 0.0
      %1658 = vmatpush1.msra.mxu0 0.0
      %1659 = vmatprep.subr.mxu0 0.0
      %1660 = vmatpush1.msra.mxu0 0.0
      %1661 = vmatprep.subr.mxu0 0.0
      %1662 = vmatpush1.msra.mxu0 0.0
      %1663 = vmatprep.subr.mxu0 0.0
      %1664 = vmatpush1.msra.mxu0 0.0
      %1665 = vmatprep.subr.mxu0 0.0
      %1666 = vmatpush1.msra.mxu0 0.0
      %1667 = vmatprep.subr.mxu0 0.0
      %1668 = vmatpush1.msra.mxu0 0.0
      %1669 = vmatprep.mubr.f32.mxu0 0.0
      %1670 = vmatmul.mubr.f32.gmra.mrb[0].mxu0 %v171
      %v1671 = vpop.f32.mrb[0].mxu0
      %v1672 = vadd.f32 %v674, %v1671
      %v1673 = vpop.f32.mrb[0].mxu0
      %v1674 = vadd.f32 %v674, %v1673
      %1675 = vmatprep.mubr.f32.mxu0 0.0
      %1676 = vmatmul.mubr.f32.gmra.mrb[0].mxu0 %v172
      %v1677 = vpop.f32.mrb[0].mxu0
      %v1678 = vadd.f32 %v679, %v1677
      %v1679 = vpop.f32.mrb[0].mxu0
      %v1680 = vadd.f32 %v679, %v1679
      %1681 = vdwg.mxu0
      %1682 = vmatprep.subr.mxu0 %v200
      %1683 = vmatpush1.msra.mxu0 %v199
      %1684 = vmatprep.subr.mxu0 %v231
      %1685 = vmatpush1.msra.mxu0 %v230
      %1686 = vmatprep.subr.mxu0 %v262
      %1687 = vmatpush1.msra.mxu0 %v261
      %1688 = vmatprep.subr.mxu0 %v293
      %1689 = vmatpush1.msra.mxu0 %v292
      %1690 = vmatprep.subr.mxu0 %v324
      %1691 = vmatpush1.msra.mxu0 %v323
      %1692 = vmatprep.subr.mxu0 %v355
      %1693 = vmatpush1.msra.mxu0 %v354
      %1694 = vmatprep.subr.mxu0 %v386
      %1695 = vmatpush1.msra.mxu0 %v385
      %1696 = vmatprep.subr.mxu0 %v417
      %1697 = vmatpush1.msra.mxu0 %v416
      %1698 = vmatprep.subr.mxu0 %v448
      %1699 = vmatpush1.msra.mxu0 %v447
      %1700 = vmatprep.subr.mxu0 %v479
      %1701 = vmatpush1.msra.mxu0 %v478
      %1702 = vmatprep.subr.mxu0 %v510
      %1703 = vmatpush1.msra.mxu0 %v509
      %1704 = vmatprep.subr.mxu0 %v541
      %1705 = vmatpush1.msra.mxu0 %v540
      %1706 = vmatprep.subr.mxu0 %v572
      %1707 = vmatpush1.msra.mxu0 %v571
      %1708 = vmatprep.subr.mxu0 %v603
      %1709 = vmatpush1.msra.mxu0 %v602
      %1710 = vmatprep.subr.mxu0 %v634
      %1711 = vmatpush1.msra.mxu0 %v633
      %1712 = vmatprep.subr.mxu0 %v665
      %1713 = vmatpush1.msra.mxu0 %v664
      %1714 = vmatprep.subr.mxu0 0.0
      %1715 = vmatpush1.msra.mxu0 0.0
      %1716 = vmatprep.subr.mxu0 0.0
      %1717 = vmatpush1.msra.mxu0 0.0
      %1718 = vmatprep.subr.mxu0 0.0
      %1719 = vmatpush1.msra.mxu0 0.0
      %1720 = vmatprep.subr.mxu0 0.0
      %1721 = vmatpush1.msra.mxu0 0.0
      %1722 = vmatprep.subr.mxu0 0.0
      %1723 = vmatpush1.msra.mxu0 0.0
      %1724 = vmatprep.subr.mxu0 0.0
      %1725 = vmatpush1.msra.mxu0 0.0
      %1726 = vmatprep.subr.mxu0 0.0
      %1727 = vmatpush1.msra.mxu0 0.0
      %1728 = vmatprep.subr.mxu0 0.0
      %1729 = vmatpush1.msra.mxu0 0.0
      %1730 = vmatprep.subr.mxu0 0.0
      %1731 = vmatpush1.msra.mxu0 0.0
      %1732 = vmatprep.subr.mxu0 0.0
      %1733 = vmatpush1.msra.mxu0 0.0
      %1734 = vmatprep.subr.mxu0 0.0
      %1735 = vmatpush1.msra.mxu0 0.0
      %1736 = vmatprep.subr.mxu0 0.0
      %1737 = vmatpush1.msra.mxu0 0.0
      %1738 = vmatprep.subr.mxu0 0.0
      %1739 = vmatpush1.msra.mxu0 0.0
      %1740 = vmatprep.subr.mxu0 0.0
      %1741 = vmatpush1.msra.mxu0 0.0
      %1742 = vmatprep.subr.mxu0 0.0
      %1743 = vmatpush1.msra.mxu0 0.0
      %1744 = vmatprep.subr.mxu0 0.0
      %1745 = vmatpush1.msra.mxu0 0.0
      %1746 = vmatprep.mubr.f32.mxu0 0.0
      %1747 = vmatmul.mubr.f32.gmra.mrb[0].mxu0 %v171
      %v1748 = vpop.f32.mrb[0].mxu0
      %v1749 = vadd.f32 %v674, %v1748
      %v1750 = vpop.f32.mrb[0].mxu0
      %v1751 = vadd.f32 %v674, %v1750
      %1752 = vmatprep.mubr.f32.mxu0 0.0
      %1753 = vmatmul.mubr.f32.gmra.mrb[0].mxu0 %v172
      %v1754 = vpop.f32.mrb[0].mxu0
      %v1755 = vadd.f32 %v679, %v1754
      %v1756 = vpop.f32.mrb[0].mxu0
      %v1757 = vadd.f32 %v679, %v1756
      %1758 = vdwg.mxu0
      %1759 = vmatprep.subr.mxu0 %v202
      %1760 = vmatpush1.msra.mxu0 %v201
      %1761 = vmatprep.subr.mxu0 %v233
      %1762 = vmatpush1.msra.mxu0 %v232
      %1763 = vmatprep.subr.mxu0 %v264
      %1764 = vmatpush1.msra.mxu0 %v263
      %1765 = vmatprep.subr.mxu0 %v295
      %1766 = vmatpush1.msra.mxu0 %v294
      %1767 = vmatprep.subr.mxu0 %v326
      %1768 = vmatpush1.msra.mxu0 %v325
      %1769 = vmatprep.subr.mxu0 %v357
      %1770 = vmatpush1.msra.mxu0 %v356
      %1771 = vmatprep.subr.mxu0 %v388
      %1772 = vmatpush1.msra.mxu0 %v387
      %1773 = vmatprep.subr.mxu0 %v419
      %1774 = vmatpush1.msra.mxu0 %v418
      %1775 = vmatprep.subr.mxu0 %v450
      %1776 = vmatpush1.msra.mxu0 %v449
      %1777 = vmatprep.subr.mxu0 %v481
      %1778 = vmatpush1.msra.mxu0 %v480
      %1779 = vmatprep.subr.mxu0 %v512
      %1780 = vmatpush1.msra.mxu0 %v511
      %1781 = vmatprep.subr.mxu0 %v543
      %1782 = vmatpush1.msra.mxu0 %v542
      %1783 = vmatprep.subr.mxu0 %v574
      %1784 = vmatpush1.msra.mxu0 %v573
      %1785 = vmatprep.subr.mxu0 %v605
      %1786 = vmatpush1.msra.mxu0 %v604
      %1787 = vmatprep.subr.mxu0 %v636
      %1788 = vmatpush1.msra.mxu0 %v635
      %1789 = vmatprep.subr.mxu0 %v667
      %1790 = vmatpush1.msra.mxu0 %v666
      %1791 = vmatprep.subr.mxu0 0.0
      %1792 = vmatpush1.msra.mxu0 0.0
      %1793 = vmatprep.subr.mxu0 0.0
      %1794 = vmatpush1.msra.mxu0 0.0
      %1795 = vmatprep.subr.mxu0 0.0
      %1796 = vmatpush1.msra.mxu0 0.0
      %1797 = vmatprep.subr.mxu0 0.0
      %1798 = vmatpush1.msra.mxu0 0.0
      %1799 = vmatprep.subr.mxu0 0.0
      %1800 = vmatpush1.msra.mxu0 0.0
      %1801 = vmatprep.subr.mxu0 0.0
      %1802 = vmatpush1.msra.mxu0 0.0
      %1803 = vmatprep.subr.mxu0 0.0
      %1804 = vmatpush1.msra.mxu0 0.0
      %1805 = vmatprep.subr.mxu0 0.0
      %1806 = vmatpush1.msra.mxu0 0.0
      %1807 = vmatprep.subr.mxu0 0.0
      %1808 = vmatpush1.msra.mxu0 0.0
      %1809 = vmatprep.subr.mxu0 0.0
      %1810 = vmatpush1.msra.mxu0 0.0
      %1811 = vmatprep.subr.mxu0 0.0
      %1812 = vmatpush1.msra.mxu0 0.0
      %1813 = vmatprep.subr.mxu0 0.0
      %1814 = vmatpush1.msra.mxu0 0.0
      %1815 = vmatprep.subr.mxu0 0.0
      %1816 = vmatpush1.msra.mxu0 0.0
      %1817 = vmatprep.subr.mxu0 0.0
      %1818 = vmatpush1.msra.mxu0 0.0
      %1819 = vmatprep.subr.mxu0 0.0
      %1820 = vmatpush1.msra.mxu0 0.0
      %1821 = vmatprep.subr.mxu0 0.0
      %1822 = vmatpush1.msra.mxu0 0.0
      %1823 = vmatprep.mubr.f32.mxu0 0.0
      %1824 = vmatmul.mubr.f32.gmra.mrb[0].mxu0 %v171
      %v1825 = vpop.f32.mrb[0].mxu0
      %v1826 = vadd.f32 %v674, %v1825
      %v1827 = vpop.f32.mrb[0].mxu0
      %v1828 = vadd.f32 %v674, %v1827
      %1829 = vmatprep.mubr.f32.mxu0 0.0
      %1830 = vmatmul.mubr.f32.gmra.mrb[0].mxu0 %v172
      %v1831 = vpop.f32.mrb[0].mxu0
      %v1832 = vadd.f32 %v679, %v1831
      %v1833 = vpop.f32.mrb[0].mxu0
      %v1834 = vadd.f32 %v679, %v1833
      %1835 = vdwg.mxu0
      %1836 = vmatprep.subr.mxu0 0.0
      %1837 = vmatpush1.msra.mxu0 %v203
      %1838 = vmatprep.subr.mxu0 0.0
      %1839 = vmatpush1.msra.mxu0 %v234
      %1840 = vmatprep.subr.mxu0 0.0
      %1841 = vmatpush1.msra.mxu0 %v265
      %1842 = vmatprep.subr.mxu0 0.0
      %1843 = vmatpush1.msra.mxu0 %v296
      %1844 = vmatprep.subr.mxu0 0.0
      %1845 = vmatpush1.msra.mxu0 %v327
      %1846 = vmatprep.subr.mxu0 0.0
      %1847 = vmatpush1.msra.mxu0 %v358
      %1848 = vmatprep.subr.mxu0 0.0
      %1849 = vmatpush1.msra.mxu0 %v389
      %1850 = vmatprep.subr.mxu0 0.0
      %1851 = vmatpush1.msra.mxu0 %v420
      %1852 = vmatprep.subr.mxu0 0.0
      %1853 = vmatpush1.msra.mxu0 %v451
      %1854 = vmatprep.subr.mxu0 0.0
      %1855 = vmatpush1.msra.mxu0 %v482
      %1856 = vmatprep.subr.mxu0 0.0
      %1857 = vmatpush1.msra.mxu0 %v513
      %1858 = vmatprep.subr.mxu0 0.0
      %1859 = vmatpush1.msra.mxu0 %v544
      %1860 = vmatprep.subr.mxu0 0.0
      %1861 = vmatpush1.msra.mxu0 %v575
      %1862 = vmatprep.subr.mxu0 0.0
      %1863 = vmatpush1.msra.mxu0 %v606
      %1864 = vmatprep.subr.mxu0 0.0
      %1865 = vmatpush1.msra.mxu0 %v637
      %1866 = vmatprep.subr.mxu0 0.0
      %1867 = vmatpush1.msra.mxu0 %v668
      %1868 = vmatprep.subr.mxu0 0.0
      %1869 = vmatpush1.msra.mxu0 0.0
      %1870 = vmatprep.subr.mxu0 0.0
      %1871 = vmatpush1.msra.mxu0 0.0
      %1872 = vmatprep.subr.mxu0 0.0
      %1873 = vmatpush1.msra.mxu0 0.0
      %1874 = vmatprep.subr.mxu0 0.0
      %1875 = vmatpush1.msra.mxu0 0.0
      %1876 = vmatprep.subr.mxu0 0.0
      %1877 = vmatpush1.msra.mxu0 0.0
      %1878 = vmatprep.subr.mxu0 0.0
      %1879 = vmatpush1.msra.mxu0 0.0
      %1880 = vmatprep.subr.mxu0 0.0
      %1881 = vmatpush1.msra.mxu0 0.0
      %1882 = vmatprep.subr.mxu0 0.0
      %1883 = vmatpush1.msra.mxu0 0.0
      %1884 = vmatprep.subr.mxu0 0.0
      %1885 = vmatpush1.msra.mxu0 0.0
      %1886 = vmatprep.subr.mxu0 0.0
      %1887 = vmatpush1.msra.mxu0 0.0
      %1888 = vmatprep.subr.mxu0 0.0
      %1889 = vmatpush1.msra.mxu0 0.0
      %1890 = vmatprep.subr.mxu0 0.0
      %1891 = vmatpush1.msra.mxu0 0.0
      %1892 = vmatprep.subr.mxu0 0.0
      %1893 = vmatpush1.msra.mxu0 0.0
      %1894 = vmatprep.subr.mxu0 0.0
      %1895 = vmatpush1.msra.mxu0 0.0
      %1896 = vmatprep.subr.mxu0 0.0
      %1897 = vmatpush1.msra.mxu0 0.0
      %1898 = vmatprep.subr.mxu0 0.0
      %1899 = vmatpush1.msra.mxu0 0.0
      %1900 = vmatprep.mubr.f32.mxu0 0.0
      %1901 = vmatmul.mubr.f32.gmra.mrb[0].mxu0 %v171
      %v1902 = vpop.f32.mrb[0].mxu0
      %v1903 = vadd.f32 %v674, %v1902
      %v1904 = vpop.f32.mrb[0].mxu0
      %1905 = vmatprep.mubr.f32.mxu0 0.0
      %1906 = vmatmul.mubr.f32.gmra.mrb[0].mxu0 %v172
      %v1907 = vpop.f32.mrb[0].mxu0
      %v1908 = vadd.f32 %v679, %v1907
      %v1909 = vpop.f32.mrb[0].mxu0
      %1910 = vdwg.mxu0
      %1911 = vst [vmem:[%s170] sm:$0xff] %v748
      %1912 = vst [vmem:[%s170 + $0x8] sm:$0xff] %v750
      %1913 = vst [vmem:[%s170 + $0x10] sm:$0xff] %v825
      %1914 = vst [vmem:[%s170 + $0x18] sm:$0xff] %v827
      %1915 = vst [vmem:[%s170 + $0x20] sm:$0xff] %v902
      %1916 = vst [vmem:[%s170 + $0x28] sm:$0xff] %v904
      %1917 = vst [vmem:[%s170 + $0x30] sm:$0xff] %v979
      %1918 = vst [vmem:[%s170 + $0x38] sm:$0xff] %v981
      %1919 = vst [vmem:[%s170 + $0x40] sm:$0xff] %v1056
      %1920 = vst [vmem:[%s170 + $0x48] sm:$0xff] %v1058
      %1921 = vst [vmem:[%s170 + $0x50] sm:$0xff] %v1133
      %1922 = vst [vmem:[%s170 + $0x58] sm:$0xff] %v1135
      %1923 = vst [vmem:[%s170 + $0x60] sm:$0xff] %v1210
      %1924 = vst [vmem:[%s170 + $0x68] sm:$0xff] %v1212
      %1925 = vst [vmem:[%s170 + $0x70] sm:$0xff] %v1287
      %1926 = vst [vmem:[%s170 + $0x78] sm:$0xff] %v1289
      %1927 = vst [vmem:[%s170 + $0x80] sm:$0xff] %v1364
      %1928 = vst [vmem:[%s170 + $0x88] sm:$0xff] %v1366
      %1929 = vst [vmem:[%s170 + $0x90] sm:$0xff] %v1441
      %1930 = vst [vmem:[%s170 + $0x98] sm:$0xff] %v1443
      %1931 = vst [vmem:[%s170 + $0xa0] sm:$0xff] %v1518
      %1932 = vst [vmem:[%s170 + $0xa8] sm:$0xff] %v1520
      %1933 = vst [vmem:[%s170 + $0xb0] sm:$0xff] %v1595
      %1934 = vst [vmem:[%s170 + $0xb8] sm:$0xff] %v1597
      %1935 = vst [vmem:[%s170 + $0xc0] sm:$0xff] %v1672
      %1936 = vst [vmem:[%s170 + $0xc8] sm:$0xff] %v1674
      %1937 = vst [vmem:[%s170 + $0xd0] sm:$0xff] %v1749
      %1938 = vst [vmem:[%s170 + $0xd8] sm:$0xff] %v1751
      %1939 = vst [vmem:[%s170 + $0xe0] sm:$0xff] %v1826
      %1940 = vst [vmem:[%s170 + $0xe8] sm:$0xff] %v1828
      %1941 = vst [vmem:[%s170 + $0xf0] sm:$0xff] %v1903
      %1942 = vst [vmem:[%s170 + $0xf8] sm:$0xf] %v754
      %1943 = vst [vmem:[%s170 + $0x100] sm:$0xf] %v756
      %1944 = vst [vmem:[%s170 + $0x108] sm:$0xf] %v831
      %1945 = vst [vmem:[%s170 + $0x110] sm:$0xf] %v833
      %1946 = vst [vmem:[%s170 + $0x118] sm:$0xf] %v908
      %1947 = vst [vmem:[%s170 + $0x120] sm:$0xf] %v910
      %1948 = vst [vmem:[%s170 + $0x128] sm:$0xf] %v985
      %1949 = vst [vmem:[%s170 + $0x130] sm:$0xf] %v987
      %1950 = vst [vmem:[%s170 + $0x138] sm:$0xf] %v1062
      %1951 = vst [vmem:[%s170 + $0x140] sm:$0xf] %v1064
      %1952 = vst [vmem:[%s170 + $0x148] sm:$0xf] %v1139
      %1953 = vst [vmem:[%s170 + $0x150] sm:$0xf] %v1141
      %1954 = vst [vmem:[%s170 + $0x158] sm:$0xf] %v1216
      %1955 = vst [vmem:[%s170 + $0x160] sm:$0xf] %v1218
      %1956 = vst [vmem:[%s170 + $0x168] sm:$0xf] %v1293
      %1957 = vst [vmem:[%s170 + $0x170] sm:$0xf] %v1295
      %1958 = vst [vmem:[%s170 + $0x178] sm:$0xf] %v1370
      %1959 = vst [vmem:[%s170 + $0x180] sm:$0xf] %v1372
      %1960 = vst [vmem:[%s170 + $0x188] sm:$0xf] %v1447
      %1961 = vst [vmem:[%s170 + $0x190] sm:$0xf] %v1449
      %1962 = vst [vmem:[%s170 + $0x198] sm:$0xf] %v1524
      %1963 = vst [vmem:[%s170 + $0x1a0] sm:$0xf] %v1526
      %1964 = vst [vmem:[%s170 + $0x1a8] sm:$0xf] %v1601
      %1965 = vst [vmem:[%s170 + $0x1b0] sm:$0xf] %v1603
      %1966 = vst [vmem:[%s170 + $0x1b8] sm:$0xf] %v1678
      %1967 = vst [vmem:[%s170 + $0x1c0] sm:$0xf] %v1680
      %1968 = vst [vmem:[%s170 + $0x1c8] sm:$0xf] %v1755
      %1969 = vst [vmem:[%s170 + $0x1d0] sm:$0xf] %v1757
      %1970 = vst [vmem:[%s170 + $0x1d8] sm:$0xf] %v1832
      %1971 = vst [vmem:[%s170 + $0x1e0] sm:$0xf] %v1834
      %1972 = vst [vmem:[%s170 + $0x1e8] sm:$0xf] %v1908
      %p1973 = scmp.lt.s32.totalorder %s14, 1
      %s1974 = scalar_select %p1973, %s14, 1
      %s1975 = smul.addr %s1974, 62
      %s1976 = smul.addr %s1975, 8
      %s1977 = scalar_lea.vmem %s3, %s1976
      // Predicated region
      $region33: #{decoder_forward.9} parent=31 // pred_check
        %p1978 = pneg %p100
      $region34: #{decoder_forward.9} parent=31 // pred_check_branch
        %1980 = sbr.rel (%p1978) target = $region36
      $region35: #{decoder_forward.9} parent=31 // pred_region
        _
      $region36: #{decoder_forward.9} parent=31 // pred_fallthru
        _
    $region32: #{decoder_forward.9} parent=5 // pred_fallthru
      _
    %p1981 = scmp.le.s32.totalorder 2, %s9
    // Predicated region
    $region37: #{decoder_forward.9} parent=5 // pred_check
      %p1982 = pneg %p1981
    $region38: #{decoder_forward.9} parent=5 // pred_check_branch
      %1984 = sbr.rel (%p1982) target = $region40
    $region39: #{decoder_forward.9} parent=5 // pred_region
      %s1985 = ssub.s32 %s9, 2
      // Predicated region
      $region41: #{decoder_forward.9} parent=39 // pred_check
        %p1986 = pneg %p106
      $region42: #{decoder_forward.9} parent=39 // pred_check_branch
        %1988 = sbr.rel (%p1986) target = $region44
      $region43: #{decoder_forward.9} parent=39 // pred_region
        %p1989 = scmp.lt.s32.totalorder %s15, 1
        %s1990 = scalar_select %p1989, %s15, 1
        %s1991 = smul.addr %s1990, 62
        %s1992 = smul.addr %s1991, 8
        %s1993 = scalar_lea.vmem %s3, %s1992
      $region44: #{decoder_forward.9} parent=39 // pred_fallthru
        _
    $region40: #{decoder_forward.9} parent=5 // pred_fallthru
      _
  $region6: #{decoder_forward.9} parent=0 // loop_footer
    %s13 = sadd.s32 1, %s9
  $region7: #{decoder_forward.9} parent=0 // loop_footer_branch
    %8 = sbr.rel target = $region3
  $region8: #{decoder_forward.9} parent=0 // loop_exit
    _

</llo_original>
